<compile_context>
chip_gen: v7x
topology: tpu7x:2x2x1
jax: 0.10.0
libtpu: 0.0.40
codegen_flags: <defaults>
</compile_context>

<pallas_src>
import jax
import jax.numpy as jnp
from jax.experimental import pallas as pl
from jax.experimental.pallas import tpu as pltpu

EPS = 1e-5                        # nn.BatchNorm2d default eps
BF16 = jnp.bfloat16
VMEM_LIMIT = 48 * 1024 * 1024     # safe on v7x (64 MiB/TC); tiles sized well below this
TILE_BUDGET = 10 * 1024 * 1024    # per-step block budget used by the tile pickers


# ----------------------------- small helpers --------------------------------

def _divisor_at_most(n, target):
    t = max(1, min(n, int(target)))
    while n % t:
        t -= 1
    return t


def _pick_row_tile(m, target):
    """Largest divisor of m that is <= target and a multiple of 8 (or m itself)."""
    if m <= target:
        return m
    t = min(m, int(target))
    while t >= 8:
        if m % t == 0 and t % 8 == 0:
            return t
        t -= 1
    return m


def _cparams(dims):
    return pltpu.CompilerParams(dimension_semantics=dims,
                                vmem_limit_bytes=VMEM_LIMIT)


# ----------------------------- 3x3 conv + BN stats ---------------------------

def _pick_th(h, w, cins, tco):
    """Largest row-tile height TH dividing h (<=64) whose blocks fit TILE_BUDGET."""
    best = 1
    for th in range(1, min(h, 64) + 1):
        if h % th:
            continue
        in_b = sum((th + 2) * (w + 2) * c * 2 for c in cins)       # bf16 inputs
        w_b = 9 * sum(cins) * tco * 2                              # bf16 weights
        out_b = th * w * tco * 2                                   # bf16 z block
        acc_b = 3 * th * (w + 2) * tco * 4                         # f32 kx partials
        if 2 * (in_b + out_b + w_b) + acc_b <= TILE_BUDGET:
            best = th
    return best


def _prep_halo_flat(x, th):
    """Zero-pad H/W by 1 and present each TH-row tile (with 2 halo rows) as a flat
    ((TH+2)*(W+2), Cin) slab.  When TH == H this is a free reshape of the padded array."""
    n, h, w, cin = x.shape
    nt_h = h // th
    xp = jnp.pad(x.astype(BF16), ((0, 0), (1, 1), (1, 1), (0, 0)))
    if nt_h == 1:
        return xp.reshape(n, (h + 2) * (w + 2), cin)
    # Fallback for very tall images: halo re-tile (duplicates 2 rows per tile).
    row_idx = jnp.arange(nt_h)[:, None] * th + jnp.arange(th + 2)[None, :]
    return xp[:, row_idx].reshape(n * nt_h, (th + 2) * (w + 2), cin)


def _make_conv3x3_kernel(th, w_out, n_in):
    """3x3 conv (pad=1, no bias) on a flat halo'd row tile + per-tile BN partial stats.

    refs: n_in x x_ref (1, (TH+2)*(W+2), Cin_i) bf16
          n_in x w_ref (9, Cin_i, TCO)          bf16   (k = ky*3 + kx)
          z_ref        (1, TH, W, TCO)          bf16   pre-BN conv output
          s_ref        (1, 2, TCO)              f32    per-tile [sum, sumsq]
    """
    wp = w_out + 2

    def kernel(*refs):
        x_refs = refs[:n_in]
        w_refs = refs[n_in:2 * n_in]
        z_ref = refs[2 * n_in]
        s_ref = refs[2 * n_in + 1]
        tco = z_ref.shape[-1]

        # 9 (or 18) big matmuls: M = TH*(W+2), K = Cin, N = TCO.  Only the 3 kx-partials
        # are live f32 accumulators; the kx column shift is applied at store time.
        s_parts = [jnp.zeros((th * wp, tco), jnp.float32) for _ in range(3)]
        for x_ref, w_ref in zip(x_refs, w_refs):
            for ky in range(3):
                a = x_ref[0, ky * wp:(ky + th) * wp, :]            # (TH*(W+2), Cin) bf16
                for kx in range(3):
                    s_parts[kx] = s_parts[kx] + jnp.dot(
                        a, w_ref[ky * 3 + kx],
                        preferred_element_type=jnp.float32)

        ssum = jnp.zeros((1, tco), jnp.float32)
        ssq = jnp.zeros((1, tco), jnp.float32)
        for r in range(th):
            b = r * wp
            row = (s_parts[0][b:b + w_out, :]
                   + s_parts[1][b + 1:b + 1 + w_out, :]
                   + s_parts[2][b + 2:b + 2 + w_out, :])           # (W, TCO) f32
            z_ref[0, r] = row.astype(z_ref.dtype)
            ssum = ssum + jnp.sum(row, axis=0, keepdims=True)
            ssq = ssq + jnp.sum(row * row, axis=0, keepdims=True)
        s_ref[0, 0:1, :] = ssum
        s_ref[0, 1:2, :] = ssq

    return kernel


def _bn_relu_kernel(z_ref, sc_ref, sh_ref, o_ref):
    y = z_ref[...].astype(jnp.float32) * sc_ref[...] + sh_ref[...]
    o_ref[...] = jnp.maximum(y, 0.0).astype(o_ref.dtype)


def _bn_relu(z, scale, shift):
    """Scale/shift + ReLU on a lane-dense flat 2-D view (C<128 regrouped to 128 lanes)."""
    shape = z.shape
    c = shape[-1]
    m = z.size // c
    g = 1
    if c < 128 and 128 % c == 0 and m % (128 // c) == 0:
        g = 128 // c
    cl = g * c
    m2 = m // g
    z2 = z.reshape(m2, cl)                                        # free contiguity view
    sc = jnp.tile(scale.astype(jnp.float32).reshape(1, c), (1, g))
    sh = jnp.tile(shift.astype(jnp.float32).reshape(1, c), (1, g))
    tm = _pick_row_tile(m2, max(8, (2 * 1024 * 1024) // (cl * 2)))
    out = pl.pallas_call(
        _bn_relu_kernel,
        out_shape=jax.ShapeDtypeStruct((m2, cl), BF16),
        grid=(m2 // tm,),
        in_specs=[pl.BlockSpec((tm, cl), lambda i: (i, 0)),
                  pl.BlockSpec((1, cl), lambda i: (0, 0)),
                  pl.BlockSpec((1, cl), lambda i: (0, 0))],
        out_specs=pl.BlockSpec((tm, cl), lambda i: (i, 0)),
        compiler_params=_cparams(("parallel",)),
    )(z2, sc, sh)
    return out.reshape(shape)


def _conv3x3_bn_relu(xs, ws, gamma, beta):
    """Conv2d(3x3, pad=1, bias=False) over the channel-concat of xs, + BatchNorm2d
    (batch statistics) + ReLU.  NHWC, one or two inputs (fused skip concat)."""
    n, h, w, _ = xs[0].shape
    cout = ws[0].shape[-1]
    cins = [x.shape[-1] for x in xs]
    tco = min(cout, 256)
    n_co = cout // tco
    th = _pick_th(h, w, cins, tco)
    nt = n * (h // th)
    wp = w + 2
    ell = (th + 2) * wp

    x_flat = [_prep_halo_flat(x, th) for x in xs]
    w_flat = [wk.reshape(9, ci, cout).astype(BF16) for wk, ci in zip(ws, cins)]

    kernel = _make_conv3x3_kernel(th, w, len(xs))
    in_specs = ([pl.BlockSpec((1, ell, ci), lambda j, i: (i, 0, 0)) for ci in cins]
                + [pl.BlockSpec((9, ci, tco), lambda j, i: (0, 0, j)) for ci in cins])

    flops = 2 * nt * th * wp * 9 * sum(cins) * cout
    bytes_acc = int(n_co * sum(nt * ell * ci * 2 for ci in cins)
                    + 9 * sum(cins) * cout * 2
                    + nt * th * w * cout * 2 + nt * 2 * cout * 4)

    z, stats = pl.pallas_call(
        kernel,
        out_shape=(jax.ShapeDtypeStruct((nt, th, w, cout), BF16),
                   jax.ShapeDtypeStruct((nt, 2, cout), jnp.float32)),
        grid=(n_co, nt),
        in_specs=in_specs,
        out_specs=(pl.BlockSpec((1, th, w, tco), lambda j, i: (i, 0, 0, j)),
                   pl.BlockSpec((1, 2, tco), lambda j, i: (i, 0, j))),
        compiler_params=_cparams(("parallel", "parallel")),
        cost_estimate=pl.CostEstimate(flops=flops, transcendentals=0,
                                      bytes_accessed=bytes_acc),
    )(*x_flat, *w_flat)

    # BatchNorm parameters from global batch statistics (tiny, plain JAX).
    st = jnp.sum(stats, axis=0)                                    # (2, Cout)
    cnt = jnp.float32(n * h * w)
    mean = st[0] / cnt
    var = jnp.maximum(st[1] / cnt - mean * mean, 0.0)              # biased variance
    inv = jax.lax.rsqrt(var + EPS)
    scale = gamma * inv
    shift = beta - mean * scale

    act = _bn_relu(z, scale, shift)                                # (NT, TH, W, Cout) bf16
    return act.reshape(n, h, w, cout)


def conv3x3_bn_relu(x, w, gamma, beta):
    return _conv3x3_bn_relu([x], [w], gamma, beta)


def conv3x3_bn_relu_pair(xa, xb, wa, wb, gamma, beta):
    return _conv3x3_bn_relu([xa, xb], [wa, wb], gamma, beta)


# ----------------------------- maxpool 2x2 -----------------------------------

def _maxpool_kernel(x_ref, o_ref):
    # x: (1, THp, 2, Wh, 2*C) ; o: (1, THp, Wh, C)
    c = o_ref.shape[-1]
    top = x_ref[0, :, 0, :, :]                  # rows 2h
    bot = x_ref[0, :, 1, :, :]                  # rows 2h+1
    m = jnp.maximum(top, bot)                   # (THp, Wh, 2C): [even cols | odd cols]
    o_ref[0] = jnp.maximum(m[:, :, :c], m[:, :, c:])


def maxpool2x2(x):
    n, h, w, c = x.shape
    hh, wh = h // 2, w // 2
    xr = x.reshape(n, hh, 2, wh, 2 * c)         # free view of the NHWC layout
    row_bytes = 2 * wh * 2 * c * 2
    thp = _divisor_at_most(hh, max(1, (2 * 1024 * 1024) // row_bytes))
    return pl.pallas_call(
        _maxpool_kernel,
        out_shape=jax.ShapeDtypeStruct((n, hh, wh, c), x.dtype),
        grid=(n, hh // thp),
        in_specs=[pl.BlockSpec((1, thp, 2, wh, 2 * c), lambda b, t: (b, t, 0, 0, 0))],
        out_specs=pl.BlockSpec((1, thp, wh, c), lambda b, t: (b, t, 0, 0)),
        compiler_params=_cparams(("parallel", "parallel")),
    )(xr)


# ----------------------------- ConvTranspose 2x2 / s2 ------------------------

def _make_convt_kernel(tmh, w):
    def kernel(x_ref, w_ref, b_ref, o_ref):
        # x: (TMH*W, Cin) bf16 ; w: (2, Cin, 2*Cout) bf16 ; b: (1, 2*Cout) f32
        # o: (TMH, 2, W, 2*Cout) bf16  -- interleaved output layout (free final view)
        x = x_ref[...]
        b = b_ref[...]
        for di in range(2):
            z = jnp.dot(x, w_ref[di], preferred_element_type=jnp.float32) + b
            zc = z.astype(o_ref.dtype)
            for r in range(tmh):
                o_ref[r, di] = zc[r * w:(r + 1) * w, :]
    return kernel


def conv_transpose2x2(x, wt, bias):
    """ConvTranspose2d(Cin, Cout, kernel=2, stride=2). wt: (4, Cin, Cout), k = di*2+dj."""
    n, h, w, cin = x.shape
    cout = wt.shape[-1]
    mh = n * h
    x2 = x.reshape(mh * w, cin).astype(BF16)
    w2 = (wt.reshape(2, 2, cin, cout).transpose(0, 2, 1, 3)
          .reshape(2, cin, 2 * cout).astype(BF16))
    b2 = jnp.tile(bias.astype(jnp.float32), 2).reshape(1, 2 * cout)

    row_bytes = w * (cin + 4 * cout) * 2
    tmh = _divisor_at_most(mh, min(256, max(1, (4 * 1024 * 1024) // row_bytes)))
    if (tmh * w) % 8 and tmh != mh:
        tmh = mh                               # keep the (8,128) block rule satisfied

    out = pl.pallas_call(
        _make_convt_kernel(tmh, w),
        out_shape=jax.ShapeDtypeStruct((mh, 2, w, 2 * cout), BF16),
        grid=(mh // tmh,),
        in_specs=[pl.BlockSpec((tmh * w, cin), lambda i: (i, 0)),
                  pl.BlockSpec((2, cin, 2 * cout), lambda i: (0, 0, 0)),
                  pl.BlockSpec((1, 2 * cout), lambda i: (0, 0))],
        out_specs=pl.BlockSpec((tmh, 2, w, 2 * cout), lambda i: (i, 0, 0, 0)),
        compiler_params=_cparams(("parallel",)),
        cost_estimate=pl.CostEstimate(flops=2 * mh * w * cin * 4 * cout,
                                      transcendentals=0,
                                      bytes_accessed=mh * w * (cin + 4 * cout) * 2),
    )(x2, w2, b2)
    # (N, H, 2, W, 2, Cout) -> (N, 2H, 2W, Cout) is a free contiguity reshape.
    return out.reshape(n, 2 * h, 2 * w, cout)


# ----------------------------- OutConv fusion ---------------------------------

def _avg_matmul_bias_kernel(x_ref, y_ref, w_ref, b_ref, o_ref):
    avg = (x_ref[...].astype(jnp.float32) + y_ref[...].astype(jnp.float32)) * 0.5
    acc = jnp.dot(avg.astype(BF16), w_ref[...], preferred_element_type=jnp.float32)
    o_ref[...] = acc + b_ref[...]


def outconv_fused(xf, yf, w, bias):
    """0.5*OutConv(xf) + 0.5*OutConv(yf) == OutConv(0.5*(xf+yf)) (shared 1x1 conv)."""
    n, h, w_sp, c = xf.shape
    ncls = w.shape[-1]
    ncp = ((ncls + 127) // 128) * 128           # lane-dense padded class dimension
    wp_ = jnp.zeros((c, ncp), jnp.float32).at[:, :ncls].set(w).astype(BF16)
    bp = jnp.zeros((1, ncp), jnp.float32).at[:, :ncls].set(bias.reshape(1, ncls))
    m = n * h * w_sp
    tm = _pick_row_tile(m, 2048)
    out = pl.pallas_call(
        _avg_matmul_bias_kernel,
        out_shape=jax.ShapeDtypeStruct((m, ncp), jnp.float32),
        grid=(m // tm,),
        in_specs=[pl.BlockSpec((tm, c), lambda i: (i, 0)),
                  pl.BlockSpec((tm, c), lambda i: (i, 0)),
                  pl.BlockSpec((c, ncp), lambda i: (0, 0)),
                  pl.BlockSpec((1, ncp), lambda i: (0, 0))],
        out_specs=pl.BlockSpec((tm, ncp), lambda i: (i, 0)),
        compiler_params=_cparams(("parallel",)),
    )(xf.reshape(m, c).astype(BF16), yf.reshape(m, c).astype(BF16), wp_, bp)
    return out[:, :ncls].reshape(n, h, w_sp, ncls)


# ----------------------------- parameters ------------------------------------

def _init_conv(key, cin, cout, k=3):
    fan_in = cin * k * k
    return jax.random.normal(key, (k, k, cin, cout), jnp.float32) / jnp.sqrt(fan_in)


def _double_conv_params(key, cin, cout):
    k1, k2 = jax.random.split(key)
    return dict(
        w1=_init_conv(k1, cin, cout),
        g1=jnp.ones((cout,), jnp.float32), b1=jnp.zeros((cout,), jnp.float32),
        w2=_init_conv(k2, cout, cout),
        g2=jnp.ones((cout,), jnp.float32), b2=jnp.zeros((cout,), jnp.float32),
    )


def _up_params(key, cin, cout):
    k1, k2, k3 = jax.random.split(key, 3)
    wt = jax.random.normal(k1, (4, cin, cin // 2), jnp.float32) / jnp.sqrt(4.0 * cin)
    bt = 0.01 * jax.random.normal(k2, (cin // 2,), jnp.float32)
    return dict(wt=wt, bt=bt, conv=_double_conv_params(k3, cin, cout))


def make_params(n_channels_rgb, n_channels_gvf, n_classes, key):
    ks = jax.random.split(key, 12)
    return dict(
        inc_rgb=_double_conv_params(ks[0], n_channels_rgb, 64),
        inc_gvf=_double_conv_params(ks[1], n_channels_gvf, 64),
        down1=_double_conv_params(ks[2], 64, 128),
        down2=_double_conv_params(ks[3], 128, 256),
        down3=_double_conv_params(ks[4], 256, 512),
        down4=_double_conv_params(ks[5], 512, 1024),
        up1=_up_params(ks[6], 1024, 512),
        up2=_up_params(ks[7], 512, 256),
        up3=_up_params(ks[8], 256, 128),
        up4=_up_params(ks[9], 128, 64),
        outc_w=jax.random.normal(ks[10], (64, n_classes), jnp.float32) / 8.0,
        outc_b=0.01 * jax.random.normal(ks[11], (n_classes,), jnp.float32),
    )


# ----------------------------- forward pass -----------------------------------

def double_conv(x, p):
    x = conv3x3_bn_relu(x, p['w1'], p['g1'], p['b1'])
    x = conv3x3_bn_relu(x, p['w2'], p['g2'], p['b2'])
    return x


def down(x, p):
    return double_conv(maxpool2x2(x), p)


def up(x_deep, x_skip, p):
    xu = conv_transpose2x2(x_deep, p['wt'], p['bt'])
    # TODO(synk): F.pad for odd spatial sizes skipped -- exact for even / power-of-2 H, W.
    c = p['conv']
    ca = x_skip.shape[-1]
    # Fused skip concat: conv1 reads x_skip and xu directly with split weights
    # (channel order matches torch.cat([x2, x1], dim=1): skip first).
    h = conv3x3_bn_relu_pair(x_skip, xu,
                             c['w1'][:, :, :ca, :], c['w1'][:, :, ca:, :],
                             c['g1'], c['b1'])
    return conv3x3_bn_relu(h, c['w2'], c['g2'], c['b2'])


def unet_branch(x_nhwc, inc_p, params):
    x1 = double_conv(x_nhwc, inc_p)
    x2 = down(x1, params['down1'])
    x3 = down(x2, params['down2'])
    x4 = down(x3, params['down3'])
    x5 = down(x4, params['down4'])
    x = up(x5, x4, params['up1'])
    x = up(x, x3, params['up2'])
    x = up(x, x2, params['up3'])
    x = up(x, x1, params['up4'])
    return x


def two_unet_fusion(x_nchw, y_nchw, params):
    x = jnp.transpose(x_nchw, (0, 2, 3, 1)).astype(BF16)   # NCHW -> NHWC bf16
    y = jnp.transpose(y_nchw, (0, 2, 3, 1)).astype(BF16)
    xf = unet_branch(x, params['inc_rgb'], params)
    yf = unet_branch(y, params['inc_gvf'], params)
    logits = outconv_fused(xf, yf, params['outc_w'], params['outc_b'])
    return jnp.transpose(logits, (0, 3, 1, 2))              # NHWC -> NCHW, f32


# ----------------------------- driver ------------------------------------------

if __name__ == "__main__":
    n_channels_rgb, n_channels_gvf, n_classes = 3, 2, 3
    N, H, W = 2, 16, 16

    key = jax.random.PRNGKey(0)
    kx, ky, kp = jax.random.split(key, 3)
    x = jax.random.normal(kx, (N, n_channels_rgb, H, W), jnp.float32)
    y = jax.random.normal(ky, (N, n_channels_gvf, H, W), jnp.float32)
    params = make_params(n_channels_rgb, n_channels_gvf, n_classes, kp)

    fwd = jax.jit(two_unet_fusion)
    logits = fwd(x, y, params)
    jax.block_until_ready(logits)

    assert logits.shape == (N, n_classes, H, W), logits.shape
    assert bool(jnp.all(jnp.isfinite(logits)))
    print("KERNEL_OK")
</pallas_src>

<mosaic_0001>
module attributes {stable_mosaic.version = 11 : i64} {
  func.func @kernel(%arg0: i32, %arg1: i32, %arg2: memref<1x324x2xbf16, #tpu.memory_space<vmem>>, %arg3: memref<9x2x64xbf16, #tpu.memory_space<vmem>>, %arg4: memref<1x16x16x64xbf16, #tpu.memory_space<vmem>>, %arg5: memref<1x2x64xf32, #tpu.memory_space<vmem>>) attributes {dimension_semantics = [#tpu.dimension_semantics<parallel>, #tpu.dimension_semantics<parallel>], iteration_bounds = array<i64: 1, 2>, scalar_prefetch = 0 : i64, scratch_operands = 0 : i64, tpu.core_type = #tpu.core_type<tc>, window_params = [{transform_indices = @transform_0, window_bounds = array<i64: 1, 324, 2>}, {transform_indices = @transform_1, window_bounds = array<i64: 9, 2, 64>}, {transform_indices = @transform_2, window_bounds = array<i64: 1, 16, 16, 64>}, {transform_indices = @transform_3, window_bounds = array<i64: 1, 2, 64>}]} {
    %cst = arith.constant 0.000000e+00 : f32
    %0 = vector.broadcast %cst : f32 to vector<288x64xf32>
    %cst_0 = arith.constant 0.000000e+00 : f32
    %1 = vector.broadcast %cst_0 : f32 to vector<288x64xf32>
    %cst_1 = arith.constant 0.000000e+00 : f32
    %2 = vector.broadcast %cst_1 : f32 to vector<288x64xf32>
    %c0 = arith.constant 0 : index
    %c0_2 = arith.constant 0 : index
    %c0_3 = arith.constant 0 : index
    %3 = vector.load %arg2[%c0, %c0_2, %c0_3] : memref<1x324x2xbf16, #tpu.memory_space<vmem>>, vector<1x288x2xbf16>
    %4 = vector.shape_cast %3 : vector<1x288x2xbf16> to vector<288x2xbf16>
    %c0_4 = arith.constant 0 : index
    %c0_5 = arith.constant 0 : index
    %c0_6 = arith.constant 0 : index
    %5 = vector.load %arg3[%c0_4, %c0_5, %c0_6] : memref<9x2x64xbf16, #tpu.memory_space<vmem>>, vector<1x2x64xbf16>
    %6 = vector.shape_cast %5 : vector<1x2x64xbf16> to vector<2x64xbf16>
    %cst_7 = arith.constant dense<0.000000e+00> : vector<288x64xf32>
    %7 = tpu.matmul %4, %6, %cst_7 {dimension_numbers = #tpu.dot_dimension_numbers<[1], [0], [0], [1], [0, 0, 1, 1], [], []>} : vector<288x2xbf16>, vector<2x64xbf16>, vector<288x64xf32> -> vector<288x64xf32>
    %8 = arith.addf %0, %7 : vector<288x64xf32>
    %c1 = arith.constant 1 : index
    %c0_8 = arith.constant 0 : index
    %c0_9 = arith.constant 0 : index
    %9 = vector.load %arg3[%c1, %c0_8, %c0_9] : memref<9x2x64xbf16, #tpu.memory_space<vmem>>, vector<1x2x64xbf16>
    %10 = vector.shape_cast %9 : vector<1x2x64xbf16> to vector<2x64xbf16>
    %cst_10 = arith.constant dense<0.000000e+00> : vector<288x64xf32>
    %11 = tpu.matmul %4, %10, %cst_10 {dimension_numbers = #tpu.dot_dimension_numbers<[1], [0], [0], [1], [0, 0, 1, 1], [], []>} : vector<288x2xbf16>, vector<2x64xbf16>, vector<288x64xf32> -> vector<288x64xf32>
    %12 = arith.addf %1, %11 : vector<288x64xf32>
    %c2 = arith.constant 2 : index
    %c0_11 = arith.constant 0 : index
    %c0_12 = arith.constant 0 : index
    %13 = vector.load %arg3[%c2, %c0_11, %c0_12] : memref<9x2x64xbf16, #tpu.memory_space<vmem>>, vector<1x2x64xbf16>
    %14 = vector.shape_cast %13 : vector<1x2x64xbf16> to vector<2x64xbf16>
    %cst_13 = arith.constant dense<0.000000e+00> : vector<288x64xf32>
    %15 = tpu.matmul %4, %14, %cst_13 {dimension_numbers = #tpu.dot_dimension_numbers<[1], [0], [0], [1], [0, 0, 1, 1], [], []>} : vector<288x2xbf16>, vector<2x64xbf16>, vector<288x64xf32> -> vector<288x64xf32>
    %16 = arith.addf %2, %15 : vector<288x64xf32>
    %c0_14 = arith.constant 0 : index
    %c18 = arith.constant 18 : index
    %c0_15 = arith.constant 0 : index
    %17 = vector.load %arg2[%c0_14, %c18, %c0_15] : memref<1x324x2xbf16, #tpu.memory_space<vmem>>, vector<1x288x2xbf16>
    %18 = vector.shape_cast %17 : vector<1x288x2xbf16> to vector<288x2xbf16>
    %c3 = arith.constant 3 : index
    %c0_16 = arith.constant 0 : index
    %c0_17 = arith.constant 0 : index
    %19 = vector.load %arg3[%c3, %c0_16, %c0_17] : memref<9x2x64xbf16, #tpu.memory_space<vmem>>, vector<1x2x64xbf16>
    %20 = vector.shape_cast %19 : vector<1x2x64xbf16> to vector<2x64xbf16>
    %cst_18 = arith.constant dense<0.000000e+00> : vector<288x64xf32>
    %21 = tpu.matmul %18, %20, %cst_18 {dimension_numbers = #tpu.dot_dimension_numbers<[1], [0], [0], [1], [0, 0, 1, 1], [], []>} : vector<288x2xbf16>, vector<2x64xbf16>, vector<288x64xf32> -> vector<288x64xf32>
    %22 = arith.addf %8, %21 : vector<288x64xf32>
    %c4 = arith.constant 4 : index
    %c0_19 = arith.constant 0 : index
    %c0_20 = arith.constant 0 : index
    %23 = vector.load %arg3[%c4, %c0_19, %c0_20] : memref<9x2x64xbf16, #tpu.memory_space<vmem>>, vector<1x2x64xbf16>
    %24 = vector.shape_cast %23 : vector<1x2x64xbf16> to vector<2x64xbf16>
    %cst_21 = arith.constant dense<0.000000e+00> : vector<288x64xf32>
    %25 = tpu.matmul %18, %24, %cst_21 {dimension_numbers = #tpu.dot_dimension_numbers<[1], [0], [0], [1], [0, 0, 1, 1], [], []>} : vector<288x2xbf16>, vector<2x64xbf16>, vector<288x64xf32> -> vector<288x64xf32>
    %26 = arith.addf %12, %25 : vector<288x64xf32>
    %c5 = arith.constant 5 : index
    %c0_22 = arith.constant 0 : index
    %c0_23 = arith.constant 0 : index
    %27 = vector.load %arg3[%c5, %c0_22, %c0_23] : memref<9x2x64xbf16, #tpu.memory_space<vmem>>, vector<1x2x64xbf16>
    %28 = vector.shape_cast %27 : vector<1x2x64xbf16> to vector<2x64xbf16>
    %cst_24 = arith.constant dense<0.000000e+00> : vector<288x64xf32>
    %29 = tpu.matmul %18, %28, %cst_24 {dimension_numbers = #tpu.dot_dimension_numbers<[1], [0], [0], [1], [0, 0, 1, 1], [], []>} : vector<288x2xbf16>, vector<2x64xbf16>, vector<288x64xf32> -> vector<288x64xf32>
    %30 = arith.addf %16, %29 : vector<288x64xf32>
    %c0_25 = arith.constant 0 : index
    %c36 = arith.constant 36 : index
    %c0_26 = arith.constant 0 : index
    %31 = vector.load %arg2[%c0_25, %c36, %c0_26] : memref<1x324x2xbf16, #tpu.memory_space<vmem>>, vector<1x288x2xbf16>
    %32 = vector.shape_cast %31 : vector<1x288x2xbf16> to vector<288x2xbf16>
    %c6 = arith.constant 6 : index
    %c0_27 = arith.constant 0 : index
    %c0_28 = arith.constant 0 : index
    %33 = vector.load %arg3[%c6, %c0_27, %c0_28] : memref<9x2x64xbf16, #tpu.memory_space<vmem>>, vector<1x2x64xbf16>
    %34 = vector.shape_cast %33 : vector<1x2x64xbf16> to vector<2x64xbf16>
    %cst_29 = arith.constant dense<0.000000e+00> : vector<288x64xf32>
    %35 = tpu.matmul %32, %34, %cst_29 {dimension_numbers = #tpu.dot_dimension_numbers<[1], [0], [0], [1], [0, 0, 1, 1], [], []>} : vector<288x2xbf16>, vector<2x64xbf16>, vector<288x64xf32> -> vector<288x64xf32>
    %36 = arith.addf %22, %35 : vector<288x64xf32>
    %c7 = arith.constant 7 : index
    %c0_30 = arith.constant 0 : index
    %c0_31 = arith.constant 0 : index
    %37 = vector.load %arg3[%c7, %c0_30, %c0_31] : memref<9x2x64xbf16, #tpu.memory_space<vmem>>, vector<1x2x64xbf16>
    %38 = vector.shape_cast %37 : vector<1x2x64xbf16> to vector<2x64xbf16>
    %cst_32 = arith.constant dense<0.000000e+00> : vector<288x64xf32>
    %39 = tpu.matmul %32, %38, %cst_32 {dimension_numbers = #tpu.dot_dimension_numbers<[1], [0], [0], [1], [0, 0, 1, 1], [], []>} : vector<288x2xbf16>, vector<2x64xbf16>, vector<288x64xf32> -> vector<288x64xf32>
    %40 = arith.addf %26, %39 : vector<288x64xf32>
    %c8 = arith.constant 8 : index
    %c0_33 = arith.constant 0 : index
    %c0_34 = arith.constant 0 : index
    %41 = vector.load %arg3[%c8, %c0_33, %c0_34] : memref<9x2x64xbf16, #tpu.memory_space<vmem>>, vector<1x2x64xbf16>
    %42 = vector.shape_cast %41 : vector<1x2x64xbf16> to vector<2x64xbf16>
    %cst_35 = arith.constant dense<0.000000e+00> : vector<288x64xf32>
    %43 = tpu.matmul %32, %42, %cst_35 {dimension_numbers = #tpu.dot_dimension_numbers<[1], [0], [0], [1], [0, 0, 1, 1], [], []>} : vector<288x2xbf16>, vector<2x64xbf16>, vector<288x64xf32> -> vector<288x64xf32>
    %44 = arith.addf %30, %43 : vector<288x64xf32>
    %cst_36 = arith.constant 0.000000e+00 : f32
    %45 = vector.broadcast %cst_36 : f32 to vector<1x64xf32>
    %cst_37 = arith.constant 0.000000e+00 : f32
    %46 = vector.broadcast %cst_37 : f32 to vector<1x64xf32>
    %47 = vector.extract_strided_slice %36 {offsets = [0, 0], sizes = [16, 64], strides = [1, 1]} : vector<288x64xf32> to vector<16x64xf32>
    %48 = vector.extract_strided_slice %40 {offsets = [1, 0], sizes = [16, 64], strides = [1, 1]} : vector<288x64xf32> to vector<16x64xf32>
    %49 = arith.addf %47, %48 : vector<16x64xf32>
    %50 = vector.extract_strided_slice %44 {offsets = [2, 0], sizes = [16, 64], strides = [1, 1]} : vector<288x64xf32> to vector<16x64xf32>
    %51 = arith.addf %49, %50 : vector<16x64xf32>
    %52 = arith.truncf %51 : vector<16x64xf32> to vector<16x64xbf16>
    %c0_38 = arith.constant 0 : index
    %c0_39 = arith.constant 0 : index
    %c0_40 = arith.constant 0 : index
    %c0_41 = arith.constant 0 : index
    %53 = vector.load %arg4[%c0_38, %c0_39, %c0_40, %c0_41] : memref<1x16x16x64xbf16, #tpu.memory_space<vmem>>, vector<1x1x16x64xbf16>
    %54 = vector.shape_cast %53 : vector<1x1x16x64xbf16> to vector<16x64xbf16>
    %55 = vector.shape_cast %52 : vector<16x64xbf16> to vector<1x1x16x64xbf16>
    tpu.vector_store %arg4[%c0_38, %c0_39, %c0_40, %c0_41], %55 {strides = array<i32>} : memref<1x16x16x64xbf16, #tpu.memory_space<vmem>>, vector<1x1x16x64xbf16>,
    %cst_42 = arith.constant dense<0.000000e+00> : vector<64xf32>
    %56 = vector.multi_reduction <add>, %51, %cst_42 [0] : vector<16x64xf32> to vector<64xf32>
    %57 = vector.shape_cast %56 : vector<64xf32> to vector<1x64xf32>
    %58 = arith.addf %45, %57 : vector<1x64xf32>
    %59 = arith.mulf %51, %51 : vector<16x64xf32>
    %cst_43 = arith.constant dense<0.000000e+00> : vector<64xf32>
    %60 = vector.multi_reduction <add>, %59, %cst_43 [0] : vector<16x64xf32> to vector<64xf32>
    %61 = vector.shape_cast %60 : vector<64xf32> to vector<1x64xf32>
    %62 = arith.addf %46, %61 : vector<1x64xf32>
    %63 = vector.extract_strided_slice %36 {offsets = [18, 0], sizes = [16, 64], strides = [1, 1]} : vector<288x64xf32> to vector<16x64xf32>
    %64 = vector.extract_strided_slice %40 {offsets = [19, 0], sizes = [16, 64], strides = [1, 1]} : vector<288x64xf32> to vector<16x64xf32>
    %65 = arith.addf %63, %64 : vector<16x64xf32>
    %66 = vector.extract_strided_slice %44 {offsets = [20, 0], sizes = [16, 64], strides = [1, 1]} : vector<288x64xf32> to vector<16x64xf32>
    %67 = arith.addf %65, %66 : vector<16x64xf32>
    %68 = arith.truncf %67 : vector<16x64xf32> to vector<16x64xbf16>
    %c0_44 = arith.constant 0 : index
    %c1_45 = arith.constant 1 : index
    %c0_46 = arith.constant 0 : index
    %c0_47 = arith.constant 0 : index
    %69 = vector.load %arg4[%c0_44, %c1_45, %c0_46, %c0_47] : memref<1x16x16x64xbf16, #tpu.memory_space<vmem>>, vector<1x1x16x64xbf16>
    %70 = vector.shape_cast %69 : vector<1x1x16x64xbf16> to vector<16x64xbf16>
    %71 = vector.shape_cast %68 : vector<16x64xbf16> to vector<1x1x16x64xbf16>
    tpu.vector_store %arg4[%c0_44, %c1_45, %c0_46, %c0_47], %71 {strides = array<i32>} : memref<1x16x16x64xbf16, #tpu.memory_space<vmem>>, vector<1x1x16x64xbf16>,
    %cst_48 = arith.constant dense<0.000000e+00> : vector<64xf32>
    %72 = vector.multi_reduction <add>, %67, %cst_48 [0] : vector<16x64xf32> to vector<64xf32>
    %73 = vector.shape_cast %72 : vector<64xf32> to vector<1x64xf32>
    %74 = arith.addf %58, %73 : vector<1x64xf32>
    %75 = arith.mulf %67, %67 : vector<16x64xf32>
    %cst_49 = arith.constant dense<0.000000e+00> : vector<64xf32>
    %76 = vector.multi_reduction <add>, %75, %cst_49 [0] : vector<16x64xf32> to vector<64xf32>
    %77 = vector.shape_cast %76 : vector<64xf32> to vector<1x64xf32>
    %78 = arith.addf %62, %77 : vector<1x64xf32>
    %79 = vector.extract_strided_slice %36 {offsets = [36, 0], sizes = [16, 64], strides = [1, 1]} : vector<288x64xf32> to vector<16x64xf32>
    %80 = vector.extract_strided_slice %40 {offsets = [37, 0], sizes = [16, 64], strides = [1, 1]} : vector<288x64xf32> to vector<16x64xf32>
    %81 = arith.addf %79, %80 : vector<16x64xf32>
    %82 = vector.extract_strided_slice %44 {offsets = [38, 0], sizes = [16, 64], strides = [1, 1]} : vector<288x64xf32> to vector<16x64xf32>
    %83 = arith.addf %81, %82 : vector<16x64xf32>
    %84 = arith.truncf %83 : vector<16x64xf32> to vector<16x64xbf16>
    %c0_50 = arith.constant 0 : index
    %c2_51 = arith.constant 2 : index
    %c0_52 = arith.constant 0 : index
    %c0_53 = arith.constant 0 : index
    %85 = vector.load %arg4[%c0_50, %c2_51, %c0_52, %c0_53] : memref<1x16x16x64xbf16, #tpu.memory_space<vmem>>, vector<1x1x16x64xbf16>
    %86 = vector.shape_cast %85 : vector<1x1x16x64xbf16> to vector<16x64xbf16>
    %87 = vector.shape_cast %84 : vector<16x64xbf16> to vector<1x1x16x64xbf16>
    tpu.vector_store %arg4[%c0_50, %c2_51, %c0_52, %c0_53], %87 {strides = array<i32>} : memref<1x16x16x64xbf16, #tpu.memory_space<vmem>>, vector<1x1x16x64xbf16>,
    %cst_54 = arith.constant dense<0.000000e+00> : vector<64xf32>
    %88 = vector.multi_reduction <add>, %83, %cst_54 [0] : vector<16x64xf32> to vector<64xf32>
    %89 = vector.shape_cast %88 : vector<64xf32> to vector<1x64xf32>
    %90 = arith.addf %74, %89 : vector<1x64xf32>
    %91 = arith.mulf %83, %83 : vector<16x64xf32>
    %cst_55 = arith.constant dense<0.000000e+00> : vector<64xf32>
    %92 = vector.multi_reduction <add>, %91, %cst_55 [0] : vector<16x64xf32> to vector<64xf32>
    %93 = vector.shape_cast %92 : vector<64xf32> to vector<1x64xf32>
    %94 = arith.addf %78, %93 : vector<1x64xf32>
    %95 = vector.extract_strided_slice %36 {offsets = [54, 0], sizes = [16, 64], strides = [1, 1]} : vector<288x64xf32> to vector<16x64xf32>
    %96 = vector.extract_strided_slice %40 {offsets = [55, 0], sizes = [16, 64], strides = [1, 1]} : vector<288x64xf32> to vector<16x64xf32>
    %97 = arith.addf %95, %96 : vector<16x64xf32>
    %98 = vector.extract_strided_slice %44 {offsets = [56, 0], sizes = [16, 64], strides = [1, 1]} : vector<288x64xf32> to vector<16x64xf32>
    %99 = arith.addf %97, %98 : vector<16x64xf32>
    %100 = arith.truncf %99 : vector<16x64xf32> to vector<16x64xbf16>
    %c0_56 = arith.constant 0 : index
    %c3_57 = arith.constant 3 : index
    %c0_58 = arith.constant 0 : index
    %c0_59 = arith.constant 0 : index
    %101 = vector.load %arg4[%c0_56, %c3_57, %c0_58, %c0_59] : memref<1x16x16x64xbf16, #tpu.memory_space<vmem>>, vector<1x1x16x64xbf16>
    %102 = vector.shape_cast %101 : vector<1x1x16x64xbf16> to vector<16x64xbf16>
    %103 = vector.shape_cast %100 : vector<16x64xbf16> to vector<1x1x16x64xbf16>
    tpu.vector_store %arg4[%c0_56, %c3_57, %c0_58, %c0_59], %103 {strides = array<i32>} : memref<1x16x16x64xbf16, #tpu.memory_space<vmem>>, vector<1x1x16x64xbf16>,
    %cst_60 = arith.constant dense<0.000000e+00> : vector<64xf32>
    %104 = vector.multi_reduction <add>, %99, %cst_60 [0] : vector<16x64xf32> to vector<64xf32>
    %105 = vector.shape_cast %104 : vector<64xf32> to vector<1x64xf32>
    %106 = arith.addf %90, %105 : vector<1x64xf32>
    %107 = arith.mulf %99, %99 : vector<16x64xf32>
    %cst_61 = arith.constant dense<0.000000e+00> : vector<64xf32>
    %108 = vector.multi_reduction <add>, %107, %cst_61 [0] : vector<16x64xf32> to vector<64xf32>
    %109 = vector.shape_cast %108 : vector<64xf32> to vector<1x64xf32>
    %110 = arith.addf %94, %109 : vector<1x64xf32>
    %111 = vector.extract_strided_slice %36 {offsets = [72, 0], sizes = [16, 64], strides = [1, 1]} : vector<288x64xf32> to vector<16x64xf32>
    %112 = vector.extract_strided_slice %40 {offsets = [73, 0], sizes = [16, 64], strides = [1, 1]} : vector<288x64xf32> to vector<16x64xf32>
    %113 = arith.addf %111, %112 : vector<16x64xf32>
    %114 = vector.extract_strided_slice %44 {offsets = [74, 0], sizes = [16, 64], strides = [1, 1]} : vector<288x64xf32> to vector<16x64xf32>
    %115 = arith.addf %113, %114 : vector<16x64xf32>
    %116 = arith.truncf %115 : vector<16x64xf32> to vector<16x64xbf16>
    %c0_62 = arith.constant 0 : index
    %c4_63 = arith.constant 4 : index
    %c0_64 = arith.constant 0 : index
    %c0_65 = arith.constant 0 : index
    %117 = vector.load %arg4[%c0_62, %c4_63, %c0_64, %c0_65] : memref<1x16x16x64xbf16, #tpu.memory_space<vmem>>, vector<1x1x16x64xbf16>
    %118 = vector.shape_cast %117 : vector<1x1x16x64xbf16> to vector<16x64xbf16>
    %119 = vector.shape_cast %116 : vector<16x64xbf16> to vector<1x1x16x64xbf16>
    tpu.vector_store %arg4[%c0_62, %c4_63, %c0_64, %c0_65], %119 {strides = array<i32>} : memref<1x16x16x64xbf16, #tpu.memory_space<vmem>>, vector<1x1x16x64xbf16>,
    %cst_66 = arith.constant dense<0.000000e+00> : vector<64xf32>
    %120 = vector.multi_reduction <add>, %115, %cst_66 [0] : vector<16x64xf32> to vector<64xf32>
    %121 = vector.shape_cast %120 : vector<64xf32> to vector<1x64xf32>
    %122 = arith.addf %106, %121 : vector<1x64xf32>
    %123 = arith.mulf %115, %115 : vector<16x64xf32>
    %cst_67 = arith.constant dense<0.000000e+00> : vector<64xf32>
    %124 = vector.multi_reduction <add>, %123, %cst_67 [0] : vector<16x64xf32> to vector<64xf32>
    %125 = vector.shape_cast %124 : vector<64xf32> to vector<1x64xf32>
    %126 = arith.addf %110, %125 : vector<1x64xf32>
    %127 = vector.extract_strided_slice %36 {offsets = [90, 0], sizes = [16, 64], strides = [1, 1]} : vector<288x64xf32> to vector<16x64xf32>
    %128 = vector.extract_strided_slice %40 {offsets = [91, 0], sizes = [16, 64], strides = [1, 1]} : vector<288x64xf32> to vector<16x64xf32>
    %129 = arith.addf %127, %128 : vector<16x64xf32>
    %130 = vector.extract_strided_slice %44 {offsets = [92, 0], sizes = [16, 64], strides = [1, 1]} : vector<288x64xf32> to vector<16x64xf32>
    %131 = arith.addf %129, %130 : vector<16x64xf32>
    %132 = arith.truncf %131 : vector<16x64xf32> to vector<16x64xbf16>
    %c0_68 = arith.constant 0 : index
    %c5_69 = arith.constant 5 : index
    %c0_70 = arith.constant 0 : index
    %c0_71 = arith.constant 0 : index
    %133 = vector.load %arg4[%c0_68, %c5_69, %c0_70, %c0_71] : memref<1x16x16x64xbf16, #tpu.memory_space<vmem>>, vector<1x1x16x64xbf16>
    %134 = vector.shape_cast %133 : vector<1x1x16x64xbf16> to vector<16x64xbf16>
    %135 = vector.shape_cast %132 : vector<16x64xbf16> to vector<1x1x16x64xbf16>
    tpu.vector_store %arg4[%c0_68, %c5_69, %c0_70, %c0_71], %135 {strides = array<i32>} : memref<1x16x16x64xbf16, #tpu.memory_space<vmem>>, vector<1x1x16x64xbf16>,
    %cst_72 = arith.constant dense<0.000000e+00> : vector<64xf32>
    %136 = vector.multi_reduction <add>, %131, %cst_72 [0] : vector<16x64xf32> to vector<64xf32>
    %137 = vector.shape_cast %136 : vector<64xf32> to vector<1x64xf32>
    %138 = arith.addf %122, %137 : vector<1x64xf32>
    %139 = arith.mulf %131, %131 : vector<16x64xf32>
    %cst_73 = arith.constant dense<0.000000e+00> : vector<64xf32>
    %140 = vector.multi_reduction <add>, %139, %cst_73 [0] : vector<16x64xf32> to vector<64xf32>
    %141 = vector.shape_cast %140 : vector<64xf32> to vector<1x64xf32>
    %142 = arith.addf %126, %141 : vector<1x64xf32>
    %143 = vector.extract_strided_slice %36 {offsets = [108, 0], sizes = [16, 64], strides = [1, 1]} : vector<288x64xf32> to vector<16x64xf32>
    %144 = vector.extract_strided_slice %40 {offsets = [109, 0], sizes = [16, 64], strides = [1, 1]} : vector<288x64xf32> to vector<16x64xf32>
    %145 = arith.addf %143, %144 : vector<16x64xf32>
    %146 = vector.extract_strided_slice %44 {offsets = [110, 0], sizes = [16, 64], strides = [1, 1]} : vector<288x64xf32> to vector<16x64xf32>
    %147 = arith.addf %145, %146 : vector<16x64xf32>
    %148 = arith.truncf %147 : vector<16x64xf32> to vector<16x64xbf16>
    %c0_74 = arith.constant 0 : index
    %c6_75 = arith.constant 6 : index
    %c0_76 = arith.constant 0 : index
    %c0_77 = arith.constant 0 : index
    %149 = vector.load %arg4[%c0_74, %c6_75, %c0_76, %c0_77] : memref<1x16x16x64xbf16, #tpu.memory_space<vmem>>, vector<1x1x16x64xbf16>
    %150 = vector.shape_cast %149 : vector<1x1x16x64xbf16> to vector<16x64xbf16>
    %151 = vector.shape_cast %148 : vector<16x64xbf16> to vector<1x1x16x64xbf16>
    tpu.vector_store %arg4[%c0_74, %c6_75, %c0_76, %c0_77], %151 {strides = array<i32>} : memref<1x16x16x64xbf16, #tpu.memory_space<vmem>>, vector<1x1x16x64xbf16>,
    %cst_78 = arith.constant dense<0.000000e+00> : vector<64xf32>
    %152 = vector.multi_reduction <add>, %147, %cst_78 [0] : vector<16x64xf32> to vector<64xf32>
    %153 = vector.shape_cast %152 : vector<64xf32> to vector<1x64xf32>
    %154 = arith.addf %138, %153 : vector<1x64xf32>
    %155 = arith.mulf %147, %147 : vector<16x64xf32>
    %cst_79 = arith.constant dense<0.000000e+00> : vector<64xf32>
    %156 = vector.multi_reduction <add>, %155, %cst_79 [0] : vector<16x64xf32> to vector<64xf32>
    %157 = vector.shape_cast %156 : vector<64xf32> to vector<1x64xf32>
    %158 = arith.addf %142, %157 : vector<1x64xf32>
    %159 = vector.extract_strided_slice %36 {offsets = [126, 0], sizes = [16, 64], strides = [1, 1]} : vector<288x64xf32> to vector<16x64xf32>
    %160 = vector.extract_strided_slice %40 {offsets = [127, 0], sizes = [16, 64], strides = [1, 1]} : vector<288x64xf32> to vector<16x64xf32>
    %161 = arith.addf %159, %160 : vector<16x64xf32>
    %162 = vector.extract_strided_slice %44 {offsets = [128, 0], sizes = [16, 64], strides = [1, 1]} : vector<288x64xf32> to vector<16x64xf32>
    %163 = arith.addf %161, %162 : vector<16x64xf32>
    %164 = arith.truncf %163 : vector<16x64xf32> to vector<16x64xbf16>
    %c0_80 = arith.constant 0 : index
    %c7_81 = arith.constant 7 : index
    %c0_82 = arith.constant 0 : index
    %c0_83 = arith.constant 0 : index
    %165 = vector.load %arg4[%c0_80, %c7_81, %c0_82, %c0_83] : memref<1x16x16x64xbf16, #tpu.memory_space<vmem>>, vector<1x1x16x64xbf16>
    %166 = vector.shape_cast %165 : vector<1x1x16x64xbf16> to vector<16x64xbf16>
    %167 = vector.shape_cast %164 : vector<16x64xbf16> to vector<1x1x16x64xbf16>
    tpu.vector_store %arg4[%c0_80, %c7_81, %c0_82, %c0_83], %167 {strides = array<i32>} : memref<1x16x16x64xbf16, #tpu.memory_space<vmem>>, vector<1x1x16x64xbf16>,
    %cst_84 = arith.constant dense<0.000000e+00> : vector<64xf32>
    %168 = vector.multi_reduction <add>, %163, %cst_84 [0] : vector<16x64xf32> to vector<64xf32>
    %169 = vector.shape_cast %168 : vector<64xf32> to vector<1x64xf32>
    %170 = arith.addf %154, %169 : vector<1x64xf32>
    %171 = arith.mulf %163, %163 : vector<16x64xf32>
    %cst_85 = arith.constant dense<0.000000e+00> : vector<64xf32>
    %172 = vector.multi_reduction <add>, %171, %cst_85 [0] : vector<16x64xf32> to vector<64xf32>
    %173 = vector.shape_cast %172 : vector<64xf32> to vector<1x64xf32>
    %174 = arith.addf %158, %173 : vector<1x64xf32>
    %175 = vector.extract_strided_slice %36 {offsets = [144, 0], sizes = [16, 64], strides = [1, 1]} : vector<288x64xf32> to vector<16x64xf32>
    %176 = vector.extract_strided_slice %40 {offsets = [145, 0], sizes = [16, 64], strides = [1, 1]} : vector<288x64xf32> to vector<16x64xf32>
    %177 = arith.addf %175, %176 : vector<16x64xf32>
    %178 = vector.extract_strided_slice %44 {offsets = [146, 0], sizes = [16, 64], strides = [1, 1]} : vector<288x64xf32> to vector<16x64xf32>
    %179 = arith.addf %177, %178 : vector<16x64xf32>
    %180 = arith.truncf %179 : vector<16x64xf32> to vector<16x64xbf16>
    %c0_86 = arith.constant 0 : index
    %c8_87 = arith.constant 8 : index
    %c0_88 = arith.constant 0 : index
    %c0_89 = arith.constant 0 : index
    %181 = vector.load %arg4[%c0_86, %c8_87, %c0_88, %c0_89] : memref<1x16x16x64xbf16, #tpu.memory_space<vmem>>, vector<1x1x16x64xbf16>
    %182 = vector.shape_cast %181 : vector<1x1x16x64xbf16> to vector<16x64xbf16>
    %183 = vector.shape_cast %180 : vector<16x64xbf16> to vector<1x1x16x64xbf16>
    tpu.vector_store %arg4[%c0_86, %c8_87, %c0_88, %c0_89], %183 {strides = array<i32>} : memref<1x16x16x64xbf16, #tpu.memory_space<vmem>>, vector<1x1x16x64xbf16>,
    %cst_90 = arith.constant dense<0.000000e+00> : vector<64xf32>
    %184 = vector.multi_reduction <add>, %179, %cst_90 [0] : vector<16x64xf32> to vector<64xf32>
    %185 = vector.shape_cast %184 : vector<64xf32> to vector<1x64xf32>
    %186 = arith.addf %170, %185 : vector<1x64xf32>
    %187 = arith.mulf %179, %179 : vector<16x64xf32>
    %cst_91 = arith.constant dense<0.000000e+00> : vector<64xf32>
    %188 = vector.multi_reduction <add>, %187, %cst_91 [0] : vector<16x64xf32> to vector<64xf32>
    %189 = vector.shape_cast %188 : vector<64xf32> to vector<1x64xf32>
    %190 = arith.addf %174, %189 : vector<1x64xf32>
    %191 = vector.extract_strided_slice %36 {offsets = [162, 0], sizes = [16, 64], strides = [1, 1]} : vector<288x64xf32> to vector<16x64xf32>
    %192 = vector.extract_strided_slice %40 {offsets = [163, 0], sizes = [16, 64], strides = [1, 1]} : vector<288x64xf32> to vector<16x64xf32>
    %193 = arith.addf %191, %192 : vector<16x64xf32>
    %194 = vector.extract_strided_slice %44 {offsets = [164, 0], sizes = [16, 64], strides = [1, 1]} : vector<288x64xf32> to vector<16x64xf32>
    %195 = arith.addf %193, %194 : vector<16x64xf32>
    %196 = arith.truncf %195 : vector<16x64xf32> to vector<16x64xbf16>
    %c0_92 = arith.constant 0 : index
    %c9 = arith.constant 9 : index
    %c0_93 = arith.constant 0 : index
    %c0_94 = arith.constant 0 : index
    %197 = vector.load %arg4[%c0_92, %c9, %c0_93, %c0_94] : memref<1x16x16x64xbf16, #tpu.memory_space<vmem>>, vector<1x1x16x64xbf16>
    %198 = vector.shape_cast %197 : vector<1x1x16x64xbf16> to vector<16x64xbf16>
    %199 = vector.shape_cast %196 : vector<16x64xbf16> to vector<1x1x16x64xbf16>
    tpu.vector_store %arg4[%c0_92, %c9, %c0_93, %c0_94], %199 {strides = array<i32>} : memref<1x16x16x64xbf16, #tpu.memory_space<vmem>>, vector<1x1x16x64xbf16>,
    %cst_95 = arith.constant dense<0.000000e+00> : vector<64xf32>
    %200 = vector.multi_reduction <add>, %195, %cst_95 [0] : vector<16x64xf32> to vector<64xf32>
    %201 = vector.shape_cast %200 : vector<64xf32> to vector<1x64xf32>
    %202 = arith.addf %186, %201 : vector<1x64xf32>
    %203 = arith.mulf %195, %195 : vector<16x64xf32>
    %cst_96 = arith.constant dense<0.000000e+00> : vector<64xf32>
    %204 = vector.multi_reduction <add>, %203, %cst_96 [0] : vector<16x64xf32> to vector<64xf32>
    %205 = vector.shape_cast %204 : vector<64xf32> to vector<1x64xf32>
    %206 = arith.addf %190, %205 : vector<1x64xf32>
    %207 = vector.extract_strided_slice %36 {offsets = [180, 0], sizes = [16, 64], strides = [1, 1]} : vector<288x64xf32> to vector<16x64xf32>
    %208 = vector.extract_strided_slice %40 {offsets = [181, 0], sizes = [16, 64], strides = [1, 1]} : vector<288x64xf32> to vector<16x64xf32>
    %209 = arith.addf %207, %208 : vector<16x64xf32>
    %210 = vector.extract_strided_slice %44 {offsets = [182, 0], sizes = [16, 64], strides = [1, 1]} : vector<288x64xf32> to vector<16x64xf32>
    %211 = arith.addf %209, %210 : vector<16x64xf32>
    %212 = arith.truncf %211 : vector<16x64xf32> to vector<16x64xbf16>
    %c0_97 = arith.constant 0 : index
    %c10 = arith.constant 10 : index
    %c0_98 = arith.constant 0 : index
    %c0_99 = arith.constant 0 : index
    %213 = vector.load %arg4[%c0_97, %c10, %c0_98, %c0_99] : memref<1x16x16x64xbf16, #tpu.memory_space<vmem>>, vector<1x1x16x64xbf16>
    %214 = vector.shape_cast %213 : vector<1x1x16x64xbf16> to vector<16x64xbf16>
    %215 = vector.shape_cast %212 : vector<16x64xbf16> to vector<1x1x16x64xbf16>
    tpu.vector_store %arg4[%c0_97, %c10, %c0_98, %c0_99], %215 {strides = array<i32>} : memref<1x16x16x64xbf16, #tpu.memory_space<vmem>>, vector<1x1x16x64xbf16>,
    %cst_100 = arith.constant dense<0.000000e+00> : vector<64xf32>
    %216 = vector.multi_reduction <add>, %211, %cst_100 [0] : vector<16x64xf32> to vector<64xf32>
    %217 = vector.shape_cast %216 : vector<64xf32> to vector<1x64xf32>
    %218 = arith.addf %202, %217 : vector<1x64xf32>
    %219 = arith.mulf %211, %211 : vector<16x64xf32>
    %cst_101 = arith.constant dense<0.000000e+00> : vector<64xf32>
    %220 = vector.multi_reduction <add>, %219, %cst_101 [0] : vector<16x64xf32> to vector<64xf32>
    %221 = vector.shape_cast %220 : vector<64xf32> to vector<1x64xf32>
    %222 = arith.addf %206, %221 : vector<1x64xf32>
    %223 = vector.extract_strided_slice %36 {offsets = [198, 0], sizes = [16, 64], strides = [1, 1]} : vector<288x64xf32> to vector<16x64xf32>
    %224 = vector.extract_strided_slice %40 {offsets = [199, 0], sizes = [16, 64], strides = [1, 1]} : vector<288x64xf32> to vector<16x64xf32>
    %225 = arith.addf %223, %224 : vector<16x64xf32>
    %226 = vector.extract_strided_slice %44 {offsets = [200, 0], sizes = [16, 64], strides = [1, 1]} : vector<288x64xf32> to vector<16x64xf32>
    %227 = arith.addf %225, %226 : vector<16x64xf32>
    %228 = arith.truncf %227 : vector<16x64xf32> to vector<16x64xbf16>
    %c0_102 = arith.constant 0 : index
    %c11 = arith.constant 11 : index
    %c0_103 = arith.constant 0 : index
    %c0_104 = arith.constant 0 : index
    %229 = vector.load %arg4[%c0_102, %c11, %c0_103, %c0_104] : memref<1x16x16x64xbf16, #tpu.memory_space<vmem>>, vector<1x1x16x64xbf16>
    %230 = vector.shape_cast %229 : vector<1x1x16x64xbf16> to vector<16x64xbf16>
    %231 = vector.shape_cast %228 : vector<16x64xbf16> to vector<1x1x16x64xbf16>
    tpu.vector_store %arg4[%c0_102, %c11, %c0_103, %c0_104], %231 {strides = array<i32>} : memref<1x16x16x64xbf16, #tpu.memory_space<vmem>>, vector<1x1x16x64xbf16>,
    %cst_105 = arith.constant dense<0.000000e+00> : vector<64xf32>
    %232 = vector.multi_reduction <add>, %227, %cst_105 [0] : vector<16x64xf32> to vector<64xf32>
    %233 = vector.shape_cast %232 : vector<64xf32> to vector<1x64xf32>
    %234 = arith.addf %218, %233 : vector<1x64xf32>
    %235 = arith.mulf %227, %227 : vector<16x64xf32>
    %cst_106 = arith.constant dense<0.000000e+00> : vector<64xf32>
    %236 = vector.multi_reduction <add>, %235, %cst_106 [0] : vector<16x64xf32> to vector<64xf32>
    %237 = vector.shape_cast %236 : vector<64xf32> to vector<1x64xf32>
    %238 = arith.addf %222, %237 : vector<1x64xf32>
    %239 = vector.extract_strided_slice %36 {offsets = [216, 0], sizes = [16, 64], strides = [1, 1]} : vector<288x64xf32> to vector<16x64xf32>
    %240 = vector.extract_strided_slice %40 {offsets = [217, 0], sizes = [16, 64], strides = [1, 1]} : vector<288x64xf32> to vector<16x64xf32>
    %241 = arith.addf %239, %240 : vector<16x64xf32>
    %242 = vector.extract_strided_slice %44 {offsets = [218, 0], sizes = [16, 64], strides = [1, 1]} : vector<288x64xf32> to vector<16x64xf32>
    %243 = arith.addf %241, %242 : vector<16x64xf32>
    %244 = arith.truncf %243 : vector<16x64xf32> to vector<16x64xbf16>
    %c0_107 = arith.constant 0 : index
    %c12 = arith.constant 12 : index
    %c0_108 = arith.constant 0 : index
    %c0_109 = arith.constant 0 : index
    %245 = vector.load %arg4[%c0_107, %c12, %c0_108, %c0_109] : memref<1x16x16x64xbf16, #tpu.memory_space<vmem>>, vector<1x1x16x64xbf16>
    %246 = vector.shape_cast %245 : vector<1x1x16x64xbf16> to vector<16x64xbf16>
    %247 = vector.shape_cast %244 : vector<16x64xbf16> to vector<1x1x16x64xbf16>
    tpu.vector_store %arg4[%c0_107, %c12, %c0_108, %c0_109], %247 {strides = array<i32>} : memref<1x16x16x64xbf16, #tpu.memory_space<vmem>>, vector<1x1x16x64xbf16>,
    %cst_110 = arith.constant dense<0.000000e+00> : vector<64xf32>
    %248 = vector.multi_reduction <add>, %243, %cst_110 [0] : vector<16x64xf32> to vector<64xf32>
    %249 = vector.shape_cast %248 : vector<64xf32> to vector<1x64xf32>
    %250 = arith.addf %234, %249 : vector<1x64xf32>
    %251 = arith.mulf %243, %243 : vector<16x64xf32>
    %cst_111 = arith.constant dense<0.000000e+00> : vector<64xf32>
    %252 = vector.multi_reduction <add>, %251, %cst_111 [0] : vector<16x64xf32> to vector<64xf32>
    %253 = vector.shape_cast %252 : vector<64xf32> to vector<1x64xf32>
    %254 = arith.addf %238, %253 : vector<1x64xf32>
    %255 = vector.extract_strided_slice %36 {offsets = [234, 0], sizes = [16, 64], strides = [1, 1]} : vector<288x64xf32> to vector<16x64xf32>
    %256 = vector.extract_strided_slice %40 {offsets = [235, 0], sizes = [16, 64], strides = [1, 1]} : vector<288x64xf32> to vector<16x64xf32>
    %257 = arith.addf %255, %256 : vector<16x64xf32>
    %258 = vector.extract_strided_slice %44 {offsets = [236, 0], sizes = [16, 64], strides = [1, 1]} : vector<288x64xf32> to vector<16x64xf32>
    %259 = arith.addf %257, %258 : vector<16x64xf32>
    %260 = arith.truncf %259 : vector<16x64xf32> to vector<16x64xbf16>
    %c0_112 = arith.constant 0 : index
    %c13 = arith.constant 13 : index
    %c0_113 = arith.constant 0 : index
    %c0_114 = arith.constant 0 : index
    %261 = vector.load %arg4[%c0_112, %c13, %c0_113, %c0_114] : memref<1x16x16x64xbf16, #tpu.memory_space<vmem>>, vector<1x1x16x64xbf16>
    %262 = vector.shape_cast %261 : vector<1x1x16x64xbf16> to vector<16x64xbf16>
    %263 = vector.shape_cast %260 : vector<16x64xbf16> to vector<1x1x16x64xbf16>
    tpu.vector_store %arg4[%c0_112, %c13, %c0_113, %c0_114], %263 {strides = array<i32>} : memref<1x16x16x64xbf16, #tpu.memory_space<vmem>>, vector<1x1x16x64xbf16>,
    %cst_115 = arith.constant dense<0.000000e+00> : vector<64xf32>
    %264 = vector.multi_reduction <add>, %259, %cst_115 [0] : vector<16x64xf32> to vector<64xf32>
    %265 = vector.shape_cast %264 : vector<64xf32> to vector<1x64xf32>
    %266 = arith.addf %250, %265 : vector<1x64xf32>
    %267 = arith.mulf %259, %259 : vector<16x64xf32>
    %cst_116 = arith.constant dense<0.000000e+00> : vector<64xf32>
    %268 = vector.multi_reduction <add>, %267, %cst_116 [0] : vector<16x64xf32> to vector<64xf32>
    %269 = vector.shape_cast %268 : vector<64xf32> to vector<1x64xf32>
    %270 = arith.addf %254, %269 : vector<1x64xf32>
    %271 = vector.extract_strided_slice %36 {offsets = [252, 0], sizes = [16, 64], strides = [1, 1]} : vector<288x64xf32> to vector<16x64xf32>
    %272 = vector.extract_strided_slice %40 {offsets = [253, 0], sizes = [16, 64], strides = [1, 1]} : vector<288x64xf32> to vector<16x64xf32>
    %273 = arith.addf %271, %272 : vector<16x64xf32>
    %274 = vector.extract_strided_slice %44 {offsets = [254, 0], sizes = [16, 64], strides = [1, 1]} : vector<288x64xf32> to vector<16x64xf32>
    %275 = arith.addf %273, %274 : vector<16x64xf32>
    %276 = arith.truncf %275 : vector<16x64xf32> to vector<16x64xbf16>
    %c0_117 = arith.constant 0 : index
    %c14 = arith.constant 14 : index
    %c0_118 = arith.constant 0 : index
    %c0_119 = arith.constant 0 : index
    %277 = vector.load %arg4[%c0_117, %c14, %c0_118, %c0_119] : memref<1x16x16x64xbf16, #tpu.memory_space<vmem>>, vector<1x1x16x64xbf16>
    %278 = vector.shape_cast %277 : vector<1x1x16x64xbf16> to vector<16x64xbf16>
    %279 = vector.shape_cast %276 : vector<16x64xbf16> to vector<1x1x16x64xbf16>
    tpu.vector_store %arg4[%c0_117, %c14, %c0_118, %c0_119], %279 {strides = array<i32>} : memref<1x16x16x64xbf16, #tpu.memory_space<vmem>>, vector<1x1x16x64xbf16>,
    %cst_120 = arith.constant dense<0.000000e+00> : vector<64xf32>
    %280 = vector.multi_reduction <add>, %275, %cst_120 [0] : vector<16x64xf32> to vector<64xf32>
    %281 = vector.shape_cast %280 : vector<64xf32> to vector<1x64xf32>
    %282 = arith.addf %266, %281 : vector<1x64xf32>
    %283 = arith.mulf %275, %275 : vector<16x64xf32>
    %cst_121 = arith.constant dense<0.000000e+00> : vector<64xf32>
    %284 = vector.multi_reduction <add>, %283, %cst_121 [0] : vector<16x64xf32> to vector<64xf32>
    %285 = vector.shape_cast %284 : vector<64xf32> to vector<1x64xf32>
    %286 = arith.addf %270, %285 : vector<1x64xf32>
    %287 = vector.extract_strided_slice %36 {offsets = [270, 0], sizes = [16, 64], strides = [1, 1]} : vector<288x64xf32> to vector<16x64xf32>
    %288 = vector.extract_strided_slice %40 {offsets = [271, 0], sizes = [16, 64], strides = [1, 1]} : vector<288x64xf32> to vector<16x64xf32>
    %289 = arith.addf %287, %288 : vector<16x64xf32>
    %290 = vector.extract_strided_slice %44 {offsets = [272, 0], sizes = [16, 64], strides = [1, 1]} : vector<288x64xf32> to vector<16x64xf32>
    %291 = arith.addf %289, %290 : vector<16x64xf32>
    %292 = arith.truncf %291 : vector<16x64xf32> to vector<16x64xbf16>
    %c0_122 = arith.constant 0 : index
    %c15 = arith.constant 15 : index
    %c0_123 = arith.constant 0 : index
    %c0_124 = arith.constant 0 : index
    %293 = vector.load %arg4[%c0_122, %c15, %c0_123, %c0_124] : memref<1x16x16x64xbf16, #tpu.memory_space<vmem>>, vector<1x1x16x64xbf16>
    %294 = vector.shape_cast %293 : vector<1x1x16x64xbf16> to vector<16x64xbf16>
    %295 = vector.shape_cast %292 : vector<16x64xbf16> to vector<1x1x16x64xbf16>
    tpu.vector_store %arg4[%c0_122, %c15, %c0_123, %c0_124], %295 {strides = array<i32>} : memref<1x16x16x64xbf16, #tpu.memory_space<vmem>>, vector<1x1x16x64xbf16>,
    %cst_125 = arith.constant dense<0.000000e+00> : vector<64xf32>
    %296 = vector.multi_reduction <add>, %291, %cst_125 [0] : vector<16x64xf32> to vector<64xf32>
    %297 = vector.shape_cast %296 : vector<64xf32> to vector<1x64xf32>
    %298 = arith.addf %282, %297 : vector<1x64xf32>
    %299 = arith.mulf %291, %291 : vector<16x64xf32>
    %cst_126 = arith.constant dense<0.000000e+00> : vector<64xf32>
    %300 = vector.multi_reduction <add>, %299, %cst_126 [0] : vector<16x64xf32> to vector<64xf32>
    %301 = vector.shape_cast %300 : vector<64xf32> to vector<1x64xf32>
    %302 = arith.addf %286, %301 : vector<1x64xf32>
    %c0_127 = arith.constant 0 : index
    %c0_128 = arith.constant 0 : index
    %c0_129 = arith.constant 0 : index
    %303 = vector.load %arg5[%c0_127, %c0_128, %c0_129] : memref<1x2x64xf32, #tpu.memory_space<vmem>>, vector<1x1x64xf32>
    %304 = vector.shape_cast %303 : vector<1x1x64xf32> to vector<1x64xf32>
    %305 = vector.shape_cast %298 : vector<1x64xf32> to vector<1x1x64xf32>
    tpu.vector_store %arg5[%c0_127, %c0_128, %c0_129], %305 {strides = array<i32>} : memref<1x2x64xf32, #tpu.memory_space<vmem>>, vector<1x1x64xf32>,
    %c0_130 = arith.constant 0 : index
    %c1_131 = arith.constant 1 : index
    %c0_132 = arith.constant 0 : index
    %306 = vector.load %arg5[%c0_130, %c1_131, %c0_132] : memref<1x2x64xf32, #tpu.memory_space<vmem>>, vector<1x1x64xf32>
    %307 = vector.shape_cast %306 : vector<1x1x64xf32> to vector<1x64xf32>
    %308 = vector.shape_cast %302 : vector<1x64xf32> to vector<1x1x64xf32>
    tpu.vector_store %arg5[%c0_130, %c1_131, %c0_132], %308 {strides = array<i32>} : memref<1x2x64xf32, #tpu.memory_space<vmem>>, vector<1x1x64xf32>,
    return
  }
  func.func @transform_0(%arg0: i32, %arg1: i32) -> (i32, i32, i32) {
    %c0_i32 = arith.constant 0 : i32
    %c0_i32_0 = arith.constant 0 : i32
    %c0_i32_1 = arith.constant 0 : i32
    return %arg1, %c0_i32, %c0_i32_0 : i32, i32, i32
  }
  func.func @transform_1(%arg0: i32, %arg1: i32) -> (i32, i32, i32) {
    %c0_i32 = arith.constant 0 : i32
    %c0_i32_0 = arith.constant 0 : i32
    %c0_i32_1 = arith.constant 0 : i32
    return %c0_i32, %c0_i32_0, %arg0 : i32, i32, i32
  }
  func.func @transform_2(%arg0: i32, %arg1: i32) -> (i32, i32, i32, i32) {
    %c0_i32 = arith.constant 0 : i32
    %c0_i32_0 = arith.constant 0 : i32
    %c0_i32_1 = arith.constant 0 : i32
    return %arg1, %c0_i32, %c0_i32_0, %arg0 : i32, i32, i32, i32
  }
  func.func @transform_3(%arg0: i32, %arg1: i32) -> (i32, i32, i32) {
    %c0_i32 = arith.constant 0 : i32
    %c0_i32_0 = arith.constant 0 : i32
    return %arg1, %c0_i32, %arg0 : i32, i32, i32
  }
}

module attributes {stable_mosaic.version = 11 : i64} {
  func.func @_bn_relu_kernel(%arg0: i32, %arg1: memref<256x128xbf16, #tpu.memory_space<vmem>>, %arg2: memref<1x128xf32, #tpu.memory_space<vmem>>, %arg3: memref<1x128xf32, #tpu.memory_space<vmem>>, %arg4: memref<256x128xbf16, #tpu.memory_space<vmem>>) attributes {dimension_semantics = [#tpu.dimension_semantics<parallel>], iteration_bounds = array<i64: 1>, scalar_prefetch = 0 : i64, scratch_operands = 0 : i64, tpu.core_type = #tpu.core_type<tc>, window_params = [{transform_indices = @transform_0, window_bounds = array<i64: 256, 128>}, {pipeline_mode = #tpu.pipeline_mode<synchronous>, transform_indices = @transform_1, window_bounds = array<i64: 1, 128>}, {pipeline_mode = #tpu.pipeline_mode<synchronous>, transform_indices = @transform_2, window_bounds = array<i64: 1, 128>}, {transform_indices = @transform_3, window_bounds = array<i64: 256, 128>}]} {
    %c0 = arith.constant 0 : index
    %c0_0 = arith.constant 0 : index
    %0 = vector.load %arg1[%c0, %c0_0] : memref<256x128xbf16, #tpu.memory_space<vmem>>, vector<256x128xbf16>
    %1 = arith.extf %0 : vector<256x128xbf16> to vector<256x128xf32>
    %c0_1 = arith.constant 0 : index
    %c0_2 = arith.constant 0 : index
    %2 = vector.load %arg2[%c0_1, %c0_2] : memref<1x128xf32, #tpu.memory_space<vmem>>, vector<1x128xf32>
    %3 = vector.broadcast %2 : vector<1x128xf32> to vector<256x128xf32>
    %4 = arith.mulf %1, %3 : vector<256x128xf32>
    %c0_3 = arith.constant 0 : index
    %c0_4 = arith.constant 0 : index
    %5 = vector.load %arg3[%c0_3, %c0_4] : memref<1x128xf32, #tpu.memory_space<vmem>>, vector<1x128xf32>
    %6 = vector.broadcast %5 : vector<1x128xf32> to vector<256x128xf32>
    %7 = arith.addf %4, %6 : vector<256x128xf32>
    %cst = arith.constant 0.000000e+00 : f32
    %8 = vector.broadcast %cst : f32 to vector<256x128xf32>
    %9 = arith.maximumf %7, %8 : vector<256x128xf32>
    %10 = arith.truncf %9 : vector<256x128xf32> to vector<256x128xbf16>
    %c0_5 = arith.constant 0 : index
    %c0_6 = arith.constant 0 : index
    %11 = vector.load %arg4[%c0_5, %c0_6] : memref<256x128xbf16, #tpu.memory_space<vmem>>, vector<256x128xbf16>
    tpu.vector_store %arg4[%c0_5, %c0_6], %10 {strides = array<i32>} : memref<256x128xbf16, #tpu.memory_space<vmem>>, vector<256x128xbf16>,
    return
  }
  func.func @transform_0(%arg0: i32) -> (i32, i32) {
    %c0_i32 = arith.constant 0 : i32
    %c0_i32_0 = arith.constant 0 : i32
    return %arg0, %c0_i32 : i32, i32
  }
  func.func @transform_1(%arg0: i32) -> (i32, i32) {
    %c0_i32 = arith.constant 0 : i32
    %c0_i32_0 = arith.constant 0 : i32
    %c0_i32_1 = arith.constant 0 : i32
    return %c0_i32, %c0_i32_0 : i32, i32
  }
  func.func @transform_2(%arg0: i32) -> (i32, i32) {
    %c0_i32 = arith.constant 0 : i32
    %c0_i32_0 = arith.constant 0 : i32
    %c0_i32_1 = arith.constant 0 : i32
    return %c0_i32, %c0_i32_0 : i32, i32
  }
  func.func @transform_3(%arg0: i32) -> (i32, i32) {
    %c0_i32 = arith.constant 0 : i32
    %c0_i32_0 = arith.constant 0 : i32
    return %arg0, %c0_i32 : i32, i32
  }
}

module attributes {stable_mosaic.version = 11 : i64} {
  func.func @_maxpool_kernel(%arg0: i32, %arg1: i32, %arg2: memref<1x8x2x8x128xbf16, #tpu.memory_space<vmem>>, %arg3: memref<1x8x8x64xbf16, #tpu.memory_space<vmem>>) attributes {dimension_semantics = [#tpu.dimension_semantics<parallel>, #tpu.dimension_semantics<parallel>], iteration_bounds = array<i64: 2, 1>, scalar_prefetch = 0 : i64, scratch_operands = 0 : i64, tpu.core_type = #tpu.core_type<tc>, window_params = [{transform_indices = @transform_0, window_bounds = array<i64: 1, 8, 2, 8, 128>}, {transform_indices = @transform_1, window_bounds = array<i64: 1, 8, 8, 64>}]} {
    %c0 = arith.constant 0 : index
    %c0_0 = arith.constant 0 : index
    %c0_1 = arith.constant 0 : index
    %c0_2 = arith.constant 0 : index
    %c0_3 = arith.constant 0 : index
    %0 = vector.load %arg2[%c0, %c0_0, %c0_1, %c0_2, %c0_3] : memref<1x8x2x8x128xbf16, #tpu.memory_space<vmem>>, vector<1x8x1x8x128xbf16>
    %1 = vector.shape_cast %0 : vector<1x8x1x8x128xbf16> to vector<8x8x128xbf16>
    %c0_4 = arith.constant 0 : index
    %c0_5 = arith.constant 0 : index
    %c1 = arith.constant 1 : index
    %c0_6 = arith.constant 0 : index
    %c0_7 = arith.constant 0 : index
    %2 = vector.load %arg2[%c0_4, %c0_5, %c1, %c0_6, %c0_7] : memref<1x8x2x8x128xbf16, #tpu.memory_space<vmem>>, vector<1x8x1x8x128xbf16>
    %3 = vector.shape_cast %2 : vector<1x8x1x8x128xbf16> to vector<8x8x128xbf16>
    %4 = arith.maximumf %1, %3 : vector<8x8x128xbf16>
    %5 = vector.extract_strided_slice %4 {offsets = [0, 0, 0], sizes = [8, 8, 64], strides = [1, 1, 1]} : vector<8x8x128xbf16> to vector<8x8x64xbf16>
    %6 = vector.extract_strided_slice %4 {offsets = [0, 0, 64], sizes = [8, 8, 64], strides = [1, 1, 1]} : vector<8x8x128xbf16> to vector<8x8x64xbf16>
    %7 = arith.maximumf %5, %6 : vector<8x8x64xbf16>
    %c0_8 = arith.constant 0 : index
    %c0_9 = arith.constant 0 : index
    %c0_10 = arith.constant 0 : index
    %c0_11 = arith.constant 0 : index
    %8 = vector.load %arg3[%c0_8, %c0_9, %c0_10, %c0_11] : memref<1x8x8x64xbf16, #tpu.memory_space<vmem>>, vector<1x8x8x64xbf16>
    %9 = vector.shape_cast %8 : vector<1x8x8x64xbf16> to vector<8x8x64xbf16>
    %10 = vector.shape_cast %7 : vector<8x8x64xbf16> to vector<1x8x8x64xbf16>
    tpu.vector_store %arg3[%c0_8, %c0_9, %c0_10, %c0_11], %10 {strides = array<i32>} : memref<1x8x8x64xbf16, #tpu.memory_space<vmem>>, vector<1x8x8x64xbf16>,
    return
  }
  func.func @transform_0(%arg0: i32, %arg1: i32) -> (i32, i32, i32, i32, i32) {
    %c0_i32 = arith.constant 0 : i32
    %c0_i32_0 = arith.constant 0 : i32
    %c0_i32_1 = arith.constant 0 : i32
    %c0_i32_2 = arith.constant 0 : i32
    return %arg0, %arg1, %c0_i32, %c0_i32_0, %c0_i32_1 : i32, i32, i32, i32, i32
  }
  func.func @transform_1(%arg0: i32, %arg1: i32) -> (i32, i32, i32, i32) {
    %c0_i32 = arith.constant 0 : i32
    %c0_i32_0 = arith.constant 0 : i32
    %c0_i32_1 = arith.constant 0 : i32
    return %arg0, %arg1, %c0_i32, %c0_i32_0 : i32, i32, i32, i32
  }
}

module attributes {stable_mosaic.version = 11 : i64} {
  func.func @kernel(%arg0: i32, %arg1: i32, %arg2: memref<1x324x64xbf16, #tpu.memory_space<vmem>>, %arg3: memref<9x64x64xbf16, #tpu.memory_space<vmem>>, %arg4: memref<1x16x16x64xbf16, #tpu.memory_space<vmem>>, %arg5: memref<1x2x64xf32, #tpu.memory_space<vmem>>) attributes {dimension_semantics = [#tpu.dimension_semantics<parallel>, #tpu.dimension_semantics<parallel>], iteration_bounds = array<i64: 1, 2>, scalar_prefetch = 0 : i64, scratch_operands = 0 : i64, tpu.core_type = #tpu.core_type<tc>, window_params = [{transform_indices = @transform_0, window_bounds = array<i64: 1, 324, 64>}, {transform_indices = @transform_1, window_bounds = array<i64: 9, 64, 64>}, {transform_indices = @transform_2, window_bounds = array<i64: 1, 16, 16, 64>}, {transform_indices = @transform_3, window_bounds = array<i64: 1, 2, 64>}]} {
    %cst = arith.constant 0.000000e+00 : f32
    %0 = vector.broadcast %cst : f32 to vector<288x64xf32>
    %cst_0 = arith.constant 0.000000e+00 : f32
    %1 = vector.broadcast %cst_0 : f32 to vector<288x64xf32>
    %cst_1 = arith.constant 0.000000e+00 : f32
    %2 = vector.broadcast %cst_1 : f32 to vector<288x64xf32>
    %c0 = arith.constant 0 : index
    %c0_2 = arith.constant 0 : index
    %c0_3 = arith.constant 0 : index
    %3 = vector.load %arg2[%c0, %c0_2, %c0_3] : memref<1x324x64xbf16, #tpu.memory_space<vmem>>, vector<1x288x64xbf16>
    %4 = vector.shape_cast %3 : vector<1x288x64xbf16> to vector<288x64xbf16>
    %c0_4 = arith.constant 0 : index
    %c0_5 = arith.constant 0 : index
    %c0_6 = arith.constant 0 : index
    %5 = vector.load %arg3[%c0_4, %c0_5, %c0_6] : memref<9x64x64xbf16, #tpu.memory_space<vmem>>, vector<1x64x64xbf16>
    %6 = vector.shape_cast %5 : vector<1x64x64xbf16> to vector<64x64xbf16>
    %cst_7 = arith.constant dense<0.000000e+00> : vector<288x64xf32>
    %7 = tpu.matmul %4, %6, %cst_7 {dimension_numbers = #tpu.dot_dimension_numbers<[1], [0], [0], [1], [0, 0, 1, 1], [], []>} : vector<288x64xbf16>, vector<64x64xbf16>, vector<288x64xf32> -> vector<288x64xf32>
    %8 = arith.addf %0, %7 : vector<288x64xf32>
    %c1 = arith.constant 1 : index
    %c0_8 = arith.constant 0 : index
    %c0_9 = arith.constant 0 : index
    %9 = vector.load %arg3[%c1, %c0_8, %c0_9] : memref<9x64x64xbf16, #tpu.memory_space<vmem>>, vector<1x64x64xbf16>
    %10 = vector.shape_cast %9 : vector<1x64x64xbf16> to vector<64x64xbf16>
    %cst_10 = arith.constant dense<0.000000e+00> : vector<288x64xf32>
    %11 = tpu.matmul %4, %10, %cst_10 {dimension_numbers = #tpu.dot_dimension_numbers<[1], [0], [0], [1], [0, 0, 1, 1], [], []>} : vector<288x64xbf16>, vector<64x64xbf16>, vector<288x64xf32> -> vector<288x64xf32>
    %12 = arith.addf %1, %11 : vector<288x64xf32>
    %c2 = arith.constant 2 : index
    %c0_11 = arith.constant 0 : index
    %c0_12 = arith.constant 0 : index
    %13 = vector.load %arg3[%c2, %c0_11, %c0_12] : memref<9x64x64xbf16, #tpu.memory_space<vmem>>, vector<1x64x64xbf16>
    %14 = vector.shape_cast %13 : vector<1x64x64xbf16> to vector<64x64xbf16>
    %cst_13 = arith.constant dense<0.000000e+00> : vector<288x64xf32>
    %15 = tpu.matmul %4, %14, %cst_13 {dimension_numbers = #tpu.dot_dimension_numbers<[1], [0], [0], [1], [0, 0, 1, 1], [], []>} : vector<288x64xbf16>, vector<64x64xbf16>, vector<288x64xf32> -> vector<288x64xf32>
    %16 = arith.addf %2, %15 : vector<288x64xf32>
    %c0_14 = arith.constant 0 : index
    %c18 = arith.constant 18 : index
    %c0_15 = arith.constant 0 : index
    %17 = vector.load %arg2[%c0_14, %c18, %c0_15] : memref<1x324x64xbf16, #tpu.memory_space<vmem>>, vector<1x288x64xbf16>
    %18 = vector.shape_cast %17 : vector<1x288x64xbf16> to vector<288x64xbf16>
    %c3 = arith.constant 3 : index
    %c0_16 = arith.constant 0 : index
    %c0_17 = arith.constant 0 : index
    %19 = vector.load %arg3[%c3, %c0_16, %c0_17] : memref<9x64x64xbf16, #tpu.memory_space<vmem>>, vector<1x64x64xbf16>
    %20 = vector.shape_cast %19 : vector<1x64x64xbf16> to vector<64x64xbf16>
    %cst_18 = arith.constant dense<0.000000e+00> : vector<288x64xf32>
    %21 = tpu.matmul %18, %20, %cst_18 {dimension_numbers = #tpu.dot_dimension_numbers<[1], [0], [0], [1], [0, 0, 1, 1], [], []>} : vector<288x64xbf16>, vector<64x64xbf16>, vector<288x64xf32> -> vector<288x64xf32>
    %22 = arith.addf %8, %21 : vector<288x64xf32>
    %c4 = arith.constant 4 : index
    %c0_19 = arith.constant 0 : index
    %c0_20 = arith.constant 0 : index
    %23 = vector.load %arg3[%c4, %c0_19, %c0_20] : memref<9x64x64xbf16, #tpu.memory_space<vmem>>, vector<1x64x64xbf16>
    %24 = vector.shape_cast %23 : vector<1x64x64xbf16> to vector<64x64xbf16>
    %cst_21 = arith.constant dense<0.000000e+00> : vector<288x64xf32>
    %25 = tpu.matmul %18, %24, %cst_21 {dimension_numbers = #tpu.dot_dimension_numbers<[1], [0], [0], [1], [0, 0, 1, 1], [], []>} : vector<288x64xbf16>, vector<64x64xbf16>, vector<288x64xf32> -> vector<288x64xf32>
    %26 = arith.addf %12, %25 : vector<288x64xf32>
    %c5 = arith.constant 5 : index
    %c0_22 = arith.constant 0 : index
    %c0_23 = arith.constant 0 : index
    %27 = vector.load %arg3[%c5, %c0_22, %c0_23] : memref<9x64x64xbf16, #tpu.memory_space<vmem>>, vector<1x64x64xbf16>
    %28 = vector.shape_cast %27 : vector<1x64x64xbf16> to vector<64x64xbf16>
    %cst_24 = arith.constant dense<0.000000e+00> : vector<288x64xf32>
    %29 = tpu.matmul %18, %28, %cst_24 {dimension_numbers = #tpu.dot_dimension_numbers<[1], [0], [0], [1], [0, 0, 1, 1], [], []>} : vector<288x64xbf16>, vector<64x64xbf16>, vector<288x64xf32> -> vector<288x64xf32>
    %30 = arith.addf %16, %29 : vector<288x64xf32>
    %c0_25 = arith.constant 0 : index
    %c36 = arith.constant 36 : index
    %c0_26 = arith.constant 0 : index
    %31 = vector.load %arg2[%c0_25, %c36, %c0_26] : memref<1x324x64xbf16, #tpu.memory_space<vmem>>, vector<1x288x64xbf16>
    %32 = vector.shape_cast %31 : vector<1x288x64xbf16> to vector<288x64xbf16>
    %c6 = arith.constant 6 : index
    %c0_27 = arith.constant 0 : index
    %c0_28 = arith.constant 0 : index
    %33 = vector.load %arg3[%c6, %c0_27, %c0_28] : memref<9x64x64xbf16, #tpu.memory_space<vmem>>, vector<1x64x64xbf16>
    %34 = vector.shape_cast %33 : vector<1x64x64xbf16> to vector<64x64xbf16>
    %cst_29 = arith.constant dense<0.000000e+00> : vector<288x64xf32>
    %35 = tpu.matmul %32, %34, %cst_29 {dimension_numbers = #tpu.dot_dimension_numbers<[1], [0], [0], [1], [0, 0, 1, 1], [], []>} : vector<288x64xbf16>, vector<64x64xbf16>, vector<288x64xf32> -> vector<288x64xf32>
    %36 = arith.addf %22, %35 : vector<288x64xf32>
    %c7 = arith.constant 7 : index
    %c0_30 = arith.constant 0 : index
    %c0_31 = arith.constant 0 : index
    %37 = vector.load %arg3[%c7, %c0_30, %c0_31] : memref<9x64x64xbf16, #tpu.memory_space<vmem>>, vector<1x64x64xbf16>
    %38 = vector.shape_cast %37 : vector<1x64x64xbf16> to vector<64x64xbf16>
    %cst_32 = arith.constant dense<0.000000e+00> : vector<288x64xf32>
    %39 = tpu.matmul %32, %38, %cst_32 {dimension_numbers = #tpu.dot_dimension_numbers<[1], [0], [0], [1], [0, 0, 1, 1], [], []>} : vector<288x64xbf16>, vector<64x64xbf16>, vector<288x64xf32> -> vector<288x64xf32>
    %40 = arith.addf %26, %39 : vector<288x64xf32>
    %c8 = arith.constant 8 : index
    %c0_33 = arith.constant 0 : index
    %c0_34 = arith.constant 0 : index
    %41 = vector.load %arg3[%c8, %c0_33, %c0_34] : memref<9x64x64xbf16, #tpu.memory_space<vmem>>, vector<1x64x64xbf16>
    %42 = vector.shape_cast %41 : vector<1x64x64xbf16> to vector<64x64xbf16>
    %cst_35 = arith.constant dense<0.000000e+00> : vector<288x64xf32>
    %43 = tpu.matmul %32, %42, %cst_35 {dimension_numbers = #tpu.dot_dimension_numbers<[1], [0], [0], [1], [0, 0, 1, 1], [], []>} : vector<288x64xbf16>, vector<64x64xbf16>, vector<288x64xf32> -> vector<288x64xf32>
    %44 = arith.addf %30, %43 : vector<288x64xf32>
    %cst_36 = arith.constant 0.000000e+00 : f32
    %45 = vector.broadcast %cst_36 : f32 to vector<1x64xf32>
    %cst_37 = arith.constant 0.000000e+00 : f32
    %46 = vector.broadcast %cst_37 : f32 to vector<1x64xf32>
    %47 = vector.extract_strided_slice %36 {offsets = [0, 0], sizes = [16, 64], strides = [1, 1]} : vector<288x64xf32> to vector<16x64xf32>
    %48 = vector.extract_strided_slice %40 {offsets = [1, 0], sizes = [16, 64], strides = [1, 1]} : vector<288x64xf32> to vector<16x64xf32>
    %49 = arith.addf %47, %48 : vector<16x64xf32>
    %50 = vector.extract_strided_slice %44 {offsets = [2, 0], sizes = [16, 64], strides = [1, 1]} : vector<288x64xf32> to vector<16x64xf32>
    %51 = arith.addf %49, %50 : vector<16x64xf32>
    %52 = arith.truncf %51 : vector<16x64xf32> to vector<16x64xbf16>
    %c0_38 = arith.constant 0 : index
    %c0_39 = arith.constant 0 : index
    %c0_40 = arith.constant 0 : index
    %c0_41 = arith.constant 0 : index
    %53 = vector.load %arg4[%c0_38, %c0_39, %c0_40, %c0_41] : memref<1x16x16x64xbf16, #tpu.memory_space<vmem>>, vector<1x1x16x64xbf16>
    %54 = vector.shape_cast %53 : vector<1x1x16x64xbf16> to vector<16x64xbf16>
    %55 = vector.shape_cast %52 : vector<16x64xbf16> to vector<1x1x16x64xbf16>
    tpu.vector_store %arg4[%c0_38, %c0_39, %c0_40, %c0_41], %55 {strides = array<i32>} : memref<1x16x16x64xbf16, #tpu.memory_space<vmem>>, vector<1x1x16x64xbf16>,
    %cst_42 = arith.constant dense<0.000000e+00> : vector<64xf32>
    %56 = vector.multi_reduction <add>, %51, %cst_42 [0] : vector<16x64xf32> to vector<64xf32>
    %57 = vector.shape_cast %56 : vector<64xf32> to vector<1x64xf32>
    %58 = arith.addf %45, %57 : vector<1x64xf32>
    %59 = arith.mulf %51, %51 : vector<16x64xf32>
    %cst_43 = arith.constant dense<0.000000e+00> : vector<64xf32>
    %60 = vector.multi_reduction <add>, %59, %cst_43 [0] : vector<16x64xf32> to vector<64xf32>
    %61 = vector.shape_cast %60 : vector<64xf32> to vector<1x64xf32>
    %62 = arith.addf %46, %61 : vector<1x64xf32>
    %63 = vector.extract_strided_slice %36 {offsets = [18, 0], sizes = [16, 64], strides = [1, 1]} : vector<288x64xf32> to vector<16x64xf32>
    %64 = vector.extract_strided_slice %40 {offsets = [19, 0], sizes = [16, 64], strides = [1, 1]} : vector<288x64xf32> to vector<16x64xf32>
    %65 = arith.addf %63, %64 : vector<16x64xf32>
    %66 = vector.extract_strided_slice %44 {offsets = [20, 0], sizes = [16, 64], strides = [1, 1]} : vector<288x64xf32> to vector<16x64xf32>
    %67 = arith.addf %65, %66 : vector<16x64xf32>
    %68 = arith.truncf %67 : vector<16x64xf32> to vector<16x64xbf16>
    %c0_44 = arith.constant 0 : index
    %c1_45 = arith.constant 1 : index
    %c0_46 = arith.constant 0 : index
    %c0_47 = arith.constant 0 : index
    %69 = vector.load %arg4[%c0_44, %c1_45, %c0_46, %c0_47] : memref<1x16x16x64xbf16, #tpu.memory_space<vmem>>, vector<1x1x16x64xbf16>
    %70 = vector.shape_cast %69 : vector<1x1x16x64xbf16> to vector<16x64xbf16>
    %71 = vector.shape_cast %68 : vector<16x64xbf16> to vector<1x1x16x64xbf16>
    tpu.vector_store %arg4[%c0_44, %c1_45, %c0_46, %c0_47], %71 {strides = array<i32>} : memref<1x16x16x64xbf16, #tpu.memory_space<vmem>>, vector<1x1x16x64xbf16>,
    %cst_48 = arith.constant dense<0.000000e+00> : vector<64xf32>
    %72 = vector.multi_reduction <add>, %67, %cst_48 [0] : vector<16x64xf32> to vector<64xf32>
    %73 = vector.shape_cast %72 : vector<64xf32> to vector<1x64xf32>
    %74 = arith.addf %58, %73 : vector<1x64xf32>
    %75 = arith.mulf %67, %67 : vector<16x64xf32>
    %cst_49 = arith.constant dense<0.000000e+00> : vector<64xf32>
    %76 = vector.multi_reduction <add>, %75, %cst_49 [0] : vector<16x64xf32> to vector<64xf32>
    %77 = vector.shape_cast %76 : vector<64xf32> to vector<1x64xf32>
    %78 = arith.addf %62, %77 : vector<1x64xf32>
    %79 = vector.extract_strided_slice %36 {offsets = [36, 0], sizes = [16, 64], strides = [1, 1]} : vector<288x64xf32> to vector<16x64xf32>
    %80 = vector.extract_strided_slice %40 {offsets = [37, 0], sizes = [16, 64], strides = [1, 1]} : vector<288x64xf32> to vector<16x64xf32>
    %81 = arith.addf %79, %80 : vector<16x64xf32>
    %82 = vector.extract_strided_slice %44 {offsets = [38, 0], sizes = [16, 64], strides = [1, 1]} : vector<288x64xf32> to vector<16x64xf32>
    %83 = arith.addf %81, %82 : vector<16x64xf32>
    %84 = arith.truncf %83 : vector<16x64xf32> to vector<16x64xbf16>
    %c0_50 = arith.constant 0 : index
    %c2_51 = arith.constant 2 : index
    %c0_52 = arith.constant 0 : index
    %c0_53 = arith.constant 0 : index
    %85 = vector.load %arg4[%c0_50, %c2_51, %c0_52, %c0_53] : memref<1x16x16x64xbf16, #tpu.memory_space<vmem>>, vector<1x1x16x64xbf16>
    %86 = vector.shape_cast %85 : vector<1x1x16x64xbf16> to vector<16x64xbf16>
    %87 = vector.shape_cast %84 : vector<16x64xbf16> to vector<1x1x16x64xbf16>
    tpu.vector_store %arg4[%c0_50, %c2_51, %c0_52, %c0_53], %87 {strides = array<i32>} : memref<1x16x16x64xbf16, #tpu.memory_space<vmem>>, vector<1x1x16x64xbf16>,
    %cst_54 = arith.constant dense<0.000000e+00> : vector<64xf32>
    %88 = vector.multi_reduction <add>, %83, %cst_54 [0] : vector<16x64xf32> to vector<64xf32>
    %89 = vector.shape_cast %88 : vector<64xf32> to vector<1x64xf32>
    %90 = arith.addf %74, %89 : vector<1x64xf32>
    %91 = arith.mulf %83, %83 : vector<16x64xf32>
    %cst_55 = arith.constant dense<0.000000e+00> : vector<64xf32>
    %92 = vector.multi_reduction <add>, %91, %cst_55 [0] : vector<16x64xf32> to vector<64xf32>
    %93 = vector.shape_cast %92 : vector<64xf32> to vector<1x64xf32>
    %94 = arith.addf %78, %93 : vector<1x64xf32>
    %95 = vector.extract_strided_slice %36 {offsets = [54, 0], sizes = [16, 64], strides = [1, 1]} : vector<288x64xf32> to vector<16x64xf32>
    %96 = vector.extract_strided_slice %40 {offsets = [55, 0], sizes = [16, 64], strides = [1, 1]} : vector<288x64xf32> to vector<16x64xf32>
    %97 = arith.addf %95, %96 : vector<16x64xf32>
    %98 = vector.extract_strided_slice %44 {offsets = [56, 0], sizes = [16, 64], strides = [1, 1]} : vector<288x64xf32> to vector<16x64xf32>
    %99 = arith.addf %97, %98 : vector<16x64xf32>
    %100 = arith.truncf %99 : vector<16x64xf32> to vector<16x64xbf16>
    %c0_56 = arith.constant 0 : index
    %c3_57 = arith.constant 3 : index
    %c0_58 = arith.constant 0 : index
    %c0_59 = arith.constant 0 : index
    %101 = vector.load %arg4[%c0_56, %c3_57, %c0_58, %c0_59] : memref<1x16x16x64xbf16, #tpu.memory_space<vmem>>, vector<1x1x16x64xbf16>
    %102 = vector.shape_cast %101 : vector<1x1x16x64xbf16> to vector<16x64xbf16>
    %103 = vector.shape_cast %100 : vector<16x64xbf16> to vector<1x1x16x64xbf16>
    tpu.vector_store %arg4[%c0_56, %c3_57, %c0_58, %c0_59], %103 {strides = array<i32>} : memref<1x16x16x64xbf16, #tpu.memory_space<vmem>>, vector<1x1x16x64xbf16>,
    %cst_60 = arith.constant dense<0.000000e+00> : vector<64xf32>
    %104 = vector.multi_reduction <add>, %99, %cst_60 [0] : vector<16x64xf32> to vector<64xf32>
    %105 = vector.shape_cast %104 : vector<64xf32> to vector<1x64xf32>
    %106 = arith.addf %90, %105 : vector<1x64xf32>
    %107 = arith.mulf %99, %99 : vector<16x64xf32>
    %cst_61 = arith.constant dense<0.000000e+00> : vector<64xf32>
    %108 = vector.multi_reduction <add>, %107, %cst_61 [0] : vector<16x64xf32> to vector<64xf32>
    %109 = vector.shape_cast %108 : vector<64xf32> to vector<1x64xf32>
    %110 = arith.addf %94, %109 : vector<1x64xf32>
    %111 = vector.extract_strided_slice %36 {offsets = [72, 0], sizes = [16, 64], strides = [1, 1]} : vector<288x64xf32> to vector<16x64xf32>
    %112 = vector.extract_strided_slice %40 {offsets = [73, 0], sizes = [16, 64], strides = [1, 1]} : vector<288x64xf32> to vector<16x64xf32>
    %113 = arith.addf %111, %112 : vector<16x64xf32>
    %114 = vector.extract_strided_slice %44 {offsets = [74, 0], sizes = [16, 64], strides = [1, 1]} : vector<288x64xf32> to vector<16x64xf32>
    %115 = arith.addf %113, %114 : vector<16x64xf32>
    %116 = arith.truncf %115 : vector<16x64xf32> to vector<16x64xbf16>
    %c0_62 = arith.constant 0 : index
    %c4_63 = arith.constant 4 : index
    %c0_64 = arith.constant 0 : index
    %c0_65 = arith.constant 0 : index
    %117 = vector.load %arg4[%c0_62, %c4_63, %c0_64, %c0_65] : memref<1x16x16x64xbf16, #tpu.memory_space<vmem>>, vector<1x1x16x64xbf16>
    %118 = vector.shape_cast %117 : vector<1x1x16x64xbf16> to vector<16x64xbf16>
    %119 = vector.shape_cast %116 : vector<16x64xbf16> to vector<1x1x16x64xbf16>
    tpu.vector_store %arg4[%c0_62, %c4_63, %c0_64, %c0_65], %119 {strides = array<i32>} : memref<1x16x16x64xbf16, #tpu.memory_space<vmem>>, vector<1x1x16x64xbf16>,
    %cst_66 = arith.constant dense<0.000000e+00> : vector<64xf32>
    %120 = vector.multi_reduction <add>, %115, %cst_66 [0] : vector<16x64xf32> to vector<64xf32>
    %121 = vector.shape_cast %120 : vector<64xf32> to vector<1x64xf32>
    %122 = arith.addf %106, %121 : vector<1x64xf32>
    %123 = arith.mulf %115, %115 : vector<16x64xf32>
    %cst_67 = arith.constant dense<0.000000e+00> : vector<64xf32>
    %124 = vector.multi_reduction <add>, %123, %cst_67 [0] : vector<16x64xf32> to vector<64xf32>
    %125 = vector.shape_cast %124 : vector<64xf32> to vector<1x64xf32>
    %126 = arith.addf %110, %125 : vector<1x64xf32>
    %127 = vector.extract_strided_slice %36 {offsets = [90, 0], sizes = [16, 64], strides = [1, 1]} : vector<288x64xf32> to vector<16x64xf32>
    %128 = vector.extract_strided_slice %40 {offsets = [91, 0], sizes = [16, 64], strides = [1, 1]} : vector<288x64xf32> to vector<16x64xf32>
    %129 = arith.addf %127, %128 : vector<16x64xf32>
    %130 = vector.extract_strided_slice %44 {offsets = [92, 0], sizes = [16, 64], strides = [1, 1]} : vector<288x64xf32> to vector<16x64xf32>
    %131 = arith.addf %129, %130 : vector<16x64xf32>
    %132 = arith.truncf %131 : vector<16x64xf32> to vector<16x64xbf16>
    %c0_68 = arith.constant 0 : index
    %c5_69 = arith.constant 5 : index
    %c0_70 = arith.constant 0 : index
    %c0_71 = arith.constant 0 : index
    %133 = vector.load %arg4[%c0_68, %c5_69, %c0_70, %c0_71] : memref<1x16x16x64xbf16, #tpu.memory_space<vmem>>, vector<1x1x16x64xbf16>
    %134 = vector.shape_cast %133 : vector<1x1x16x64xbf16> to vector<16x64xbf16>
    %135 = vector.shape_cast %132 : vector<16x64xbf16> to vector<1x1x16x64xbf16>
    tpu.vector_store %arg4[%c0_68, %c5_69, %c0_70, %c0_71], %135 {strides = array<i32>} : memref<1x16x16x64xbf16, #tpu.memory_space<vmem>>, vector<1x1x16x64xbf16>,
    %cst_72 = arith.constant dense<0.000000e+00> : vector<64xf32>
    %136 = vector.multi_reduction <add>, %131, %cst_72 [0] : vector<16x64xf32> to vector<64xf32>
    %137 = vector.shape_cast %136 : vector<64xf32> to vector<1x64xf32>
    %138 = arith.addf %122, %137 : vector<1x64xf32>
    %139 = arith.mulf %131, %131 : vector<16x64xf32>
    %cst_73 = arith.constant dense<0.000000e+00> : vector<64xf32>
    %140 = vector.multi_reduction <add>, %139, %cst_73 [0] : vector<16x64xf32> to vector<64xf32>
    %141 = vector.shape_cast %140 : vector<64xf32> to vector<1x64xf32>
    %142 = arith.addf %126, %141 : vector<1x64xf32>
    %143 = vector.extract_strided_slice %36 {offsets = [108, 0], sizes = [16, 64], strides = [1, 1]} : vector<288x64xf32> to vector<16x64xf32>
    %144 = vector.extract_strided_slice %40 {offsets = [109, 0], sizes = [16, 64], strides = [1, 1]} : vector<288x64xf32> to vector<16x64xf32>
    %145 = arith.addf %143, %144 : vector<16x64xf32>
    %146 = vector.extract_strided_slice %44 {offsets = [110, 0], sizes = [16, 64], strides = [1, 1]} : vector<288x64xf32> to vector<16x64xf32>
    %147 = arith.addf %145, %146 : vector<16x64xf32>
    %148 = arith.truncf %147 : vector<16x64xf32> to vector<16x64xbf16>
    %c0_74 = arith.constant 0 : index
    %c6_75 = arith.constant 6 : index
    %c0_76 = arith.constant 0 : index
    %c0_77 = arith.constant 0 : index
    %149 = vector.load %arg4[%c0_74, %c6_75, %c0_76, %c0_77] : memref<1x16x16x64xbf16, #tpu.memory_space<vmem>>, vector<1x1x16x64xbf16>
    %150 = vector.shape_cast %149 : vector<1x1x16x64xbf16> to vector<16x64xbf16>
    %151 = vector.shape_cast %148 : vector<16x64xbf16> to vector<1x1x16x64xbf16>
    tpu.vector_store %arg4[%c0_74, %c6_75, %c0_76, %c0_77], %151 {strides = array<i32>} : memref<1x16x16x64xbf16, #tpu.memory_space<vmem>>, vector<1x1x16x64xbf16>,
    %cst_78 = arith.constant dense<0.000000e+00> : vector<64xf32>
    %152 = vector.multi_reduction <add>, %147, %cst_78 [0] : vector<16x64xf32> to vector<64xf32>
    %153 = vector.shape_cast %152 : vector<64xf32> to vector<1x64xf32>
    %154 = arith.addf %138, %153 : vector<1x64xf32>
    %155 = arith.mulf %147, %147 : vector<16x64xf32>
    %cst_79 = arith.constant dense<0.000000e+00> : vector<64xf32>
    %156 = vector.multi_reduction <add>, %155, %cst_79 [0] : vector<16x64xf32> to vector<64xf32>
    %157 = vector.shape_cast %156 : vector<64xf32> to vector<1x64xf32>
    %158 = arith.addf %142, %157 : vector<1x64xf32>
    %159 = vector.extract_strided_slice %36 {offsets = [126, 0], sizes = [16, 64], strides = [1, 1]} : vector<288x64xf32> to vector<16x64xf32>
    %160 = vector.extract_strided_slice %40 {offsets = [127, 0], sizes = [16, 64], strides = [1, 1]} : vector<288x64xf32> to vector<16x64xf32>
    %161 = arith.addf %159, %160 : vector<16x64xf32>
    %162 = vector.extract_strided_slice %44 {offsets = [128, 0], sizes = [16, 64], strides = [1, 1]} : vector<288x64xf32> to vector<16x64xf32>
    %163 = arith.addf %161, %162 : vector<16x64xf32>
    %164 = arith.truncf %163 : vector<16x64xf32> to vector<16x64xbf16>
    %c0_80 = arith.constant 0 : index
    %c7_81 = arith.constant 7 : index
    %c0_82 = arith.constant 0 : index
    %c0_83 = arith.constant 0 : index
    %165 = vector.load %arg4[%c0_80, %c7_81, %c0_82, %c0_83] : memref<1x16x16x64xbf16, #tpu.memory_space<vmem>>, vector<1x1x16x64xbf16>
    %166 = vector.shape_cast %165 : vector<1x1x16x64xbf16> to vector<16x64xbf16>
    %167 = vector.shape_cast %164 : vector<16x64xbf16> to vector<1x1x16x64xbf16>
    tpu.vector_store %arg4[%c0_80, %c7_81, %c0_82, %c0_83], %167 {strides = array<i32>} : memref<1x16x16x64xbf16, #tpu.memory_space<vmem>>, vector<1x1x16x64xbf16>,
    %cst_84 = arith.constant dense<0.000000e+00> : vector<64xf32>
    %168 = vector.multi_reduction <add>, %163, %cst_84 [0] : vector<16x64xf32> to vector<64xf32>
    %169 = vector.shape_cast %168 : vector<64xf32> to vector<1x64xf32>
    %170 = arith.addf %154, %169 : vector<1x64xf32>
    %171 = arith.mulf %163, %163 : vector<16x64xf32>
    %cst_85 = arith.constant dense<0.000000e+00> : vector<64xf32>
    %172 = vector.multi_reduction <add>, %171, %cst_85 [0] : vector<16x64xf32> to vector<64xf32>
    %173 = vector.shape_cast %172 : vector<64xf32> to vector<1x64xf32>
    %174 = arith.addf %158, %173 : vector<1x64xf32>
    %175 = vector.extract_strided_slice %36 {offsets = [144, 0], sizes = [16, 64], strides = [1, 1]} : vector<288x64xf32> to vector<16x64xf32>
    %176 = vector.extract_strided_slice %40 {offsets = [145, 0], sizes = [16, 64], strides = [1, 1]} : vector<288x64xf32> to vector<16x64xf32>
    %177 = arith.addf %175, %176 : vector<16x64xf32>
    %178 = vector.extract_strided_slice %44 {offsets = [146, 0], sizes = [16, 64], strides = [1, 1]} : vector<288x64xf32> to vector<16x64xf32>
    %179 = arith.addf %177, %178 : vector<16x64xf32>
    %180 = arith.truncf %179 : vector<16x64xf32> to vector<16x64xbf16>
    %c0_86 = arith.constant 0 : index
    %c8_87 = arith.constant 8 : index
    %c0_88 = arith.constant 0 : index
    %c0_89 = arith.constant 0 : index
    %181 = vector.load %arg4[%c0_86, %c8_87, %c0_88, %c0_89] : memref<1x16x16x64xbf16, #tpu.memory_space<vmem>>, vector<1x1x16x64xbf16>
    %182 = vector.shape_cast %181 : vector<1x1x16x64xbf16> to vector<16x64xbf16>
    %183 = vector.shape_cast %180 : vector<16x64xbf16> to vector<1x1x16x64xbf16>
    tpu.vector_store %arg4[%c0_86, %c8_87, %c0_88, %c0_89], %183 {strides = array<i32>} : memref<1x16x16x64xbf16, #tpu.memory_space<vmem>>, vector<1x1x16x64xbf16>,
    %cst_90 = arith.constant dense<0.000000e+00> : vector<64xf32>
    %184 = vector.multi_reduction <add>, %179, %cst_90 [0] : vector<16x64xf32> to vector<64xf32>
    %185 = vector.shape_cast %184 : vector<64xf32> to vector<1x64xf32>
    %186 = arith.addf %170, %185 : vector<1x64xf32>
    %187 = arith.mulf %179, %179 : vector<16x64xf32>
    %cst_91 = arith.constant dense<0.000000e+00> : vector<64xf32>
    %188 = vector.multi_reduction <add>, %187, %cst_91 [0] : vector<16x64xf32> to vector<64xf32>
    %189 = vector.shape_cast %188 : vector<64xf32> to vector<1x64xf32>
    %190 = arith.addf %174, %189 : vector<1x64xf32>
    %191 = vector.extract_strided_slice %36 {offsets = [162, 0], sizes = [16, 64], strides = [1, 1]} : vector<288x64xf32> to vector<16x64xf32>
    %192 = vector.extract_strided_slice %40 {offsets = [163, 0], sizes = [16, 64], strides = [1, 1]} : vector<288x64xf32> to vector<16x64xf32>
    %193 = arith.addf %191, %192 : vector<16x64xf32>
    %194 = vector.extract_strided_slice %44 {offsets = [164, 0], sizes = [16, 64], strides = [1, 1]} : vector<288x64xf32> to vector<16x64xf32>
    %195 = arith.addf %193, %194 : vector<16x64xf32>
    %196 = arith.truncf %195 : vector<16x64xf32> to vector<16x64xbf16>
    %c0_92 = arith.constant 0 : index
    %c9 = arith.constant 9 : index
    %c0_93 = arith.constant 0 : index
    %c0_94 = arith.constant 0 : index
    %197 = vector.load %arg4[%c0_92, %c9, %c0_93, %c0_94] : memref<1x16x16x64xbf16, #tpu.memory_space<vmem>>, vector<1x1x16x64xbf16>
    %198 = vector.shape_cast %197 : vector<1x1x16x64xbf16> to vector<16x64xbf16>
    %199 = vector.shape_cast %196 : vector<16x64xbf16> to vector<1x1x16x64xbf16>
    tpu.vector_store %arg4[%c0_92, %c9, %c0_93, %c0_94], %199 {strides = array<i32>} : memref<1x16x16x64xbf16, #tpu.memory_space<vmem>>, vector<1x1x16x64xbf16>,
    %cst_95 = arith.constant dense<0.000000e+00> : vector<64xf32>
    %200 = vector.multi_reduction <add>, %195, %cst_95 [0] : vector<16x64xf32> to vector<64xf32>
    %201 = vector.shape_cast %200 : vector<64xf32> to vector<1x64xf32>
    %202 = arith.addf %186, %201 : vector<1x64xf32>
    %203 = arith.mulf %195, %195 : vector<16x64xf32>
    %cst_96 = arith.constant dense<0.000000e+00> : vector<64xf32>
    %204 = vector.multi_reduction <add>, %203, %cst_96 [0] : vector<16x64xf32> to vector<64xf32>
    %205 = vector.shape_cast %204 : vector<64xf32> to vector<1x64xf32>
    %206 = arith.addf %190, %205 : vector<1x64xf32>
    %207 = vector.extract_strided_slice %36 {offsets = [180, 0], sizes = [16, 64], strides = [1, 1]} : vector<288x64xf32> to vector<16x64xf32>
    %208 = vector.extract_strided_slice %40 {offsets = [181, 0], sizes = [16, 64], strides = [1, 1]} : vector<288x64xf32> to vector<16x64xf32>
    %209 = arith.addf %207, %208 : vector<16x64xf32>
    %210 = vector.extract_strided_slice %44 {offsets = [182, 0], sizes = [16, 64], strides = [1, 1]} : vector<288x64xf32> to vector<16x64xf32>
    %211 = arith.addf %209, %210 : vector<16x64xf32>
    %212 = arith.truncf %211 : vector<16x64xf32> to vector<16x64xbf16>
    %c0_97 = arith.constant 0 : index
    %c10 = arith.constant 10 : index
    %c0_98 = arith.constant 0 : index
    %c0_99 = arith.constant 0 : index
    %213 = vector.load %arg4[%c0_97, %c10, %c0_98, %c0_99] : memref<1x16x16x64xbf16, #tpu.memory_space<vmem>>, vector<1x1x16x64xbf16>
    %214 = vector.shape_cast %213 : vector<1x1x16x64xbf16> to vector<16x64xbf16>
    %215 = vector.shape_cast %212 : vector<16x64xbf16> to vector<1x1x16x64xbf16>
    tpu.vector_store %arg4[%c0_97, %c10, %c0_98, %c0_99], %215 {strides = array<i32>} : memref<1x16x16x64xbf16, #tpu.memory_space<vmem>>, vector<1x1x16x64xbf16>,
    %cst_100 = arith.constant dense<0.000000e+00> : vector<64xf32>
    %216 = vector.multi_reduction <add>, %211, %cst_100 [0] : vector<16x64xf32> to vector<64xf32>
    %217 = vector.shape_cast %216 : vector<64xf32> to vector<1x64xf32>
    %218 = arith.addf %202, %217 : vector<1x64xf32>
    %219 = arith.mulf %211, %211 : vector<16x64xf32>
    %cst_101 = arith.constant dense<0.000000e+00> : vector<64xf32>
    %220 = vector.multi_reduction <add>, %219, %cst_101 [0] : vector<16x64xf32> to vector<64xf32>
    %221 = vector.shape_cast %220 : vector<64xf32> to vector<1x64xf32>
    %222 = arith.addf %206, %221 : vector<1x64xf32>
    %223 = vector.extract_strided_slice %36 {offsets = [198, 0], sizes = [16, 64], strides = [1, 1]} : vector<288x64xf32> to vector<16x64xf32>
    %224 = vector.extract_strided_slice %40 {offsets = [199, 0], sizes = [16, 64], strides = [1, 1]} : vector<288x64xf32> to vector<16x64xf32>
    %225 = arith.addf %223, %224 : vector<16x64xf32>
    %226 = vector.extract_strided_slice %44 {offsets = [200, 0], sizes = [16, 64], strides = [1, 1]} : vector<288x64xf32> to vector<16x64xf32>
    %227 = arith.addf %225, %226 : vector<16x64xf32>
    %228 = arith.truncf %227 : vector<16x64xf32> to vector<16x64xbf16>
    %c0_102 = arith.constant 0 : index
    %c11 = arith.constant 11 : index
    %c0_103 = arith.constant 0 : index
    %c0_104 = arith.constant 0 : index
    %229 = vector.load %arg4[%c0_102, %c11, %c0_103, %c0_104] : memref<1x16x16x64xbf16, #tpu.memory_space<vmem>>, vector<1x1x16x64xbf16>
    %230 = vector.shape_cast %229 : vector<1x1x16x64xbf16> to vector<16x64xbf16>
    %231 = vector.shape_cast %228 : vector<16x64xbf16> to vector<1x1x16x64xbf16>
    tpu.vector_store %arg4[%c0_102, %c11, %c0_103, %c0_104], %231 {strides = array<i32>} : memref<1x16x16x64xbf16, #tpu.memory_space<vmem>>, vector<1x1x16x64xbf16>,
    %cst_105 = arith.constant dense<0.000000e+00> : vector<64xf32>
    %232 = vector.multi_reduction <add>, %227, %cst_105 [0] : vector<16x64xf32> to vector<64xf32>
    %233 = vector.shape_cast %232 : vector<64xf32> to vector<1x64xf32>
    %234 = arith.addf %218, %233 : vector<1x64xf32>
    %235 = arith.mulf %227, %227 : vector<16x64xf32>
    %cst_106 = arith.constant dense<0.000000e+00> : vector<64xf32>
    %236 = vector.multi_reduction <add>, %235, %cst_106 [0] : vector<16x64xf32> to vector<64xf32>
    %237 = vector.shape_cast %236 : vector<64xf32> to vector<1x64xf32>
    %238 = arith.addf %222, %237 : vector<1x64xf32>
    %239 = vector.extract_strided_slice %36 {offsets = [216, 0], sizes = [16, 64], strides = [1, 1]} : vector<288x64xf32> to vector<16x64xf32>
    %240 = vector.extract_strided_slice %40 {offsets = [217, 0], sizes = [16, 64], strides = [1, 1]} : vector<288x64xf32> to vector<16x64xf32>
    %241 = arith.addf %239, %240 : vector<16x64xf32>
    %242 = vector.extract_strided_slice %44 {offsets = [218, 0], sizes = [16, 64], strides = [1, 1]} : vector<288x64xf32> to vector<16x64xf32>
    %243 = arith.addf %241, %242 : vector<16x64xf32>
    %244 = arith.truncf %243 : vector<16x64xf32> to vector<16x64xbf16>
    %c0_107 = arith.constant 0 : index
    %c12 = arith.constant 12 : index
    %c0_108 = arith.constant 0 : index
    %c0_109 = arith.constant 0 : index
    %245 = vector.load %arg4[%c0_107, %c12, %c0_108, %c0_109] : memref<1x16x16x64xbf16, #tpu.memory_space<vmem>>, vector<1x1x16x64xbf16>
    %246 = vector.shape_cast %245 : vector<1x1x16x64xbf16> to vector<16x64xbf16>
    %247 = vector.shape_cast %244 : vector<16x64xbf16> to vector<1x1x16x64xbf16>
    tpu.vector_store %arg4[%c0_107, %c12, %c0_108, %c0_109], %247 {strides = array<i32>} : memref<1x16x16x64xbf16, #tpu.memory_space<vmem>>, vector<1x1x16x64xbf16>,
    %cst_110 = arith.constant dense<0.000000e+00> : vector<64xf32>
    %248 = vector.multi_reduction <add>, %243, %cst_110 [0] : vector<16x64xf32> to vector<64xf32>
    %249 = vector.shape_cast %248 : vector<64xf32> to vector<1x64xf32>
    %250 = arith.addf %234, %249 : vector<1x64xf32>
    %251 = arith.mulf %243, %243 : vector<16x64xf32>
    %cst_111 = arith.constant dense<0.000000e+00> : vector<64xf32>
    %252 = vector.multi_reduction <add>, %251, %cst_111 [0] : vector<16x64xf32> to vector<64xf32>
    %253 = vector.shape_cast %252 : vector<64xf32> to vector<1x64xf32>
    %254 = arith.addf %238, %253 : vector<1x64xf32>
    %255 = vector.extract_strided_slice %36 {offsets = [234, 0], sizes = [16, 64], strides = [1, 1]} : vector<288x64xf32> to vector<16x64xf32>
    %256 = vector.extract_strided_slice %40 {offsets = [235, 0], sizes = [16, 64], strides = [1, 1]} : vector<288x64xf32> to vector<16x64xf32>
    %257 = arith.addf %255, %256 : vector<16x64xf32>
    %258 = vector.extract_strided_slice %44 {offsets = [236, 0], sizes = [16, 64], strides = [1, 1]} : vector<288x64xf32> to vector<16x64xf32>
    %259 = arith.addf %257, %258 : vector<16x64xf32>
    %260 = arith.truncf %259 : vector<16x64xf32> to vector<16x64xbf16>
    %c0_112 = arith.constant 0 : index
    %c13 = arith.constant 13 : index
    %c0_113 = arith.constant 0 : index
    %c0_114 = arith.constant 0 : index
    %261 = vector.load %arg4[%c0_112, %c13, %c0_113, %c0_114] : memref<1x16x16x64xbf16, #tpu.memory_space<vmem>>, vector<1x1x16x64xbf16>
    %262 = vector.shape_cast %261 : vector<1x1x16x64xbf16> to vector<16x64xbf16>
    %263 = vector.shape_cast %260 : vector<16x64xbf16> to vector<1x1x16x64xbf16>
    tpu.vector_store %arg4[%c0_112, %c13, %c0_113, %c0_114], %263 {strides = array<i32>} : memref<1x16x16x64xbf16, #tpu.memory_space<vmem>>, vector<1x1x16x64xbf16>,
    %cst_115 = arith.constant dense<0.000000e+00> : vector<64xf32>
    %264 = vector.multi_reduction <add>, %259, %cst_115 [0] : vector<16x64xf32> to vector<64xf32>
    %265 = vector.shape_cast %264 : vector<64xf32> to vector<1x64xf32>
    %266 = arith.addf %250, %265 : vector<1x64xf32>
    %267 = arith.mulf %259, %259 : vector<16x64xf32>
    %cst_116 = arith.constant dense<0.000000e+00> : vector<64xf32>
    %268 = vector.multi_reduction <add>, %267, %cst_116 [0] : vector<16x64xf32> to vector<64xf32>
    %269 = vector.shape_cast %268 : vector<64xf32> to vector<1x64xf32>
    %270 = arith.addf %254, %269 : vector<1x64xf32>
    %271 = vector.extract_strided_slice %36 {offsets = [252, 0], sizes = [16, 64], strides = [1, 1]} : vector<288x64xf32> to vector<16x64xf32>
    %272 = vector.extract_strided_slice %40 {offsets = [253, 0], sizes = [16, 64], strides = [1, 1]} : vector<288x64xf32> to vector<16x64xf32>
    %273 = arith.addf %271, %272 : vector<16x64xf32>
    %274 = vector.extract_strided_slice %44 {offsets = [254, 0], sizes = [16, 64], strides = [1, 1]} : vector<288x64xf32> to vector<16x64xf32>
    %275 = arith.addf %273, %274 : vector<16x64xf32>
    %276 = arith.truncf %275 : vector<16x64xf32> to vector<16x64xbf16>
    %c0_117 = arith.constant 0 : index
    %c14 = arith.constant 14 : index
    %c0_118 = arith.constant 0 : index
    %c0_119 = arith.constant 0 : index
    %277 = vector.load %arg4[%c0_117, %c14, %c0_118, %c0_119] : memref<1x16x16x64xbf16, #tpu.memory_space<vmem>>, vector<1x1x16x64xbf16>
    %278 = vector.shape_cast %277 : vector<1x1x16x64xbf16> to vector<16x64xbf16>
    %279 = vector.shape_cast %276 : vector<16x64xbf16> to vector<1x1x16x64xbf16>
    tpu.vector_store %arg4[%c0_117, %c14, %c0_118, %c0_119], %279 {strides = array<i32>} : memref<1x16x16x64xbf16, #tpu.memory_space<vmem>>, vector<1x1x16x64xbf16>,
    %cst_120 = arith.constant dense<0.000000e+00> : vector<64xf32>
    %280 = vector.multi_reduction <add>, %275, %cst_120 [0] : vector<16x64xf32> to vector<64xf32>
    %281 = vector.shape_cast %280 : vector<64xf32> to vector<1x64xf32>
    %282 = arith.addf %266, %281 : vector<1x64xf32>
    %283 = arith.mulf %275, %275 : vector<16x64xf32>
    %cst_121 = arith.constant dense<0.000000e+00> : vector<64xf32>
    %284 = vector.multi_reduction <add>, %283, %cst_121 [0] : vector<16x64xf32> to vector<64xf32>
    %285 = vector.shape_cast %284 : vector<64xf32> to vector<1x64xf32>
    %286 = arith.addf %270, %285 : vector<1x64xf32>
    %287 = vector.extract_strided_slice %36 {offsets = [270, 0], sizes = [16, 64], strides = [1, 1]} : vector<288x64xf32> to vector<16x64xf32>
    %288 = vector.extract_strided_slice %40 {offsets = [271, 0], sizes = [16, 64], strides = [1, 1]} : vector<288x64xf32> to vector<16x64xf32>
    %289 = arith.addf %287, %288 : vector<16x64xf32>
    %290 = vector.extract_strided_slice %44 {offsets = [272, 0], sizes = [16, 64], strides = [1, 1]} : vector<288x64xf32> to vector<16x64xf32>
    %291 = arith.addf %289, %290 : vector<16x64xf32>
    %292 = arith.truncf %291 : vector<16x64xf32> to vector<16x64xbf16>
    %c0_122 = arith.constant 0 : index
    %c15 = arith.constant 15 : index
    %c0_123 = arith.constant 0 : index
    %c0_124 = arith.constant 0 : index
    %293 = vector.load %arg4[%c0_122, %c15, %c0_123, %c0_124] : memref<1x16x16x64xbf16, #tpu.memory_space<vmem>>, vector<1x1x16x64xbf16>
    %294 = vector.shape_cast %293 : vector<1x1x16x64xbf16> to vector<16x64xbf16>
    %295 = vector.shape_cast %292 : vector<16x64xbf16> to vector<1x1x16x64xbf16>
    tpu.vector_store %arg4[%c0_122, %c15, %c0_123, %c0_124], %295 {strides = array<i32>} : memref<1x16x16x64xbf16, #tpu.memory_space<vmem>>, vector<1x1x16x64xbf16>,
    %cst_125 = arith.constant dense<0.000000e+00> : vector<64xf32>
    %296 = vector.multi_reduction <add>, %291, %cst_125 [0] : vector<16x64xf32> to vector<64xf32>
    %297 = vector.shape_cast %296 : vector<64xf32> to vector<1x64xf32>
    %298 = arith.addf %282, %297 : vector<1x64xf32>
    %299 = arith.mulf %291, %291 : vector<16x64xf32>
    %cst_126 = arith.constant dense<0.000000e+00> : vector<64xf32>
    %300 = vector.multi_reduction <add>, %299, %cst_126 [0] : vector<16x64xf32> to vector<64xf32>
    %301 = vector.shape_cast %300 : vector<64xf32> to vector<1x64xf32>
    %302 = arith.addf %286, %301 : vector<1x64xf32>
    %c0_127 = arith.constant 0 : index
    %c0_128 = arith.constant 0 : index
    %c0_129 = arith.constant 0 : index
    %303 = vector.load %arg5[%c0_127, %c0_128, %c0_129] : memref<1x2x64xf32, #tpu.memory_space<vmem>>, vector<1x1x64xf32>
    %304 = vector.shape_cast %303 : vector<1x1x64xf32> to vector<1x64xf32>
    %305 = vector.shape_cast %298 : vector<1x64xf32> to vector<1x1x64xf32>
    tpu.vector_store %arg5[%c0_127, %c0_128, %c0_129], %305 {strides = array<i32>} : memref<1x2x64xf32, #tpu.memory_space<vmem>>, vector<1x1x64xf32>,
    %c0_130 = arith.constant 0 : index
    %c1_131 = arith.constant 1 : index
    %c0_132 = arith.constant 0 : index
    %306 = vector.load %arg5[%c0_130, %c1_131, %c0_132] : memref<1x2x64xf32, #tpu.memory_space<vmem>>, vector<1x1x64xf32>
    %307 = vector.shape_cast %306 : vector<1x1x64xf32> to vector<1x64xf32>
    %308 = vector.shape_cast %302 : vector<1x64xf32> to vector<1x1x64xf32>
    tpu.vector_store %arg5[%c0_130, %c1_131, %c0_132], %308 {strides = array<i32>} : memref<1x2x64xf32, #tpu.memory_space<vmem>>, vector<1x1x64xf32>,
    return
  }
  func.func @transform_0(%arg0: i32, %arg1: i32) -> (i32, i32, i32) {
    %c0_i32 = arith.constant 0 : i32
    %c0_i32_0 = arith.constant 0 : i32
    %c0_i32_1 = arith.constant 0 : i32
    return %arg1, %c0_i32, %c0_i32_0 : i32, i32, i32
  }
  func.func @transform_1(%arg0: i32, %arg1: i32) -> (i32, i32, i32) {
    %c0_i32 = arith.constant 0 : i32
    %c0_i32_0 = arith.constant 0 : i32
    %c0_i32_1 = arith.constant 0 : i32
    return %c0_i32, %c0_i32_0, %arg0 : i32, i32, i32
  }
  func.func @transform_2(%arg0: i32, %arg1: i32) -> (i32, i32, i32, i32) {
    %c0_i32 = arith.constant 0 : i32
    %c0_i32_0 = arith.constant 0 : i32
    %c0_i32_1 = arith.constant 0 : i32
    return %arg1, %c0_i32, %c0_i32_0, %arg0 : i32, i32, i32, i32
  }
  func.func @transform_3(%arg0: i32, %arg1: i32) -> (i32, i32, i32) {
    %c0_i32 = arith.constant 0 : i32
    %c0_i32_0 = arith.constant 0 : i32
    return %arg1, %c0_i32, %arg0 : i32, i32, i32
  }
}

module attributes {stable_mosaic.version = 11 : i64} {
  func.func @kernel(%arg0: i32, %arg1: i32, %arg2: memref<1x100x64xbf16, #tpu.memory_space<vmem>>, %arg3: memref<9x64x128xbf16, #tpu.memory_space<vmem>>, %arg4: memref<1x8x8x128xbf16, #tpu.memory_space<vmem>>, %arg5: memref<1x2x128xf32, #tpu.memory_space<vmem>>) attributes {dimension_semantics = [#tpu.dimension_semantics<parallel>, #tpu.dimension_semantics<parallel>], iteration_bounds = array<i64: 1, 2>, scalar_prefetch = 0 : i64, scratch_operands = 0 : i64, tpu.core_type = #tpu.core_type<tc>, window_params = [{transform_indices = @transform_0, window_bounds = array<i64: 1, 100, 64>}, {transform_indices = @transform_1, window_bounds = array<i64: 9, 64, 128>}, {transform_indices = @transform_2, window_bounds = array<i64: 1, 8, 8, 128>}, {transform_indices = @transform_3, window_bounds = array<i64: 1, 2, 128>}]} {
    %cst = arith.constant 0.000000e+00 : f32
    %0 = vector.broadcast %cst : f32 to vector<80x128xf32>
    %cst_0 = arith.constant 0.000000e+00 : f32
    %1 = vector.broadcast %cst_0 : f32 to vector<80x128xf32>
    %cst_1 = arith.constant 0.000000e+00 : f32
    %2 = vector.broadcast %cst_1 : f32 to vector<80x128xf32>
    %c0 = arith.constant 0 : index
    %c0_2 = arith.constant 0 : index
    %c0_3 = arith.constant 0 : index
    %3 = vector.load %arg2[%c0, %c0_2, %c0_3] : memref<1x100x64xbf16, #tpu.memory_space<vmem>>, vector<1x80x64xbf16>
    %4 = vector.shape_cast %3 : vector<1x80x64xbf16> to vector<80x64xbf16>
    %c0_4 = arith.constant 0 : index
    %c0_5 = arith.constant 0 : index
    %c0_6 = arith.constant 0 : index
    %5 = vector.load %arg3[%c0_4, %c0_5, %c0_6] : memref<9x64x128xbf16, #tpu.memory_space<vmem>>, vector<1x64x128xbf16>
    %6 = vector.shape_cast %5 : vector<1x64x128xbf16> to vector<64x128xbf16>
    %cst_7 = arith.constant dense<0.000000e+00> : vector<80x128xf32>
    %7 = tpu.matmul %4, %6, %cst_7 {dimension_numbers = #tpu.dot_dimension_numbers<[1], [0], [0], [1], [0, 0, 1, 1], [], []>} : vector<80x64xbf16>, vector<64x128xbf16>, vector<80x128xf32> -> vector<80x128xf32>
    %8 = arith.addf %0, %7 : vector<80x128xf32>
    %c1 = arith.constant 1 : index
    %c0_8 = arith.constant 0 : index
    %c0_9 = arith.constant 0 : index
    %9 = vector.load %arg3[%c1, %c0_8, %c0_9] : memref<9x64x128xbf16, #tpu.memory_space<vmem>>, vector<1x64x128xbf16>
    %10 = vector.shape_cast %9 : vector<1x64x128xbf16> to vector<64x128xbf16>
    %cst_10 = arith.constant dense<0.000000e+00> : vector<80x128xf32>
    %11 = tpu.matmul %4, %10, %cst_10 {dimension_numbers = #tpu.dot_dimension_numbers<[1], [0], [0], [1], [0, 0, 1, 1], [], []>} : vector<80x64xbf16>, vector<64x128xbf16>, vector<80x128xf32> -> vector<80x128xf32>
    %12 = arith.addf %1, %11 : vector<80x128xf32>
    %c2 = arith.constant 2 : index
    %c0_11 = arith.constant 0 : index
    %c0_12 = arith.constant 0 : index
    %13 = vector.load %arg3[%c2, %c0_11, %c0_12] : memref<9x64x128xbf16, #tpu.memory_space<vmem>>, vector<1x64x128xbf16>
    %14 = vector.shape_cast %13 : vector<1x64x128xbf16> to vector<64x128xbf16>
    %cst_13 = arith.constant dense<0.000000e+00> : vector<80x128xf32>
    %15 = tpu.matmul %4, %14, %cst_13 {dimension_numbers = #tpu.dot_dimension_numbers<[1], [0], [0], [1], [0, 0, 1, 1], [], []>} : vector<80x64xbf16>, vector<64x128xbf16>, vector<80x128xf32> -> vector<80x128xf32>
    %16 = arith.addf %2, %15 : vector<80x128xf32>
    %c0_14 = arith.constant 0 : index
    %c10 = arith.constant 10 : index
    %c0_15 = arith.constant 0 : index
    %17 = vector.load %arg2[%c0_14, %c10, %c0_15] : memref<1x100x64xbf16, #tpu.memory_space<vmem>>, vector<1x80x64xbf16>
    %18 = vector.shape_cast %17 : vector<1x80x64xbf16> to vector<80x64xbf16>
    %c3 = arith.constant 3 : index
    %c0_16 = arith.constant 0 : index
    %c0_17 = arith.constant 0 : index
    %19 = vector.load %arg3[%c3, %c0_16, %c0_17] : memref<9x64x128xbf16, #tpu.memory_space<vmem>>, vector<1x64x128xbf16>
    %20 = vector.shape_cast %19 : vector<1x64x128xbf16> to vector<64x128xbf16>
    %cst_18 = arith.constant dense<0.000000e+00> : vector<80x128xf32>
    %21 = tpu.matmul %18, %20, %cst_18 {dimension_numbers = #tpu.dot_dimension_numbers<[1], [0], [0], [1], [0, 0, 1, 1], [], []>} : vector<80x64xbf16>, vector<64x128xbf16>, vector<80x128xf32> -> vector<80x128xf32>
    %22 = arith.addf %8, %21 : vector<80x128xf32>
    %c4 = arith.constant 4 : index
    %c0_19 = arith.constant 0 : index
    %c0_20 = arith.constant 0 : index
    %23 = vector.load %arg3[%c4, %c0_19, %c0_20] : memref<9x64x128xbf16, #tpu.memory_space<vmem>>, vector<1x64x128xbf16>
    %24 = vector.shape_cast %23 : vector<1x64x128xbf16> to vector<64x128xbf16>
    %cst_21 = arith.constant dense<0.000000e+00> : vector<80x128xf32>
    %25 = tpu.matmul %18, %24, %cst_21 {dimension_numbers = #tpu.dot_dimension_numbers<[1], [0], [0], [1], [0, 0, 1, 1], [], []>} : vector<80x64xbf16>, vector<64x128xbf16>, vector<80x128xf32> -> vector<80x128xf32>
    %26 = arith.addf %12, %25 : vector<80x128xf32>
    %c5 = arith.constant 5 : index
    %c0_22 = arith.constant 0 : index
    %c0_23 = arith.constant 0 : index
    %27 = vector.load %arg3[%c5, %c0_22, %c0_23] : memref<9x64x128xbf16, #tpu.memory_space<vmem>>, vector<1x64x128xbf16>
    %28 = vector.shape_cast %27 : vector<1x64x128xbf16> to vector<64x128xbf16>
    %cst_24 = arith.constant dense<0.000000e+00> : vector<80x128xf32>
    %29 = tpu.matmul %18, %28, %cst_24 {dimension_numbers = #tpu.dot_dimension_numbers<[1], [0], [0], [1], [0, 0, 1, 1], [], []>} : vector<80x64xbf16>, vector<64x128xbf16>, vector<80x128xf32> -> vector<80x128xf32>
    %30 = arith.addf %16, %29 : vector<80x128xf32>
    %c0_25 = arith.constant 0 : index
    %c20 = arith.constant 20 : index
    %c0_26 = arith.constant 0 : index
    %31 = vector.load %arg2[%c0_25, %c20, %c0_26] : memref<1x100x64xbf16, #tpu.memory_space<vmem>>, vector<1x80x64xbf16>
    %32 = vector.shape_cast %31 : vector<1x80x64xbf16> to vector<80x64xbf16>
    %c6 = arith.constant 6 : index
    %c0_27 = arith.constant 0 : index
    %c0_28 = arith.constant 0 : index
    %33 = vector.load %arg3[%c6, %c0_27, %c0_28] : memref<9x64x128xbf16, #tpu.memory_space<vmem>>, vector<1x64x128xbf16>
    %34 = vector.shape_cast %33 : vector<1x64x128xbf16> to vector<64x128xbf16>
    %cst_29 = arith.constant dense<0.000000e+00> : vector<80x128xf32>
    %35 = tpu.matmul %32, %34, %cst_29 {dimension_numbers = #tpu.dot_dimension_numbers<[1], [0], [0], [1], [0, 0, 1, 1], [], []>} : vector<80x64xbf16>, vector<64x128xbf16>, vector<80x128xf32> -> vector<80x128xf32>
    %36 = arith.addf %22, %35 : vector<80x128xf32>
    %c7 = arith.constant 7 : index
    %c0_30 = arith.constant 0 : index
    %c0_31 = arith.constant 0 : index
    %37 = vector.load %arg3[%c7, %c0_30, %c0_31] : memref<9x64x128xbf16, #tpu.memory_space<vmem>>, vector<1x64x128xbf16>
    %38 = vector.shape_cast %37 : vector<1x64x128xbf16> to vector<64x128xbf16>
    %cst_32 = arith.constant dense<0.000000e+00> : vector<80x128xf32>
    %39 = tpu.matmul %32, %38, %cst_32 {dimension_numbers = #tpu.dot_dimension_numbers<[1], [0], [0], [1], [0, 0, 1, 1], [], []>} : vector<80x64xbf16>, vector<64x128xbf16>, vector<80x128xf32> -> vector<80x128xf32>
    %40 = arith.addf %26, %39 : vector<80x128xf32>
    %c8 = arith.constant 8 : index
    %c0_33 = arith.constant 0 : index
    %c0_34 = arith.constant 0 : index
    %41 = vector.load %arg3[%c8, %c0_33, %c0_34] : memref<9x64x128xbf16, #tpu.memory_space<vmem>>, vector<1x64x128xbf16>
    %42 = vector.shape_cast %41 : vector<1x64x128xbf16> to vector<64x128xbf16>
    %cst_35 = arith.constant dense<0.000000e+00> : vector<80x128xf32>
    %43 = tpu.matmul %32, %42, %cst_35 {dimension_numbers = #tpu.dot_dimension_numbers<[1], [0], [0], [1], [0, 0, 1, 1], [], []>} : vector<80x64xbf16>, vector<64x128xbf16>, vector<80x128xf32> -> vector<80x128xf32>
    %44 = arith.addf %30, %43 : vector<80x128xf32>
    %cst_36 = arith.constant 0.000000e+00 : f32
    %45 = vector.broadcast %cst_36 : f32 to vector<1x128xf32>
    %cst_37 = arith.constant 0.000000e+00 : f32
    %46 = vector.broadcast %cst_37 : f32 to vector<1x128xf32>
    %47 = vector.extract_strided_slice %36 {offsets = [0, 0], sizes = [8, 128], strides = [1, 1]} : vector<80x128xf32> to vector<8x128xf32>
    %48 = vector.extract_strided_slice %40 {offsets = [1, 0], sizes = [8, 128], strides = [1, 1]} : vector<80x128xf32> to vector<8x128xf32>
    %49 = arith.addf %47, %48 : vector<8x128xf32>
    %50 = vector.extract_strided_slice %44 {offsets = [2, 0], sizes = [8, 128], strides = [1, 1]} : vector<80x128xf32> to vector<8x128xf32>
    %51 = arith.addf %49, %50 : vector<8x128xf32>
    %52 = arith.truncf %51 : vector<8x128xf32> to vector<8x128xbf16>
    %c0_38 = arith.constant 0 : index
    %c0_39 = arith.constant 0 : index
    %c0_40 = arith.constant 0 : index
    %c0_41 = arith.constant 0 : index
    %53 = vector.load %arg4[%c0_38, %c0_39, %c0_40, %c0_41] : memref<1x8x8x128xbf16, #tpu.memory_space<vmem>>, vector<1x1x8x128xbf16>
    %54 = vector.shape_cast %53 : vector<1x1x8x128xbf16> to vector<8x128xbf16>
    %55 = vector.shape_cast %52 : vector<8x128xbf16> to vector<1x1x8x128xbf16>
    tpu.vector_store %arg4[%c0_38, %c0_39, %c0_40, %c0_41], %55 {strides = array<i32>} : memref<1x8x8x128xbf16, #tpu.memory_space<vmem>>, vector<1x1x8x128xbf16>,
    %cst_42 = arith.constant dense<0.000000e+00> : vector<128xf32>
    %56 = vector.multi_reduction <add>, %51, %cst_42 [0] : vector<8x128xf32> to vector<128xf32>
    %57 = vector.shape_cast %56 : vector<128xf32> to vector<1x128xf32>
    %58 = arith.addf %45, %57 : vector<1x128xf32>
    %59 = arith.mulf %51, %51 : vector<8x128xf32>
    %cst_43 = arith.constant dense<0.000000e+00> : vector<128xf32>
    %60 = vector.multi_reduction <add>, %59, %cst_43 [0] : vector<8x128xf32> to vector<128xf32>
    %61 = vector.shape_cast %60 : vector<128xf32> to vector<1x128xf32>
    %62 = arith.addf %46, %61 : vector<1x128xf32>
    %63 = vector.extract_strided_slice %36 {offsets = [10, 0], sizes = [8, 128], strides = [1, 1]} : vector<80x128xf32> to vector<8x128xf32>
    %64 = vector.extract_strided_slice %40 {offsets = [11, 0], sizes = [8, 128], strides = [1, 1]} : vector<80x128xf32> to vector<8x128xf32>
    %65 = arith.addf %63, %64 : vector<8x128xf32>
    %66 = vector.extract_strided_slice %44 {offsets = [12, 0], sizes = [8, 128], strides = [1, 1]} : vector<80x128xf32> to vector<8x128xf32>
    %67 = arith.addf %65, %66 : vector<8x128xf32>
    %68 = arith.truncf %67 : vector<8x128xf32> to vector<8x128xbf16>
    %c0_44 = arith.constant 0 : index
    %c1_45 = arith.constant 1 : index
    %c0_46 = arith.constant 0 : index
    %c0_47 = arith.constant 0 : index
    %69 = vector.load %arg4[%c0_44, %c1_45, %c0_46, %c0_47] : memref<1x8x8x128xbf16, #tpu.memory_space<vmem>>, vector<1x1x8x128xbf16>
    %70 = vector.shape_cast %69 : vector<1x1x8x128xbf16> to vector<8x128xbf16>
    %71 = vector.shape_cast %68 : vector<8x128xbf16> to vector<1x1x8x128xbf16>
    tpu.vector_store %arg4[%c0_44, %c1_45, %c0_46, %c0_47], %71 {strides = array<i32>} : memref<1x8x8x128xbf16, #tpu.memory_space<vmem>>, vector<1x1x8x128xbf16>,
    %cst_48 = arith.constant dense<0.000000e+00> : vector<128xf32>
    %72 = vector.multi_reduction <add>, %67, %cst_48 [0] : vector<8x128xf32> to vector<128xf32>
    %73 = vector.shape_cast %72 : vector<128xf32> to vector<1x128xf32>
    %74 = arith.addf %58, %73 : vector<1x128xf32>
    %75 = arith.mulf %67, %67 : vector<8x128xf32>
    %cst_49 = arith.constant dense<0.000000e+00> : vector<128xf32>
    %76 = vector.multi_reduction <add>, %75, %cst_49 [0] : vector<8x128xf32> to vector<128xf32>
    %77 = vector.shape_cast %76 : vector<128xf32> to vector<1x128xf32>
    %78 = arith.addf %62, %77 : vector<1x128xf32>
    %79 = vector.extract_strided_slice %36 {offsets = [20, 0], sizes = [8, 128], strides = [1, 1]} : vector<80x128xf32> to vector<8x128xf32>
    %80 = vector.extract_strided_slice %40 {offsets = [21, 0], sizes = [8, 128], strides = [1, 1]} : vector<80x128xf32> to vector<8x128xf32>
    %81 = arith.addf %79, %80 : vector<8x128xf32>
    %82 = vector.extract_strided_slice %44 {offsets = [22, 0], sizes = [8, 128], strides = [1, 1]} : vector<80x128xf32> to vector<8x128xf32>
    %83 = arith.addf %81, %82 : vector<8x128xf32>
    %84 = arith.truncf %83 : vector<8x128xf32> to vector<8x128xbf16>
    %c0_50 = arith.constant 0 : index
    %c2_51 = arith.constant 2 : index
    %c0_52 = arith.constant 0 : index
    %c0_53 = arith.constant 0 : index
    %85 = vector.load %arg4[%c0_50, %c2_51, %c0_52, %c0_53] : memref<1x8x8x128xbf16, #tpu.memory_space<vmem>>, vector<1x1x8x128xbf16>
    %86 = vector.shape_cast %85 : vector<1x1x8x128xbf16> to vector<8x128xbf16>
    %87 = vector.shape_cast %84 : vector<8x128xbf16> to vector<1x1x8x128xbf16>
    tpu.vector_store %arg4[%c0_50, %c2_51, %c0_52, %c0_53], %87 {strides = array<i32>} : memref<1x8x8x128xbf16, #tpu.memory_space<vmem>>, vector<1x1x8x128xbf16>,
    %cst_54 = arith.constant dense<0.000000e+00> : vector<128xf32>
    %88 = vector.multi_reduction <add>, %83, %cst_54 [0] : vector<8x128xf32> to vector<128xf32>
    %89 = vector.shape_cast %88 : vector<128xf32> to vector<1x128xf32>
    %90 = arith.addf %74, %89 : vector<1x128xf32>
    %91 = arith.mulf %83, %83 : vector<8x128xf32>
    %cst_55 = arith.constant dense<0.000000e+00> : vector<128xf32>
    %92 = vector.multi_reduction <add>, %91, %cst_55 [0] : vector<8x128xf32> to vector<128xf32>
    %93 = vector.shape_cast %92 : vector<128xf32> to vector<1x128xf32>
    %94 = arith.addf %78, %93 : vector<1x128xf32>
    %95 = vector.extract_strided_slice %36 {offsets = [30, 0], sizes = [8, 128], strides = [1, 1]} : vector<80x128xf32> to vector<8x128xf32>
    %96 = vector.extract_strided_slice %40 {offsets = [31, 0], sizes = [8, 128], strides = [1, 1]} : vector<80x128xf32> to vector<8x128xf32>
    %97 = arith.addf %95, %96 : vector<8x128xf32>
    %98 = vector.extract_strided_slice %44 {offsets = [32, 0], sizes = [8, 128], strides = [1, 1]} : vector<80x128xf32> to vector<8x128xf32>
    %99 = arith.addf %97, %98 : vector<8x128xf32>
    %100 = arith.truncf %99 : vector<8x128xf32> to vector<8x128xbf16>
    %c0_56 = arith.constant 0 : index
    %c3_57 = arith.constant 3 : index
    %c0_58 = arith.constant 0 : index
    %c0_59 = arith.constant 0 : index
    %101 = vector.load %arg4[%c0_56, %c3_57, %c0_58, %c0_59] : memref<1x8x8x128xbf16, #tpu.memory_space<vmem>>, vector<1x1x8x128xbf16>
    %102 = vector.shape_cast %101 : vector<1x1x8x128xbf16> to vector<8x128xbf16>
    %103 = vector.shape_cast %100 : vector<8x128xbf16> to vector<1x1x8x128xbf16>
    tpu.vector_store %arg4[%c0_56, %c3_57, %c0_58, %c0_59], %103 {strides = array<i32>} : memref<1x8x8x128xbf16, #tpu.memory_space<vmem>>, vector<1x1x8x128xbf16>,
    %cst_60 = arith.constant dense<0.000000e+00> : vector<128xf32>
    %104 = vector.multi_reduction <add>, %99, %cst_60 [0] : vector<8x128xf32> to vector<128xf32>
    %105 = vector.shape_cast %104 : vector<128xf32> to vector<1x128xf32>
    %106 = arith.addf %90, %105 : vector<1x128xf32>
    %107 = arith.mulf %99, %99 : vector<8x128xf32>
    %cst_61 = arith.constant dense<0.000000e+00> : vector<128xf32>
    %108 = vector.multi_reduction <add>, %107, %cst_61 [0] : vector<8x128xf32> to vector<128xf32>
    %109 = vector.shape_cast %108 : vector<128xf32> to vector<1x128xf32>
    %110 = arith.addf %94, %109 : vector<1x128xf32>
    %111 = vector.extract_strided_slice %36 {offsets = [40, 0], sizes = [8, 128], strides = [1, 1]} : vector<80x128xf32> to vector<8x128xf32>
    %112 = vector.extract_strided_slice %40 {offsets = [41, 0], sizes = [8, 128], strides = [1, 1]} : vector<80x128xf32> to vector<8x128xf32>
    %113 = arith.addf %111, %112 : vector<8x128xf32>
    %114 = vector.extract_strided_slice %44 {offsets = [42, 0], sizes = [8, 128], strides = [1, 1]} : vector<80x128xf32> to vector<8x128xf32>
    %115 = arith.addf %113, %114 : vector<8x128xf32>
    %116 = arith.truncf %115 : vector<8x128xf32> to vector<8x128xbf16>
    %c0_62 = arith.constant 0 : index
    %c4_63 = arith.constant 4 : index
    %c0_64 = arith.constant 0 : index
    %c0_65 = arith.constant 0 : index
    %117 = vector.load %arg4[%c0_62, %c4_63, %c0_64, %c0_65] : memref<1x8x8x128xbf16, #tpu.memory_space<vmem>>, vector<1x1x8x128xbf16>
    %118 = vector.shape_cast %117 : vector<1x1x8x128xbf16> to vector<8x128xbf16>
    %119 = vector.shape_cast %116 : vector<8x128xbf16> to vector<1x1x8x128xbf16>
    tpu.vector_store %arg4[%c0_62, %c4_63, %c0_64, %c0_65], %119 {strides = array<i32>} : memref<1x8x8x128xbf16, #tpu.memory_space<vmem>>, vector<1x1x8x128xbf16>,
    %cst_66 = arith.constant dense<0.000000e+00> : vector<128xf32>
    %120 = vector.multi_reduction <add>, %115, %cst_66 [0] : vector<8x128xf32> to vector<128xf32>
    %121 = vector.shape_cast %120 : vector<128xf32> to vector<1x128xf32>
    %122 = arith.addf %106, %121 : vector<1x128xf32>
    %123 = arith.mulf %115, %115 : vector<8x128xf32>
    %cst_67 = arith.constant dense<0.000000e+00> : vector<128xf32>
    %124 = vector.multi_reduction <add>, %123, %cst_67 [0] : vector<8x128xf32> to vector<128xf32>
    %125 = vector.shape_cast %124 : vector<128xf32> to vector<1x128xf32>
    %126 = arith.addf %110, %125 : vector<1x128xf32>
    %127 = vector.extract_strided_slice %36 {offsets = [50, 0], sizes = [8, 128], strides = [1, 1]} : vector<80x128xf32> to vector<8x128xf32>
    %128 = vector.extract_strided_slice %40 {offsets = [51, 0], sizes = [8, 128], strides = [1, 1]} : vector<80x128xf32> to vector<8x128xf32>
    %129 = arith.addf %127, %128 : vector<8x128xf32>
    %130 = vector.extract_strided_slice %44 {offsets = [52, 0], sizes = [8, 128], strides = [1, 1]} : vector<80x128xf32> to vector<8x128xf32>
    %131 = arith.addf %129, %130 : vector<8x128xf32>
    %132 = arith.truncf %131 : vector<8x128xf32> to vector<8x128xbf16>
    %c0_68 = arith.constant 0 : index
    %c5_69 = arith.constant 5 : index
    %c0_70 = arith.constant 0 : index
    %c0_71 = arith.constant 0 : index
    %133 = vector.load %arg4[%c0_68, %c5_69, %c0_70, %c0_71] : memref<1x8x8x128xbf16, #tpu.memory_space<vmem>>, vector<1x1x8x128xbf16>
    %134 = vector.shape_cast %133 : vector<1x1x8x128xbf16> to vector<8x128xbf16>
    %135 = vector.shape_cast %132 : vector<8x128xbf16> to vector<1x1x8x128xbf16>
    tpu.vector_store %arg4[%c0_68, %c5_69, %c0_70, %c0_71], %135 {strides = array<i32>} : memref<1x8x8x128xbf16, #tpu.memory_space<vmem>>, vector<1x1x8x128xbf16>,
    %cst_72 = arith.constant dense<0.000000e+00> : vector<128xf32>
    %136 = vector.multi_reduction <add>, %131, %cst_72 [0] : vector<8x128xf32> to vector<128xf32>
    %137 = vector.shape_cast %136 : vector<128xf32> to vector<1x128xf32>
    %138 = arith.addf %122, %137 : vector<1x128xf32>
    %139 = arith.mulf %131, %131 : vector<8x128xf32>
    %cst_73 = arith.constant dense<0.000000e+00> : vector<128xf32>
    %140 = vector.multi_reduction <add>, %139, %cst_73 [0] : vector<8x128xf32> to vector<128xf32>
    %141 = vector.shape_cast %140 : vector<128xf32> to vector<1x128xf32>
    %142 = arith.addf %126, %141 : vector<1x128xf32>
    %143 = vector.extract_strided_slice %36 {offsets = [60, 0], sizes = [8, 128], strides = [1, 1]} : vector<80x128xf32> to vector<8x128xf32>
    %144 = vector.extract_strided_slice %40 {offsets = [61, 0], sizes = [8, 128], strides = [1, 1]} : vector<80x128xf32> to vector<8x128xf32>
    %145 = arith.addf %143, %144 : vector<8x128xf32>
    %146 = vector.extract_strided_slice %44 {offsets = [62, 0], sizes = [8, 128], strides = [1, 1]} : vector<80x128xf32> to vector<8x128xf32>
    %147 = arith.addf %145, %146 : vector<8x128xf32>
    %148 = arith.truncf %147 : vector<8x128xf32> to vector<8x128xbf16>
    %c0_74 = arith.constant 0 : index
    %c6_75 = arith.constant 6 : index
    %c0_76 = arith.constant 0 : index
    %c0_77 = arith.constant 0 : index
    %149 = vector.load %arg4[%c0_74, %c6_75, %c0_76, %c0_77] : memref<1x8x8x128xbf16, #tpu.memory_space<vmem>>, vector<1x1x8x128xbf16>
    %150 = vector.shape_cast %149 : vector<1x1x8x128xbf16> to vector<8x128xbf16>
    %151 = vector.shape_cast %148 : vector<8x128xbf16> to vector<1x1x8x128xbf16>
    tpu.vector_store %arg4[%c0_74, %c6_75, %c0_76, %c0_77], %151 {strides = array<i32>} : memref<1x8x8x128xbf16, #tpu.memory_space<vmem>>, vector<1x1x8x128xbf16>,
    %cst_78 = arith.constant dense<0.000000e+00> : vector<128xf32>
    %152 = vector.multi_reduction <add>, %147, %cst_78 [0] : vector<8x128xf32> to vector<128xf32>
    %153 = vector.shape_cast %152 : vector<128xf32> to vector<1x128xf32>
    %154 = arith.addf %138, %153 : vector<1x128xf32>
    %155 = arith.mulf %147, %147 : vector<8x128xf32>
    %cst_79 = arith.constant dense<0.000000e+00> : vector<128xf32>
    %156 = vector.multi_reduction <add>, %155, %cst_79 [0] : vector<8x128xf32> to vector<128xf32>
    %157 = vector.shape_cast %156 : vector<128xf32> to vector<1x128xf32>
    %158 = arith.addf %142, %157 : vector<1x128xf32>
    %159 = vector.extract_strided_slice %36 {offsets = [70, 0], sizes = [8, 128], strides = [1, 1]} : vector<80x128xf32> to vector<8x128xf32>
    %160 = vector.extract_strided_slice %40 {offsets = [71, 0], sizes = [8, 128], strides = [1, 1]} : vector<80x128xf32> to vector<8x128xf32>
    %161 = arith.addf %159, %160 : vector<8x128xf32>
    %162 = vector.extract_strided_slice %44 {offsets = [72, 0], sizes = [8, 128], strides = [1, 1]} : vector<80x128xf32> to vector<8x128xf32>
    %163 = arith.addf %161, %162 : vector<8x128xf32>
    %164 = arith.truncf %163 : vector<8x128xf32> to vector<8x128xbf16>
    %c0_80 = arith.constant 0 : index
    %c7_81 = arith.constant 7 : index
    %c0_82 = arith.constant 0 : index
    %c0_83 = arith.constant 0 : index
    %165 = vector.load %arg4[%c0_80, %c7_81, %c0_82, %c0_83] : memref<1x8x8x128xbf16, #tpu.memory_space<vmem>>, vector<1x1x8x128xbf16>
    %166 = vector.shape_cast %165 : vector<1x1x8x128xbf16> to vector<8x128xbf16>
    %167 = vector.shape_cast %164 : vector<8x128xbf16> to vector<1x1x8x128xbf16>
    tpu.vector_store %arg4[%c0_80, %c7_81, %c0_82, %c0_83], %167 {strides = array<i32>} : memref<1x8x8x128xbf16, #tpu.memory_space<vmem>>, vector<1x1x8x128xbf16>,
    %cst_84 = arith.constant dense<0.000000e+00> : vector<128xf32>
    %168 = vector.multi_reduction <add>, %163, %cst_84 [0] : vector<8x128xf32> to vector<128xf32>
    %169 = vector.shape_cast %168 : vector<128xf32> to vector<1x128xf32>
    %170 = arith.addf %154, %169 : vector<1x128xf32>
    %171 = arith.mulf %163, %163 : vector<8x128xf32>
    %cst_85 = arith.constant dense<0.000000e+00> : vector<128xf32>
    %172 = vector.multi_reduction <add>, %171, %cst_85 [0] : vector<8x128xf32> to vector<128xf32>
    %173 = vector.shape_cast %172 : vector<128xf32> to vector<1x128xf32>
    %174 = arith.addf %158, %173 : vector<1x128xf32>
    %c0_86 = arith.constant 0 : index
    %c0_87 = arith.constant 0 : index
    %c0_88 = arith.constant 0 : index
    %175 = vector.load %arg5[%c0_86, %c0_87, %c0_88] : memref<1x2x128xf32, #tpu.memory_space<vmem>>, vector<1x1x128xf32>
    %176 = vector.shape_cast %175 : vector<1x1x128xf32> to vector<1x128xf32>
    %177 = vector.shape_cast %170 : vector<1x128xf32> to vector<1x1x128xf32>
    tpu.vector_store %arg5[%c0_86, %c0_87, %c0_88], %177 {strides = array<i32>} : memref<1x2x128xf32, #tpu.memory_space<vmem>>, vector<1x1x128xf32>,
    %c0_89 = arith.constant 0 : index
    %c1_90 = arith.constant 1 : index
    %c0_91 = arith.constant 0 : index
    %178 = vector.load %arg5[%c0_89, %c1_90, %c0_91] : memref<1x2x128xf32, #tpu.memory_space<vmem>>, vector<1x1x128xf32>
    %179 = vector.shape_cast %178 : vector<1x1x128xf32> to vector<1x128xf32>
    %180 = vector.shape_cast %174 : vector<1x128xf32> to vector<1x1x128xf32>
    tpu.vector_store %arg5[%c0_89, %c1_90, %c0_91], %180 {strides = array<i32>} : memref<1x2x128xf32, #tpu.memory_space<vmem>>, vector<1x1x128xf32>,
    return
  }
  func.func @transform_0(%arg0: i32, %arg1: i32) -> (i32, i32, i32) {
    %c0_i32 = arith.constant 0 : i32
    %c0_i32_0 = arith.constant 0 : i32
    %c0_i32_1 = arith.constant 0 : i32
    return %arg1, %c0_i32, %c0_i32_0 : i32, i32, i32
  }
  func.func @transform_1(%arg0: i32, %arg1: i32) -> (i32, i32, i32) {
    %c0_i32 = arith.constant 0 : i32
    %c0_i32_0 = arith.constant 0 : i32
    %c0_i32_1 = arith.constant 0 : i32
    return %c0_i32, %c0_i32_0, %arg0 : i32, i32, i32
  }
  func.func @transform_2(%arg0: i32, %arg1: i32) -> (i32, i32, i32, i32) {
    %c0_i32 = arith.constant 0 : i32
    %c0_i32_0 = arith.constant 0 : i32
    %c0_i32_1 = arith.constant 0 : i32
    return %arg1, %c0_i32, %c0_i32_0, %arg0 : i32, i32, i32, i32
  }
  func.func @transform_3(%arg0: i32, %arg1: i32) -> (i32, i32, i32) {
    %c0_i32 = arith.constant 0 : i32
    %c0_i32_0 = arith.constant 0 : i32
    return %arg1, %c0_i32, %arg0 : i32, i32, i32
  }
}

module attributes {stable_mosaic.version = 11 : i64} {
  func.func @kernel(%arg0: i32, %arg1: i32, %arg2: memref<1x324x3xbf16, #tpu.memory_space<vmem>>, %arg3: memref<9x3x64xbf16, #tpu.memory_space<vmem>>, %arg4: memref<1x16x16x64xbf16, #tpu.memory_space<vmem>>, %arg5: memref<1x2x64xf32, #tpu.memory_space<vmem>>) attributes {dimension_semantics = [#tpu.dimension_semantics<parallel>, #tpu.dimension_semantics<parallel>], iteration_bounds = array<i64: 1, 2>, scalar_prefetch = 0 : i64, scratch_operands = 0 : i64, tpu.core_type = #tpu.core_type<tc>, window_params = [{transform_indices = @transform_0, window_bounds = array<i64: 1, 324, 3>}, {transform_indices = @transform_1, window_bounds = array<i64: 9, 3, 64>}, {transform_indices = @transform_2, window_bounds = array<i64: 1, 16, 16, 64>}, {transform_indices = @transform_3, window_bounds = array<i64: 1, 2, 64>}]} {
    %cst = arith.constant 0.000000e+00 : f32
    %0 = vector.broadcast %cst : f32 to vector<288x64xf32>
    %cst_0 = arith.constant 0.000000e+00 : f32
    %1 = vector.broadcast %cst_0 : f32 to vector<288x64xf32>
    %cst_1 = arith.constant 0.000000e+00 : f32
    %2 = vector.broadcast %cst_1 : f32 to vector<288x64xf32>
    %c0 = arith.constant 0 : index
    %c0_2 = arith.constant 0 : index
    %c0_3 = arith.constant 0 : index
    %3 = vector.load %arg2[%c0, %c0_2, %c0_3] : memref<1x324x3xbf16, #tpu.memory_space<vmem>>, vector<1x288x3xbf16>
    %4 = vector.shape_cast %3 : vector<1x288x3xbf16> to vector<288x3xbf16>
    %c0_4 = arith.constant 0 : index
    %c0_5 = arith.constant 0 : index
    %c0_6 = arith.constant 0 : index
    %5 = vector.load %arg3[%c0_4, %c0_5, %c0_6] : memref<9x3x64xbf16, #tpu.memory_space<vmem>>, vector<1x3x64xbf16>
    %6 = vector.shape_cast %5 : vector<1x3x64xbf16> to vector<3x64xbf16>
    %cst_7 = arith.constant dense<0.000000e+00> : vector<288x64xf32>
    %7 = tpu.matmul %4, %6, %cst_7 {dimension_numbers = #tpu.dot_dimension_numbers<[1], [0], [0], [1], [0, 0, 1, 1], [], []>} : vector<288x3xbf16>, vector<3x64xbf16>, vector<288x64xf32> -> vector<288x64xf32>
    %8 = arith.addf %0, %7 : vector<288x64xf32>
    %c1 = arith.constant 1 : index
    %c0_8 = arith.constant 0 : index
    %c0_9 = arith.constant 0 : index
    %9 = vector.load %arg3[%c1, %c0_8, %c0_9] : memref<9x3x64xbf16, #tpu.memory_space<vmem>>, vector<1x3x64xbf16>
    %10 = vector.shape_cast %9 : vector<1x3x64xbf16> to vector<3x64xbf16>
    %cst_10 = arith.constant dense<0.000000e+00> : vector<288x64xf32>
    %11 = tpu.matmul %4, %10, %cst_10 {dimension_numbers = #tpu.dot_dimension_numbers<[1], [0], [0], [1], [0, 0, 1, 1], [], []>} : vector<288x3xbf16>, vector<3x64xbf16>, vector<288x64xf32> -> vector<288x64xf32>
    %12 = arith.addf %1, %11 : vector<288x64xf32>
    %c2 = arith.constant 2 : index
    %c0_11 = arith.constant 0 : index
    %c0_12 = arith.constant 0 : index
    %13 = vector.load %arg3[%c2, %c0_11, %c0_12] : memref<9x3x64xbf16, #tpu.memory_space<vmem>>, vector<1x3x64xbf16>
    %14 = vector.shape_cast %13 : vector<1x3x64xbf16> to vector<3x64xbf16>
    %cst_13 = arith.constant dense<0.000000e+00> : vector<288x64xf32>
    %15 = tpu.matmul %4, %14, %cst_13 {dimension_numbers = #tpu.dot_dimension_numbers<[1], [0], [0], [1], [0, 0, 1, 1], [], []>} : vector<288x3xbf16>, vector<3x64xbf16>, vector<288x64xf32> -> vector<288x64xf32>
    %16 = arith.addf %2, %15 : vector<288x64xf32>
    %c0_14 = arith.constant 0 : index
    %c18 = arith.constant 18 : index
    %c0_15 = arith.constant 0 : index
    %17 = vector.load %arg2[%c0_14, %c18, %c0_15] : memref<1x324x3xbf16, #tpu.memory_space<vmem>>, vector<1x288x3xbf16>
    %18 = vector.shape_cast %17 : vector<1x288x3xbf16> to vector<288x3xbf16>
    %c3 = arith.constant 3 : index
    %c0_16 = arith.constant 0 : index
    %c0_17 = arith.constant 0 : index
    %19 = vector.load %arg3[%c3, %c0_16, %c0_17] : memref<9x3x64xbf16, #tpu.memory_space<vmem>>, vector<1x3x64xbf16>
    %20 = vector.shape_cast %19 : vector<1x3x64xbf16> to vector<3x64xbf16>
    %cst_18 = arith.constant dense<0.000000e+00> : vector<288x64xf32>
    %21 = tpu.matmul %18, %20, %cst_18 {dimension_numbers = #tpu.dot_dimension_numbers<[1], [0], [0], [1], [0, 0, 1, 1], [], []>} : vector<288x3xbf16>, vector<3x64xbf16>, vector<288x64xf32> -> vector<288x64xf32>
    %22 = arith.addf %8, %21 : vector<288x64xf32>
    %c4 = arith.constant 4 : index
    %c0_19 = arith.constant 0 : index
    %c0_20 = arith.constant 0 : index
    %23 = vector.load %arg3[%c4, %c0_19, %c0_20] : memref<9x3x64xbf16, #tpu.memory_space<vmem>>, vector<1x3x64xbf16>
    %24 = vector.shape_cast %23 : vector<1x3x64xbf16> to vector<3x64xbf16>
    %cst_21 = arith.constant dense<0.000000e+00> : vector<288x64xf32>
    %25 = tpu.matmul %18, %24, %cst_21 {dimension_numbers = #tpu.dot_dimension_numbers<[1], [0], [0], [1], [0, 0, 1, 1], [], []>} : vector<288x3xbf16>, vector<3x64xbf16>, vector<288x64xf32> -> vector<288x64xf32>
    %26 = arith.addf %12, %25 : vector<288x64xf32>
    %c5 = arith.constant 5 : index
    %c0_22 = arith.constant 0 : index
    %c0_23 = arith.constant 0 : index
    %27 = vector.load %arg3[%c5, %c0_22, %c0_23] : memref<9x3x64xbf16, #tpu.memory_space<vmem>>, vector<1x3x64xbf16>
    %28 = vector.shape_cast %27 : vector<1x3x64xbf16> to vector<3x64xbf16>
    %cst_24 = arith.constant dense<0.000000e+00> : vector<288x64xf32>
    %29 = tpu.matmul %18, %28, %cst_24 {dimension_numbers = #tpu.dot_dimension_numbers<[1], [0], [0], [1], [0, 0, 1, 1], [], []>} : vector<288x3xbf16>, vector<3x64xbf16>, vector<288x64xf32> -> vector<288x64xf32>
    %30 = arith.addf %16, %29 : vector<288x64xf32>
    %c0_25 = arith.constant 0 : index
    %c36 = arith.constant 36 : index
    %c0_26 = arith.constant 0 : index
    %31 = vector.load %arg2[%c0_25, %c36, %c0_26] : memref<1x324x3xbf16, #tpu.memory_space<vmem>>, vector<1x288x3xbf16>
    %32 = vector.shape_cast %31 : vector<1x288x3xbf16> to vector<288x3xbf16>
    %c6 = arith.constant 6 : index
    %c0_27 = arith.constant 0 : index
    %c0_28 = arith.constant 0 : index
    %33 = vector.load %arg3[%c6, %c0_27, %c0_28] : memref<9x3x64xbf16, #tpu.memory_space<vmem>>, vector<1x3x64xbf16>
    %34 = vector.shape_cast %33 : vector<1x3x64xbf16> to vector<3x64xbf16>
    %cst_29 = arith.constant dense<0.000000e+00> : vector<288x64xf32>
    %35 = tpu.matmul %32, %34, %cst_29 {dimension_numbers = #tpu.dot_dimension_numbers<[1], [0], [0], [1], [0, 0, 1, 1], [], []>} : vector<288x3xbf16>, vector<3x64xbf16>, vector<288x64xf32> -> vector<288x64xf32>
    %36 = arith.addf %22, %35 : vector<288x64xf32>
    %c7 = arith.constant 7 : index
    %c0_30 = arith.constant 0 : index
    %c0_31 = arith.constant 0 : index
    %37 = vector.load %arg3[%c7, %c0_30, %c0_31] : memref<9x3x64xbf16, #tpu.memory_space<vmem>>, vector<1x3x64xbf16>
    %38 = vector.shape_cast %37 : vector<1x3x64xbf16> to vector<3x64xbf16>
    %cst_32 = arith.constant dense<0.000000e+00> : vector<288x64xf32>
    %39 = tpu.matmul %32, %38, %cst_32 {dimension_numbers = #tpu.dot_dimension_numbers<[1], [0], [0], [1], [0, 0, 1, 1], [], []>} : vector<288x3xbf16>, vector<3x64xbf16>, vector<288x64xf32> -> vector<288x64xf32>
    %40 = arith.addf %26, %39 : vector<288x64xf32>
    %c8 = arith.constant 8 : index
    %c0_33 = arith.constant 0 : index
    %c0_34 = arith.constant 0 : index
    %41 = vector.load %arg3[%c8, %c0_33, %c0_34] : memref<9x3x64xbf16, #tpu.memory_space<vmem>>, vector<1x3x64xbf16>
    %42 = vector.shape_cast %41 : vector<1x3x64xbf16> to vector<3x64xbf16>
    %cst_35 = arith.constant dense<0.000000e+00> : vector<288x64xf32>
    %43 = tpu.matmul %32, %42, %cst_35 {dimension_numbers = #tpu.dot_dimension_numbers<[1], [0], [0], [1], [0, 0, 1, 1], [], []>} : vector<288x3xbf16>, vector<3x64xbf16>, vector<288x64xf32> -> vector<288x64xf32>
    %44 = arith.addf %30, %43 : vector<288x64xf32>
    %cst_36 = arith.constant 0.000000e+00 : f32
    %45 = vector.broadcast %cst_36 : f32 to vector<1x64xf32>
    %cst_37 = arith.constant 0.000000e+00 : f32
    %46 = vector.broadcast %cst_37 : f32 to vector<1x64xf32>
    %47 = vector.extract_strided_slice %36 {offsets = [0, 0], sizes = [16, 64], strides = [1, 1]} : vector<288x64xf32> to vector<16x64xf32>
    %48 = vector.extract_strided_slice %40 {offsets = [1, 0], sizes = [16, 64], strides = [1, 1]} : vector<288x64xf32> to vector<16x64xf32>
    %49 = arith.addf %47, %48 : vector<16x64xf32>
    %50 = vector.extract_strided_slice %44 {offsets = [2, 0], sizes = [16, 64], strides = [1, 1]} : vector<288x64xf32> to vector<16x64xf32>
    %51 = arith.addf %49, %50 : vector<16x64xf32>
    %52 = arith.truncf %51 : vector<16x64xf32> to vector<16x64xbf16>
    %c0_38 = arith.constant 0 : index
    %c0_39 = arith.constant 0 : index
    %c0_40 = arith.constant 0 : index
    %c0_41 = arith.constant 0 : index
    %53 = vector.load %arg4[%c0_38, %c0_39, %c0_40, %c0_41] : memref<1x16x16x64xbf16, #tpu.memory_space<vmem>>, vector<1x1x16x64xbf16>
    %54 = vector.shape_cast %53 : vector<1x1x16x64xbf16> to vector<16x64xbf16>
    %55 = vector.shape_cast %52 : vector<16x64xbf16> to vector<1x1x16x64xbf16>
    tpu.vector_store %arg4[%c0_38, %c0_39, %c0_40, %c0_41], %55 {strides = array<i32>} : memref<1x16x16x64xbf16, #tpu.memory_space<vmem>>, vector<1x1x16x64xbf16>,
    %cst_42 = arith.constant dense<0.000000e+00> : vector<64xf32>
    %56 = vector.multi_reduction <add>, %51, %cst_42 [0] : vector<16x64xf32> to vector<64xf32>
    %57 = vector.shape_cast %56 : vector<64xf32> to vector<1x64xf32>
    %58 = arith.addf %45, %57 : vector<1x64xf32>
    %59 = arith.mulf %51, %51 : vector<16x64xf32>
    %cst_43 = arith.constant dense<0.000000e+00> : vector<64xf32>
    %60 = vector.multi_reduction <add>, %59, %cst_43 [0] : vector<16x64xf32> to vector<64xf32>
    %61 = vector.shape_cast %60 : vector<64xf32> to vector<1x64xf32>
    %62 = arith.addf %46, %61 : vector<1x64xf32>
    %63 = vector.extract_strided_slice %36 {offsets = [18, 0], sizes = [16, 64], strides = [1, 1]} : vector<288x64xf32> to vector<16x64xf32>
    %64 = vector.extract_strided_slice %40 {offsets = [19, 0], sizes = [16, 64], strides = [1, 1]} : vector<288x64xf32> to vector<16x64xf32>
    %65 = arith.addf %63, %64 : vector<16x64xf32>
    %66 = vector.extract_strided_slice %44 {offsets = [20, 0], sizes = [16, 64], strides = [1, 1]} : vector<288x64xf32> to vector<16x64xf32>
    %67 = arith.addf %65, %66 : vector<16x64xf32>
    %68 = arith.truncf %67 : vector<16x64xf32> to vector<16x64xbf16>
    %c0_44 = arith.constant 0 : index
    %c1_45 = arith.constant 1 : index
    %c0_46 = arith.constant 0 : index
    %c0_47 = arith.constant 0 : index
    %69 = vector.load %arg4[%c0_44, %c1_45, %c0_46, %c0_47] : memref<1x16x16x64xbf16, #tpu.memory_space<vmem>>, vector<1x1x16x64xbf16>
    %70 = vector.shape_cast %69 : vector<1x1x16x64xbf16> to vector<16x64xbf16>
    %71 = vector.shape_cast %68 : vector<16x64xbf16> to vector<1x1x16x64xbf16>
    tpu.vector_store %arg4[%c0_44, %c1_45, %c0_46, %c0_47], %71 {strides = array<i32>} : memref<1x16x16x64xbf16, #tpu.memory_space<vmem>>, vector<1x1x16x64xbf16>,
    %cst_48 = arith.constant dense<0.000000e+00> : vector<64xf32>
    %72 = vector.multi_reduction <add>, %67, %cst_48 [0] : vector<16x64xf32> to vector<64xf32>
    %73 = vector.shape_cast %72 : vector<64xf32> to vector<1x64xf32>
    %74 = arith.addf %58, %73 : vector<1x64xf32>
    %75 = arith.mulf %67, %67 : vector<16x64xf32>
    %cst_49 = arith.constant dense<0.000000e+00> : vector<64xf32>
    %76 = vector.multi_reduction <add>, %75, %cst_49 [0] : vector<16x64xf32> to vector<64xf32>
    %77 = vector.shape_cast %76 : vector<64xf32> to vector<1x64xf32>
    %78 = arith.addf %62, %77 : vector<1x64xf32>
    %79 = vector.extract_strided_slice %36 {offsets = [36, 0], sizes = [16, 64], strides = [1, 1]} : vector<288x64xf32> to vector<16x64xf32>
    %80 = vector.extract_strided_slice %40 {offsets = [37, 0], sizes = [16, 64], strides = [1, 1]} : vector<288x64xf32> to vector<16x64xf32>
    %81 = arith.addf %79, %80 : vector<16x64xf32>
    %82 = vector.extract_strided_slice %44 {offsets = [38, 0], sizes = [16, 64], strides = [1, 1]} : vector<288x64xf32> to vector<16x64xf32>
    %83 = arith.addf %81, %82 : vector<16x64xf32>
    %84 = arith.truncf %83 : vector<16x64xf32> to vector<16x64xbf16>
    %c0_50 = arith.constant 0 : index
    %c2_51 = arith.constant 2 : index
    %c0_52 = arith.constant 0 : index
    %c0_53 = arith.constant 0 : index
    %85 = vector.load %arg4[%c0_50, %c2_51, %c0_52, %c0_53] : memref<1x16x16x64xbf16, #tpu.memory_space<vmem>>, vector<1x1x16x64xbf16>
    %86 = vector.shape_cast %85 : vector<1x1x16x64xbf16> to vector<16x64xbf16>
    %87 = vector.shape_cast %84 : vector<16x64xbf16> to vector<1x1x16x64xbf16>
    tpu.vector_store %arg4[%c0_50, %c2_51, %c0_52, %c0_53], %87 {strides = array<i32>} : memref<1x16x16x64xbf16, #tpu.memory_space<vmem>>, vector<1x1x16x64xbf16>,
    %cst_54 = arith.constant dense<0.000000e+00> : vector<64xf32>
    %88 = vector.multi_reduction <add>, %83, %cst_54 [0] : vector<16x64xf32> to vector<64xf32>
    %89 = vector.shape_cast %88 : vector<64xf32> to vector<1x64xf32>
    %90 = arith.addf %74, %89 : vector<1x64xf32>
    %91 = arith.mulf %83, %83 : vector<16x64xf32>
    %cst_55 = arith.constant dense<0.000000e+00> : vector<64xf32>
    %92 = vector.multi_reduction <add>, %91, %cst_55 [0] : vector<16x64xf32> to vector<64xf32>
    %93 = vector.shape_cast %92 : vector<64xf32> to vector<1x64xf32>
    %94 = arith.addf %78, %93 : vector<1x64xf32>
    %95 = vector.extract_strided_slice %36 {offsets = [54, 0], sizes = [16, 64], strides = [1, 1]} : vector<288x64xf32> to vector<16x64xf32>
    %96 = vector.extract_strided_slice %40 {offsets = [55, 0], sizes = [16, 64], strides = [1, 1]} : vector<288x64xf32> to vector<16x64xf32>
    %97 = arith.addf %95, %96 : vector<16x64xf32>
    %98 = vector.extract_strided_slice %44 {offsets = [56, 0], sizes = [16, 64], strides = [1, 1]} : vector<288x64xf32> to vector<16x64xf32>
    %99 = arith.addf %97, %98 : vector<16x64xf32>
    %100 = arith.truncf %99 : vector<16x64xf32> to vector<16x64xbf16>
    %c0_56 = arith.constant 0 : index
    %c3_57 = arith.constant 3 : index
    %c0_58 = arith.constant 0 : index
    %c0_59 = arith.constant 0 : index
    %101 = vector.load %arg4[%c0_56, %c3_57, %c0_58, %c0_59] : memref<1x16x16x64xbf16, #tpu.memory_space<vmem>>, vector<1x1x16x64xbf16>
    %102 = vector.shape_cast %101 : vector<1x1x16x64xbf16> to vector<16x64xbf16>
    %103 = vector.shape_cast %100 : vector<16x64xbf16> to vector<1x1x16x64xbf16>
    tpu.vector_store %arg4[%c0_56, %c3_57, %c0_58, %c0_59], %103 {strides = array<i32>} : memref<1x16x16x64xbf16, #tpu.memory_space<vmem>>, vector<1x1x16x64xbf16>,
    %cst_60 = arith.constant dense<0.000000e+00> : vector<64xf32>
    %104 = vector.multi_reduction <add>, %99, %cst_60 [0] : vector<16x64xf32> to vector<64xf32>
    %105 = vector.shape_cast %104 : vector<64xf32> to vector<1x64xf32>
    %106 = arith.addf %90, %105 : vector<1x64xf32>
    %107 = arith.mulf %99, %99 : vector<16x64xf32>
    %cst_61 = arith.constant dense<0.000000e+00> : vector<64xf32>
    %108 = vector.multi_reduction <add>, %107, %cst_61 [0] : vector<16x64xf32> to vector<64xf32>
    %109 = vector.shape_cast %108 : vector<64xf32> to vector<1x64xf32>
    %110 = arith.addf %94, %109 : vector<1x64xf32>
    %111 = vector.extract_strided_slice %36 {offsets = [72, 0], sizes = [16, 64], strides = [1, 1]} : vector<288x64xf32> to vector<16x64xf32>
    %112 = vector.extract_strided_slice %40 {offsets = [73, 0], sizes = [16, 64], strides = [1, 1]} : vector<288x64xf32> to vector<16x64xf32>
    %113 = arith.addf %111, %112 : vector<16x64xf32>
    %114 = vector.extract_strided_slice %44 {offsets = [74, 0], sizes = [16, 64], strides = [1, 1]} : vector<288x64xf32> to vector<16x64xf32>
    %115 = arith.addf %113, %114 : vector<16x64xf32>
    %116 = arith.truncf %115 : vector<16x64xf32> to vector<16x64xbf16>
    %c0_62 = arith.constant 0 : index
    %c4_63 = arith.constant 4 : index
    %c0_64 = arith.constant 0 : index
    %c0_65 = arith.constant 0 : index
    %117 = vector.load %arg4[%c0_62, %c4_63, %c0_64, %c0_65] : memref<1x16x16x64xbf16, #tpu.memory_space<vmem>>, vector<1x1x16x64xbf16>
    %118 = vector.shape_cast %117 : vector<1x1x16x64xbf16> to vector<16x64xbf16>
    %119 = vector.shape_cast %116 : vector<16x64xbf16> to vector<1x1x16x64xbf16>
    tpu.vector_store %arg4[%c0_62, %c4_63, %c0_64, %c0_65], %119 {strides = array<i32>} : memref<1x16x16x64xbf16, #tpu.memory_space<vmem>>, vector<1x1x16x64xbf16>,
    %cst_66 = arith.constant dense<0.000000e+00> : vector<64xf32>
    %120 = vector.multi_reduction <add>, %115, %cst_66 [0] : vector<16x64xf32> to vector<64xf32>
    %121 = vector.shape_cast %120 : vector<64xf32> to vector<1x64xf32>
    %122 = arith.addf %106, %121 : vector<1x64xf32>
    %123 = arith.mulf %115, %115 : vector<16x64xf32>
    %cst_67 = arith.constant dense<0.000000e+00> : vector<64xf32>
    %124 = vector.multi_reduction <add>, %123, %cst_67 [0] : vector<16x64xf32> to vector<64xf32>
    %125 = vector.shape_cast %124 : vector<64xf32> to vector<1x64xf32>
    %126 = arith.addf %110, %125 : vector<1x64xf32>
    %127 = vector.extract_strided_slice %36 {offsets = [90, 0], sizes = [16, 64], strides = [1, 1]} : vector<288x64xf32> to vector<16x64xf32>
    %128 = vector.extract_strided_slice %40 {offsets = [91, 0], sizes = [16, 64], strides = [1, 1]} : vector<288x64xf32> to vector<16x64xf32>
    %129 = arith.addf %127, %128 : vector<16x64xf32>
    %130 = vector.extract_strided_slice %44 {offsets = [92, 0], sizes = [16, 64], strides = [1, 1]} : vector<288x64xf32> to vector<16x64xf32>
    %131 = arith.addf %129, %130 : vector<16x64xf32>
    %132 = arith.truncf %131 : vector<16x64xf32> to vector<16x64xbf16>
    %c0_68 = arith.constant 0 : index
    %c5_69 = arith.constant 5 : index
    %c0_70 = arith.constant 0 : index
    %c0_71 = arith.constant 0 : index
    %133 = vector.load %arg4[%c0_68, %c5_69, %c0_70, %c0_71] : memref<1x16x16x64xbf16, #tpu.memory_space<vmem>>, vector<1x1x16x64xbf16>
    %134 = vector.shape_cast %133 : vector<1x1x16x64xbf16> to vector<16x64xbf16>
    %135 = vector.shape_cast %132 : vector<16x64xbf16> to vector<1x1x16x64xbf16>
    tpu.vector_store %arg4[%c0_68, %c5_69, %c0_70, %c0_71], %135 {strides = array<i32>} : memref<1x16x16x64xbf16, #tpu.memory_space<vmem>>, vector<1x1x16x64xbf16>,
    %cst_72 = arith.constant dense<0.000000e+00> : vector<64xf32>
    %136 = vector.multi_reduction <add>, %131, %cst_72 [0] : vector<16x64xf32> to vector<64xf32>
    %137 = vector.shape_cast %136 : vector<64xf32> to vector<1x64xf32>
    %138 = arith.addf %122, %137 : vector<1x64xf32>
    %139 = arith.mulf %131, %131 : vector<16x64xf32>
    %cst_73 = arith.constant dense<0.000000e+00> : vector<64xf32>
    %140 = vector.multi_reduction <add>, %139, %cst_73 [0] : vector<16x64xf32> to vector<64xf32>
    %141 = vector.shape_cast %140 : vector<64xf32> to vector<1x64xf32>
    %142 = arith.addf %126, %141 : vector<1x64xf32>
    %143 = vector.extract_strided_slice %36 {offsets = [108, 0], sizes = [16, 64], strides = [1, 1]} : vector<288x64xf32> to vector<16x64xf32>
    %144 = vector.extract_strided_slice %40 {offsets = [109, 0], sizes = [16, 64], strides = [1, 1]} : vector<288x64xf32> to vector<16x64xf32>
    %145 = arith.addf %143, %144 : vector<16x64xf32>
    %146 = vector.extract_strided_slice %44 {offsets = [110, 0], sizes = [16, 64], strides = [1, 1]} : vector<288x64xf32> to vector<16x64xf32>
    %147 = arith.addf %145, %146 : vector<16x64xf32>
    %148 = arith.truncf %147 : vector<16x64xf32> to vector<16x64xbf16>
    %c0_74 = arith.constant 0 : index
    %c6_75 = arith.constant 6 : index
    %c0_76 = arith.constant 0 : index
    %c0_77 = arith.constant 0 : index
    %149 = vector.load %arg4[%c0_74, %c6_75, %c0_76, %c0_77] : memref<1x16x16x64xbf16, #tpu.memory_space<vmem>>, vector<1x1x16x64xbf16>
    %150 = vector.shape_cast %149 : vector<1x1x16x64xbf16> to vector<16x64xbf16>
    %151 = vector.shape_cast %148 : vector<16x64xbf16> to vector<1x1x16x64xbf16>
    tpu.vector_store %arg4[%c0_74, %c6_75, %c0_76, %c0_77], %151 {strides = array<i32>} : memref<1x16x16x64xbf16, #tpu.memory_space<vmem>>, vector<1x1x16x64xbf16>,
    %cst_78 = arith.constant dense<0.000000e+00> : vector<64xf32>
    %152 = vector.multi_reduction <add>, %147, %cst_78 [0] : vector<16x64xf32> to vector<64xf32>
    %153 = vector.shape_cast %152 : vector<64xf32> to vector<1x64xf32>
    %154 = arith.addf %138, %153 : vector<1x64xf32>
    %155 = arith.mulf %147, %147 : vector<16x64xf32>
    %cst_79 = arith.constant dense<0.000000e+00> : vector<64xf32>
    %156 = vector.multi_reduction <add>, %155, %cst_79 [0] : vector<16x64xf32> to vector<64xf32>
    %157 = vector.shape_cast %156 : vector<64xf32> to vector<1x64xf32>
    %158 = arith.addf %142, %157 : vector<1x64xf32>
    %159 = vector.extract_strided_slice %36 {offsets = [126, 0], sizes = [16, 64], strides = [1, 1]} : vector<288x64xf32> to vector<16x64xf32>
    %160 = vector.extract_strided_slice %40 {offsets = [127, 0], sizes = [16, 64], strides = [1, 1]} : vector<288x64xf32> to vector<16x64xf32>
    %161 = arith.addf %159, %160 : vector<16x64xf32>
    %162 = vector.extract_strided_slice %44 {offsets = [128, 0], sizes = [16, 64], strides = [1, 1]} : vector<288x64xf32> to vector<16x64xf32>
    %163 = arith.addf %161, %162 : vector<16x64xf32>
    %164 = arith.truncf %163 : vector<16x64xf32> to vector<16x64xbf16>
    %c0_80 = arith.constant 0 : index
    %c7_81 = arith.constant 7 : index
    %c0_82 = arith.constant 0 : index
    %c0_83 = arith.constant 0 : index
    %165 = vector.load %arg4[%c0_80, %c7_81, %c0_82, %c0_83] : memref<1x16x16x64xbf16, #tpu.memory_space<vmem>>, vector<1x1x16x64xbf16>
    %166 = vector.shape_cast %165 : vector<1x1x16x64xbf16> to vector<16x64xbf16>
    %167 = vector.shape_cast %164 : vector<16x64xbf16> to vector<1x1x16x64xbf16>
    tpu.vector_store %arg4[%c0_80, %c7_81, %c0_82, %c0_83], %167 {strides = array<i32>} : memref<1x16x16x64xbf16, #tpu.memory_space<vmem>>, vector<1x1x16x64xbf16>,
    %cst_84 = arith.constant dense<0.000000e+00> : vector<64xf32>
    %168 = vector.multi_reduction <add>, %163, %cst_84 [0] : vector<16x64xf32> to vector<64xf32>
    %169 = vector.shape_cast %168 : vector<64xf32> to vector<1x64xf32>
    %170 = arith.addf %154, %169 : vector<1x64xf32>
    %171 = arith.mulf %163, %163 : vector<16x64xf32>
    %cst_85 = arith.constant dense<0.000000e+00> : vector<64xf32>
    %172 = vector.multi_reduction <add>, %171, %cst_85 [0] : vector<16x64xf32> to vector<64xf32>
    %173 = vector.shape_cast %172 : vector<64xf32> to vector<1x64xf32>
    %174 = arith.addf %158, %173 : vector<1x64xf32>
    %175 = vector.extract_strided_slice %36 {offsets = [144, 0], sizes = [16, 64], strides = [1, 1]} : vector<288x64xf32> to vector<16x64xf32>
    %176 = vector.extract_strided_slice %40 {offsets = [145, 0], sizes = [16, 64], strides = [1, 1]} : vector<288x64xf32> to vector<16x64xf32>
    %177 = arith.addf %175, %176 : vector<16x64xf32>
    %178 = vector.extract_strided_slice %44 {offsets = [146, 0], sizes = [16, 64], strides = [1, 1]} : vector<288x64xf32> to vector<16x64xf32>
    %179 = arith.addf %177, %178 : vector<16x64xf32>
    %180 = arith.truncf %179 : vector<16x64xf32> to vector<16x64xbf16>
    %c0_86 = arith.constant 0 : index
    %c8_87 = arith.constant 8 : index
    %c0_88 = arith.constant 0 : index
    %c0_89 = arith.constant 0 : index
    %181 = vector.load %arg4[%c0_86, %c8_87, %c0_88, %c0_89] : memref<1x16x16x64xbf16, #tpu.memory_space<vmem>>, vector<1x1x16x64xbf16>
    %182 = vector.shape_cast %181 : vector<1x1x16x64xbf16> to vector<16x64xbf16>
    %183 = vector.shape_cast %180 : vector<16x64xbf16> to vector<1x1x16x64xbf16>
    tpu.vector_store %arg4[%c0_86, %c8_87, %c0_88, %c0_89], %183 {strides = array<i32>} : memref<1x16x16x64xbf16, #tpu.memory_space<vmem>>, vector<1x1x16x64xbf16>,
    %cst_90 = arith.constant dense<0.000000e+00> : vector<64xf32>
    %184 = vector.multi_reduction <add>, %179, %cst_90 [0] : vector<16x64xf32> to vector<64xf32>
    %185 = vector.shape_cast %184 : vector<64xf32> to vector<1x64xf32>
    %186 = arith.addf %170, %185 : vector<1x64xf32>
    %187 = arith.mulf %179, %179 : vector<16x64xf32>
    %cst_91 = arith.constant dense<0.000000e+00> : vector<64xf32>
    %188 = vector.multi_reduction <add>, %187, %cst_91 [0] : vector<16x64xf32> to vector<64xf32>
    %189 = vector.shape_cast %188 : vector<64xf32> to vector<1x64xf32>
    %190 = arith.addf %174, %189 : vector<1x64xf32>
    %191 = vector.extract_strided_slice %36 {offsets = [162, 0], sizes = [16, 64], strides = [1, 1]} : vector<288x64xf32> to vector<16x64xf32>
    %192 = vector.extract_strided_slice %40 {offsets = [163, 0], sizes = [16, 64], strides = [1, 1]} : vector<288x64xf32> to vector<16x64xf32>
    %193 = arith.addf %191, %192 : vector<16x64xf32>
    %194 = vector.extract_strided_slice %44 {offsets = [164, 0], sizes = [16, 64], strides = [1, 1]} : vector<288x64xf32> to vector<16x64xf32>
    %195 = arith.addf %193, %194 : vector<16x64xf32>
    %196 = arith.truncf %195 : vector<16x64xf32> to vector<16x64xbf16>
    %c0_92 = arith.constant 0 : index
    %c9 = arith.constant 9 : index
    %c0_93 = arith.constant 0 : index
    %c0_94 = arith.constant 0 : index
    %197 = vector.load %arg4[%c0_92, %c9, %c0_93, %c0_94] : memref<1x16x16x64xbf16, #tpu.memory_space<vmem>>, vector<1x1x16x64xbf16>
    %198 = vector.shape_cast %197 : vector<1x1x16x64xbf16> to vector<16x64xbf16>
    %199 = vector.shape_cast %196 : vector<16x64xbf16> to vector<1x1x16x64xbf16>
    tpu.vector_store %arg4[%c0_92, %c9, %c0_93, %c0_94], %199 {strides = array<i32>} : memref<1x16x16x64xbf16, #tpu.memory_space<vmem>>, vector<1x1x16x64xbf16>,
    %cst_95 = arith.constant dense<0.000000e+00> : vector<64xf32>
    %200 = vector.multi_reduction <add>, %195, %cst_95 [0] : vector<16x64xf32> to vector<64xf32>
    %201 = vector.shape_cast %200 : vector<64xf32> to vector<1x64xf32>
    %202 = arith.addf %186, %201 : vector<1x64xf32>
    %203 = arith.mulf %195, %195 : vector<16x64xf32>
    %cst_96 = arith.constant dense<0.000000e+00> : vector<64xf32>
    %204 = vector.multi_reduction <add>, %203, %cst_96 [0] : vector<16x64xf32> to vector<64xf32>
    %205 = vector.shape_cast %204 : vector<64xf32> to vector<1x64xf32>
    %206 = arith.addf %190, %205 : vector<1x64xf32>
    %207 = vector.extract_strided_slice %36 {offsets = [180, 0], sizes = [16, 64], strides = [1, 1]} : vector<288x64xf32> to vector<16x64xf32>
    %208 = vector.extract_strided_slice %40 {offsets = [181, 0], sizes = [16, 64], strides = [1, 1]} : vector<288x64xf32> to vector<16x64xf32>
    %209 = arith.addf %207, %208 : vector<16x64xf32>
    %210 = vector.extract_strided_slice %44 {offsets = [182, 0], sizes = [16, 64], strides = [1, 1]} : vector<288x64xf32> to vector<16x64xf32>
    %211 = arith.addf %209, %210 : vector<16x64xf32>
    %212 = arith.truncf %211 : vector<16x64xf32> to vector<16x64xbf16>
    %c0_97 = arith.constant 0 : index
    %c10 = arith.constant 10 : index
    %c0_98 = arith.constant 0 : index
    %c0_99 = arith.constant 0 : index
    %213 = vector.load %arg4[%c0_97, %c10, %c0_98, %c0_99] : memref<1x16x16x64xbf16, #tpu.memory_space<vmem>>, vector<1x1x16x64xbf16>
    %214 = vector.shape_cast %213 : vector<1x1x16x64xbf16> to vector<16x64xbf16>
    %215 = vector.shape_cast %212 : vector<16x64xbf16> to vector<1x1x16x64xbf16>
    tpu.vector_store %arg4[%c0_97, %c10, %c0_98, %c0_99], %215 {strides = array<i32>} : memref<1x16x16x64xbf16, #tpu.memory_space<vmem>>, vector<1x1x16x64xbf16>,
    %cst_100 = arith.constant dense<0.000000e+00> : vector<64xf32>
    %216 = vector.multi_reduction <add>, %211, %cst_100 [0] : vector<16x64xf32> to vector<64xf32>
    %217 = vector.shape_cast %216 : vector<64xf32> to vector<1x64xf32>
    %218 = arith.addf %202, %217 : vector<1x64xf32>
    %219 = arith.mulf %211, %211 : vector<16x64xf32>
    %cst_101 = arith.constant dense<0.000000e+00> : vector<64xf32>
    %220 = vector.multi_reduction <add>, %219, %cst_101 [0] : vector<16x64xf32> to vector<64xf32>
    %221 = vector.shape_cast %220 : vector<64xf32> to vector<1x64xf32>
    %222 = arith.addf %206, %221 : vector<1x64xf32>
    %223 = vector.extract_strided_slice %36 {offsets = [198, 0], sizes = [16, 64], strides = [1, 1]} : vector<288x64xf32> to vector<16x64xf32>
    %224 = vector.extract_strided_slice %40 {offsets = [199, 0], sizes = [16, 64], strides = [1, 1]} : vector<288x64xf32> to vector<16x64xf32>
    %225 = arith.addf %223, %224 : vector<16x64xf32>
    %226 = vector.extract_strided_slice %44 {offsets = [200, 0], sizes = [16, 64], strides = [1, 1]} : vector<288x64xf32> to vector<16x64xf32>
    %227 = arith.addf %225, %226 : vector<16x64xf32>
    %228 = arith.truncf %227 : vector<16x64xf32> to vector<16x64xbf16>
    %c0_102 = arith.constant 0 : index
    %c11 = arith.constant 11 : index
    %c0_103 = arith.constant 0 : index
    %c0_104 = arith.constant 0 : index
    %229 = vector.load %arg4[%c0_102, %c11, %c0_103, %c0_104] : memref<1x16x16x64xbf16, #tpu.memory_space<vmem>>, vector<1x1x16x64xbf16>
    %230 = vector.shape_cast %229 : vector<1x1x16x64xbf16> to vector<16x64xbf16>
    %231 = vector.shape_cast %228 : vector<16x64xbf16> to vector<1x1x16x64xbf16>
    tpu.vector_store %arg4[%c0_102, %c11, %c0_103, %c0_104], %231 {strides = array<i32>} : memref<1x16x16x64xbf16, #tpu.memory_space<vmem>>, vector<1x1x16x64xbf16>,
    %cst_105 = arith.constant dense<0.000000e+00> : vector<64xf32>
    %232 = vector.multi_reduction <add>, %227, %cst_105 [0] : vector<16x64xf32> to vector<64xf32>
    %233 = vector.shape_cast %232 : vector<64xf32> to vector<1x64xf32>
    %234 = arith.addf %218, %233 : vector<1x64xf32>
    %235 = arith.mulf %227, %227 : vector<16x64xf32>
    %cst_106 = arith.constant dense<0.000000e+00> : vector<64xf32>
    %236 = vector.multi_reduction <add>, %235, %cst_106 [0] : vector<16x64xf32> to vector<64xf32>
    %237 = vector.shape_cast %236 : vector<64xf32> to vector<1x64xf32>
    %238 = arith.addf %222, %237 : vector<1x64xf32>
    %239 = vector.extract_strided_slice %36 {offsets = [216, 0], sizes = [16, 64], strides = [1, 1]} : vector<288x64xf32> to vector<16x64xf32>
    %240 = vector.extract_strided_slice %40 {offsets = [217, 0], sizes = [16, 64], strides = [1, 1]} : vector<288x64xf32> to vector<16x64xf32>
    %241 = arith.addf %239, %240 : vector<16x64xf32>
    %242 = vector.extract_strided_slice %44 {offsets = [218, 0], sizes = [16, 64], strides = [1, 1]} : vector<288x64xf32> to vector<16x64xf32>
    %243 = arith.addf %241, %242 : vector<16x64xf32>
    %244 = arith.truncf %243 : vector<16x64xf32> to vector<16x64xbf16>
    %c0_107 = arith.constant 0 : index
    %c12 = arith.constant 12 : index
    %c0_108 = arith.constant 0 : index
    %c0_109 = arith.constant 0 : index
    %245 = vector.load %arg4[%c0_107, %c12, %c0_108, %c0_109] : memref<1x16x16x64xbf16, #tpu.memory_space<vmem>>, vector<1x1x16x64xbf16>
    %246 = vector.shape_cast %245 : vector<1x1x16x64xbf16> to vector<16x64xbf16>
    %247 = vector.shape_cast %244 : vector<16x64xbf16> to vector<1x1x16x64xbf16>
    tpu.vector_store %arg4[%c0_107, %c12, %c0_108, %c0_109], %247 {strides = array<i32>} : memref<1x16x16x64xbf16, #tpu.memory_space<vmem>>, vector<1x1x16x64xbf16>,
    %cst_110 = arith.constant dense<0.000000e+00> : vector<64xf32>
    %248 = vector.multi_reduction <add>, %243, %cst_110 [0] : vector<16x64xf32> to vector<64xf32>
    %249 = vector.shape_cast %248 : vector<64xf32> to vector<1x64xf32>
    %250 = arith.addf %234, %249 : vector<1x64xf32>
    %251 = arith.mulf %243, %243 : vector<16x64xf32>
    %cst_111 = arith.constant dense<0.000000e+00> : vector<64xf32>
    %252 = vector.multi_reduction <add>, %251, %cst_111 [0] : vector<16x64xf32> to vector<64xf32>
    %253 = vector.shape_cast %252 : vector<64xf32> to vector<1x64xf32>
    %254 = arith.addf %238, %253 : vector<1x64xf32>
    %255 = vector.extract_strided_slice %36 {offsets = [234, 0], sizes = [16, 64], strides = [1, 1]} : vector<288x64xf32> to vector<16x64xf32>
    %256 = vector.extract_strided_slice %40 {offsets = [235, 0], sizes = [16, 64], strides = [1, 1]} : vector<288x64xf32> to vector<16x64xf32>
    %257 = arith.addf %255, %256 : vector<16x64xf32>
    %258 = vector.extract_strided_slice %44 {offsets = [236, 0], sizes = [16, 64], strides = [1, 1]} : vector<288x64xf32> to vector<16x64xf32>
    %259 = arith.addf %257, %258 : vector<16x64xf32>
    %260 = arith.truncf %259 : vector<16x64xf32> to vector<16x64xbf16>
    %c0_112 = arith.constant 0 : index
    %c13 = arith.constant 13 : index
    %c0_113 = arith.constant 0 : index
    %c0_114 = arith.constant 0 : index
    %261 = vector.load %arg4[%c0_112, %c13, %c0_113, %c0_114] : memref<1x16x16x64xbf16, #tpu.memory_space<vmem>>, vector<1x1x16x64xbf16>
    %262 = vector.shape_cast %261 : vector<1x1x16x64xbf16> to vector<16x64xbf16>
    %263 = vector.shape_cast %260 : vector<16x64xbf16> to vector<1x1x16x64xbf16>
    tpu.vector_store %arg4[%c0_112, %c13, %c0_113, %c0_114], %263 {strides = array<i32>} : memref<1x16x16x64xbf16, #tpu.memory_space<vmem>>, vector<1x1x16x64xbf16>,
    %cst_115 = arith.constant dense<0.000000e+00> : vector<64xf32>
    %264 = vector.multi_reduction <add>, %259, %cst_115 [0] : vector<16x64xf32> to vector<64xf32>
    %265 = vector.shape_cast %264 : vector<64xf32> to vector<1x64xf32>
    %266 = arith.addf %250, %265 : vector<1x64xf32>
    %267 = arith.mulf %259, %259 : vector<16x64xf32>
    %cst_116 = arith.constant dense<0.000000e+00> : vector<64xf32>
    %268 = vector.multi_reduction <add>, %267, %cst_116 [0] : vector<16x64xf32> to vector<64xf32>
    %269 = vector.shape_cast %268 : vector<64xf32> to vector<1x64xf32>
    %270 = arith.addf %254, %269 : vector<1x64xf32>
    %271 = vector.extract_strided_slice %36 {offsets = [252, 0], sizes = [16, 64], strides = [1, 1]} : vector<288x64xf32> to vector<16x64xf32>
    %272 = vector.extract_strided_slice %40 {offsets = [253, 0], sizes = [16, 64], strides = [1, 1]} : vector<288x64xf32> to vector<16x64xf32>
    %273 = arith.addf %271, %272 : vector<16x64xf32>
    %274 = vector.extract_strided_slice %44 {offsets = [254, 0], sizes = [16, 64], strides = [1, 1]} : vector<288x64xf32> to vector<16x64xf32>
    %275 = arith.addf %273, %274 : vector<16x64xf32>
    %276 = arith.truncf %275 : vector<16x64xf32> to vector<16x64xbf16>
    %c0_117 = arith.constant 0 : index
    %c14 = arith.constant 14 : index
    %c0_118 = arith.constant 0 : index
    %c0_119 = arith.constant 0 : index
    %277 = vector.load %arg4[%c0_117, %c14, %c0_118, %c0_119] : memref<1x16x16x64xbf16, #tpu.memory_space<vmem>>, vector<1x1x16x64xbf16>
    %278 = vector.shape_cast %277 : vector<1x1x16x64xbf16> to vector<16x64xbf16>
    %279 = vector.shape_cast %276 : vector<16x64xbf16> to vector<1x1x16x64xbf16>
    tpu.vector_store %arg4[%c0_117, %c14, %c0_118, %c0_119], %279 {strides = array<i32>} : memref<1x16x16x64xbf16, #tpu.memory_space<vmem>>, vector<1x1x16x64xbf16>,
    %cst_120 = arith.constant dense<0.000000e+00> : vector<64xf32>
    %280 = vector.multi_reduction <add>, %275, %cst_120 [0] : vector<16x64xf32> to vector<64xf32>
    %281 = vector.shape_cast %280 : vector<64xf32> to vector<1x64xf32>
    %282 = arith.addf %266, %281 : vector<1x64xf32>
    %283 = arith.mulf %275, %275 : vector<16x64xf32>
    %cst_121 = arith.constant dense<0.000000e+00> : vector<64xf32>
    %284 = vector.multi_reduction <add>, %283, %cst_121 [0] : vector<16x64xf32> to vector<64xf32>
    %285 = vector.shape_cast %284 : vector<64xf32> to vector<1x64xf32>
    %286 = arith.addf %270, %285 : vector<1x64xf32>
    %287 = vector.extract_strided_slice %36 {offsets = [270, 0], sizes = [16, 64], strides = [1, 1]} : vector<288x64xf32> to vector<16x64xf32>
    %288 = vector.extract_strided_slice %40 {offsets = [271, 0], sizes = [16, 64], strides = [1, 1]} : vector<288x64xf32> to vector<16x64xf32>
    %289 = arith.addf %287, %288 : vector<16x64xf32>
    %290 = vector.extract_strided_slice %44 {offsets = [272, 0], sizes = [16, 64], strides = [1, 1]} : vector<288x64xf32> to vector<16x64xf32>
    %291 = arith.addf %289, %290 : vector<16x64xf32>
    %292 = arith.truncf %291 : vector<16x64xf32> to vector<16x64xbf16>
    %c0_122 = arith.constant 0 : index
    %c15 = arith.constant 15 : index
    %c0_123 = arith.constant 0 : index
    %c0_124 = arith.constant 0 : index
    %293 = vector.load %arg4[%c0_122, %c15, %c0_123, %c0_124] : memref<1x16x16x64xbf16, #tpu.memory_space<vmem>>, vector<1x1x16x64xbf16>
    %294 = vector.shape_cast %293 : vector<1x1x16x64xbf16> to vector<16x64xbf16>
    %295 = vector.shape_cast %292 : vector<16x64xbf16> to vector<1x1x16x64xbf16>
    tpu.vector_store %arg4[%c0_122, %c15, %c0_123, %c0_124], %295 {strides = array<i32>} : memref<1x16x16x64xbf16, #tpu.memory_space<vmem>>, vector<1x1x16x64xbf16>,
    %cst_125 = arith.constant dense<0.000000e+00> : vector<64xf32>
    %296 = vector.multi_reduction <add>, %291, %cst_125 [0] : vector<16x64xf32> to vector<64xf32>
    %297 = vector.shape_cast %296 : vector<64xf32> to vector<1x64xf32>
    %298 = arith.addf %282, %297 : vector<1x64xf32>
    %299 = arith.mulf %291, %291 : vector<16x64xf32>
    %cst_126 = arith.constant dense<0.000000e+00> : vector<64xf32>
    %300 = vector.multi_reduction <add>, %299, %cst_126 [0] : vector<16x64xf32> to vector<64xf32>
    %301 = vector.shape_cast %300 : vector<64xf32> to vector<1x64xf32>
    %302 = arith.addf %286, %301 : vector<1x64xf32>
    %c0_127 = arith.constant 0 : index
    %c0_128 = arith.constant 0 : index
    %c0_129 = arith.constant 0 : index
    %303 = vector.load %arg5[%c0_127, %c0_128, %c0_129] : memref<1x2x64xf32, #tpu.memory_space<vmem>>, vector<1x1x64xf32>
    %304 = vector.shape_cast %303 : vector<1x1x64xf32> to vector<1x64xf32>
    %305 = vector.shape_cast %298 : vector<1x64xf32> to vector<1x1x64xf32>
    tpu.vector_store %arg5[%c0_127, %c0_128, %c0_129], %305 {strides = array<i32>} : memref<1x2x64xf32, #tpu.memory_space<vmem>>, vector<1x1x64xf32>,
    %c0_130 = arith.constant 0 : index
    %c1_131 = arith.constant 1 : index
    %c0_132 = arith.constant 0 : index
    %306 = vector.load %arg5[%c0_130, %c1_131, %c0_132] : memref<1x2x64xf32, #tpu.memory_space<vmem>>, vector<1x1x64xf32>
    %307 = vector.shape_cast %306 : vector<1x1x64xf32> to vector<1x64xf32>
    %308 = vector.shape_cast %302 : vector<1x64xf32> to vector<1x1x64xf32>
    tpu.vector_store %arg5[%c0_130, %c1_131, %c0_132], %308 {strides = array<i32>} : memref<1x2x64xf32, #tpu.memory_space<vmem>>, vector<1x1x64xf32>,
    return
  }
  func.func @transform_0(%arg0: i32, %arg1: i32) -> (i32, i32, i32) {
    %c0_i32 = arith.constant 0 : i32
    %c0_i32_0 = arith.constant 0 : i32
    %c0_i32_1 = arith.constant 0 : i32
    return %arg1, %c0_i32, %c0_i32_0 : i32, i32, i32
  }
  func.func @transform_1(%arg0: i32, %arg1: i32) -> (i32, i32, i32) {
    %c0_i32 = arith.constant 0 : i32
    %c0_i32_0 = arith.constant 0 : i32
    %c0_i32_1 = arith.constant 0 : i32
    return %c0_i32, %c0_i32_0, %arg0 : i32, i32, i32
  }
  func.func @transform_2(%arg0: i32, %arg1: i32) -> (i32, i32, i32, i32) {
    %c0_i32 = arith.constant 0 : i32
    %c0_i32_0 = arith.constant 0 : i32
    %c0_i32_1 = arith.constant 0 : i32
    return %arg1, %c0_i32, %c0_i32_0, %arg0 : i32, i32, i32, i32
  }
  func.func @transform_3(%arg0: i32, %arg1: i32) -> (i32, i32, i32) {
    %c0_i32 = arith.constant 0 : i32
    %c0_i32_0 = arith.constant 0 : i32
    return %arg1, %c0_i32, %arg0 : i32, i32, i32
  }
}

module attributes {stable_mosaic.version = 11 : i64} {
  func.func @_bn_relu_kernel(%arg0: i32, %arg1: memref<128x128xbf16, #tpu.memory_space<vmem>>, %arg2: memref<1x128xf32, #tpu.memory_space<vmem>>, %arg3: memref<1x128xf32, #tpu.memory_space<vmem>>, %arg4: memref<128x128xbf16, #tpu.memory_space<vmem>>) attributes {dimension_semantics = [#tpu.dimension_semantics<parallel>], iteration_bounds = array<i64: 1>, scalar_prefetch = 0 : i64, scratch_operands = 0 : i64, tpu.core_type = #tpu.core_type<tc>, window_params = [{transform_indices = @transform_0, window_bounds = array<i64: 128, 128>}, {pipeline_mode = #tpu.pipeline_mode<synchronous>, transform_indices = @transform_1, window_bounds = array<i64: 1, 128>}, {pipeline_mode = #tpu.pipeline_mode<synchronous>, transform_indices = @transform_2, window_bounds = array<i64: 1, 128>}, {transform_indices = @transform_3, window_bounds = array<i64: 128, 128>}]} {
    %c0 = arith.constant 0 : index
    %c0_0 = arith.constant 0 : index
    %0 = vector.load %arg1[%c0, %c0_0] : memref<128x128xbf16, #tpu.memory_space<vmem>>, vector<128x128xbf16>
    %1 = arith.extf %0 : vector<128x128xbf16> to vector<128x128xf32>
    %c0_1 = arith.constant 0 : index
    %c0_2 = arith.constant 0 : index
    %2 = vector.load %arg2[%c0_1, %c0_2] : memref<1x128xf32, #tpu.memory_space<vmem>>, vector<1x128xf32>
    %3 = vector.broadcast %2 : vector<1x128xf32> to vector<128x128xf32>
    %4 = arith.mulf %1, %3 : vector<128x128xf32>
    %c0_3 = arith.constant 0 : index
    %c0_4 = arith.constant 0 : index
    %5 = vector.load %arg3[%c0_3, %c0_4] : memref<1x128xf32, #tpu.memory_space<vmem>>, vector<1x128xf32>
    %6 = vector.broadcast %5 : vector<1x128xf32> to vector<128x128xf32>
    %7 = arith.addf %4, %6 : vector<128x128xf32>
    %cst = arith.constant 0.000000e+00 : f32
    %8 = vector.broadcast %cst : f32 to vector<128x128xf32>
    %9 = arith.maximumf %7, %8 : vector<128x128xf32>
    %10 = arith.truncf %9 : vector<128x128xf32> to vector<128x128xbf16>
    %c0_5 = arith.constant 0 : index
    %c0_6 = arith.constant 0 : index
    %11 = vector.load %arg4[%c0_5, %c0_6] : memref<128x128xbf16, #tpu.memory_space<vmem>>, vector<128x128xbf16>
    tpu.vector_store %arg4[%c0_5, %c0_6], %10 {strides = array<i32>} : memref<128x128xbf16, #tpu.memory_space<vmem>>, vector<128x128xbf16>,
    return
  }
  func.func @transform_0(%arg0: i32) -> (i32, i32) {
    %c0_i32 = arith.constant 0 : i32
    %c0_i32_0 = arith.constant 0 : i32
    return %arg0, %c0_i32 : i32, i32
  }
  func.func @transform_1(%arg0: i32) -> (i32, i32) {
    %c0_i32 = arith.constant 0 : i32
    %c0_i32_0 = arith.constant 0 : i32
    %c0_i32_1 = arith.constant 0 : i32
    return %c0_i32, %c0_i32_0 : i32, i32
  }
  func.func @transform_2(%arg0: i32) -> (i32, i32) {
    %c0_i32 = arith.constant 0 : i32
    %c0_i32_0 = arith.constant 0 : i32
    %c0_i32_1 = arith.constant 0 : i32
    return %c0_i32, %c0_i32_0 : i32, i32
  }
  func.func @transform_3(%arg0: i32) -> (i32, i32) {
    %c0_i32 = arith.constant 0 : i32
    %c0_i32_0 = arith.constant 0 : i32
    return %arg0, %c0_i32 : i32, i32
  }
}

module attributes {stable_mosaic.version = 11 : i64} {
  func.func @kernel(%arg0: i32, %arg1: i32, %arg2: memref<1x100x128xbf16, #tpu.memory_space<vmem>>, %arg3: memref<9x128x128xbf16, #tpu.memory_space<vmem>>, %arg4: memref<1x8x8x128xbf16, #tpu.memory_space<vmem>>, %arg5: memref<1x2x128xf32, #tpu.memory_space<vmem>>) attributes {dimension_semantics = [#tpu.dimension_semantics<parallel>, #tpu.dimension_semantics<parallel>], iteration_bounds = array<i64: 1, 2>, scalar_prefetch = 0 : i64, scratch_operands = 0 : i64, tpu.core_type = #tpu.core_type<tc>, window_params = [{transform_indices = @transform_0, window_bounds = array<i64: 1, 100, 128>}, {transform_indices = @transform_1, window_bounds = array<i64: 9, 128, 128>}, {transform_indices = @transform_2, window_bounds = array<i64: 1, 8, 8, 128>}, {transform_indices = @transform_3, window_bounds = array<i64: 1, 2, 128>}]} {
    %cst = arith.constant 0.000000e+00 : f32
    %0 = vector.broadcast %cst : f32 to vector<80x128xf32>
    %cst_0 = arith.constant 0.000000e+00 : f32
    %1 = vector.broadcast %cst_0 : f32 to vector<80x128xf32>
    %cst_1 = arith.constant 0.000000e+00 : f32
    %2 = vector.broadcast %cst_1 : f32 to vector<80x128xf32>
    %c0 = arith.constant 0 : index
    %c0_2 = arith.constant 0 : index
    %c0_3 = arith.constant 0 : index
    %3 = vector.load %arg2[%c0, %c0_2, %c0_3] : memref<1x100x128xbf16, #tpu.memory_space<vmem>>, vector<1x80x128xbf16>
    %4 = vector.shape_cast %3 : vector<1x80x128xbf16> to vector<80x128xbf16>
    %c0_4 = arith.constant 0 : index
    %c0_5 = arith.constant 0 : index
    %c0_6 = arith.constant 0 : index
    %5 = vector.load %arg3[%c0_4, %c0_5, %c0_6] : memref<9x128x128xbf16, #tpu.memory_space<vmem>>, vector<1x128x128xbf16>
    %6 = vector.shape_cast %5 : vector<1x128x128xbf16> to vector<128x128xbf16>
    %cst_7 = arith.constant dense<0.000000e+00> : vector<80x128xf32>
    %7 = tpu.matmul %4, %6, %cst_7 {dimension_numbers = #tpu.dot_dimension_numbers<[1], [0], [0], [1], [0, 0, 1, 1], [], []>} : vector<80x128xbf16>, vector<128x128xbf16>, vector<80x128xf32> -> vector<80x128xf32>
    %8 = arith.addf %0, %7 : vector<80x128xf32>
    %c1 = arith.constant 1 : index
    %c0_8 = arith.constant 0 : index
    %c0_9 = arith.constant 0 : index
    %9 = vector.load %arg3[%c1, %c0_8, %c0_9] : memref<9x128x128xbf16, #tpu.memory_space<vmem>>, vector<1x128x128xbf16>
    %10 = vector.shape_cast %9 : vector<1x128x128xbf16> to vector<128x128xbf16>
    %cst_10 = arith.constant dense<0.000000e+00> : vector<80x128xf32>
    %11 = tpu.matmul %4, %10, %cst_10 {dimension_numbers = #tpu.dot_dimension_numbers<[1], [0], [0], [1], [0, 0, 1, 1], [], []>} : vector<80x128xbf16>, vector<128x128xbf16>, vector<80x128xf32> -> vector<80x128xf32>
    %12 = arith.addf %1, %11 : vector<80x128xf32>
    %c2 = arith.constant 2 : index
    %c0_11 = arith.constant 0 : index
    %c0_12 = arith.constant 0 : index
    %13 = vector.load %arg3[%c2, %c0_11, %c0_12] : memref<9x128x128xbf16, #tpu.memory_space<vmem>>, vector<1x128x128xbf16>
    %14 = vector.shape_cast %13 : vector<1x128x128xbf16> to vector<128x128xbf16>
    %cst_13 = arith.constant dense<0.000000e+00> : vector<80x128xf32>
    %15 = tpu.matmul %4, %14, %cst_13 {dimension_numbers = #tpu.dot_dimension_numbers<[1], [0], [0], [1], [0, 0, 1, 1], [], []>} : vector<80x128xbf16>, vector<128x128xbf16>, vector<80x128xf32> -> vector<80x128xf32>
    %16 = arith.addf %2, %15 : vector<80x128xf32>
    %c0_14 = arith.constant 0 : index
    %c10 = arith.constant 10 : index
    %c0_15 = arith.constant 0 : index
    %17 = vector.load %arg2[%c0_14, %c10, %c0_15] : memref<1x100x128xbf16, #tpu.memory_space<vmem>>, vector<1x80x128xbf16>
    %18 = vector.shape_cast %17 : vector<1x80x128xbf16> to vector<80x128xbf16>
    %c3 = arith.constant 3 : index
    %c0_16 = arith.constant 0 : index
    %c0_17 = arith.constant 0 : index
    %19 = vector.load %arg3[%c3, %c0_16, %c0_17] : memref<9x128x128xbf16, #tpu.memory_space<vmem>>, vector<1x128x128xbf16>
    %20 = vector.shape_cast %19 : vector<1x128x128xbf16> to vector<128x128xbf16>
    %cst_18 = arith.constant dense<0.000000e+00> : vector<80x128xf32>
    %21 = tpu.matmul %18, %20, %cst_18 {dimension_numbers = #tpu.dot_dimension_numbers<[1], [0], [0], [1], [0, 0, 1, 1], [], []>} : vector<80x128xbf16>, vector<128x128xbf16>, vector<80x128xf32> -> vector<80x128xf32>
    %22 = arith.addf %8, %21 : vector<80x128xf32>
    %c4 = arith.constant 4 : index
    %c0_19 = arith.constant 0 : index
    %c0_20 = arith.constant 0 : index
    %23 = vector.load %arg3[%c4, %c0_19, %c0_20] : memref<9x128x128xbf16, #tpu.memory_space<vmem>>, vector<1x128x128xbf16>
    %24 = vector.shape_cast %23 : vector<1x128x128xbf16> to vector<128x128xbf16>
    %cst_21 = arith.constant dense<0.000000e+00> : vector<80x128xf32>
    %25 = tpu.matmul %18, %24, %cst_21 {dimension_numbers = #tpu.dot_dimension_numbers<[1], [0], [0], [1], [0, 0, 1, 1], [], []>} : vector<80x128xbf16>, vector<128x128xbf16>, vector<80x128xf32> -> vector<80x128xf32>
    %26 = arith.addf %12, %25 : vector<80x128xf32>
    %c5 = arith.constant 5 : index
    %c0_22 = arith.constant 0 : index
    %c0_23 = arith.constant 0 : index
    %27 = vector.load %arg3[%c5, %c0_22, %c0_23] : memref<9x128x128xbf16, #tpu.memory_space<vmem>>, vector<1x128x128xbf16>
    %28 = vector.shape_cast %27 : vector<1x128x128xbf16> to vector<128x128xbf16>
    %cst_24 = arith.constant dense<0.000000e+00> : vector<80x128xf32>
    %29 = tpu.matmul %18, %28, %cst_24 {dimension_numbers = #tpu.dot_dimension_numbers<[1], [0], [0], [1], [0, 0, 1, 1], [], []>} : vector<80x128xbf16>, vector<128x128xbf16>, vector<80x128xf32> -> vector<80x128xf32>
    %30 = arith.addf %16, %29 : vector<80x128xf32>
    %c0_25 = arith.constant 0 : index
    %c20 = arith.constant 20 : index
    %c0_26 = arith.constant 0 : index
    %31 = vector.load %arg2[%c0_25, %c20, %c0_26] : memref<1x100x128xbf16, #tpu.memory_space<vmem>>, vector<1x80x128xbf16>
    %32 = vector.shape_cast %31 : vector<1x80x128xbf16> to vector<80x128xbf16>
    %c6 = arith.constant 6 : index
    %c0_27 = arith.constant 0 : index
    %c0_28 = arith.constant 0 : index
    %33 = vector.load %arg3[%c6, %c0_27, %c0_28] : memref<9x128x128xbf16, #tpu.memory_space<vmem>>, vector<1x128x128xbf16>
    %34 = vector.shape_cast %33 : vector<1x128x128xbf16> to vector<128x128xbf16>
    %cst_29 = arith.constant dense<0.000000e+00> : vector<80x128xf32>
    %35 = tpu.matmul %32, %34, %cst_29 {dimension_numbers = #tpu.dot_dimension_numbers<[1], [0], [0], [1], [0, 0, 1, 1], [], []>} : vector<80x128xbf16>, vector<128x128xbf16>, vector<80x128xf32> -> vector<80x128xf32>
    %36 = arith.addf %22, %35 : vector<80x128xf32>
    %c7 = arith.constant 7 : index
    %c0_30 = arith.constant 0 : index
    %c0_31 = arith.constant 0 : index
    %37 = vector.load %arg3[%c7, %c0_30, %c0_31] : memref<9x128x128xbf16, #tpu.memory_space<vmem>>, vector<1x128x128xbf16>
    %38 = vector.shape_cast %37 : vector<1x128x128xbf16> to vector<128x128xbf16>
    %cst_32 = arith.constant dense<0.000000e+00> : vector<80x128xf32>
    %39 = tpu.matmul %32, %38, %cst_32 {dimension_numbers = #tpu.dot_dimension_numbers<[1], [0], [0], [1], [0, 0, 1, 1], [], []>} : vector<80x128xbf16>, vector<128x128xbf16>, vector<80x128xf32> -> vector<80x128xf32>
    %40 = arith.addf %26, %39 : vector<80x128xf32>
    %c8 = arith.constant 8 : index
    %c0_33 = arith.constant 0 : index
    %c0_34 = arith.constant 0 : index
    %41 = vector.load %arg3[%c8, %c0_33, %c0_34] : memref<9x128x128xbf16, #tpu.memory_space<vmem>>, vector<1x128x128xbf16>
    %42 = vector.shape_cast %41 : vector<1x128x128xbf16> to vector<128x128xbf16>
    %cst_35 = arith.constant dense<0.000000e+00> : vector<80x128xf32>
    %43 = tpu.matmul %32, %42, %cst_35 {dimension_numbers = #tpu.dot_dimension_numbers<[1], [0], [0], [1], [0, 0, 1, 1], [], []>} : vector<80x128xbf16>, vector<128x128xbf16>, vector<80x128xf32> -> vector<80x128xf32>
    %44 = arith.addf %30, %43 : vector<80x128xf32>
    %cst_36 = arith.constant 0.000000e+00 : f32
    %45 = vector.broadcast %cst_36 : f32 to vector<1x128xf32>
    %cst_37 = arith.constant 0.000000e+00 : f32
    %46 = vector.broadcast %cst_37 : f32 to vector<1x128xf32>
    %47 = vector.extract_strided_slice %36 {offsets = [0, 0], sizes = [8, 128], strides = [1, 1]} : vector<80x128xf32> to vector<8x128xf32>
    %48 = vector.extract_strided_slice %40 {offsets = [1, 0], sizes = [8, 128], strides = [1, 1]} : vector<80x128xf32> to vector<8x128xf32>
    %49 = arith.addf %47, %48 : vector<8x128xf32>
    %50 = vector.extract_strided_slice %44 {offsets = [2, 0], sizes = [8, 128], strides = [1, 1]} : vector<80x128xf32> to vector<8x128xf32>
    %51 = arith.addf %49, %50 : vector<8x128xf32>
    %52 = arith.truncf %51 : vector<8x128xf32> to vector<8x128xbf16>
    %c0_38 = arith.constant 0 : index
    %c0_39 = arith.constant 0 : index
    %c0_40 = arith.constant 0 : index
    %c0_41 = arith.constant 0 : index
    %53 = vector.load %arg4[%c0_38, %c0_39, %c0_40, %c0_41] : memref<1x8x8x128xbf16, #tpu.memory_space<vmem>>, vector<1x1x8x128xbf16>
    %54 = vector.shape_cast %53 : vector<1x1x8x128xbf16> to vector<8x128xbf16>
    %55 = vector.shape_cast %52 : vector<8x128xbf16> to vector<1x1x8x128xbf16>
    tpu.vector_store %arg4[%c0_38, %c0_39, %c0_40, %c0_41], %55 {strides = array<i32>} : memref<1x8x8x128xbf16, #tpu.memory_space<vmem>>, vector<1x1x8x128xbf16>,
    %cst_42 = arith.constant dense<0.000000e+00> : vector<128xf32>
    %56 = vector.multi_reduction <add>, %51, %cst_42 [0] : vector<8x128xf32> to vector<128xf32>
    %57 = vector.shape_cast %56 : vector<128xf32> to vector<1x128xf32>
    %58 = arith.addf %45, %57 : vector<1x128xf32>
    %59 = arith.mulf %51, %51 : vector<8x128xf32>
    %cst_43 = arith.constant dense<0.000000e+00> : vector<128xf32>
    %60 = vector.multi_reduction <add>, %59, %cst_43 [0] : vector<8x128xf32> to vector<128xf32>
    %61 = vector.shape_cast %60 : vector<128xf32> to vector<1x128xf32>
    %62 = arith.addf %46, %61 : vector<1x128xf32>
    %63 = vector.extract_strided_slice %36 {offsets = [10, 0], sizes = [8, 128], strides = [1, 1]} : vector<80x128xf32> to vector<8x128xf32>
    %64 = vector.extract_strided_slice %40 {offsets = [11, 0], sizes = [8, 128], strides = [1, 1]} : vector<80x128xf32> to vector<8x128xf32>
    %65 = arith.addf %63, %64 : vector<8x128xf32>
    %66 = vector.extract_strided_slice %44 {offsets = [12, 0], sizes = [8, 128], strides = [1, 1]} : vector<80x128xf32> to vector<8x128xf32>
    %67 = arith.addf %65, %66 : vector<8x128xf32>
    %68 = arith.truncf %67 : vector<8x128xf32> to vector<8x128xbf16>
    %c0_44 = arith.constant 0 : index
    %c1_45 = arith.constant 1 : index
    %c0_46 = arith.constant 0 : index
    %c0_47 = arith.constant 0 : index
    %69 = vector.load %arg4[%c0_44, %c1_45, %c0_46, %c0_47] : memref<1x8x8x128xbf16, #tpu.memory_space<vmem>>, vector<1x1x8x128xbf16>
    %70 = vector.shape_cast %69 : vector<1x1x8x128xbf16> to vector<8x128xbf16>
    %71 = vector.shape_cast %68 : vector<8x128xbf16> to vector<1x1x8x128xbf16>
    tpu.vector_store %arg4[%c0_44, %c1_45, %c0_46, %c0_47], %71 {strides = array<i32>} : memref<1x8x8x128xbf16, #tpu.memory_space<vmem>>, vector<1x1x8x128xbf16>,
    %cst_48 = arith.constant dense<0.000000e+00> : vector<128xf32>
    %72 = vector.multi_reduction <add>, %67, %cst_48 [0] : vector<8x128xf32> to vector<128xf32>
    %73 = vector.shape_cast %72 : vector<128xf32> to vector<1x128xf32>
    %74 = arith.addf %58, %73 : vector<1x128xf32>
    %75 = arith.mulf %67, %67 : vector<8x128xf32>
    %cst_49 = arith.constant dense<0.000000e+00> : vector<128xf32>
    %76 = vector.multi_reduction <add>, %75, %cst_49 [0] : vector<8x128xf32> to vector<128xf32>
    %77 = vector.shape_cast %76 : vector<128xf32> to vector<1x128xf32>
    %78 = arith.addf %62, %77 : vector<1x128xf32>
    %79 = vector.extract_strided_slice %36 {offsets = [20, 0], sizes = [8, 128], strides = [1, 1]} : vector<80x128xf32> to vector<8x128xf32>
    %80 = vector.extract_strided_slice %40 {offsets = [21, 0], sizes = [8, 128], strides = [1, 1]} : vector<80x128xf32> to vector<8x128xf32>
    %81 = arith.addf %79, %80 : vector<8x128xf32>
    %82 = vector.extract_strided_slice %44 {offsets = [22, 0], sizes = [8, 128], strides = [1, 1]} : vector<80x128xf32> to vector<8x128xf32>
    %83 = arith.addf %81, %82 : vector<8x128xf32>
    %84 = arith.truncf %83 : vector<8x128xf32> to vector<8x128xbf16>
    %c0_50 = arith.constant 0 : index
    %c2_51 = arith.constant 2 : index
    %c0_52 = arith.constant 0 : index
    %c0_53 = arith.constant 0 : index
    %85 = vector.load %arg4[%c0_50, %c2_51, %c0_52, %c0_53] : memref<1x8x8x128xbf16, #tpu.memory_space<vmem>>, vector<1x1x8x128xbf16>
    %86 = vector.shape_cast %85 : vector<1x1x8x128xbf16> to vector<8x128xbf16>
    %87 = vector.shape_cast %84 : vector<8x128xbf16> to vector<1x1x8x128xbf16>
    tpu.vector_store %arg4[%c0_50, %c2_51, %c0_52, %c0_53], %87 {strides = array<i32>} : memref<1x8x8x128xbf16, #tpu.memory_space<vmem>>, vector<1x1x8x128xbf16>,
    %cst_54 = arith.constant dense<0.000000e+00> : vector<128xf32>
    %88 = vector.multi_reduction <add>, %83, %cst_54 [0] : vector<8x128xf32> to vector<128xf32>
    %89 = vector.shape_cast %88 : vector<128xf32> to vector<1x128xf32>
    %90 = arith.addf %74, %89 : vector<1x128xf32>
    %91 = arith.mulf %83, %83 : vector<8x128xf32>
    %cst_55 = arith.constant dense<0.000000e+00> : vector<128xf32>
    %92 = vector.multi_reduction <add>, %91, %cst_55 [0] : vector<8x128xf32> to vector<128xf32>
    %93 = vector.shape_cast %92 : vector<128xf32> to vector<1x128xf32>
    %94 = arith.addf %78, %93 : vector<1x128xf32>
    %95 = vector.extract_strided_slice %36 {offsets = [30, 0], sizes = [8, 128], strides = [1, 1]} : vector<80x128xf32> to vector<8x128xf32>
    %96 = vector.extract_strided_slice %40 {offsets = [31, 0], sizes = [8, 128], strides = [1, 1]} : vector<80x128xf32> to vector<8x128xf32>
    %97 = arith.addf %95, %96 : vector<8x128xf32>
    %98 = vector.extract_strided_slice %44 {offsets = [32, 0], sizes = [8, 128], strides = [1, 1]} : vector<80x128xf32> to vector<8x128xf32>
    %99 = arith.addf %97, %98 : vector<8x128xf32>
    %100 = arith.truncf %99 : vector<8x128xf32> to vector<8x128xbf16>
    %c0_56 = arith.constant 0 : index
    %c3_57 = arith.constant 3 : index
    %c0_58 = arith.constant 0 : index
    %c0_59 = arith.constant 0 : index
    %101 = vector.load %arg4[%c0_56, %c3_57, %c0_58, %c0_59] : memref<1x8x8x128xbf16, #tpu.memory_space<vmem>>, vector<1x1x8x128xbf16>
    %102 = vector.shape_cast %101 : vector<1x1x8x128xbf16> to vector<8x128xbf16>
    %103 = vector.shape_cast %100 : vector<8x128xbf16> to vector<1x1x8x128xbf16>
    tpu.vector_store %arg4[%c0_56, %c3_57, %c0_58, %c0_59], %103 {strides = array<i32>} : memref<1x8x8x128xbf16, #tpu.memory_space<vmem>>, vector<1x1x8x128xbf16>,
    %cst_60 = arith.constant dense<0.000000e+00> : vector<128xf32>
    %104 = vector.multi_reduction <add>, %99, %cst_60 [0] : vector<8x128xf32> to vector<128xf32>
    %105 = vector.shape_cast %104 : vector<128xf32> to vector<1x128xf32>
    %106 = arith.addf %90, %105 : vector<1x128xf32>
    %107 = arith.mulf %99, %99 : vector<8x128xf32>
    %cst_61 = arith.constant dense<0.000000e+00> : vector<128xf32>
    %108 = vector.multi_reduction <add>, %107, %cst_61 [0] : vector<8x128xf32> to vector<128xf32>
    %109 = vector.shape_cast %108 : vector<128xf32> to vector<1x128xf32>
    %110 = arith.addf %94, %109 : vector<1x128xf32>
    %111 = vector.extract_strided_slice %36 {offsets = [40, 0], sizes = [8, 128], strides = [1, 1]} : vector<80x128xf32> to vector<8x128xf32>
    %112 = vector.extract_strided_slice %40 {offsets = [41, 0], sizes = [8, 128], strides = [1, 1]} : vector<80x128xf32> to vector<8x128xf32>
    %113 = arith.addf %111, %112 : vector<8x128xf32>
    %114 = vector.extract_strided_slice %44 {offsets = [42, 0], sizes = [8, 128], strides = [1, 1]} : vector<80x128xf32> to vector<8x128xf32>
    %115 = arith.addf %113, %114 : vector<8x128xf32>
    %116 = arith.truncf %115 : vector<8x128xf32> to vector<8x128xbf16>
    %c0_62 = arith.constant 0 : index
    %c4_63 = arith.constant 4 : index
    %c0_64 = arith.constant 0 : index
    %c0_65 = arith.constant 0 : index
    %117 = vector.load %arg4[%c0_62, %c4_63, %c0_64, %c0_65] : memref<1x8x8x128xbf16, #tpu.memory_space<vmem>>, vector<1x1x8x128xbf16>
    %118 = vector.shape_cast %117 : vector<1x1x8x128xbf16> to vector<8x128xbf16>
    %119 = vector.shape_cast %116 : vector<8x128xbf16> to vector<1x1x8x128xbf16>
    tpu.vector_store %arg4[%c0_62, %c4_63, %c0_64, %c0_65], %119 {strides = array<i32>} : memref<1x8x8x128xbf16, #tpu.memory_space<vmem>>, vector<1x1x8x128xbf16>,
    %cst_66 = arith.constant dense<0.000000e+00> : vector<128xf32>
    %120 = vector.multi_reduction <add>, %115, %cst_66 [0] : vector<8x128xf32> to vector<128xf32>
    %121 = vector.shape_cast %120 : vector<128xf32> to vector<1x128xf32>
    %122 = arith.addf %106, %121 : vector<1x128xf32>
    %123 = arith.mulf %115, %115 : vector<8x128xf32>
    %cst_67 = arith.constant dense<0.000000e+00> : vector<128xf32>
    %124 = vector.multi_reduction <add>, %123, %cst_67 [0] : vector<8x128xf32> to vector<128xf32>
    %125 = vector.shape_cast %124 : vector<128xf32> to vector<1x128xf32>
    %126 = arith.addf %110, %125 : vector<1x128xf32>
    %127 = vector.extract_strided_slice %36 {offsets = [50, 0], sizes = [8, 128], strides = [1, 1]} : vector<80x128xf32> to vector<8x128xf32>
    %128 = vector.extract_strided_slice %40 {offsets = [51, 0], sizes = [8, 128], strides = [1, 1]} : vector<80x128xf32> to vector<8x128xf32>
    %129 = arith.addf %127, %128 : vector<8x128xf32>
    %130 = vector.extract_strided_slice %44 {offsets = [52, 0], sizes = [8, 128], strides = [1, 1]} : vector<80x128xf32> to vector<8x128xf32>
    %131 = arith.addf %129, %130 : vector<8x128xf32>
    %132 = arith.truncf %131 : vector<8x128xf32> to vector<8x128xbf16>
    %c0_68 = arith.constant 0 : index
    %c5_69 = arith.constant 5 : index
    %c0_70 = arith.constant 0 : index
    %c0_71 = arith.constant 0 : index
    %133 = vector.load %arg4[%c0_68, %c5_69, %c0_70, %c0_71] : memref<1x8x8x128xbf16, #tpu.memory_space<vmem>>, vector<1x1x8x128xbf16>
    %134 = vector.shape_cast %133 : vector<1x1x8x128xbf16> to vector<8x128xbf16>
    %135 = vector.shape_cast %132 : vector<8x128xbf16> to vector<1x1x8x128xbf16>
    tpu.vector_store %arg4[%c0_68, %c5_69, %c0_70, %c0_71], %135 {strides = array<i32>} : memref<1x8x8x128xbf16, #tpu.memory_space<vmem>>, vector<1x1x8x128xbf16>,
    %cst_72 = arith.constant dense<0.000000e+00> : vector<128xf32>
    %136 = vector.multi_reduction <add>, %131, %cst_72 [0] : vector<8x128xf32> to vector<128xf32>
    %137 = vector.shape_cast %136 : vector<128xf32> to vector<1x128xf32>
    %138 = arith.addf %122, %137 : vector<1x128xf32>
    %139 = arith.mulf %131, %131 : vector<8x128xf32>
    %cst_73 = arith.constant dense<0.000000e+00> : vector<128xf32>
    %140 = vector.multi_reduction <add>, %139, %cst_73 [0] : vector<8x128xf32> to vector<128xf32>
    %141 = vector.shape_cast %140 : vector<128xf32> to vector<1x128xf32>
    %142 = arith.addf %126, %141 : vector<1x128xf32>
    %143 = vector.extract_strided_slice %36 {offsets = [60, 0], sizes = [8, 128], strides = [1, 1]} : vector<80x128xf32> to vector<8x128xf32>
    %144 = vector.extract_strided_slice %40 {offsets = [61, 0], sizes = [8, 128], strides = [1, 1]} : vector<80x128xf32> to vector<8x128xf32>
    %145 = arith.addf %143, %144 : vector<8x128xf32>
    %146 = vector.extract_strided_slice %44 {offsets = [62, 0], sizes = [8, 128], strides = [1, 1]} : vector<80x128xf32> to vector<8x128xf32>
    %147 = arith.addf %145, %146 : vector<8x128xf32>
    %148 = arith.truncf %147 : vector<8x128xf32> to vector<8x128xbf16>
    %c0_74 = arith.constant 0 : index
    %c6_75 = arith.constant 6 : index
    %c0_76 = arith.constant 0 : index
    %c0_77 = arith.constant 0 : index
    %149 = vector.load %arg4[%c0_74, %c6_75, %c0_76, %c0_77] : memref<1x8x8x128xbf16, #tpu.memory_space<vmem>>, vector<1x1x8x128xbf16>
    %150 = vector.shape_cast %149 : vector<1x1x8x128xbf16> to vector<8x128xbf16>
    %151 = vector.shape_cast %148 : vector<8x128xbf16> to vector<1x1x8x128xbf16>
    tpu.vector_store %arg4[%c0_74, %c6_75, %c0_76, %c0_77], %151 {strides = array<i32>} : memref<1x8x8x128xbf16, #tpu.memory_space<vmem>>, vector<1x1x8x128xbf16>,
    %cst_78 = arith.constant dense<0.000000e+00> : vector<128xf32>
    %152 = vector.multi_reduction <add>, %147, %cst_78 [0] : vector<8x128xf32> to vector<128xf32>
    %153 = vector.shape_cast %152 : vector<128xf32> to vector<1x128xf32>
    %154 = arith.addf %138, %153 : vector<1x128xf32>
    %155 = arith.mulf %147, %147 : vector<8x128xf32>
    %cst_79 = arith.constant dense<0.000000e+00> : vector<128xf32>
    %156 = vector.multi_reduction <add>, %155, %cst_79 [0] : vector<8x128xf32> to vector<128xf32>
    %157 = vector.shape_cast %156 : vector<128xf32> to vector<1x128xf32>
    %158 = arith.addf %142, %157 : vector<1x128xf32>
    %159 = vector.extract_strided_slice %36 {offsets = [70, 0], sizes = [8, 128], strides = [1, 1]} : vector<80x128xf32> to vector<8x128xf32>
    %160 = vector.extract_strided_slice %40 {offsets = [71, 0], sizes = [8, 128], strides = [1, 1]} : vector<80x128xf32> to vector<8x128xf32>
    %161 = arith.addf %159, %160 : vector<8x128xf32>
    %162 = vector.extract_strided_slice %44 {offsets = [72, 0], sizes = [8, 128], strides = [1, 1]} : vector<80x128xf32> to vector<8x128xf32>
    %163 = arith.addf %161, %162 : vector<8x128xf32>
    %164 = arith.truncf %163 : vector<8x128xf32> to vector<8x128xbf16>
    %c0_80 = arith.constant 0 : index
    %c7_81 = arith.constant 7 : index
    %c0_82 = arith.constant 0 : index
    %c0_83 = arith.constant 0 : index
    %165 = vector.load %arg4[%c0_80, %c7_81, %c0_82, %c0_83] : memref<1x8x8x128xbf16, #tpu.memory_space<vmem>>, vector<1x1x8x128xbf16>
    %166 = vector.shape_cast %165 : vector<1x1x8x128xbf16> to vector<8x128xbf16>
    %167 = vector.shape_cast %164 : vector<8x128xbf16> to vector<1x1x8x128xbf16>
    tpu.vector_store %arg4[%c0_80, %c7_81, %c0_82, %c0_83], %167 {strides = array<i32>} : memref<1x8x8x128xbf16, #tpu.memory_space<vmem>>, vector<1x1x8x128xbf16>,
    %cst_84 = arith.constant dense<0.000000e+00> : vector<128xf32>
    %168 = vector.multi_reduction <add>, %163, %cst_84 [0] : vector<8x128xf32> to vector<128xf32>
    %169 = vector.shape_cast %168 : vector<128xf32> to vector<1x128xf32>
    %170 = arith.addf %154, %169 : vector<1x128xf32>
    %171 = arith.mulf %163, %163 : vector<8x128xf32>
    %cst_85 = arith.constant dense<0.000000e+00> : vector<128xf32>
    %172 = vector.multi_reduction <add>, %171, %cst_85 [0] : vector<8x128xf32> to vector<128xf32>
    %173 = vector.shape_cast %172 : vector<128xf32> to vector<1x128xf32>
    %174 = arith.addf %158, %173 : vector<1x128xf32>
    %c0_86 = arith.constant 0 : index
    %c0_87 = arith.constant 0 : index
    %c0_88 = arith.constant 0 : index
    %175 = vector.load %arg5[%c0_86, %c0_87, %c0_88] : memref<1x2x128xf32, #tpu.memory_space<vmem>>, vector<1x1x128xf32>
    %176 = vector.shape_cast %175 : vector<1x1x128xf32> to vector<1x128xf32>
    %177 = vector.shape_cast %170 : vector<1x128xf32> to vector<1x1x128xf32>
    tpu.vector_store %arg5[%c0_86, %c0_87, %c0_88], %177 {strides = array<i32>} : memref<1x2x128xf32, #tpu.memory_space<vmem>>, vector<1x1x128xf32>,
    %c0_89 = arith.constant 0 : index
    %c1_90 = arith.constant 1 : index
    %c0_91 = arith.constant 0 : index
    %178 = vector.load %arg5[%c0_89, %c1_90, %c0_91] : memref<1x2x128xf32, #tpu.memory_space<vmem>>, vector<1x1x128xf32>
    %179 = vector.shape_cast %178 : vector<1x1x128xf32> to vector<1x128xf32>
    %180 = vector.shape_cast %174 : vector<1x128xf32> to vector<1x1x128xf32>
    tpu.vector_store %arg5[%c0_89, %c1_90, %c0_91], %180 {strides = array<i32>} : memref<1x2x128xf32, #tpu.memory_space<vmem>>, vector<1x1x128xf32>,
    return
  }
  func.func @transform_0(%arg0: i32, %arg1: i32) -> (i32, i32, i32) {
    %c0_i32 = arith.constant 0 : i32
    %c0_i32_0 = arith.constant 0 : i32
    %c0_i32_1 = arith.constant 0 : i32
    return %arg1, %c0_i32, %c0_i32_0 : i32, i32, i32
  }
  func.func @transform_1(%arg0: i32, %arg1: i32) -> (i32, i32, i32) {
    %c0_i32 = arith.constant 0 : i32
    %c0_i32_0 = arith.constant 0 : i32
    %c0_i32_1 = arith.constant 0 : i32
    return %c0_i32, %c0_i32_0, %arg0 : i32, i32, i32
  }
  func.func @transform_2(%arg0: i32, %arg1: i32) -> (i32, i32, i32, i32) {
    %c0_i32 = arith.constant 0 : i32
    %c0_i32_0 = arith.constant 0 : i32
    %c0_i32_1 = arith.constant 0 : i32
    return %arg1, %c0_i32, %c0_i32_0, %arg0 : i32, i32, i32, i32
  }
  func.func @transform_3(%arg0: i32, %arg1: i32) -> (i32, i32, i32) {
    %c0_i32 = arith.constant 0 : i32
    %c0_i32_0 = arith.constant 0 : i32
    return %arg1, %c0_i32, %arg0 : i32, i32, i32
  }
}

module attributes {stable_mosaic.version = 11 : i64} {
  func.func @_maxpool_kernel(%arg0: i32, %arg1: i32, %arg2: memref<1x4x2x4x256xbf16, #tpu.memory_space<vmem>>, %arg3: memref<1x4x4x128xbf16, #tpu.memory_space<vmem>>) attributes {dimension_semantics = [#tpu.dimension_semantics<parallel>, #tpu.dimension_semantics<parallel>], iteration_bounds = array<i64: 2, 1>, scalar_prefetch = 0 : i64, scratch_operands = 0 : i64, tpu.core_type = #tpu.core_type<tc>, window_params = [{transform_indices = @transform_0, window_bounds = array<i64: 1, 4, 2, 4, 256>}, {transform_indices = @transform_1, window_bounds = array<i64: 1, 4, 4, 128>}]} {
    %c0 = arith.constant 0 : index
    %c0_0 = arith.constant 0 : index
    %c0_1 = arith.constant 0 : index
    %c0_2 = arith.constant 0 : index
    %c0_3 = arith.constant 0 : index
    %0 = vector.load %arg2[%c0, %c0_0, %c0_1, %c0_2, %c0_3] : memref<1x4x2x4x256xbf16, #tpu.memory_space<vmem>>, vector<1x4x1x4x256xbf16>
    %1 = vector.shape_cast %0 : vector<1x4x1x4x256xbf16> to vector<4x4x256xbf16>
    %c0_4 = arith.constant 0 : index
    %c0_5 = arith.constant 0 : index
    %c1 = arith.constant 1 : index
    %c0_6 = arith.constant 0 : index
    %c0_7 = arith.constant 0 : index
    %2 = vector.load %arg2[%c0_4, %c0_5, %c1, %c0_6, %c0_7] : memref<1x4x2x4x256xbf16, #tpu.memory_space<vmem>>, vector<1x4x1x4x256xbf16>
    %3 = vector.shape_cast %2 : vector<1x4x1x4x256xbf16> to vector<4x4x256xbf16>
    %4 = arith.maximumf %1, %3 : vector<4x4x256xbf16>
    %5 = vector.extract_strided_slice %4 {offsets = [0, 0, 0], sizes = [4, 4, 128], strides = [1, 1, 1]} : vector<4x4x256xbf16> to vector<4x4x128xbf16>
    %6 = vector.extract_strided_slice %4 {offsets = [0, 0, 128], sizes = [4, 4, 128], strides = [1, 1, 1]} : vector<4x4x256xbf16> to vector<4x4x128xbf16>
    %7 = arith.maximumf %5, %6 : vector<4x4x128xbf16>
    %c0_8 = arith.constant 0 : index
    %c0_9 = arith.constant 0 : index
    %c0_10 = arith.constant 0 : index
    %c0_11 = arith.constant 0 : index
    %8 = vector.load %arg3[%c0_8, %c0_9, %c0_10, %c0_11] : memref<1x4x4x128xbf16, #tpu.memory_space<vmem>>, vector<1x4x4x128xbf16>
    %9 = vector.shape_cast %8 : vector<1x4x4x128xbf16> to vector<4x4x128xbf16>
    %10 = vector.shape_cast %7 : vector<4x4x128xbf16> to vector<1x4x4x128xbf16>
    tpu.vector_store %arg3[%c0_8, %c0_9, %c0_10, %c0_11], %10 {strides = array<i32>} : memref<1x4x4x128xbf16, #tpu.memory_space<vmem>>, vector<1x4x4x128xbf16>,
    return
  }
  func.func @transform_0(%arg0: i32, %arg1: i32) -> (i32, i32, i32, i32, i32) {
    %c0_i32 = arith.constant 0 : i32
    %c0_i32_0 = arith.constant 0 : i32
    %c0_i32_1 = arith.constant 0 : i32
    %c0_i32_2 = arith.constant 0 : i32
    return %arg0, %arg1, %c0_i32, %c0_i32_0, %c0_i32_1 : i32, i32, i32, i32, i32
  }
  func.func @transform_1(%arg0: i32, %arg1: i32) -> (i32, i32, i32, i32) {
    %c0_i32 = arith.constant 0 : i32
    %c0_i32_0 = arith.constant 0 : i32
    %c0_i32_1 = arith.constant 0 : i32
    return %arg0, %arg1, %c0_i32, %c0_i32_0 : i32, i32, i32, i32
  }
}

module attributes {stable_mosaic.version = 11 : i64} {
  func.func @_bn_relu_kernel(%arg0: i32, %arg1: memref<32x256xbf16, #tpu.memory_space<vmem>>, %arg2: memref<1x256xf32, #tpu.memory_space<vmem>>, %arg3: memref<1x256xf32, #tpu.memory_space<vmem>>, %arg4: memref<32x256xbf16, #tpu.memory_space<vmem>>) attributes {dimension_semantics = [#tpu.dimension_semantics<parallel>], iteration_bounds = array<i64: 1>, scalar_prefetch = 0 : i64, scratch_operands = 0 : i64, tpu.core_type = #tpu.core_type<tc>, window_params = [{transform_indices = @transform_0, window_bounds = array<i64: 32, 256>}, {pipeline_mode = #tpu.pipeline_mode<synchronous>, transform_indices = @transform_1, window_bounds = array<i64: 1, 256>}, {pipeline_mode = #tpu.pipeline_mode<synchronous>, transform_indices = @transform_2, window_bounds = array<i64: 1, 256>}, {transform_indices = @transform_3, window_bounds = array<i64: 32, 256>}]} {
    %c0 = arith.constant 0 : index
    %c0_0 = arith.constant 0 : index
    %0 = vector.load %arg1[%c0, %c0_0] : memref<32x256xbf16, #tpu.memory_space<vmem>>, vector<32x256xbf16>
    %1 = arith.extf %0 : vector<32x256xbf16> to vector<32x256xf32>
    %c0_1 = arith.constant 0 : index
    %c0_2 = arith.constant 0 : index
    %2 = vector.load %arg2[%c0_1, %c0_2] : memref<1x256xf32, #tpu.memory_space<vmem>>, vector<1x256xf32>
    %3 = vector.broadcast %2 : vector<1x256xf32> to vector<32x256xf32>
    %4 = arith.mulf %1, %3 : vector<32x256xf32>
    %c0_3 = arith.constant 0 : index
    %c0_4 = arith.constant 0 : index
    %5 = vector.load %arg3[%c0_3, %c0_4] : memref<1x256xf32, #tpu.memory_space<vmem>>, vector<1x256xf32>
    %6 = vector.broadcast %5 : vector<1x256xf32> to vector<32x256xf32>
    %7 = arith.addf %4, %6 : vector<32x256xf32>
    %cst = arith.constant 0.000000e+00 : f32
    %8 = vector.broadcast %cst : f32 to vector<32x256xf32>
    %9 = arith.maximumf %7, %8 : vector<32x256xf32>
    %10 = arith.truncf %9 : vector<32x256xf32> to vector<32x256xbf16>
    %c0_5 = arith.constant 0 : index
    %c0_6 = arith.constant 0 : index
    %11 = vector.load %arg4[%c0_5, %c0_6] : memref<32x256xbf16, #tpu.memory_space<vmem>>, vector<32x256xbf16>
    tpu.vector_store %arg4[%c0_5, %c0_6], %10 {strides = array<i32>} : memref<32x256xbf16, #tpu.memory_space<vmem>>, vector<32x256xbf16>,
    return
  }
  func.func @transform_0(%arg0: i32) -> (i32, i32) {
    %c0_i32 = arith.constant 0 : i32
    %c0_i32_0 = arith.constant 0 : i32
    return %arg0, %c0_i32 : i32, i32
  }
  func.func @transform_1(%arg0: i32) -> (i32, i32) {
    %c0_i32 = arith.constant 0 : i32
    %c0_i32_0 = arith.constant 0 : i32
    %c0_i32_1 = arith.constant 0 : i32
    return %c0_i32, %c0_i32_0 : i32, i32
  }
  func.func @transform_2(%arg0: i32) -> (i32, i32) {
    %c0_i32 = arith.constant 0 : i32
    %c0_i32_0 = arith.constant 0 : i32
    %c0_i32_1 = arith.constant 0 : i32
    return %c0_i32, %c0_i32_0 : i32, i32
  }
  func.func @transform_3(%arg0: i32) -> (i32, i32) {
    %c0_i32 = arith.constant 0 : i32
    %c0_i32_0 = arith.constant 0 : i32
    return %arg0, %c0_i32 : i32, i32
  }
}

module attributes {stable_mosaic.version = 11 : i64} {
  func.func @kernel(%arg0: i32, %arg1: i32, %arg2: memref<1x36x128xbf16, #tpu.memory_space<vmem>>, %arg3: memref<9x128x256xbf16, #tpu.memory_space<vmem>>, %arg4: memref<1x4x4x256xbf16, #tpu.memory_space<vmem>>, %arg5: memref<1x2x256xf32, #tpu.memory_space<vmem>>) attributes {dimension_semantics = [#tpu.dimension_semantics<parallel>, #tpu.dimension_semantics<parallel>], iteration_bounds = array<i64: 1, 2>, scalar_prefetch = 0 : i64, scratch_operands = 0 : i64, tpu.core_type = #tpu.core_type<tc>, window_params = [{transform_indices = @transform_0, window_bounds = array<i64: 1, 36, 128>}, {transform_indices = @transform_1, window_bounds = array<i64: 9, 128, 256>}, {transform_indices = @transform_2, window_bounds = array<i64: 1, 4, 4, 256>}, {transform_indices = @transform_3, window_bounds = array<i64: 1, 2, 256>}]} {
    %cst = arith.constant 0.000000e+00 : f32
    %0 = vector.broadcast %cst : f32 to vector<24x256xf32>
    %cst_0 = arith.constant 0.000000e+00 : f32
    %1 = vector.broadcast %cst_0 : f32 to vector<24x256xf32>
    %cst_1 = arith.constant 0.000000e+00 : f32
    %2 = vector.broadcast %cst_1 : f32 to vector<24x256xf32>
    %c0 = arith.constant 0 : index
    %c0_2 = arith.constant 0 : index
    %c0_3 = arith.constant 0 : index
    %3 = vector.load %arg2[%c0, %c0_2, %c0_3] : memref<1x36x128xbf16, #tpu.memory_space<vmem>>, vector<1x24x128xbf16>
    %4 = vector.shape_cast %3 : vector<1x24x128xbf16> to vector<24x128xbf16>
    %c0_4 = arith.constant 0 : index
    %c0_5 = arith.constant 0 : index
    %c0_6 = arith.constant 0 : index
    %5 = vector.load %arg3[%c0_4, %c0_5, %c0_6] : memref<9x128x256xbf16, #tpu.memory_space<vmem>>, vector<1x128x256xbf16>
    %6 = vector.shape_cast %5 : vector<1x128x256xbf16> to vector<128x256xbf16>
    %cst_7 = arith.constant dense<0.000000e+00> : vector<24x256xf32>
    %7 = tpu.matmul %4, %6, %cst_7 {dimension_numbers = #tpu.dot_dimension_numbers<[1], [0], [0], [1], [0, 0, 1, 1], [], []>} : vector<24x128xbf16>, vector<128x256xbf16>, vector<24x256xf32> -> vector<24x256xf32>
    %8 = arith.addf %0, %7 : vector<24x256xf32>
    %c1 = arith.constant 1 : index
    %c0_8 = arith.constant 0 : index
    %c0_9 = arith.constant 0 : index
    %9 = vector.load %arg3[%c1, %c0_8, %c0_9] : memref<9x128x256xbf16, #tpu.memory_space<vmem>>, vector<1x128x256xbf16>
    %10 = vector.shape_cast %9 : vector<1x128x256xbf16> to vector<128x256xbf16>
    %cst_10 = arith.constant dense<0.000000e+00> : vector<24x256xf32>
    %11 = tpu.matmul %4, %10, %cst_10 {dimension_numbers = #tpu.dot_dimension_numbers<[1], [0], [0], [1], [0, 0, 1, 1], [], []>} : vector<24x128xbf16>, vector<128x256xbf16>, vector<24x256xf32> -> vector<24x256xf32>
    %12 = arith.addf %1, %11 : vector<24x256xf32>
    %c2 = arith.constant 2 : index
    %c0_11 = arith.constant 0 : index
    %c0_12 = arith.constant 0 : index
    %13 = vector.load %arg3[%c2, %c0_11, %c0_12] : memref<9x128x256xbf16, #tpu.memory_space<vmem>>, vector<1x128x256xbf16>
    %14 = vector.shape_cast %13 : vector<1x128x256xbf16> to vector<128x256xbf16>
    %cst_13 = arith.constant dense<0.000000e+00> : vector<24x256xf32>
    %15 = tpu.matmul %4, %14, %cst_13 {dimension_numbers = #tpu.dot_dimension_numbers<[1], [0], [0], [1], [0, 0, 1, 1], [], []>} : vector<24x128xbf16>, vector<128x256xbf16>, vector<24x256xf32> -> vector<24x256xf32>
    %16 = arith.addf %2, %15 : vector<24x256xf32>
    %c0_14 = arith.constant 0 : index
    %c6 = arith.constant 6 : index
    %c0_15 = arith.constant 0 : index
    %17 = vector.load %arg2[%c0_14, %c6, %c0_15] : memref<1x36x128xbf16, #tpu.memory_space<vmem>>, vector<1x24x128xbf16>
    %18 = vector.shape_cast %17 : vector<1x24x128xbf16> to vector<24x128xbf16>
    %c3 = arith.constant 3 : index
    %c0_16 = arith.constant 0 : index
    %c0_17 = arith.constant 0 : index
    %19 = vector.load %arg3[%c3, %c0_16, %c0_17] : memref<9x128x256xbf16, #tpu.memory_space<vmem>>, vector<1x128x256xbf16>
    %20 = vector.shape_cast %19 : vector<1x128x256xbf16> to vector<128x256xbf16>
    %cst_18 = arith.constant dense<0.000000e+00> : vector<24x256xf32>
    %21 = tpu.matmul %18, %20, %cst_18 {dimension_numbers = #tpu.dot_dimension_numbers<[1], [0], [0], [1], [0, 0, 1, 1], [], []>} : vector<24x128xbf16>, vector<128x256xbf16>, vector<24x256xf32> -> vector<24x256xf32>
    %22 = arith.addf %8, %21 : vector<24x256xf32>
    %c4 = arith.constant 4 : index
    %c0_19 = arith.constant 0 : index
    %c0_20 = arith.constant 0 : index
    %23 = vector.load %arg3[%c4, %c0_19, %c0_20] : memref<9x128x256xbf16, #tpu.memory_space<vmem>>, vector<1x128x256xbf16>
    %24 = vector.shape_cast %23 : vector<1x128x256xbf16> to vector<128x256xbf16>
    %cst_21 = arith.constant dense<0.000000e+00> : vector<24x256xf32>
    %25 = tpu.matmul %18, %24, %cst_21 {dimension_numbers = #tpu.dot_dimension_numbers<[1], [0], [0], [1], [0, 0, 1, 1], [], []>} : vector<24x128xbf16>, vector<128x256xbf16>, vector<24x256xf32> -> vector<24x256xf32>
    %26 = arith.addf %12, %25 : vector<24x256xf32>
    %c5 = arith.constant 5 : index
    %c0_22 = arith.constant 0 : index
    %c0_23 = arith.constant 0 : index
    %27 = vector.load %arg3[%c5, %c0_22, %c0_23] : memref<9x128x256xbf16, #tpu.memory_space<vmem>>, vector<1x128x256xbf16>
    %28 = vector.shape_cast %27 : vector<1x128x256xbf16> to vector<128x256xbf16>
    %cst_24 = arith.constant dense<0.000000e+00> : vector<24x256xf32>
    %29 = tpu.matmul %18, %28, %cst_24 {dimension_numbers = #tpu.dot_dimension_numbers<[1], [0], [0], [1], [0, 0, 1, 1], [], []>} : vector<24x128xbf16>, vector<128x256xbf16>, vector<24x256xf32> -> vector<24x256xf32>
    %30 = arith.addf %16, %29 : vector<24x256xf32>
    %c0_25 = arith.constant 0 : index
    %c12 = arith.constant 12 : index
    %c0_26 = arith.constant 0 : index
    %31 = vector.load %arg2[%c0_25, %c12, %c0_26] : memref<1x36x128xbf16, #tpu.memory_space<vmem>>, vector<1x24x128xbf16>
    %32 = vector.shape_cast %31 : vector<1x24x128xbf16> to vector<24x128xbf16>
    %c6_27 = arith.constant 6 : index
    %c0_28 = arith.constant 0 : index
    %c0_29 = arith.constant 0 : index
    %33 = vector.load %arg3[%c6_27, %c0_28, %c0_29] : memref<9x128x256xbf16, #tpu.memory_space<vmem>>, vector<1x128x256xbf16>
    %34 = vector.shape_cast %33 : vector<1x128x256xbf16> to vector<128x256xbf16>
    %cst_30 = arith.constant dense<0.000000e+00> : vector<24x256xf32>
    %35 = tpu.matmul %32, %34, %cst_30 {dimension_numbers = #tpu.dot_dimension_numbers<[1], [0], [0], [1], [0, 0, 1, 1], [], []>} : vector<24x128xbf16>, vector<128x256xbf16>, vector<24x256xf32> -> vector<24x256xf32>
    %36 = arith.addf %22, %35 : vector<24x256xf32>
    %c7 = arith.constant 7 : index
    %c0_31 = arith.constant 0 : index
    %c0_32 = arith.constant 0 : index
    %37 = vector.load %arg3[%c7, %c0_31, %c0_32] : memref<9x128x256xbf16, #tpu.memory_space<vmem>>, vector<1x128x256xbf16>
    %38 = vector.shape_cast %37 : vector<1x128x256xbf16> to vector<128x256xbf16>
    %cst_33 = arith.constant dense<0.000000e+00> : vector<24x256xf32>
    %39 = tpu.matmul %32, %38, %cst_33 {dimension_numbers = #tpu.dot_dimension_numbers<[1], [0], [0], [1], [0, 0, 1, 1], [], []>} : vector<24x128xbf16>, vector<128x256xbf16>, vector<24x256xf32> -> vector<24x256xf32>
    %40 = arith.addf %26, %39 : vector<24x256xf32>
    %c8 = arith.constant 8 : index
    %c0_34 = arith.constant 0 : index
    %c0_35 = arith.constant 0 : index
    %41 = vector.load %arg3[%c8, %c0_34, %c0_35] : memref<9x128x256xbf16, #tpu.memory_space<vmem>>, vector<1x128x256xbf16>
    %42 = vector.shape_cast %41 : vector<1x128x256xbf16> to vector<128x256xbf16>
    %cst_36 = arith.constant dense<0.000000e+00> : vector<24x256xf32>
    %43 = tpu.matmul %32, %42, %cst_36 {dimension_numbers = #tpu.dot_dimension_numbers<[1], [0], [0], [1], [0, 0, 1, 1], [], []>} : vector<24x128xbf16>, vector<128x256xbf16>, vector<24x256xf32> -> vector<24x256xf32>
    %44 = arith.addf %30, %43 : vector<24x256xf32>
    %cst_37 = arith.constant 0.000000e+00 : f32
    %45 = vector.broadcast %cst_37 : f32 to vector<1x256xf32>
    %cst_38 = arith.constant 0.000000e+00 : f32
    %46 = vector.broadcast %cst_38 : f32 to vector<1x256xf32>
    %47 = vector.extract_strided_slice %36 {offsets = [0, 0], sizes = [4, 256], strides = [1, 1]} : vector<24x256xf32> to vector<4x256xf32>
    %48 = vector.extract_strided_slice %40 {offsets = [1, 0], sizes = [4, 256], strides = [1, 1]} : vector<24x256xf32> to vector<4x256xf32>
    %49 = arith.addf %47, %48 : vector<4x256xf32>
    %50 = vector.extract_strided_slice %44 {offsets = [2, 0], sizes = [4, 256], strides = [1, 1]} : vector<24x256xf32> to vector<4x256xf32>
    %51 = arith.addf %49, %50 : vector<4x256xf32>
    %52 = arith.truncf %51 : vector<4x256xf32> to vector<4x256xbf16>
    %c0_39 = arith.constant 0 : index
    %c0_40 = arith.constant 0 : index
    %c0_41 = arith.constant 0 : index
    %c0_42 = arith.constant 0 : index
    %53 = vector.load %arg4[%c0_39, %c0_40, %c0_41, %c0_42] : memref<1x4x4x256xbf16, #tpu.memory_space<vmem>>, vector<1x1x4x256xbf16>
    %54 = vector.shape_cast %53 : vector<1x1x4x256xbf16> to vector<4x256xbf16>
    %55 = vector.shape_cast %52 : vector<4x256xbf16> to vector<1x1x4x256xbf16>
    tpu.vector_store %arg4[%c0_39, %c0_40, %c0_41, %c0_42], %55 {strides = array<i32>} : memref<1x4x4x256xbf16, #tpu.memory_space<vmem>>, vector<1x1x4x256xbf16>,
    %cst_43 = arith.constant dense<0.000000e+00> : vector<256xf32>
    %56 = vector.multi_reduction <add>, %51, %cst_43 [0] : vector<4x256xf32> to vector<256xf32>
    %57 = vector.shape_cast %56 : vector<256xf32> to vector<1x256xf32>
    %58 = arith.addf %45, %57 : vector<1x256xf32>
    %59 = arith.mulf %51, %51 : vector<4x256xf32>
    %cst_44 = arith.constant dense<0.000000e+00> : vector<256xf32>
    %60 = vector.multi_reduction <add>, %59, %cst_44 [0] : vector<4x256xf32> to vector<256xf32>
    %61 = vector.shape_cast %60 : vector<256xf32> to vector<1x256xf32>
    %62 = arith.addf %46, %61 : vector<1x256xf32>
    %63 = vector.extract_strided_slice %36 {offsets = [6, 0], sizes = [4, 256], strides = [1, 1]} : vector<24x256xf32> to vector<4x256xf32>
    %64 = vector.extract_strided_slice %40 {offsets = [7, 0], sizes = [4, 256], strides = [1, 1]} : vector<24x256xf32> to vector<4x256xf32>
    %65 = arith.addf %63, %64 : vector<4x256xf32>
    %66 = vector.extract_strided_slice %44 {offsets = [8, 0], sizes = [4, 256], strides = [1, 1]} : vector<24x256xf32> to vector<4x256xf32>
    %67 = arith.addf %65, %66 : vector<4x256xf32>
    %68 = arith.truncf %67 : vector<4x256xf32> to vector<4x256xbf16>
    %c0_45 = arith.constant 0 : index
    %c1_46 = arith.constant 1 : index
    %c0_47 = arith.constant 0 : index
    %c0_48 = arith.constant 0 : index
    %69 = vector.load %arg4[%c0_45, %c1_46, %c0_47, %c0_48] : memref<1x4x4x256xbf16, #tpu.memory_space<vmem>>, vector<1x1x4x256xbf16>
    %70 = vector.shape_cast %69 : vector<1x1x4x256xbf16> to vector<4x256xbf16>
    %71 = vector.shape_cast %68 : vector<4x256xbf16> to vector<1x1x4x256xbf16>
    tpu.vector_store %arg4[%c0_45, %c1_46, %c0_47, %c0_48], %71 {strides = array<i32>} : memref<1x4x4x256xbf16, #tpu.memory_space<vmem>>, vector<1x1x4x256xbf16>,
    %cst_49 = arith.constant dense<0.000000e+00> : vector<256xf32>
    %72 = vector.multi_reduction <add>, %67, %cst_49 [0] : vector<4x256xf32> to vector<256xf32>
    %73 = vector.shape_cast %72 : vector<256xf32> to vector<1x256xf32>
    %74 = arith.addf %58, %73 : vector<1x256xf32>
    %75 = arith.mulf %67, %67 : vector<4x256xf32>
    %cst_50 = arith.constant dense<0.000000e+00> : vector<256xf32>
    %76 = vector.multi_reduction <add>, %75, %cst_50 [0] : vector<4x256xf32> to vector<256xf32>
    %77 = vector.shape_cast %76 : vector<256xf32> to vector<1x256xf32>
    %78 = arith.addf %62, %77 : vector<1x256xf32>
    %79 = vector.extract_strided_slice %36 {offsets = [12, 0], sizes = [4, 256], strides = [1, 1]} : vector<24x256xf32> to vector<4x256xf32>
    %80 = vector.extract_strided_slice %40 {offsets = [13, 0], sizes = [4, 256], strides = [1, 1]} : vector<24x256xf32> to vector<4x256xf32>
    %81 = arith.addf %79, %80 : vector<4x256xf32>
    %82 = vector.extract_strided_slice %44 {offsets = [14, 0], sizes = [4, 256], strides = [1, 1]} : vector<24x256xf32> to vector<4x256xf32>
    %83 = arith.addf %81, %82 : vector<4x256xf32>
    %84 = arith.truncf %83 : vector<4x256xf32> to vector<4x256xbf16>
    %c0_51 = arith.constant 0 : index
    %c2_52 = arith.constant 2 : index
    %c0_53 = arith.constant 0 : index
    %c0_54 = arith.constant 0 : index
    %85 = vector.load %arg4[%c0_51, %c2_52, %c0_53, %c0_54] : memref<1x4x4x256xbf16, #tpu.memory_space<vmem>>, vector<1x1x4x256xbf16>
    %86 = vector.shape_cast %85 : vector<1x1x4x256xbf16> to vector<4x256xbf16>
    %87 = vector.shape_cast %84 : vector<4x256xbf16> to vector<1x1x4x256xbf16>
    tpu.vector_store %arg4[%c0_51, %c2_52, %c0_53, %c0_54], %87 {strides = array<i32>} : memref<1x4x4x256xbf16, #tpu.memory_space<vmem>>, vector<1x1x4x256xbf16>,
    %cst_55 = arith.constant dense<0.000000e+00> : vector<256xf32>
    %88 = vector.multi_reduction <add>, %83, %cst_55 [0] : vector<4x256xf32> to vector<256xf32>
    %89 = vector.shape_cast %88 : vector<256xf32> to vector<1x256xf32>
    %90 = arith.addf %74, %89 : vector<1x256xf32>
    %91 = arith.mulf %83, %83 : vector<4x256xf32>
    %cst_56 = arith.constant dense<0.000000e+00> : vector<256xf32>
    %92 = vector.multi_reduction <add>, %91, %cst_56 [0] : vector<4x256xf32> to vector<256xf32>
    %93 = vector.shape_cast %92 : vector<256xf32> to vector<1x256xf32>
    %94 = arith.addf %78, %93 : vector<1x256xf32>
    %95 = vector.extract_strided_slice %36 {offsets = [18, 0], sizes = [4, 256], strides = [1, 1]} : vector<24x256xf32> to vector<4x256xf32>
    %96 = vector.extract_strided_slice %40 {offsets = [19, 0], sizes = [4, 256], strides = [1, 1]} : vector<24x256xf32> to vector<4x256xf32>
    %97 = arith.addf %95, %96 : vector<4x256xf32>
    %98 = vector.extract_strided_slice %44 {offsets = [20, 0], sizes = [4, 256], strides = [1, 1]} : vector<24x256xf32> to vector<4x256xf32>
    %99 = arith.addf %97, %98 : vector<4x256xf32>
    %100 = arith.truncf %99 : vector<4x256xf32> to vector<4x256xbf16>
    %c0_57 = arith.constant 0 : index
    %c3_58 = arith.constant 3 : index
    %c0_59 = arith.constant 0 : index
    %c0_60 = arith.constant 0 : index
    %101 = vector.load %arg4[%c0_57, %c3_58, %c0_59, %c0_60] : memref<1x4x4x256xbf16, #tpu.memory_space<vmem>>, vector<1x1x4x256xbf16>
    %102 = vector.shape_cast %101 : vector<1x1x4x256xbf16> to vector<4x256xbf16>
    %103 = vector.shape_cast %100 : vector<4x256xbf16> to vector<1x1x4x256xbf16>
    tpu.vector_store %arg4[%c0_57, %c3_58, %c0_59, %c0_60], %103 {strides = array<i32>} : memref<1x4x4x256xbf16, #tpu.memory_space<vmem>>, vector<1x1x4x256xbf16>,
    %cst_61 = arith.constant dense<0.000000e+00> : vector<256xf32>
    %104 = vector.multi_reduction <add>, %99, %cst_61 [0] : vector<4x256xf32> to vector<256xf32>
    %105 = vector.shape_cast %104 : vector<256xf32> to vector<1x256xf32>
    %106 = arith.addf %90, %105 : vector<1x256xf32>
    %107 = arith.mulf %99, %99 : vector<4x256xf32>
    %cst_62 = arith.constant dense<0.000000e+00> : vector<256xf32>
    %108 = vector.multi_reduction <add>, %107, %cst_62 [0] : vector<4x256xf32> to vector<256xf32>
    %109 = vector.shape_cast %108 : vector<256xf32> to vector<1x256xf32>
    %110 = arith.addf %94, %109 : vector<1x256xf32>
    %c0_63 = arith.constant 0 : index
    %c0_64 = arith.constant 0 : index
    %c0_65 = arith.constant 0 : index
    %111 = vector.load %arg5[%c0_63, %c0_64, %c0_65] : memref<1x2x256xf32, #tpu.memory_space<vmem>>, vector<1x1x256xf32>
    %112 = vector.shape_cast %111 : vector<1x1x256xf32> to vector<1x256xf32>
    %113 = vector.shape_cast %106 : vector<1x256xf32> to vector<1x1x256xf32>
    tpu.vector_store %arg5[%c0_63, %c0_64, %c0_65], %113 {strides = array<i32>} : memref<1x2x256xf32, #tpu.memory_space<vmem>>, vector<1x1x256xf32>,
    %c0_66 = arith.constant 0 : index
    %c1_67 = arith.constant 1 : index
    %c0_68 = arith.constant 0 : index
    %114 = vector.load %arg5[%c0_66, %c1_67, %c0_68] : memref<1x2x256xf32, #tpu.memory_space<vmem>>, vector<1x1x256xf32>
    %115 = vector.shape_cast %114 : vector<1x1x256xf32> to vector<1x256xf32>
    %116 = vector.shape_cast %110 : vector<1x256xf32> to vector<1x1x256xf32>
    tpu.vector_store %arg5[%c0_66, %c1_67, %c0_68], %116 {strides = array<i32>} : memref<1x2x256xf32, #tpu.memory_space<vmem>>, vector<1x1x256xf32>,
    return
  }
  func.func @transform_0(%arg0: i32, %arg1: i32) -> (i32, i32, i32) {
    %c0_i32 = arith.constant 0 : i32
    %c0_i32_0 = arith.constant 0 : i32
    %c0_i32_1 = arith.constant 0 : i32
    return %arg1, %c0_i32, %c0_i32_0 : i32, i32, i32
  }
  func.func @transform_1(%arg0: i32, %arg1: i32) -> (i32, i32, i32) {
    %c0_i32 = arith.constant 0 : i32
    %c0_i32_0 = arith.constant 0 : i32
    %c0_i32_1 = arith.constant 0 : i32
    return %c0_i32, %c0_i32_0, %arg0 : i32, i32, i32
  }
  func.func @transform_2(%arg0: i32, %arg1: i32) -> (i32, i32, i32, i32) {
    %c0_i32 = arith.constant 0 : i32
    %c0_i32_0 = arith.constant 0 : i32
    %c0_i32_1 = arith.constant 0 : i32
    return %arg1, %c0_i32, %c0_i32_0, %arg0 : i32, i32, i32, i32
  }
  func.func @transform_3(%arg0: i32, %arg1: i32) -> (i32, i32, i32) {
    %c0_i32 = arith.constant 0 : i32
    %c0_i32_0 = arith.constant 0 : i32
    return %arg1, %c0_i32, %arg0 : i32, i32, i32
  }
}

module attributes {stable_mosaic.version = 11 : i64} {
  func.func @kernel(%arg0: i32, %arg1: i32, %arg2: memref<1x36x256xbf16, #tpu.memory_space<vmem>>, %arg3: memref<9x256x256xbf16, #tpu.memory_space<vmem>>, %arg4: memref<1x4x4x256xbf16, #tpu.memory_space<vmem>>, %arg5: memref<1x2x256xf32, #tpu.memory_space<vmem>>) attributes {dimension_semantics = [#tpu.dimension_semantics<parallel>, #tpu.dimension_semantics<parallel>], iteration_bounds = array<i64: 1, 2>, scalar_prefetch = 0 : i64, scratch_operands = 0 : i64, tpu.core_type = #tpu.core_type<tc>, window_params = [{transform_indices = @transform_0, window_bounds = array<i64: 1, 36, 256>}, {transform_indices = @transform_1, window_bounds = array<i64: 9, 256, 256>}, {transform_indices = @transform_2, window_bounds = array<i64: 1, 4, 4, 256>}, {transform_indices = @transform_3, window_bounds = array<i64: 1, 2, 256>}]} {
    %cst = arith.constant 0.000000e+00 : f32
    %0 = vector.broadcast %cst : f32 to vector<24x256xf32>
    %cst_0 = arith.constant 0.000000e+00 : f32
    %1 = vector.broadcast %cst_0 : f32 to vector<24x256xf32>
    %cst_1 = arith.constant 0.000000e+00 : f32
    %2 = vector.broadcast %cst_1 : f32 to vector<24x256xf32>
    %c0 = arith.constant 0 : index
    %c0_2 = arith.constant 0 : index
    %c0_3 = arith.constant 0 : index
    %3 = vector.load %arg2[%c0, %c0_2, %c0_3] : memref<1x36x256xbf16, #tpu.memory_space<vmem>>, vector<1x24x256xbf16>
    %4 = vector.shape_cast %3 : vector<1x24x256xbf16> to vector<24x256xbf16>
    %c0_4 = arith.constant 0 : index
    %c0_5 = arith.constant 0 : index
    %c0_6 = arith.constant 0 : index
    %5 = vector.load %arg3[%c0_4, %c0_5, %c0_6] : memref<9x256x256xbf16, #tpu.memory_space<vmem>>, vector<1x256x256xbf16>
    %6 = vector.shape_cast %5 : vector<1x256x256xbf16> to vector<256x256xbf16>
    %cst_7 = arith.constant dense<0.000000e+00> : vector<24x256xf32>
    %7 = tpu.matmul %4, %6, %cst_7 {dimension_numbers = #tpu.dot_dimension_numbers<[1], [0], [0], [1], [0, 0, 1, 1], [], []>} : vector<24x256xbf16>, vector<256x256xbf16>, vector<24x256xf32> -> vector<24x256xf32>
    %8 = arith.addf %0, %7 : vector<24x256xf32>
    %c1 = arith.constant 1 : index
    %c0_8 = arith.constant 0 : index
    %c0_9 = arith.constant 0 : index
    %9 = vector.load %arg3[%c1, %c0_8, %c0_9] : memref<9x256x256xbf16, #tpu.memory_space<vmem>>, vector<1x256x256xbf16>
    %10 = vector.shape_cast %9 : vector<1x256x256xbf16> to vector<256x256xbf16>
    %cst_10 = arith.constant dense<0.000000e+00> : vector<24x256xf32>
    %11 = tpu.matmul %4, %10, %cst_10 {dimension_numbers = #tpu.dot_dimension_numbers<[1], [0], [0], [1], [0, 0, 1, 1], [], []>} : vector<24x256xbf16>, vector<256x256xbf16>, vector<24x256xf32> -> vector<24x256xf32>
    %12 = arith.addf %1, %11 : vector<24x256xf32>
    %c2 = arith.constant 2 : index
    %c0_11 = arith.constant 0 : index
    %c0_12 = arith.constant 0 : index
    %13 = vector.load %arg3[%c2, %c0_11, %c0_12] : memref<9x256x256xbf16, #tpu.memory_space<vmem>>, vector<1x256x256xbf16>
    %14 = vector.shape_cast %13 : vector<1x256x256xbf16> to vector<256x256xbf16>
    %cst_13 = arith.constant dense<0.000000e+00> : vector<24x256xf32>
    %15 = tpu.matmul %4, %14, %cst_13 {dimension_numbers = #tpu.dot_dimension_numbers<[1], [0], [0], [1], [0, 0, 1, 1], [], []>} : vector<24x256xbf16>, vector<256x256xbf16>, vector<24x256xf32> -> vector<24x256xf32>
    %16 = arith.addf %2, %15 : vector<24x256xf32>
    %c0_14 = arith.constant 0 : index
    %c6 = arith.constant 6 : index
    %c0_15 = arith.constant 0 : index
    %17 = vector.load %arg2[%c0_14, %c6, %c0_15] : memref<1x36x256xbf16, #tpu.memory_space<vmem>>, vector<1x24x256xbf16>
    %18 = vector.shape_cast %17 : vector<1x24x256xbf16> to vector<24x256xbf16>
    %c3 = arith.constant 3 : index
    %c0_16 = arith.constant 0 : index
    %c0_17 = arith.constant 0 : index
    %19 = vector.load %arg3[%c3, %c0_16, %c0_17] : memref<9x256x256xbf16, #tpu.memory_space<vmem>>, vector<1x256x256xbf16>
    %20 = vector.shape_cast %19 : vector<1x256x256xbf16> to vector<256x256xbf16>
    %cst_18 = arith.constant dense<0.000000e+00> : vector<24x256xf32>
    %21 = tpu.matmul %18, %20, %cst_18 {dimension_numbers = #tpu.dot_dimension_numbers<[1], [0], [0], [1], [0, 0, 1, 1], [], []>} : vector<24x256xbf16>, vector<256x256xbf16>, vector<24x256xf32> -> vector<24x256xf32>
    %22 = arith.addf %8, %21 : vector<24x256xf32>
    %c4 = arith.constant 4 : index
    %c0_19 = arith.constant 0 : index
    %c0_20 = arith.constant 0 : index
    %23 = vector.load %arg3[%c4, %c0_19, %c0_20] : memref<9x256x256xbf16, #tpu.memory_space<vmem>>, vector<1x256x256xbf16>
    %24 = vector.shape_cast %23 : vector<1x256x256xbf16> to vector<256x256xbf16>
    %cst_21 = arith.constant dense<0.000000e+00> : vector<24x256xf32>
    %25 = tpu.matmul %18, %24, %cst_21 {dimension_numbers = #tpu.dot_dimension_numbers<[1], [0], [0], [1], [0, 0, 1, 1], [], []>} : vector<24x256xbf16>, vector<256x256xbf16>, vector<24x256xf32> -> vector<24x256xf32>
    %26 = arith.addf %12, %25 : vector<24x256xf32>
    %c5 = arith.constant 5 : index
    %c0_22 = arith.constant 0 : index
    %c0_23 = arith.constant 0 : index
    %27 = vector.load %arg3[%c5, %c0_22, %c0_23] : memref<9x256x256xbf16, #tpu.memory_space<vmem>>, vector<1x256x256xbf16>
    %28 = vector.shape_cast %27 : vector<1x256x256xbf16> to vector<256x256xbf16>
    %cst_24 = arith.constant dense<0.000000e+00> : vector<24x256xf32>
    %29 = tpu.matmul %18, %28, %cst_24 {dimension_numbers = #tpu.dot_dimension_numbers<[1], [0], [0], [1], [0, 0, 1, 1], [], []>} : vector<24x256xbf16>, vector<256x256xbf16>, vector<24x256xf32> -> vector<24x256xf32>
    %30 = arith.addf %16, %29 : vector<24x256xf32>
    %c0_25 = arith.constant 0 : index
    %c12 = arith.constant 12 : index
    %c0_26 = arith.constant 0 : index
    %31 = vector.load %arg2[%c0_25, %c12, %c0_26] : memref<1x36x256xbf16, #tpu.memory_space<vmem>>, vector<1x24x256xbf16>
    %32 = vector.shape_cast %31 : vector<1x24x256xbf16> to vector<24x256xbf16>
    %c6_27 = arith.constant 6 : index
    %c0_28 = arith.constant 0 : index
    %c0_29 = arith.constant 0 : index
    %33 = vector.load %arg3[%c6_27, %c0_28, %c0_29] : memref<9x256x256xbf16, #tpu.memory_space<vmem>>, vector<1x256x256xbf16>
    %34 = vector.shape_cast %33 : vector<1x256x256xbf16> to vector<256x256xbf16>
    %cst_30 = arith.constant dense<0.000000e+00> : vector<24x256xf32>
    %35 = tpu.matmul %32, %34, %cst_30 {dimension_numbers = #tpu.dot_dimension_numbers<[1], [0], [0], [1], [0, 0, 1, 1], [], []>} : vector<24x256xbf16>, vector<256x256xbf16>, vector<24x256xf32> -> vector<24x256xf32>
    %36 = arith.addf %22, %35 : vector<24x256xf32>
    %c7 = arith.constant 7 : index
    %c0_31 = arith.constant 0 : index
    %c0_32 = arith.constant 0 : index
    %37 = vector.load %arg3[%c7, %c0_31, %c0_32] : memref<9x256x256xbf16, #tpu.memory_space<vmem>>, vector<1x256x256xbf16>
    %38 = vector.shape_cast %37 : vector<1x256x256xbf16> to vector<256x256xbf16>
    %cst_33 = arith.constant dense<0.000000e+00> : vector<24x256xf32>
    %39 = tpu.matmul %32, %38, %cst_33 {dimension_numbers = #tpu.dot_dimension_numbers<[1], [0], [0], [1], [0, 0, 1, 1], [], []>} : vector<24x256xbf16>, vector<256x256xbf16>, vector<24x256xf32> -> vector<24x256xf32>
    %40 = arith.addf %26, %39 : vector<24x256xf32>
    %c8 = arith.constant 8 : index
    %c0_34 = arith.constant 0 : index
    %c0_35 = arith.constant 0 : index
    %41 = vector.load %arg3[%c8, %c0_34, %c0_35] : memref<9x256x256xbf16, #tpu.memory_space<vmem>>, vector<1x256x256xbf16>
    %42 = vector.shape_cast %41 : vector<1x256x256xbf16> to vector<256x256xbf16>
    %cst_36 = arith.constant dense<0.000000e+00> : vector<24x256xf32>
    %43 = tpu.matmul %32, %42, %cst_36 {dimension_numbers = #tpu.dot_dimension_numbers<[1], [0], [0], [1], [0, 0, 1, 1], [], []>} : vector<24x256xbf16>, vector<256x256xbf16>, vector<24x256xf32> -> vector<24x256xf32>
    %44 = arith.addf %30, %43 : vector<24x256xf32>
    %cst_37 = arith.constant 0.000000e+00 : f32
    %45 = vector.broadcast %cst_37 : f32 to vector<1x256xf32>
    %cst_38 = arith.constant 0.000000e+00 : f32
    %46 = vector.broadcast %cst_38 : f32 to vector<1x256xf32>
    %47 = vector.extract_strided_slice %36 {offsets = [0, 0], sizes = [4, 256], strides = [1, 1]} : vector<24x256xf32> to vector<4x256xf32>
    %48 = vector.extract_strided_slice %40 {offsets = [1, 0], sizes = [4, 256], strides = [1, 1]} : vector<24x256xf32> to vector<4x256xf32>
    %49 = arith.addf %47, %48 : vector<4x256xf32>
    %50 = vector.extract_strided_slice %44 {offsets = [2, 0], sizes = [4, 256], strides = [1, 1]} : vector<24x256xf32> to vector<4x256xf32>
    %51 = arith.addf %49, %50 : vector<4x256xf32>
    %52 = arith.truncf %51 : vector<4x256xf32> to vector<4x256xbf16>
    %c0_39 = arith.constant 0 : index
    %c0_40 = arith.constant 0 : index
    %c0_41 = arith.constant 0 : index
    %c0_42 = arith.constant 0 : index
    %53 = vector.load %arg4[%c0_39, %c0_40, %c0_41, %c0_42] : memref<1x4x4x256xbf16, #tpu.memory_space<vmem>>, vector<1x1x4x256xbf16>
    %54 = vector.shape_cast %53 : vector<1x1x4x256xbf16> to vector<4x256xbf16>
    %55 = vector.shape_cast %52 : vector<4x256xbf16> to vector<1x1x4x256xbf16>
    tpu.vector_store %arg4[%c0_39, %c0_40, %c0_41, %c0_42], %55 {strides = array<i32>} : memref<1x4x4x256xbf16, #tpu.memory_space<vmem>>, vector<1x1x4x256xbf16>,
    %cst_43 = arith.constant dense<0.000000e+00> : vector<256xf32>
    %56 = vector.multi_reduction <add>, %51, %cst_43 [0] : vector<4x256xf32> to vector<256xf32>
    %57 = vector.shape_cast %56 : vector<256xf32> to vector<1x256xf32>
    %58 = arith.addf %45, %57 : vector<1x256xf32>
    %59 = arith.mulf %51, %51 : vector<4x256xf32>
    %cst_44 = arith.constant dense<0.000000e+00> : vector<256xf32>
    %60 = vector.multi_reduction <add>, %59, %cst_44 [0] : vector<4x256xf32> to vector<256xf32>
    %61 = vector.shape_cast %60 : vector<256xf32> to vector<1x256xf32>
    %62 = arith.addf %46, %61 : vector<1x256xf32>
    %63 = vector.extract_strided_slice %36 {offsets = [6, 0], sizes = [4, 256], strides = [1, 1]} : vector<24x256xf32> to vector<4x256xf32>
    %64 = vector.extract_strided_slice %40 {offsets = [7, 0], sizes = [4, 256], strides = [1, 1]} : vector<24x256xf32> to vector<4x256xf32>
    %65 = arith.addf %63, %64 : vector<4x256xf32>
    %66 = vector.extract_strided_slice %44 {offsets = [8, 0], sizes = [4, 256], strides = [1, 1]} : vector<24x256xf32> to vector<4x256xf32>
    %67 = arith.addf %65, %66 : vector<4x256xf32>
    %68 = arith.truncf %67 : vector<4x256xf32> to vector<4x256xbf16>
    %c0_45 = arith.constant 0 : index
    %c1_46 = arith.constant 1 : index
    %c0_47 = arith.constant 0 : index
    %c0_48 = arith.constant 0 : index
    %69 = vector.load %arg4[%c0_45, %c1_46, %c0_47, %c0_48] : memref<1x4x4x256xbf16, #tpu.memory_space<vmem>>, vector<1x1x4x256xbf16>
    %70 = vector.shape_cast %69 : vector<1x1x4x256xbf16> to vector<4x256xbf16>
    %71 = vector.shape_cast %68 : vector<4x256xbf16> to vector<1x1x4x256xbf16>
    tpu.vector_store %arg4[%c0_45, %c1_46, %c0_47, %c0_48], %71 {strides = array<i32>} : memref<1x4x4x256xbf16, #tpu.memory_space<vmem>>, vector<1x1x4x256xbf16>,
    %cst_49 = arith.constant dense<0.000000e+00> : vector<256xf32>
    %72 = vector.multi_reduction <add>, %67, %cst_49 [0] : vector<4x256xf32> to vector<256xf32>
    %73 = vector.shape_cast %72 : vector<256xf32> to vector<1x256xf32>
    %74 = arith.addf %58, %73 : vector<1x256xf32>
    %75 = arith.mulf %67, %67 : vector<4x256xf32>
    %cst_50 = arith.constant dense<0.000000e+00> : vector<256xf32>
    %76 = vector.multi_reduction <add>, %75, %cst_50 [0] : vector<4x256xf32> to vector<256xf32>
    %77 = vector.shape_cast %76 : vector<256xf32> to vector<1x256xf32>
    %78 = arith.addf %62, %77 : vector<1x256xf32>
    %79 = vector.extract_strided_slice %36 {offsets = [12, 0], sizes = [4, 256], strides = [1, 1]} : vector<24x256xf32> to vector<4x256xf32>
    %80 = vector.extract_strided_slice %40 {offsets = [13, 0], sizes = [4, 256], strides = [1, 1]} : vector<24x256xf32> to vector<4x256xf32>
    %81 = arith.addf %79, %80 : vector<4x256xf32>
    %82 = vector.extract_strided_slice %44 {offsets = [14, 0], sizes = [4, 256], strides = [1, 1]} : vector<24x256xf32> to vector<4x256xf32>
    %83 = arith.addf %81, %82 : vector<4x256xf32>
    %84 = arith.truncf %83 : vector<4x256xf32> to vector<4x256xbf16>
    %c0_51 = arith.constant 0 : index
    %c2_52 = arith.constant 2 : index
    %c0_53 = arith.constant 0 : index
    %c0_54 = arith.constant 0 : index
    %85 = vector.load %arg4[%c0_51, %c2_52, %c0_53, %c0_54] : memref<1x4x4x256xbf16, #tpu.memory_space<vmem>>, vector<1x1x4x256xbf16>
    %86 = vector.shape_cast %85 : vector<1x1x4x256xbf16> to vector<4x256xbf16>
    %87 = vector.shape_cast %84 : vector<4x256xbf16> to vector<1x1x4x256xbf16>
    tpu.vector_store %arg4[%c0_51, %c2_52, %c0_53, %c0_54], %87 {strides = array<i32>} : memref<1x4x4x256xbf16, #tpu.memory_space<vmem>>, vector<1x1x4x256xbf16>,
    %cst_55 = arith.constant dense<0.000000e+00> : vector<256xf32>
    %88 = vector.multi_reduction <add>, %83, %cst_55 [0] : vector<4x256xf32> to vector<256xf32>
    %89 = vector.shape_cast %88 : vector<256xf32> to vector<1x256xf32>
    %90 = arith.addf %74, %89 : vector<1x256xf32>
    %91 = arith.mulf %83, %83 : vector<4x256xf32>
    %cst_56 = arith.constant dense<0.000000e+00> : vector<256xf32>
    %92 = vector.multi_reduction <add>, %91, %cst_56 [0] : vector<4x256xf32> to vector<256xf32>
    %93 = vector.shape_cast %92 : vector<256xf32> to vector<1x256xf32>
    %94 = arith.addf %78, %93 : vector<1x256xf32>
    %95 = vector.extract_strided_slice %36 {offsets = [18, 0], sizes = [4, 256], strides = [1, 1]} : vector<24x256xf32> to vector<4x256xf32>
    %96 = vector.extract_strided_slice %40 {offsets = [19, 0], sizes = [4, 256], strides = [1, 1]} : vector<24x256xf32> to vector<4x256xf32>
    %97 = arith.addf %95, %96 : vector<4x256xf32>
    %98 = vector.extract_strided_slice %44 {offsets = [20, 0], sizes = [4, 256], strides = [1, 1]} : vector<24x256xf32> to vector<4x256xf32>
    %99 = arith.addf %97, %98 : vector<4x256xf32>
    %100 = arith.truncf %99 : vector<4x256xf32> to vector<4x256xbf16>
    %c0_57 = arith.constant 0 : index
    %c3_58 = arith.constant 3 : index
    %c0_59 = arith.constant 0 : index
    %c0_60 = arith.constant 0 : index
    %101 = vector.load %arg4[%c0_57, %c3_58, %c0_59, %c0_60] : memref<1x4x4x256xbf16, #tpu.memory_space<vmem>>, vector<1x1x4x256xbf16>
    %102 = vector.shape_cast %101 : vector<1x1x4x256xbf16> to vector<4x256xbf16>
    %103 = vector.shape_cast %100 : vector<4x256xbf16> to vector<1x1x4x256xbf16>
    tpu.vector_store %arg4[%c0_57, %c3_58, %c0_59, %c0_60], %103 {strides = array<i32>} : memref<1x4x4x256xbf16, #tpu.memory_space<vmem>>, vector<1x1x4x256xbf16>,
    %cst_61 = arith.constant dense<0.000000e+00> : vector<256xf32>
    %104 = vector.multi_reduction <add>, %99, %cst_61 [0] : vector<4x256xf32> to vector<256xf32>
    %105 = vector.shape_cast %104 : vector<256xf32> to vector<1x256xf32>
    %106 = arith.addf %90, %105 : vector<1x256xf32>
    %107 = arith.mulf %99, %99 : vector<4x256xf32>
    %cst_62 = arith.constant dense<0.000000e+00> : vector<256xf32>
    %108 = vector.multi_reduction <add>, %107, %cst_62 [0] : vector<4x256xf32> to vector<256xf32>
    %109 = vector.shape_cast %108 : vector<256xf32> to vector<1x256xf32>
    %110 = arith.addf %94, %109 : vector<1x256xf32>
    %c0_63 = arith.constant 0 : index
    %c0_64 = arith.constant 0 : index
    %c0_65 = arith.constant 0 : index
    %111 = vector.load %arg5[%c0_63, %c0_64, %c0_65] : memref<1x2x256xf32, #tpu.memory_space<vmem>>, vector<1x1x256xf32>
    %112 = vector.shape_cast %111 : vector<1x1x256xf32> to vector<1x256xf32>
    %113 = vector.shape_cast %106 : vector<1x256xf32> to vector<1x1x256xf32>
    tpu.vector_store %arg5[%c0_63, %c0_64, %c0_65], %113 {strides = array<i32>} : memref<1x2x256xf32, #tpu.memory_space<vmem>>, vector<1x1x256xf32>,
    %c0_66 = arith.constant 0 : index
    %c1_67 = arith.constant 1 : index
    %c0_68 = arith.constant 0 : index
    %114 = vector.load %arg5[%c0_66, %c1_67, %c0_68] : memref<1x2x256xf32, #tpu.memory_space<vmem>>, vector<1x1x256xf32>
    %115 = vector.shape_cast %114 : vector<1x1x256xf32> to vector<1x256xf32>
    %116 = vector.shape_cast %110 : vector<1x256xf32> to vector<1x1x256xf32>
    tpu.vector_store %arg5[%c0_66, %c1_67, %c0_68], %116 {strides = array<i32>} : memref<1x2x256xf32, #tpu.memory_space<vmem>>, vector<1x1x256xf32>,
    return
  }
  func.func @transform_0(%arg0: i32, %arg1: i32) -> (i32, i32, i32) {
    %c0_i32 = arith.constant 0 : i32
    %c0_i32_0 = arith.constant 0 : i32
    %c0_i32_1 = arith.constant 0 : i32
    return %arg1, %c0_i32, %c0_i32_0 : i32, i32, i32
  }
  func.func @transform_1(%arg0: i32, %arg1: i32) -> (i32, i32, i32) {
    %c0_i32 = arith.constant 0 : i32
    %c0_i32_0 = arith.constant 0 : i32
    %c0_i32_1 = arith.constant 0 : i32
    return %c0_i32, %c0_i32_0, %arg0 : i32, i32, i32
  }
  func.func @transform_2(%arg0: i32, %arg1: i32) -> (i32, i32, i32, i32) {
    %c0_i32 = arith.constant 0 : i32
    %c0_i32_0 = arith.constant 0 : i32
    %c0_i32_1 = arith.constant 0 : i32
    return %arg1, %c0_i32, %c0_i32_0, %arg0 : i32, i32, i32, i32
  }
  func.func @transform_3(%arg0: i32, %arg1: i32) -> (i32, i32, i32) {
    %c0_i32 = arith.constant 0 : i32
    %c0_i32_0 = arith.constant 0 : i32
    return %arg1, %c0_i32, %arg0 : i32, i32, i32
  }
}

module attributes {stable_mosaic.version = 11 : i64} {
  func.func @_maxpool_kernel(%arg0: i32, %arg1: i32, %arg2: memref<1x2x2x2x512xbf16, #tpu.memory_space<vmem>>, %arg3: memref<1x2x2x256xbf16, #tpu.memory_space<vmem>>) attributes {dimension_semantics = [#tpu.dimension_semantics<parallel>, #tpu.dimension_semantics<parallel>], iteration_bounds = array<i64: 2, 1>, scalar_prefetch = 0 : i64, scratch_operands = 0 : i64, tpu.core_type = #tpu.core_type<tc>, window_params = [{transform_indices = @transform_0, window_bounds = array<i64: 1, 2, 2, 2, 512>}, {transform_indices = @transform_1, window_bounds = array<i64: 1, 2, 2, 256>}]} {
    %c0 = arith.constant 0 : index
    %c0_0 = arith.constant 0 : index
    %c0_1 = arith.constant 0 : index
    %c0_2 = arith.constant 0 : index
    %c0_3 = arith.constant 0 : index
    %0 = vector.load %arg2[%c0, %c0_0, %c0_1, %c0_2, %c0_3] : memref<1x2x2x2x512xbf16, #tpu.memory_space<vmem>>, vector<1x2x1x2x512xbf16>
    %1 = vector.shape_cast %0 : vector<1x2x1x2x512xbf16> to vector<2x2x512xbf16>
    %c0_4 = arith.constant 0 : index
    %c0_5 = arith.constant 0 : index
    %c1 = arith.constant 1 : index
    %c0_6 = arith.constant 0 : index
    %c0_7 = arith.constant 0 : index
    %2 = vector.load %arg2[%c0_4, %c0_5, %c1, %c0_6, %c0_7] : memref<1x2x2x2x512xbf16, #tpu.memory_space<vmem>>, vector<1x2x1x2x512xbf16>
    %3 = vector.shape_cast %2 : vector<1x2x1x2x512xbf16> to vector<2x2x512xbf16>
    %4 = arith.maximumf %1, %3 : vector<2x2x512xbf16>
    %5 = vector.extract_strided_slice %4 {offsets = [0, 0, 0], sizes = [2, 2, 256], strides = [1, 1, 1]} : vector<2x2x512xbf16> to vector<2x2x256xbf16>
    %6 = vector.extract_strided_slice %4 {offsets = [0, 0, 256], sizes = [2, 2, 256], strides = [1, 1, 1]} : vector<2x2x512xbf16> to vector<2x2x256xbf16>
    %7 = arith.maximumf %5, %6 : vector<2x2x256xbf16>
    %c0_8 = arith.constant 0 : index
    %c0_9 = arith.constant 0 : index
    %c0_10 = arith.constant 0 : index
    %c0_11 = arith.constant 0 : index
    %8 = vector.load %arg3[%c0_8, %c0_9, %c0_10, %c0_11] : memref<1x2x2x256xbf16, #tpu.memory_space<vmem>>, vector<1x2x2x256xbf16>
    %9 = vector.shape_cast %8 : vector<1x2x2x256xbf16> to vector<2x2x256xbf16>
    %10 = vector.shape_cast %7 : vector<2x2x256xbf16> to vector<1x2x2x256xbf16>
    tpu.vector_store %arg3[%c0_8, %c0_9, %c0_10, %c0_11], %10 {strides = array<i32>} : memref<1x2x2x256xbf16, #tpu.memory_space<vmem>>, vector<1x2x2x256xbf16>,
    return
  }
  func.func @transform_0(%arg0: i32, %arg1: i32) -> (i32, i32, i32, i32, i32) {
    %c0_i32 = arith.constant 0 : i32
    %c0_i32_0 = arith.constant 0 : i32
    %c0_i32_1 = arith.constant 0 : i32
    %c0_i32_2 = arith.constant 0 : i32
    return %arg0, %arg1, %c0_i32, %c0_i32_0, %c0_i32_1 : i32, i32, i32, i32, i32
  }
  func.func @transform_1(%arg0: i32, %arg1: i32) -> (i32, i32, i32, i32) {
    %c0_i32 = arith.constant 0 : i32
    %c0_i32_0 = arith.constant 0 : i32
    %c0_i32_1 = arith.constant 0 : i32
    return %arg0, %arg1, %c0_i32, %c0_i32_0 : i32, i32, i32, i32
  }
}

module attributes {stable_mosaic.version = 11 : i64} {
  func.func @kernel(%arg0: i32, %arg1: i32, %arg2: memref<1x16x256xbf16, #tpu.memory_space<vmem>>, %arg3: memref<9x256x256xbf16, #tpu.memory_space<vmem>>, %arg4: memref<1x2x2x256xbf16, #tpu.memory_space<vmem>>, %arg5: memref<1x2x256xf32, #tpu.memory_space<vmem>>) attributes {dimension_semantics = [#tpu.dimension_semantics<parallel>, #tpu.dimension_semantics<parallel>], iteration_bounds = array<i64: 2, 2>, scalar_prefetch = 0 : i64, scratch_operands = 0 : i64, tpu.core_type = #tpu.core_type<tc>, window_params = [{transform_indices = @transform_0, window_bounds = array<i64: 1, 16, 256>}, {transform_indices = @transform_1, window_bounds = array<i64: 9, 256, 256>}, {transform_indices = @transform_2, window_bounds = array<i64: 1, 2, 2, 256>}, {transform_indices = @transform_3, window_bounds = array<i64: 1, 2, 256>}]} {
    %cst = arith.constant 0.000000e+00 : f32
    %0 = vector.broadcast %cst : f32 to vector<8x256xf32>
    %cst_0 = arith.constant 0.000000e+00 : f32
    %1 = vector.broadcast %cst_0 : f32 to vector<8x256xf32>
    %cst_1 = arith.constant 0.000000e+00 : f32
    %2 = vector.broadcast %cst_1 : f32 to vector<8x256xf32>
    %c0 = arith.constant 0 : index
    %c0_2 = arith.constant 0 : index
    %c0_3 = arith.constant 0 : index
    %3 = vector.load %arg2[%c0, %c0_2, %c0_3] : memref<1x16x256xbf16, #tpu.memory_space<vmem>>, vector<1x8x256xbf16>
    %4 = vector.shape_cast %3 : vector<1x8x256xbf16> to vector<8x256xbf16>
    %c0_4 = arith.constant 0 : index
    %c0_5 = arith.constant 0 : index
    %c0_6 = arith.constant 0 : index
    %5 = vector.load %arg3[%c0_4, %c0_5, %c0_6] : memref<9x256x256xbf16, #tpu.memory_space<vmem>>, vector<1x256x256xbf16>
    %6 = vector.shape_cast %5 : vector<1x256x256xbf16> to vector<256x256xbf16>
    %cst_7 = arith.constant dense<0.000000e+00> : vector<8x256xf32>
    %7 = tpu.matmul %4, %6, %cst_7 {dimension_numbers = #tpu.dot_dimension_numbers<[1], [0], [0], [1], [0, 0, 1, 1], [], []>} : vector<8x256xbf16>, vector<256x256xbf16>, vector<8x256xf32> -> vector<8x256xf32>
    %8 = arith.addf %0, %7 : vector<8x256xf32>
    %c1 = arith.constant 1 : index
    %c0_8 = arith.constant 0 : index
    %c0_9 = arith.constant 0 : index
    %9 = vector.load %arg3[%c1, %c0_8, %c0_9] : memref<9x256x256xbf16, #tpu.memory_space<vmem>>, vector<1x256x256xbf16>
    %10 = vector.shape_cast %9 : vector<1x256x256xbf16> to vector<256x256xbf16>
    %cst_10 = arith.constant dense<0.000000e+00> : vector<8x256xf32>
    %11 = tpu.matmul %4, %10, %cst_10 {dimension_numbers = #tpu.dot_dimension_numbers<[1], [0], [0], [1], [0, 0, 1, 1], [], []>} : vector<8x256xbf16>, vector<256x256xbf16>, vector<8x256xf32> -> vector<8x256xf32>
    %12 = arith.addf %1, %11 : vector<8x256xf32>
    %c2 = arith.constant 2 : index
    %c0_11 = arith.constant 0 : index
    %c0_12 = arith.constant 0 : index
    %13 = vector.load %arg3[%c2, %c0_11, %c0_12] : memref<9x256x256xbf16, #tpu.memory_space<vmem>>, vector<1x256x256xbf16>
    %14 = vector.shape_cast %13 : vector<1x256x256xbf16> to vector<256x256xbf16>
    %cst_13 = arith.constant dense<0.000000e+00> : vector<8x256xf32>
    %15 = tpu.matmul %4, %14, %cst_13 {dimension_numbers = #tpu.dot_dimension_numbers<[1], [0], [0], [1], [0, 0, 1, 1], [], []>} : vector<8x256xbf16>, vector<256x256xbf16>, vector<8x256xf32> -> vector<8x256xf32>
    %16 = arith.addf %2, %15 : vector<8x256xf32>
    %c0_14 = arith.constant 0 : index
    %c4 = arith.constant 4 : index
    %c0_15 = arith.constant 0 : index
    %17 = vector.load %arg2[%c0_14, %c4, %c0_15] : memref<1x16x256xbf16, #tpu.memory_space<vmem>>, vector<1x8x256xbf16>
    %18 = vector.shape_cast %17 : vector<1x8x256xbf16> to vector<8x256xbf16>
    %c3 = arith.constant 3 : index
    %c0_16 = arith.constant 0 : index
    %c0_17 = arith.constant 0 : index
    %19 = vector.load %arg3[%c3, %c0_16, %c0_17] : memref<9x256x256xbf16, #tpu.memory_space<vmem>>, vector<1x256x256xbf16>
    %20 = vector.shape_cast %19 : vector<1x256x256xbf16> to vector<256x256xbf16>
    %cst_18 = arith.constant dense<0.000000e+00> : vector<8x256xf32>
    %21 = tpu.matmul %18, %20, %cst_18 {dimension_numbers = #tpu.dot_dimension_numbers<[1], [0], [0], [1], [0, 0, 1, 1], [], []>} : vector<8x256xbf16>, vector<256x256xbf16>, vector<8x256xf32> -> vector<8x256xf32>
    %22 = arith.addf %8, %21 : vector<8x256xf32>
    %c4_19 = arith.constant 4 : index
    %c0_20 = arith.constant 0 : index
    %c0_21 = arith.constant 0 : index
    %23 = vector.load %arg3[%c4_19, %c0_20, %c0_21] : memref<9x256x256xbf16, #tpu.memory_space<vmem>>, vector<1x256x256xbf16>
    %24 = vector.shape_cast %23 : vector<1x256x256xbf16> to vector<256x256xbf16>
    %cst_22 = arith.constant dense<0.000000e+00> : vector<8x256xf32>
    %25 = tpu.matmul %18, %24, %cst_22 {dimension_numbers = #tpu.dot_dimension_numbers<[1], [0], [0], [1], [0, 0, 1, 1], [], []>} : vector<8x256xbf16>, vector<256x256xbf16>, vector<8x256xf32> -> vector<8x256xf32>
    %26 = arith.addf %12, %25 : vector<8x256xf32>
    %c5 = arith.constant 5 : index
    %c0_23 = arith.constant 0 : index
    %c0_24 = arith.constant 0 : index
    %27 = vector.load %arg3[%c5, %c0_23, %c0_24] : memref<9x256x256xbf16, #tpu.memory_space<vmem>>, vector<1x256x256xbf16>
    %28 = vector.shape_cast %27 : vector<1x256x256xbf16> to vector<256x256xbf16>
    %cst_25 = arith.constant dense<0.000000e+00> : vector<8x256xf32>
    %29 = tpu.matmul %18, %28, %cst_25 {dimension_numbers = #tpu.dot_dimension_numbers<[1], [0], [0], [1], [0, 0, 1, 1], [], []>} : vector<8x256xbf16>, vector<256x256xbf16>, vector<8x256xf32> -> vector<8x256xf32>
    %30 = arith.addf %16, %29 : vector<8x256xf32>
    %c0_26 = arith.constant 0 : index
    %c8 = arith.constant 8 : index
    %c0_27 = arith.constant 0 : index
    %31 = vector.load %arg2[%c0_26, %c8, %c0_27] : memref<1x16x256xbf16, #tpu.memory_space<vmem>>, vector<1x8x256xbf16>
    %32 = vector.shape_cast %31 : vector<1x8x256xbf16> to vector<8x256xbf16>
    %c6 = arith.constant 6 : index
    %c0_28 = arith.constant 0 : index
    %c0_29 = arith.constant 0 : index
    %33 = vector.load %arg3[%c6, %c0_28, %c0_29] : memref<9x256x256xbf16, #tpu.memory_space<vmem>>, vector<1x256x256xbf16>
    %34 = vector.shape_cast %33 : vector<1x256x256xbf16> to vector<256x256xbf16>
    %cst_30 = arith.constant dense<0.000000e+00> : vector<8x256xf32>
    %35 = tpu.matmul %32, %34, %cst_30 {dimension_numbers = #tpu.dot_dimension_numbers<[1], [0], [0], [1], [0, 0, 1, 1], [], []>} : vector<8x256xbf16>, vector<256x256xbf16>, vector<8x256xf32> -> vector<8x256xf32>
    %36 = arith.addf %22, %35 : vector<8x256xf32>
    %c7 = arith.constant 7 : index
    %c0_31 = arith.constant 0 : index
    %c0_32 = arith.constant 0 : index
    %37 = vector.load %arg3[%c7, %c0_31, %c0_32] : memref<9x256x256xbf16, #tpu.memory_space<vmem>>, vector<1x256x256xbf16>
    %38 = vector.shape_cast %37 : vector<1x256x256xbf16> to vector<256x256xbf16>
    %cst_33 = arith.constant dense<0.000000e+00> : vector<8x256xf32>
    %39 = tpu.matmul %32, %38, %cst_33 {dimension_numbers = #tpu.dot_dimension_numbers<[1], [0], [0], [1], [0, 0, 1, 1], [], []>} : vector<8x256xbf16>, vector<256x256xbf16>, vector<8x256xf32> -> vector<8x256xf32>
    %40 = arith.addf %26, %39 : vector<8x256xf32>
    %c8_34 = arith.constant 8 : index
    %c0_35 = arith.constant 0 : index
    %c0_36 = arith.constant 0 : index
    %41 = vector.load %arg3[%c8_34, %c0_35, %c0_36] : memref<9x256x256xbf16, #tpu.memory_space<vmem>>, vector<1x256x256xbf16>
    %42 = vector.shape_cast %41 : vector<1x256x256xbf16> to vector<256x256xbf16>
    %cst_37 = arith.constant dense<0.000000e+00> : vector<8x256xf32>
    %43 = tpu.matmul %32, %42, %cst_37 {dimension_numbers = #tpu.dot_dimension_numbers<[1], [0], [0], [1], [0, 0, 1, 1], [], []>} : vector<8x256xbf16>, vector<256x256xbf16>, vector<8x256xf32> -> vector<8x256xf32>
    %44 = arith.addf %30, %43 : vector<8x256xf32>
    %cst_38 = arith.constant 0.000000e+00 : f32
    %45 = vector.broadcast %cst_38 : f32 to vector<1x256xf32>
    %cst_39 = arith.constant 0.000000e+00 : f32
    %46 = vector.broadcast %cst_39 : f32 to vector<1x256xf32>
    %47 = vector.extract_strided_slice %36 {offsets = [0, 0], sizes = [2, 256], strides = [1, 1]} : vector<8x256xf32> to vector<2x256xf32>
    %48 = vector.extract_strided_slice %40 {offsets = [1, 0], sizes = [2, 256], strides = [1, 1]} : vector<8x256xf32> to vector<2x256xf32>
    %49 = arith.addf %47, %48 : vector<2x256xf32>
    %50 = vector.extract_strided_slice %44 {offsets = [2, 0], sizes = [2, 256], strides = [1, 1]} : vector<8x256xf32> to vector<2x256xf32>
    %51 = arith.addf %49, %50 : vector<2x256xf32>
    %52 = arith.truncf %51 : vector<2x256xf32> to vector<2x256xbf16>
    %c0_40 = arith.constant 0 : index
    %c0_41 = arith.constant 0 : index
    %c0_42 = arith.constant 0 : index
    %c0_43 = arith.constant 0 : index
    %53 = vector.load %arg4[%c0_40, %c0_41, %c0_42, %c0_43] : memref<1x2x2x256xbf16, #tpu.memory_space<vmem>>, vector<1x1x2x256xbf16>
    %54 = vector.shape_cast %53 : vector<1x1x2x256xbf16> to vector<2x256xbf16>
    %55 = vector.shape_cast %52 : vector<2x256xbf16> to vector<1x1x2x256xbf16>
    tpu.vector_store %arg4[%c0_40, %c0_41, %c0_42, %c0_43], %55 {strides = array<i32>} : memref<1x2x2x256xbf16, #tpu.memory_space<vmem>>, vector<1x1x2x256xbf16>,
    %cst_44 = arith.constant dense<0.000000e+00> : vector<256xf32>
    %56 = vector.multi_reduction <add>, %51, %cst_44 [0] : vector<2x256xf32> to vector<256xf32>
    %57 = vector.shape_cast %56 : vector<256xf32> to vector<1x256xf32>
    %58 = arith.addf %45, %57 : vector<1x256xf32>
    %59 = arith.mulf %51, %51 : vector<2x256xf32>
    %cst_45 = arith.constant dense<0.000000e+00> : vector<256xf32>
    %60 = vector.multi_reduction <add>, %59, %cst_45 [0] : vector<2x256xf32> to vector<256xf32>
    %61 = vector.shape_cast %60 : vector<256xf32> to vector<1x256xf32>
    %62 = arith.addf %46, %61 : vector<1x256xf32>
    %63 = vector.extract_strided_slice %36 {offsets = [4, 0], sizes = [2, 256], strides = [1, 1]} : vector<8x256xf32> to vector<2x256xf32>
    %64 = vector.extract_strided_slice %40 {offsets = [5, 0], sizes = [2, 256], strides = [1, 1]} : vector<8x256xf32> to vector<2x256xf32>
    %65 = arith.addf %63, %64 : vector<2x256xf32>
    %66 = vector.extract_strided_slice %44 {offsets = [6, 0], sizes = [2, 256], strides = [1, 1]} : vector<8x256xf32> to vector<2x256xf32>
    %67 = arith.addf %65, %66 : vector<2x256xf32>
    %68 = arith.truncf %67 : vector<2x256xf32> to vector<2x256xbf16>
    %c0_46 = arith.constant 0 : index
    %c1_47 = arith.constant 1 : index
    %c0_48 = arith.constant 0 : index
    %c0_49 = arith.constant 0 : index
    %69 = vector.load %arg4[%c0_46, %c1_47, %c0_48, %c0_49] : memref<1x2x2x256xbf16, #tpu.memory_space<vmem>>, vector<1x1x2x256xbf16>
    %70 = vector.shape_cast %69 : vector<1x1x2x256xbf16> to vector<2x256xbf16>
    %71 = vector.shape_cast %68 : vector<2x256xbf16> to vector<1x1x2x256xbf16>
    tpu.vector_store %arg4[%c0_46, %c1_47, %c0_48, %c0_49], %71 {strides = array<i32>} : memref<1x2x2x256xbf16, #tpu.memory_space<vmem>>, vector<1x1x2x256xbf16>,
    %cst_50 = arith.constant dense<0.000000e+00> : vector<256xf32>
    %72 = vector.multi_reduction <add>, %67, %cst_50 [0] : vector<2x256xf32> to vector<256xf32>
    %73 = vector.shape_cast %72 : vector<256xf32> to vector<1x256xf32>
    %74 = arith.addf %58, %73 : vector<1x256xf32>
    %75 = arith.mulf %67, %67 : vector<2x256xf32>
    %cst_51 = arith.constant dense<0.000000e+00> : vector<256xf32>
    %76 = vector.multi_reduction <add>, %75, %cst_51 [0] : vector<2x256xf32> to vector<256xf32>
    %77 = vector.shape_cast %76 : vector<256xf32> to vector<1x256xf32>
    %78 = arith.addf %62, %77 : vector<1x256xf32>
    %c0_52 = arith.constant 0 : index
    %c0_53 = arith.constant 0 : index
    %c0_54 = arith.constant 0 : index
    %79 = vector.load %arg5[%c0_52, %c0_53, %c0_54] : memref<1x2x256xf32, #tpu.memory_space<vmem>>, vector<1x1x256xf32>
    %80 = vector.shape_cast %79 : vector<1x1x256xf32> to vector<1x256xf32>
    %81 = vector.shape_cast %74 : vector<1x256xf32> to vector<1x1x256xf32>
    tpu.vector_store %arg5[%c0_52, %c0_53, %c0_54], %81 {strides = array<i32>} : memref<1x2x256xf32, #tpu.memory_space<vmem>>, vector<1x1x256xf32>,
    %c0_55 = arith.constant 0 : index
    %c1_56 = arith.constant 1 : index
    %c0_57 = arith.constant 0 : index
    %82 = vector.load %arg5[%c0_55, %c1_56, %c0_57] : memref<1x2x256xf32, #tpu.memory_space<vmem>>, vector<1x1x256xf32>
    %83 = vector.shape_cast %82 : vector<1x1x256xf32> to vector<1x256xf32>
    %84 = vector.shape_cast %78 : vector<1x256xf32> to vector<1x1x256xf32>
    tpu.vector_store %arg5[%c0_55, %c1_56, %c0_57], %84 {strides = array<i32>} : memref<1x2x256xf32, #tpu.memory_space<vmem>>, vector<1x1x256xf32>,
    return
  }
  func.func @transform_0(%arg0: i32, %arg1: i32) -> (i32, i32, i32) {
    %c0_i32 = arith.constant 0 : i32
    %c0_i32_0 = arith.constant 0 : i32
    %c0_i32_1 = arith.constant 0 : i32
    return %arg1, %c0_i32, %c0_i32_0 : i32, i32, i32
  }
  func.func @transform_1(%arg0: i32, %arg1: i32) -> (i32, i32, i32) {
    %c0_i32 = arith.constant 0 : i32
    %c0_i32_0 = arith.constant 0 : i32
    %c0_i32_1 = arith.constant 0 : i32
    return %c0_i32, %c0_i32_0, %arg0 : i32, i32, i32
  }
  func.func @transform_2(%arg0: i32, %arg1: i32) -> (i32, i32, i32, i32) {
    %c0_i32 = arith.constant 0 : i32
    %c0_i32_0 = arith.constant 0 : i32
    %c0_i32_1 = arith.constant 0 : i32
    return %arg1, %c0_i32, %c0_i32_0, %arg0 : i32, i32, i32, i32
  }
  func.func @transform_3(%arg0: i32, %arg1: i32) -> (i32, i32, i32) {
    %c0_i32 = arith.constant 0 : i32
    %c0_i32_0 = arith.constant 0 : i32
    return %arg1, %c0_i32, %arg0 : i32, i32, i32
  }
}

module attributes {stable_mosaic.version = 11 : i64} {
  func.func @_bn_relu_kernel(%arg0: i32, %arg1: memref<8x512xbf16, #tpu.memory_space<vmem>>, %arg2: memref<1x512xf32, #tpu.memory_space<vmem>>, %arg3: memref<1x512xf32, #tpu.memory_space<vmem>>, %arg4: memref<8x512xbf16, #tpu.memory_space<vmem>>) attributes {dimension_semantics = [#tpu.dimension_semantics<parallel>], iteration_bounds = array<i64: 1>, scalar_prefetch = 0 : i64, scratch_operands = 0 : i64, tpu.core_type = #tpu.core_type<tc>, window_params = [{transform_indices = @transform_0, window_bounds = array<i64: 8, 512>}, {pipeline_mode = #tpu.pipeline_mode<synchronous>, transform_indices = @transform_1, window_bounds = array<i64: 1, 512>}, {pipeline_mode = #tpu.pipeline_mode<synchronous>, transform_indices = @transform_2, window_bounds = array<i64: 1, 512>}, {transform_indices = @transform_3, window_bounds = array<i64: 8, 512>}]} {
    %c0 = arith.constant 0 : index
    %c0_0 = arith.constant 0 : index
    %0 = vector.load %arg1[%c0, %c0_0] : memref<8x512xbf16, #tpu.memory_space<vmem>>, vector<8x512xbf16>
    %1 = arith.extf %0 : vector<8x512xbf16> to vector<8x512xf32>
    %c0_1 = arith.constant 0 : index
    %c0_2 = arith.constant 0 : index
    %2 = vector.load %arg2[%c0_1, %c0_2] : memref<1x512xf32, #tpu.memory_space<vmem>>, vector<1x512xf32>
    %3 = vector.broadcast %2 : vector<1x512xf32> to vector<8x512xf32>
    %4 = arith.mulf %1, %3 : vector<8x512xf32>
    %c0_3 = arith.constant 0 : index
    %c0_4 = arith.constant 0 : index
    %5 = vector.load %arg3[%c0_3, %c0_4] : memref<1x512xf32, #tpu.memory_space<vmem>>, vector<1x512xf32>
    %6 = vector.broadcast %5 : vector<1x512xf32> to vector<8x512xf32>
    %7 = arith.addf %4, %6 : vector<8x512xf32>
    %cst = arith.constant 0.000000e+00 : f32
    %8 = vector.broadcast %cst : f32 to vector<8x512xf32>
    %9 = arith.maximumf %7, %8 : vector<8x512xf32>
    %10 = arith.truncf %9 : vector<8x512xf32> to vector<8x512xbf16>
    %c0_5 = arith.constant 0 : index
    %c0_6 = arith.constant 0 : index
    %11 = vector.load %arg4[%c0_5, %c0_6] : memref<8x512xbf16, #tpu.memory_space<vmem>>, vector<8x512xbf16>
    tpu.vector_store %arg4[%c0_5, %c0_6], %10 {strides = array<i32>} : memref<8x512xbf16, #tpu.memory_space<vmem>>, vector<8x512xbf16>,
    return
  }
  func.func @transform_0(%arg0: i32) -> (i32, i32) {
    %c0_i32 = arith.constant 0 : i32
    %c0_i32_0 = arith.constant 0 : i32
    return %arg0, %c0_i32 : i32, i32
  }
  func.func @transform_1(%arg0: i32) -> (i32, i32) {
    %c0_i32 = arith.constant 0 : i32
    %c0_i32_0 = arith.constant 0 : i32
    %c0_i32_1 = arith.constant 0 : i32
    return %c0_i32, %c0_i32_0 : i32, i32
  }
  func.func @transform_2(%arg0: i32) -> (i32, i32) {
    %c0_i32 = arith.constant 0 : i32
    %c0_i32_0 = arith.constant 0 : i32
    %c0_i32_1 = arith.constant 0 : i32
    return %c0_i32, %c0_i32_0 : i32, i32
  }
  func.func @transform_3(%arg0: i32) -> (i32, i32) {
    %c0_i32 = arith.constant 0 : i32
    %c0_i32_0 = arith.constant 0 : i32
    return %arg0, %c0_i32 : i32, i32
  }
}

module attributes {stable_mosaic.version = 11 : i64} {
  func.func @kernel(%arg0: i32, %arg1: i32, %arg2: memref<1x16x512xbf16, #tpu.memory_space<vmem>>, %arg3: memref<9x512x256xbf16, #tpu.memory_space<vmem>>, %arg4: memref<1x2x2x256xbf16, #tpu.memory_space<vmem>>, %arg5: memref<1x2x256xf32, #tpu.memory_space<vmem>>) attributes {dimension_semantics = [#tpu.dimension_semantics<parallel>, #tpu.dimension_semantics<parallel>], iteration_bounds = array<i64: 2, 2>, scalar_prefetch = 0 : i64, scratch_operands = 0 : i64, tpu.core_type = #tpu.core_type<tc>, window_params = [{transform_indices = @transform_0, window_bounds = array<i64: 1, 16, 512>}, {transform_indices = @transform_1, window_bounds = array<i64: 9, 512, 256>}, {transform_indices = @transform_2, window_bounds = array<i64: 1, 2, 2, 256>}, {transform_indices = @transform_3, window_bounds = array<i64: 1, 2, 256>}]} {
    %cst = arith.constant 0.000000e+00 : f32
    %0 = vector.broadcast %cst : f32 to vector<8x256xf32>
    %cst_0 = arith.constant 0.000000e+00 : f32
    %1 = vector.broadcast %cst_0 : f32 to vector<8x256xf32>
    %cst_1 = arith.constant 0.000000e+00 : f32
    %2 = vector.broadcast %cst_1 : f32 to vector<8x256xf32>
    %c0 = arith.constant 0 : index
    %c0_2 = arith.constant 0 : index
    %c0_3 = arith.constant 0 : index
    %3 = vector.load %arg2[%c0, %c0_2, %c0_3] : memref<1x16x512xbf16, #tpu.memory_space<vmem>>, vector<1x8x512xbf16>
    %4 = vector.shape_cast %3 : vector<1x8x512xbf16> to vector<8x512xbf16>
    %c0_4 = arith.constant 0 : index
    %c0_5 = arith.constant 0 : index
    %c0_6 = arith.constant 0 : index
    %5 = vector.load %arg3[%c0_4, %c0_5, %c0_6] : memref<9x512x256xbf16, #tpu.memory_space<vmem>>, vector<1x512x256xbf16>
    %6 = vector.shape_cast %5 : vector<1x512x256xbf16> to vector<512x256xbf16>
    %cst_7 = arith.constant dense<0.000000e+00> : vector<8x256xf32>
    %7 = tpu.matmul %4, %6, %cst_7 {dimension_numbers = #tpu.dot_dimension_numbers<[1], [0], [0], [1], [0, 0, 1, 1], [], []>} : vector<8x512xbf16>, vector<512x256xbf16>, vector<8x256xf32> -> vector<8x256xf32>
    %8 = arith.addf %0, %7 : vector<8x256xf32>
    %c1 = arith.constant 1 : index
    %c0_8 = arith.constant 0 : index
    %c0_9 = arith.constant 0 : index
    %9 = vector.load %arg3[%c1, %c0_8, %c0_9] : memref<9x512x256xbf16, #tpu.memory_space<vmem>>, vector<1x512x256xbf16>
    %10 = vector.shape_cast %9 : vector<1x512x256xbf16> to vector<512x256xbf16>
    %cst_10 = arith.constant dense<0.000000e+00> : vector<8x256xf32>
    %11 = tpu.matmul %4, %10, %cst_10 {dimension_numbers = #tpu.dot_dimension_numbers<[1], [0], [0], [1], [0, 0, 1, 1], [], []>} : vector<8x512xbf16>, vector<512x256xbf16>, vector<8x256xf32> -> vector<8x256xf32>
    %12 = arith.addf %1, %11 : vector<8x256xf32>
    %c2 = arith.constant 2 : index
    %c0_11 = arith.constant 0 : index
    %c0_12 = arith.constant 0 : index
    %13 = vector.load %arg3[%c2, %c0_11, %c0_12] : memref<9x512x256xbf16, #tpu.memory_space<vmem>>, vector<1x512x256xbf16>
    %14 = vector.shape_cast %13 : vector<1x512x256xbf16> to vector<512x256xbf16>
    %cst_13 = arith.constant dense<0.000000e+00> : vector<8x256xf32>
    %15 = tpu.matmul %4, %14, %cst_13 {dimension_numbers = #tpu.dot_dimension_numbers<[1], [0], [0], [1], [0, 0, 1, 1], [], []>} : vector<8x512xbf16>, vector<512x256xbf16>, vector<8x256xf32> -> vector<8x256xf32>
    %16 = arith.addf %2, %15 : vector<8x256xf32>
    %c0_14 = arith.constant 0 : index
    %c4 = arith.constant 4 : index
    %c0_15 = arith.constant 0 : index
    %17 = vector.load %arg2[%c0_14, %c4, %c0_15] : memref<1x16x512xbf16, #tpu.memory_space<vmem>>, vector<1x8x512xbf16>
    %18 = vector.shape_cast %17 : vector<1x8x512xbf16> to vector<8x512xbf16>
    %c3 = arith.constant 3 : index
    %c0_16 = arith.constant 0 : index
    %c0_17 = arith.constant 0 : index
    %19 = vector.load %arg3[%c3, %c0_16, %c0_17] : memref<9x512x256xbf16, #tpu.memory_space<vmem>>, vector<1x512x256xbf16>
    %20 = vector.shape_cast %19 : vector<1x512x256xbf16> to vector<512x256xbf16>
    %cst_18 = arith.constant dense<0.000000e+00> : vector<8x256xf32>
    %21 = tpu.matmul %18, %20, %cst_18 {dimension_numbers = #tpu.dot_dimension_numbers<[1], [0], [0], [1], [0, 0, 1, 1], [], []>} : vector<8x512xbf16>, vector<512x256xbf16>, vector<8x256xf32> -> vector<8x256xf32>
    %22 = arith.addf %8, %21 : vector<8x256xf32>
    %c4_19 = arith.constant 4 : index
    %c0_20 = arith.constant 0 : index
    %c0_21 = arith.constant 0 : index
    %23 = vector.load %arg3[%c4_19, %c0_20, %c0_21] : memref<9x512x256xbf16, #tpu.memory_space<vmem>>, vector<1x512x256xbf16>
    %24 = vector.shape_cast %23 : vector<1x512x256xbf16> to vector<512x256xbf16>
    %cst_22 = arith.constant dense<0.000000e+00> : vector<8x256xf32>
    %25 = tpu.matmul %18, %24, %cst_22 {dimension_numbers = #tpu.dot_dimension_numbers<[1], [0], [0], [1], [0, 0, 1, 1], [], []>} : vector<8x512xbf16>, vector<512x256xbf16>, vector<8x256xf32> -> vector<8x256xf32>
    %26 = arith.addf %12, %25 : vector<8x256xf32>
    %c5 = arith.constant 5 : index
    %c0_23 = arith.constant 0 : index
    %c0_24 = arith.constant 0 : index
    %27 = vector.load %arg3[%c5, %c0_23, %c0_24] : memref<9x512x256xbf16, #tpu.memory_space<vmem>>, vector<1x512x256xbf16>
    %28 = vector.shape_cast %27 : vector<1x512x256xbf16> to vector<512x256xbf16>
    %cst_25 = arith.constant dense<0.000000e+00> : vector<8x256xf32>
    %29 = tpu.matmul %18, %28, %cst_25 {dimension_numbers = #tpu.dot_dimension_numbers<[1], [0], [0], [1], [0, 0, 1, 1], [], []>} : vector<8x512xbf16>, vector<512x256xbf16>, vector<8x256xf32> -> vector<8x256xf32>
    %30 = arith.addf %16, %29 : vector<8x256xf32>
    %c0_26 = arith.constant 0 : index
    %c8 = arith.constant 8 : index
    %c0_27 = arith.constant 0 : index
    %31 = vector.load %arg2[%c0_26, %c8, %c0_27] : memref<1x16x512xbf16, #tpu.memory_space<vmem>>, vector<1x8x512xbf16>
    %32 = vector.shape_cast %31 : vector<1x8x512xbf16> to vector<8x512xbf16>
    %c6 = arith.constant 6 : index
    %c0_28 = arith.constant 0 : index
    %c0_29 = arith.constant 0 : index
    %33 = vector.load %arg3[%c6, %c0_28, %c0_29] : memref<9x512x256xbf16, #tpu.memory_space<vmem>>, vector<1x512x256xbf16>
    %34 = vector.shape_cast %33 : vector<1x512x256xbf16> to vector<512x256xbf16>
    %cst_30 = arith.constant dense<0.000000e+00> : vector<8x256xf32>
    %35 = tpu.matmul %32, %34, %cst_30 {dimension_numbers = #tpu.dot_dimension_numbers<[1], [0], [0], [1], [0, 0, 1, 1], [], []>} : vector<8x512xbf16>, vector<512x256xbf16>, vector<8x256xf32> -> vector<8x256xf32>
    %36 = arith.addf %22, %35 : vector<8x256xf32>
    %c7 = arith.constant 7 : index
    %c0_31 = arith.constant 0 : index
    %c0_32 = arith.constant 0 : index
    %37 = vector.load %arg3[%c7, %c0_31, %c0_32] : memref<9x512x256xbf16, #tpu.memory_space<vmem>>, vector<1x512x256xbf16>
    %38 = vector.shape_cast %37 : vector<1x512x256xbf16> to vector<512x256xbf16>
    %cst_33 = arith.constant dense<0.000000e+00> : vector<8x256xf32>
    %39 = tpu.matmul %32, %38, %cst_33 {dimension_numbers = #tpu.dot_dimension_numbers<[1], [0], [0], [1], [0, 0, 1, 1], [], []>} : vector<8x512xbf16>, vector<512x256xbf16>, vector<8x256xf32> -> vector<8x256xf32>
    %40 = arith.addf %26, %39 : vector<8x256xf32>
    %c8_34 = arith.constant 8 : index
    %c0_35 = arith.constant 0 : index
    %c0_36 = arith.constant 0 : index
    %41 = vector.load %arg3[%c8_34, %c0_35, %c0_36] : memref<9x512x256xbf16, #tpu.memory_space<vmem>>, vector<1x512x256xbf16>
    %42 = vector.shape_cast %41 : vector<1x512x256xbf16> to vector<512x256xbf16>
    %cst_37 = arith.constant dense<0.000000e+00> : vector<8x256xf32>
    %43 = tpu.matmul %32, %42, %cst_37 {dimension_numbers = #tpu.dot_dimension_numbers<[1], [0], [0], [1], [0, 0, 1, 1], [], []>} : vector<8x512xbf16>, vector<512x256xbf16>, vector<8x256xf32> -> vector<8x256xf32>
    %44 = arith.addf %30, %43 : vector<8x256xf32>
    %cst_38 = arith.constant 0.000000e+00 : f32
    %45 = vector.broadcast %cst_38 : f32 to vector<1x256xf32>
    %cst_39 = arith.constant 0.000000e+00 : f32
    %46 = vector.broadcast %cst_39 : f32 to vector<1x256xf32>
    %47 = vector.extract_strided_slice %36 {offsets = [0, 0], sizes = [2, 256], strides = [1, 1]} : vector<8x256xf32> to vector<2x256xf32>
    %48 = vector.extract_strided_slice %40 {offsets = [1, 0], sizes = [2, 256], strides = [1, 1]} : vector<8x256xf32> to vector<2x256xf32>
    %49 = arith.addf %47, %48 : vector<2x256xf32>
    %50 = vector.extract_strided_slice %44 {offsets = [2, 0], sizes = [2, 256], strides = [1, 1]} : vector<8x256xf32> to vector<2x256xf32>
    %51 = arith.addf %49, %50 : vector<2x256xf32>
    %52 = arith.truncf %51 : vector<2x256xf32> to vector<2x256xbf16>
    %c0_40 = arith.constant 0 : index
    %c0_41 = arith.constant 0 : index
    %c0_42 = arith.constant 0 : index
    %c0_43 = arith.constant 0 : index
    %53 = vector.load %arg4[%c0_40, %c0_41, %c0_42, %c0_43] : memref<1x2x2x256xbf16, #tpu.memory_space<vmem>>, vector<1x1x2x256xbf16>
    %54 = vector.shape_cast %53 : vector<1x1x2x256xbf16> to vector<2x256xbf16>
    %55 = vector.shape_cast %52 : vector<2x256xbf16> to vector<1x1x2x256xbf16>
    tpu.vector_store %arg4[%c0_40, %c0_41, %c0_42, %c0_43], %55 {strides = array<i32>} : memref<1x2x2x256xbf16, #tpu.memory_space<vmem>>, vector<1x1x2x256xbf16>,
    %cst_44 = arith.constant dense<0.000000e+00> : vector<256xf32>
    %56 = vector.multi_reduction <add>, %51, %cst_44 [0] : vector<2x256xf32> to vector<256xf32>
    %57 = vector.shape_cast %56 : vector<256xf32> to vector<1x256xf32>
    %58 = arith.addf %45, %57 : vector<1x256xf32>
    %59 = arith.mulf %51, %51 : vector<2x256xf32>
    %cst_45 = arith.constant dense<0.000000e+00> : vector<256xf32>
    %60 = vector.multi_reduction <add>, %59, %cst_45 [0] : vector<2x256xf32> to vector<256xf32>
    %61 = vector.shape_cast %60 : vector<256xf32> to vector<1x256xf32>
    %62 = arith.addf %46, %61 : vector<1x256xf32>
    %63 = vector.extract_strided_slice %36 {offsets = [4, 0], sizes = [2, 256], strides = [1, 1]} : vector<8x256xf32> to vector<2x256xf32>
    %64 = vector.extract_strided_slice %40 {offsets = [5, 0], sizes = [2, 256], strides = [1, 1]} : vector<8x256xf32> to vector<2x256xf32>
    %65 = arith.addf %63, %64 : vector<2x256xf32>
    %66 = vector.extract_strided_slice %44 {offsets = [6, 0], sizes = [2, 256], strides = [1, 1]} : vector<8x256xf32> to vector<2x256xf32>
    %67 = arith.addf %65, %66 : vector<2x256xf32>
    %68 = arith.truncf %67 : vector<2x256xf32> to vector<2x256xbf16>
    %c0_46 = arith.constant 0 : index
    %c1_47 = arith.constant 1 : index
    %c0_48 = arith.constant 0 : index
    %c0_49 = arith.constant 0 : index
    %69 = vector.load %arg4[%c0_46, %c1_47, %c0_48, %c0_49] : memref<1x2x2x256xbf16, #tpu.memory_space<vmem>>, vector<1x1x2x256xbf16>
    %70 = vector.shape_cast %69 : vector<1x1x2x256xbf16> to vector<2x256xbf16>
    %71 = vector.shape_cast %68 : vector<2x256xbf16> to vector<1x1x2x256xbf16>
    tpu.vector_store %arg4[%c0_46, %c1_47, %c0_48, %c0_49], %71 {strides = array<i32>} : memref<1x2x2x256xbf16, #tpu.memory_space<vmem>>, vector<1x1x2x256xbf16>,
    %cst_50 = arith.constant dense<0.000000e+00> : vector<256xf32>
    %72 = vector.multi_reduction <add>, %67, %cst_50 [0] : vector<2x256xf32> to vector<256xf32>
    %73 = vector.shape_cast %72 : vector<256xf32> to vector<1x256xf32>
    %74 = arith.addf %58, %73 : vector<1x256xf32>
    %75 = arith.mulf %67, %67 : vector<2x256xf32>
    %cst_51 = arith.constant dense<0.000000e+00> : vector<256xf32>
    %76 = vector.multi_reduction <add>, %75, %cst_51 [0] : vector<2x256xf32> to vector<256xf32>
    %77 = vector.shape_cast %76 : vector<256xf32> to vector<1x256xf32>
    %78 = arith.addf %62, %77 : vector<1x256xf32>
    %c0_52 = arith.constant 0 : index
    %c0_53 = arith.constant 0 : index
    %c0_54 = arith.constant 0 : index
    %79 = vector.load %arg5[%c0_52, %c0_53, %c0_54] : memref<1x2x256xf32, #tpu.memory_space<vmem>>, vector<1x1x256xf32>
    %80 = vector.shape_cast %79 : vector<1x1x256xf32> to vector<1x256xf32>
    %81 = vector.shape_cast %74 : vector<1x256xf32> to vector<1x1x256xf32>
    tpu.vector_store %arg5[%c0_52, %c0_53, %c0_54], %81 {strides = array<i32>} : memref<1x2x256xf32, #tpu.memory_space<vmem>>, vector<1x1x256xf32>,
    %c0_55 = arith.constant 0 : index
    %c1_56 = arith.constant 1 : index
    %c0_57 = arith.constant 0 : index
    %82 = vector.load %arg5[%c0_55, %c1_56, %c0_57] : memref<1x2x256xf32, #tpu.memory_space<vmem>>, vector<1x1x256xf32>
    %83 = vector.shape_cast %82 : vector<1x1x256xf32> to vector<1x256xf32>
    %84 = vector.shape_cast %78 : vector<1x256xf32> to vector<1x1x256xf32>
    tpu.vector_store %arg5[%c0_55, %c1_56, %c0_57], %84 {strides = array<i32>} : memref<1x2x256xf32, #tpu.memory_space<vmem>>, vector<1x1x256xf32>,
    return
  }
  func.func @transform_0(%arg0: i32, %arg1: i32) -> (i32, i32, i32) {
    %c0_i32 = arith.constant 0 : i32
    %c0_i32_0 = arith.constant 0 : i32
    %c0_i32_1 = arith.constant 0 : i32
    return %arg1, %c0_i32, %c0_i32_0 : i32, i32, i32
  }
  func.func @transform_1(%arg0: i32, %arg1: i32) -> (i32, i32, i32) {
    %c0_i32 = arith.constant 0 : i32
    %c0_i32_0 = arith.constant 0 : i32
    %c0_i32_1 = arith.constant 0 : i32
    return %c0_i32, %c0_i32_0, %arg0 : i32, i32, i32
  }
  func.func @transform_2(%arg0: i32, %arg1: i32) -> (i32, i32, i32, i32) {
    %c0_i32 = arith.constant 0 : i32
    %c0_i32_0 = arith.constant 0 : i32
    %c0_i32_1 = arith.constant 0 : i32
    return %arg1, %c0_i32, %c0_i32_0, %arg0 : i32, i32, i32, i32
  }
  func.func @transform_3(%arg0: i32, %arg1: i32) -> (i32, i32, i32) {
    %c0_i32 = arith.constant 0 : i32
    %c0_i32_0 = arith.constant 0 : i32
    return %arg1, %c0_i32, %arg0 : i32, i32, i32
  }
}

module attributes {stable_mosaic.version = 11 : i64} {
  func.func @_maxpool_kernel(%arg0: i32, %arg1: i32, %arg2: memref<1x1x2x1x1024xbf16, #tpu.memory_space<vmem>>, %arg3: memref<1x1x1x512xbf16, #tpu.memory_space<vmem>>) attributes {dimension_semantics = [#tpu.dimension_semantics<parallel>, #tpu.dimension_semantics<parallel>], iteration_bounds = array<i64: 2, 1>, scalar_prefetch = 0 : i64, scratch_operands = 0 : i64, tpu.core_type = #tpu.core_type<tc>, window_params = [{transform_indices = @transform_0, window_bounds = array<i64: 1, 1, 2, 1, 1024>}, {transform_indices = @transform_1, window_bounds = array<i64: 1, 1, 1, 512>}]} {
    %c0 = arith.constant 0 : index
    %c0_0 = arith.constant 0 : index
    %c0_1 = arith.constant 0 : index
    %c0_2 = arith.constant 0 : index
    %c0_3 = arith.constant 0 : index
    %0 = vector.load %arg2[%c0, %c0_0, %c0_1, %c0_2, %c0_3] : memref<1x1x2x1x1024xbf16, #tpu.memory_space<vmem>>, vector<1x1x1x1x1024xbf16>
    %1 = vector.shape_cast %0 : vector<1x1x1x1x1024xbf16> to vector<1x1x1024xbf16>
    %c0_4 = arith.constant 0 : index
    %c0_5 = arith.constant 0 : index
    %c1 = arith.constant 1 : index
    %c0_6 = arith.constant 0 : index
    %c0_7 = arith.constant 0 : index
    %2 = vector.load %arg2[%c0_4, %c0_5, %c1, %c0_6, %c0_7] : memref<1x1x2x1x1024xbf16, #tpu.memory_space<vmem>>, vector<1x1x1x1x1024xbf16>
    %3 = vector.shape_cast %2 : vector<1x1x1x1x1024xbf16> to vector<1x1x1024xbf16>
    %4 = arith.maximumf %1, %3 : vector<1x1x1024xbf16>
    %5 = vector.extract_strided_slice %4 {offsets = [0, 0, 0], sizes = [1, 1, 512], strides = [1, 1, 1]} : vector<1x1x1024xbf16> to vector<1x1x512xbf16>
    %6 = vector.extract_strided_slice %4 {offsets = [0, 0, 512], sizes = [1, 1, 512], strides = [1, 1, 1]} : vector<1x1x1024xbf16> to vector<1x1x512xbf16>
    %7 = arith.maximumf %5, %6 : vector<1x1x512xbf16>
    %c0_8 = arith.constant 0 : index
    %c0_9 = arith.constant 0 : index
    %c0_10 = arith.constant 0 : index
    %c0_11 = arith.constant 0 : index
    %8 = vector.load %arg3[%c0_8, %c0_9, %c0_10, %c0_11] : memref<1x1x1x512xbf16, #tpu.memory_space<vmem>>, vector<1x1x1x512xbf16>
    %9 = vector.shape_cast %8 : vector<1x1x1x512xbf16> to vector<1x1x512xbf16>
    %10 = vector.shape_cast %7 : vector<1x1x512xbf16> to vector<1x1x1x512xbf16>
    tpu.vector_store %arg3[%c0_8, %c0_9, %c0_10, %c0_11], %10 {strides = array<i32>} : memref<1x1x1x512xbf16, #tpu.memory_space<vmem>>, vector<1x1x1x512xbf16>,
    return
  }
  func.func @transform_0(%arg0: i32, %arg1: i32) -> (i32, i32, i32, i32, i32) {
    %c0_i32 = arith.constant 0 : i32
    %c0_i32_0 = arith.constant 0 : i32
    %c0_i32_1 = arith.constant 0 : i32
    %c0_i32_2 = arith.constant 0 : i32
    return %arg0, %arg1, %c0_i32, %c0_i32_0, %c0_i32_1 : i32, i32, i32, i32, i32
  }
  func.func @transform_1(%arg0: i32, %arg1: i32) -> (i32, i32, i32, i32) {
    %c0_i32 = arith.constant 0 : i32
    %c0_i32_0 = arith.constant 0 : i32
    %c0_i32_1 = arith.constant 0 : i32
    return %arg0, %arg1, %c0_i32, %c0_i32_0 : i32, i32, i32, i32
  }
}

module attributes {stable_mosaic.version = 11 : i64} {
  func.func @kernel(%arg0: i32, %arg1: i32, %arg2: memref<1x9x512xbf16, #tpu.memory_space<vmem>>, %arg3: memref<9x512x256xbf16, #tpu.memory_space<vmem>>, %arg4: memref<1x1x1x256xbf16, #tpu.memory_space<vmem>>, %arg5: memref<1x2x256xf32, #tpu.memory_space<vmem>>) attributes {dimension_semantics = [#tpu.dimension_semantics<parallel>, #tpu.dimension_semantics<parallel>], iteration_bounds = array<i64: 4, 2>, scalar_prefetch = 0 : i64, scratch_operands = 0 : i64, tpu.core_type = #tpu.core_type<tc>, window_params = [{transform_indices = @transform_0, window_bounds = array<i64: 1, 9, 512>}, {transform_indices = @transform_1, window_bounds = array<i64: 9, 512, 256>}, {transform_indices = @transform_2, window_bounds = array<i64: 1, 1, 1, 256>}, {transform_indices = @transform_3, window_bounds = array<i64: 1, 2, 256>}]} {
    %cst = arith.constant 0.000000e+00 : f32
    %0 = vector.broadcast %cst : f32 to vector<3x256xf32>
    %cst_0 = arith.constant 0.000000e+00 : f32
    %1 = vector.broadcast %cst_0 : f32 to vector<3x256xf32>
    %cst_1 = arith.constant 0.000000e+00 : f32
    %2 = vector.broadcast %cst_1 : f32 to vector<3x256xf32>
    %c0 = arith.constant 0 : index
    %c0_2 = arith.constant 0 : index
    %c0_3 = arith.constant 0 : index
    %3 = vector.load %arg2[%c0, %c0_2, %c0_3] : memref<1x9x512xbf16, #tpu.memory_space<vmem>>, vector<1x3x512xbf16>
    %4 = vector.shape_cast %3 : vector<1x3x512xbf16> to vector<3x512xbf16>
    %c0_4 = arith.constant 0 : index
    %c0_5 = arith.constant 0 : index
    %c0_6 = arith.constant 0 : index
    %5 = vector.load %arg3[%c0_4, %c0_5, %c0_6] : memref<9x512x256xbf16, #tpu.memory_space<vmem>>, vector<1x512x256xbf16>
    %6 = vector.shape_cast %5 : vector<1x512x256xbf16> to vector<512x256xbf16>
    %cst_7 = arith.constant dense<0.000000e+00> : vector<3x256xf32>
    %7 = tpu.matmul %4, %6, %cst_7 {dimension_numbers = #tpu.dot_dimension_numbers<[1], [0], [0], [1], [0, 0, 1, 1], [], []>} : vector<3x512xbf16>, vector<512x256xbf16>, vector<3x256xf32> -> vector<3x256xf32>
    %8 = arith.addf %0, %7 : vector<3x256xf32>
    %c1 = arith.constant 1 : index
    %c0_8 = arith.constant 0 : index
    %c0_9 = arith.constant 0 : index
    %9 = vector.load %arg3[%c1, %c0_8, %c0_9] : memref<9x512x256xbf16, #tpu.memory_space<vmem>>, vector<1x512x256xbf16>
    %10 = vector.shape_cast %9 : vector<1x512x256xbf16> to vector<512x256xbf16>
    %cst_10 = arith.constant dense<0.000000e+00> : vector<3x256xf32>
    %11 = tpu.matmul %4, %10, %cst_10 {dimension_numbers = #tpu.dot_dimension_numbers<[1], [0], [0], [1], [0, 0, 1, 1], [], []>} : vector<3x512xbf16>, vector<512x256xbf16>, vector<3x256xf32> -> vector<3x256xf32>
    %12 = arith.addf %1, %11 : vector<3x256xf32>
    %c2 = arith.constant 2 : index
    %c0_11 = arith.constant 0 : index
    %c0_12 = arith.constant 0 : index
    %13 = vector.load %arg3[%c2, %c0_11, %c0_12] : memref<9x512x256xbf16, #tpu.memory_space<vmem>>, vector<1x512x256xbf16>
    %14 = vector.shape_cast %13 : vector<1x512x256xbf16> to vector<512x256xbf16>
    %cst_13 = arith.constant dense<0.000000e+00> : vector<3x256xf32>
    %15 = tpu.matmul %4, %14, %cst_13 {dimension_numbers = #tpu.dot_dimension_numbers<[1], [0], [0], [1], [0, 0, 1, 1], [], []>} : vector<3x512xbf16>, vector<512x256xbf16>, vector<3x256xf32> -> vector<3x256xf32>
    %16 = arith.addf %2, %15 : vector<3x256xf32>
    %c0_14 = arith.constant 0 : index
    %c3 = arith.constant 3 : index
    %c0_15 = arith.constant 0 : index
    %17 = vector.load %arg2[%c0_14, %c3, %c0_15] : memref<1x9x512xbf16, #tpu.memory_space<vmem>>, vector<1x3x512xbf16>
    %18 = vector.shape_cast %17 : vector<1x3x512xbf16> to vector<3x512xbf16>
    %c3_16 = arith.constant 3 : index
    %c0_17 = arith.constant 0 : index
    %c0_18 = arith.constant 0 : index
    %19 = vector.load %arg3[%c3_16, %c0_17, %c0_18] : memref<9x512x256xbf16, #tpu.memory_space<vmem>>, vector<1x512x256xbf16>
    %20 = vector.shape_cast %19 : vector<1x512x256xbf16> to vector<512x256xbf16>
    %cst_19 = arith.constant dense<0.000000e+00> : vector<3x256xf32>
    %21 = tpu.matmul %18, %20, %cst_19 {dimension_numbers = #tpu.dot_dimension_numbers<[1], [0], [0], [1], [0, 0, 1, 1], [], []>} : vector<3x512xbf16>, vector<512x256xbf16>, vector<3x256xf32> -> vector<3x256xf32>
    %22 = arith.addf %8, %21 : vector<3x256xf32>
    %c4 = arith.constant 4 : index
    %c0_20 = arith.constant 0 : index
    %c0_21 = arith.constant 0 : index
    %23 = vector.load %arg3[%c4, %c0_20, %c0_21] : memref<9x512x256xbf16, #tpu.memory_space<vmem>>, vector<1x512x256xbf16>
    %24 = vector.shape_cast %23 : vector<1x512x256xbf16> to vector<512x256xbf16>
    %cst_22 = arith.constant dense<0.000000e+00> : vector<3x256xf32>
    %25 = tpu.matmul %18, %24, %cst_22 {dimension_numbers = #tpu.dot_dimension_numbers<[1], [0], [0], [1], [0, 0, 1, 1], [], []>} : vector<3x512xbf16>, vector<512x256xbf16>, vector<3x256xf32> -> vector<3x256xf32>
    %26 = arith.addf %12, %25 : vector<3x256xf32>
    %c5 = arith.constant 5 : index
    %c0_23 = arith.constant 0 : index
    %c0_24 = arith.constant 0 : index
    %27 = vector.load %arg3[%c5, %c0_23, %c0_24] : memref<9x512x256xbf16, #tpu.memory_space<vmem>>, vector<1x512x256xbf16>
    %28 = vector.shape_cast %27 : vector<1x512x256xbf16> to vector<512x256xbf16>
    %cst_25 = arith.constant dense<0.000000e+00> : vector<3x256xf32>
    %29 = tpu.matmul %18, %28, %cst_25 {dimension_numbers = #tpu.dot_dimension_numbers<[1], [0], [0], [1], [0, 0, 1, 1], [], []>} : vector<3x512xbf16>, vector<512x256xbf16>, vector<3x256xf32> -> vector<3x256xf32>
    %30 = arith.addf %16, %29 : vector<3x256xf32>
    %c0_26 = arith.constant 0 : index
    %c6 = arith.constant 6 : index
    %c0_27 = arith.constant 0 : index
    %31 = vector.load %arg2[%c0_26, %c6, %c0_27] : memref<1x9x512xbf16, #tpu.memory_space<vmem>>, vector<1x3x512xbf16>
    %32 = vector.shape_cast %31 : vector<1x3x512xbf16> to vector<3x512xbf16>
    %c6_28 = arith.constant 6 : index
    %c0_29 = arith.constant 0 : index
    %c0_30 = arith.constant 0 : index
    %33 = vector.load %arg3[%c6_28, %c0_29, %c0_30] : memref<9x512x256xbf16, #tpu.memory_space<vmem>>, vector<1x512x256xbf16>
    %34 = vector.shape_cast %33 : vector<1x512x256xbf16> to vector<512x256xbf16>
    %cst_31 = arith.constant dense<0.000000e+00> : vector<3x256xf32>
    %35 = tpu.matmul %32, %34, %cst_31 {dimension_numbers = #tpu.dot_dimension_numbers<[1], [0], [0], [1], [0, 0, 1, 1], [], []>} : vector<3x512xbf16>, vector<512x256xbf16>, vector<3x256xf32> -> vector<3x256xf32>
    %36 = arith.addf %22, %35 : vector<3x256xf32>
    %c7 = arith.constant 7 : index
    %c0_32 = arith.constant 0 : index
    %c0_33 = arith.constant 0 : index
    %37 = vector.load %arg3[%c7, %c0_32, %c0_33] : memref<9x512x256xbf16, #tpu.memory_space<vmem>>, vector<1x512x256xbf16>
    %38 = vector.shape_cast %37 : vector<1x512x256xbf16> to vector<512x256xbf16>
    %cst_34 = arith.constant dense<0.000000e+00> : vector<3x256xf32>
    %39 = tpu.matmul %32, %38, %cst_34 {dimension_numbers = #tpu.dot_dimension_numbers<[1], [0], [0], [1], [0, 0, 1, 1], [], []>} : vector<3x512xbf16>, vector<512x256xbf16>, vector<3x256xf32> -> vector<3x256xf32>
    %40 = arith.addf %26, %39 : vector<3x256xf32>
    %c8 = arith.constant 8 : index
    %c0_35 = arith.constant 0 : index
    %c0_36 = arith.constant 0 : index
    %41 = vector.load %arg3[%c8, %c0_35, %c0_36] : memref<9x512x256xbf16, #tpu.memory_space<vmem>>, vector<1x512x256xbf16>
    %42 = vector.shape_cast %41 : vector<1x512x256xbf16> to vector<512x256xbf16>
    %cst_37 = arith.constant dense<0.000000e+00> : vector<3x256xf32>
    %43 = tpu.matmul %32, %42, %cst_37 {dimension_numbers = #tpu.dot_dimension_numbers<[1], [0], [0], [1], [0, 0, 1, 1], [], []>} : vector<3x512xbf16>, vector<512x256xbf16>, vector<3x256xf32> -> vector<3x256xf32>
    %44 = arith.addf %30, %43 : vector<3x256xf32>
    %cst_38 = arith.constant 0.000000e+00 : f32
    %45 = vector.broadcast %cst_38 : f32 to vector<1x256xf32>
    %cst_39 = arith.constant 0.000000e+00 : f32
    %46 = vector.broadcast %cst_39 : f32 to vector<1x256xf32>
    %47 = vector.extract_strided_slice %36 {offsets = [0, 0], sizes = [1, 256], strides = [1, 1]} : vector<3x256xf32> to vector<1x256xf32>
    %48 = vector.extract_strided_slice %40 {offsets = [1, 0], sizes = [1, 256], strides = [1, 1]} : vector<3x256xf32> to vector<1x256xf32>
    %49 = arith.addf %47, %48 : vector<1x256xf32>
    %50 = vector.extract_strided_slice %44 {offsets = [2, 0], sizes = [1, 256], strides = [1, 1]} : vector<3x256xf32> to vector<1x256xf32>
    %51 = arith.addf %49, %50 : vector<1x256xf32>
    %52 = arith.truncf %51 : vector<1x256xf32> to vector<1x256xbf16>
    %c0_40 = arith.constant 0 : index
    %c0_41 = arith.constant 0 : index
    %c0_42 = arith.constant 0 : index
    %c0_43 = arith.constant 0 : index
    %53 = vector.load %arg4[%c0_40, %c0_41, %c0_42, %c0_43] : memref<1x1x1x256xbf16, #tpu.memory_space<vmem>>, vector<1x1x1x256xbf16>
    %54 = vector.shape_cast %53 : vector<1x1x1x256xbf16> to vector<1x256xbf16>
    %55 = vector.shape_cast %52 : vector<1x256xbf16> to vector<1x1x1x256xbf16>
    tpu.vector_store %arg4[%c0_40, %c0_41, %c0_42, %c0_43], %55 {strides = array<i32>} : memref<1x1x1x256xbf16, #tpu.memory_space<vmem>>, vector<1x1x1x256xbf16>,
    %cst_44 = arith.constant dense<0.000000e+00> : vector<256xf32>
    %56 = vector.multi_reduction <add>, %51, %cst_44 [0] : vector<1x256xf32> to vector<256xf32>
    %57 = vector.shape_cast %56 : vector<256xf32> to vector<1x256xf32>
    %58 = arith.addf %45, %57 : vector<1x256xf32>
    %59 = arith.mulf %51, %51 : vector<1x256xf32>
    %cst_45 = arith.constant dense<0.000000e+00> : vector<256xf32>
    %60 = vector.multi_reduction <add>, %59, %cst_45 [0] : vector<1x256xf32> to vector<256xf32>
    %61 = vector.shape_cast %60 : vector<256xf32> to vector<1x256xf32>
    %62 = arith.addf %46, %61 : vector<1x256xf32>
    %c0_46 = arith.constant 0 : index
    %c0_47 = arith.constant 0 : index
    %c0_48 = arith.constant 0 : index
    %63 = vector.load %arg5[%c0_46, %c0_47, %c0_48] : memref<1x2x256xf32, #tpu.memory_space<vmem>>, vector<1x1x256xf32>
    %64 = vector.shape_cast %63 : vector<1x1x256xf32> to vector<1x256xf32>
    %65 = vector.shape_cast %58 : vector<1x256xf32> to vector<1x1x256xf32>
    tpu.vector_store %arg5[%c0_46, %c0_47, %c0_48], %65 {strides = array<i32>} : memref<1x2x256xf32, #tpu.memory_space<vmem>>, vector<1x1x256xf32>,
    %c0_49 = arith.constant 0 : index
    %c1_50 = arith.constant 1 : index
    %c0_51 = arith.constant 0 : index
    %66 = vector.load %arg5[%c0_49, %c1_50, %c0_51] : memref<1x2x256xf32, #tpu.memory_space<vmem>>, vector<1x1x256xf32>
    %67 = vector.shape_cast %66 : vector<1x1x256xf32> to vector<1x256xf32>
    %68 = vector.shape_cast %62 : vector<1x256xf32> to vector<1x1x256xf32>
    tpu.vector_store %arg5[%c0_49, %c1_50, %c0_51], %68 {strides = array<i32>} : memref<1x2x256xf32, #tpu.memory_space<vmem>>, vector<1x1x256xf32>,
    return
  }
  func.func @transform_0(%arg0: i32, %arg1: i32) -> (i32, i32, i32) {
    %c0_i32 = arith.constant 0 : i32
    %c0_i32_0 = arith.constant 0 : i32
    %c0_i32_1 = arith.constant 0 : i32
    return %arg1, %c0_i32, %c0_i32_0 : i32, i32, i32
  }
  func.func @transform_1(%arg0: i32, %arg1: i32) -> (i32, i32, i32) {
    %c0_i32 = arith.constant 0 : i32
    %c0_i32_0 = arith.constant 0 : i32
    %c0_i32_1 = arith.constant 0 : i32
    return %c0_i32, %c0_i32_0, %arg0 : i32, i32, i32
  }
  func.func @transform_2(%arg0: i32, %arg1: i32) -> (i32, i32, i32, i32) {
    %c0_i32 = arith.constant 0 : i32
    %c0_i32_0 = arith.constant 0 : i32
    %c0_i32_1 = arith.constant 0 : i32
    return %arg1, %c0_i32, %c0_i32_0, %arg0 : i32, i32, i32, i32
  }
  func.func @transform_3(%arg0: i32, %arg1: i32) -> (i32, i32, i32) {
    %c0_i32 = arith.constant 0 : i32
    %c0_i32_0 = arith.constant 0 : i32
    return %arg1, %c0_i32, %arg0 : i32, i32, i32
  }
}

module attributes {stable_mosaic.version = 11 : i64} {
  func.func @_bn_relu_kernel(%arg0: i32, %arg1: memref<2x1024xbf16, #tpu.memory_space<vmem>>, %arg2: memref<1x1024xf32, #tpu.memory_space<vmem>>, %arg3: memref<1x1024xf32, #tpu.memory_space<vmem>>, %arg4: memref<2x1024xbf16, #tpu.memory_space<vmem>>) attributes {dimension_semantics = [#tpu.dimension_semantics<parallel>], iteration_bounds = array<i64: 1>, scalar_prefetch = 0 : i64, scratch_operands = 0 : i64, tpu.core_type = #tpu.core_type<tc>, window_params = [{transform_indices = @transform_0, window_bounds = array<i64: 2, 1024>}, {pipeline_mode = #tpu.pipeline_mode<synchronous>, transform_indices = @transform_1, window_bounds = array<i64: 1, 1024>}, {pipeline_mode = #tpu.pipeline_mode<synchronous>, transform_indices = @transform_2, window_bounds = array<i64: 1, 1024>}, {transform_indices = @transform_3, window_bounds = array<i64: 2, 1024>}]} {
    %c0 = arith.constant 0 : index
    %c0_0 = arith.constant 0 : index
    %0 = vector.load %arg1[%c0, %c0_0] : memref<2x1024xbf16, #tpu.memory_space<vmem>>, vector<2x1024xbf16>
    %1 = arith.extf %0 : vector<2x1024xbf16> to vector<2x1024xf32>
    %c0_1 = arith.constant 0 : index
    %c0_2 = arith.constant 0 : index
    %2 = vector.load %arg2[%c0_1, %c0_2] : memref<1x1024xf32, #tpu.memory_space<vmem>>, vector<1x1024xf32>
    %3 = vector.broadcast %2 : vector<1x1024xf32> to vector<2x1024xf32>
    %4 = arith.mulf %1, %3 : vector<2x1024xf32>
    %c0_3 = arith.constant 0 : index
    %c0_4 = arith.constant 0 : index
    %5 = vector.load %arg3[%c0_3, %c0_4] : memref<1x1024xf32, #tpu.memory_space<vmem>>, vector<1x1024xf32>
    %6 = vector.broadcast %5 : vector<1x1024xf32> to vector<2x1024xf32>
    %7 = arith.addf %4, %6 : vector<2x1024xf32>
    %cst = arith.constant 0.000000e+00 : f32
    %8 = vector.broadcast %cst : f32 to vector<2x1024xf32>
    %9 = arith.maximumf %7, %8 : vector<2x1024xf32>
    %10 = arith.truncf %9 : vector<2x1024xf32> to vector<2x1024xbf16>
    %c0_5 = arith.constant 0 : index
    %c0_6 = arith.constant 0 : index
    %11 = vector.load %arg4[%c0_5, %c0_6] : memref<2x1024xbf16, #tpu.memory_space<vmem>>, vector<2x1024xbf16>
    tpu.vector_store %arg4[%c0_5, %c0_6], %10 {strides = array<i32>} : memref<2x1024xbf16, #tpu.memory_space<vmem>>, vector<2x1024xbf16>,
    return
  }
  func.func @transform_0(%arg0: i32) -> (i32, i32) {
    %c0_i32 = arith.constant 0 : i32
    %c0_i32_0 = arith.constant 0 : i32
    return %arg0, %c0_i32 : i32, i32
  }
  func.func @transform_1(%arg0: i32) -> (i32, i32) {
    %c0_i32 = arith.constant 0 : i32
    %c0_i32_0 = arith.constant 0 : i32
    %c0_i32_1 = arith.constant 0 : i32
    return %c0_i32, %c0_i32_0 : i32, i32
  }
  func.func @transform_2(%arg0: i32) -> (i32, i32) {
    %c0_i32 = arith.constant 0 : i32
    %c0_i32_0 = arith.constant 0 : i32
    %c0_i32_1 = arith.constant 0 : i32
    return %c0_i32, %c0_i32_0 : i32, i32
  }
  func.func @transform_3(%arg0: i32) -> (i32, i32) {
    %c0_i32 = arith.constant 0 : i32
    %c0_i32_0 = arith.constant 0 : i32
    return %arg0, %c0_i32 : i32, i32
  }
}

module attributes {stable_mosaic.version = 11 : i64} {
  func.func @kernel(%arg0: i32, %arg1: i32, %arg2: memref<1x9x1024xbf16, #tpu.memory_space<vmem>>, %arg3: memref<9x1024x256xbf16, #tpu.memory_space<vmem>>, %arg4: memref<1x1x1x256xbf16, #tpu.memory_space<vmem>>, %arg5: memref<1x2x256xf32, #tpu.memory_space<vmem>>) attributes {dimension_semantics = [#tpu.dimension_semantics<parallel>, #tpu.dimension_semantics<parallel>], iteration_bounds = array<i64: 4, 2>, scalar_prefetch = 0 : i64, scratch_operands = 0 : i64, tpu.core_type = #tpu.core_type<tc>, window_params = [{transform_indices = @transform_0, window_bounds = array<i64: 1, 9, 1024>}, {transform_indices = @transform_1, window_bounds = array<i64: 9, 1024, 256>}, {transform_indices = @transform_2, window_bounds = array<i64: 1, 1, 1, 256>}, {transform_indices = @transform_3, window_bounds = array<i64: 1, 2, 256>}]} {
    %cst = arith.constant 0.000000e+00 : f32
    %0 = vector.broadcast %cst : f32 to vector<3x256xf32>
    %cst_0 = arith.constant 0.000000e+00 : f32
    %1 = vector.broadcast %cst_0 : f32 to vector<3x256xf32>
    %cst_1 = arith.constant 0.000000e+00 : f32
    %2 = vector.broadcast %cst_1 : f32 to vector<3x256xf32>
    %c0 = arith.constant 0 : index
    %c0_2 = arith.constant 0 : index
    %c0_3 = arith.constant 0 : index
    %3 = vector.load %arg2[%c0, %c0_2, %c0_3] : memref<1x9x1024xbf16, #tpu.memory_space<vmem>>, vector<1x3x1024xbf16>
    %4 = vector.shape_cast %3 : vector<1x3x1024xbf16> to vector<3x1024xbf16>
    %c0_4 = arith.constant 0 : index
    %c0_5 = arith.constant 0 : index
    %c0_6 = arith.constant 0 : index
    %5 = vector.load %arg3[%c0_4, %c0_5, %c0_6] : memref<9x1024x256xbf16, #tpu.memory_space<vmem>>, vector<1x1024x256xbf16>
    %6 = vector.shape_cast %5 : vector<1x1024x256xbf16> to vector<1024x256xbf16>
    %cst_7 = arith.constant dense<0.000000e+00> : vector<3x256xf32>
    %7 = tpu.matmul %4, %6, %cst_7 {dimension_numbers = #tpu.dot_dimension_numbers<[1], [0], [0], [1], [0, 0, 1, 1], [], []>} : vector<3x1024xbf16>, vector<1024x256xbf16>, vector<3x256xf32> -> vector<3x256xf32>
    %8 = arith.addf %0, %7 : vector<3x256xf32>
    %c1 = arith.constant 1 : index
    %c0_8 = arith.constant 0 : index
    %c0_9 = arith.constant 0 : index
    %9 = vector.load %arg3[%c1, %c0_8, %c0_9] : memref<9x1024x256xbf16, #tpu.memory_space<vmem>>, vector<1x1024x256xbf16>
    %10 = vector.shape_cast %9 : vector<1x1024x256xbf16> to vector<1024x256xbf16>
    %cst_10 = arith.constant dense<0.000000e+00> : vector<3x256xf32>
    %11 = tpu.matmul %4, %10, %cst_10 {dimension_numbers = #tpu.dot_dimension_numbers<[1], [0], [0], [1], [0, 0, 1, 1], [], []>} : vector<3x1024xbf16>, vector<1024x256xbf16>, vector<3x256xf32> -> vector<3x256xf32>
    %12 = arith.addf %1, %11 : vector<3x256xf32>
    %c2 = arith.constant 2 : index
    %c0_11 = arith.constant 0 : index
    %c0_12 = arith.constant 0 : index
    %13 = vector.load %arg3[%c2, %c0_11, %c0_12] : memref<9x1024x256xbf16, #tpu.memory_space<vmem>>, vector<1x1024x256xbf16>
    %14 = vector.shape_cast %13 : vector<1x1024x256xbf16> to vector<1024x256xbf16>
    %cst_13 = arith.constant dense<0.000000e+00> : vector<3x256xf32>
    %15 = tpu.matmul %4, %14, %cst_13 {dimension_numbers = #tpu.dot_dimension_numbers<[1], [0], [0], [1], [0, 0, 1, 1], [], []>} : vector<3x1024xbf16>, vector<1024x256xbf16>, vector<3x256xf32> -> vector<3x256xf32>
    %16 = arith.addf %2, %15 : vector<3x256xf32>
    %c0_14 = arith.constant 0 : index
    %c3 = arith.constant 3 : index
    %c0_15 = arith.constant 0 : index
    %17 = vector.load %arg2[%c0_14, %c3, %c0_15] : memref<1x9x1024xbf16, #tpu.memory_space<vmem>>, vector<1x3x1024xbf16>
    %18 = vector.shape_cast %17 : vector<1x3x1024xbf16> to vector<3x1024xbf16>
    %c3_16 = arith.constant 3 : index
    %c0_17 = arith.constant 0 : index
    %c0_18 = arith.constant 0 : index
    %19 = vector.load %arg3[%c3_16, %c0_17, %c0_18] : memref<9x1024x256xbf16, #tpu.memory_space<vmem>>, vector<1x1024x256xbf16>
    %20 = vector.shape_cast %19 : vector<1x1024x256xbf16> to vector<1024x256xbf16>
    %cst_19 = arith.constant dense<0.000000e+00> : vector<3x256xf32>
    %21 = tpu.matmul %18, %20, %cst_19 {dimension_numbers = #tpu.dot_dimension_numbers<[1], [0], [0], [1], [0, 0, 1, 1], [], []>} : vector<3x1024xbf16>, vector<1024x256xbf16>, vector<3x256xf32> -> vector<3x256xf32>
    %22 = arith.addf %8, %21 : vector<3x256xf32>
    %c4 = arith.constant 4 : index
    %c0_20 = arith.constant 0 : index
    %c0_21 = arith.constant 0 : index
    %23 = vector.load %arg3[%c4, %c0_20, %c0_21] : memref<9x1024x256xbf16, #tpu.memory_space<vmem>>, vector<1x1024x256xbf16>
    %24 = vector.shape_cast %23 : vector<1x1024x256xbf16> to vector<1024x256xbf16>
    %cst_22 = arith.constant dense<0.000000e+00> : vector<3x256xf32>
    %25 = tpu.matmul %18, %24, %cst_22 {dimension_numbers = #tpu.dot_dimension_numbers<[1], [0], [0], [1], [0, 0, 1, 1], [], []>} : vector<3x1024xbf16>, vector<1024x256xbf16>, vector<3x256xf32> -> vector<3x256xf32>
    %26 = arith.addf %12, %25 : vector<3x256xf32>
    %c5 = arith.constant 5 : index
    %c0_23 = arith.constant 0 : index
    %c0_24 = arith.constant 0 : index
    %27 = vector.load %arg3[%c5, %c0_23, %c0_24] : memref<9x1024x256xbf16, #tpu.memory_space<vmem>>, vector<1x1024x256xbf16>
    %28 = vector.shape_cast %27 : vector<1x1024x256xbf16> to vector<1024x256xbf16>
    %cst_25 = arith.constant dense<0.000000e+00> : vector<3x256xf32>
    %29 = tpu.matmul %18, %28, %cst_25 {dimension_numbers = #tpu.dot_dimension_numbers<[1], [0], [0], [1], [0, 0, 1, 1], [], []>} : vector<3x1024xbf16>, vector<1024x256xbf16>, vector<3x256xf32> -> vector<3x256xf32>
    %30 = arith.addf %16, %29 : vector<3x256xf32>
    %c0_26 = arith.constant 0 : index
    %c6 = arith.constant 6 : index
    %c0_27 = arith.constant 0 : index
    %31 = vector.load %arg2[%c0_26, %c6, %c0_27] : memref<1x9x1024xbf16, #tpu.memory_space<vmem>>, vector<1x3x1024xbf16>
    %32 = vector.shape_cast %31 : vector<1x3x1024xbf16> to vector<3x1024xbf16>
    %c6_28 = arith.constant 6 : index
    %c0_29 = arith.constant 0 : index
    %c0_30 = arith.constant 0 : index
    %33 = vector.load %arg3[%c6_28, %c0_29, %c0_30] : memref<9x1024x256xbf16, #tpu.memory_space<vmem>>, vector<1x1024x256xbf16>
    %34 = vector.shape_cast %33 : vector<1x1024x256xbf16> to vector<1024x256xbf16>
    %cst_31 = arith.constant dense<0.000000e+00> : vector<3x256xf32>
    %35 = tpu.matmul %32, %34, %cst_31 {dimension_numbers = #tpu.dot_dimension_numbers<[1], [0], [0], [1], [0, 0, 1, 1], [], []>} : vector<3x1024xbf16>, vector<1024x256xbf16>, vector<3x256xf32> -> vector<3x256xf32>
    %36 = arith.addf %22, %35 : vector<3x256xf32>
    %c7 = arith.constant 7 : index
    %c0_32 = arith.constant 0 : index
    %c0_33 = arith.constant 0 : index
    %37 = vector.load %arg3[%c7, %c0_32, %c0_33] : memref<9x1024x256xbf16, #tpu.memory_space<vmem>>, vector<1x1024x256xbf16>
    %38 = vector.shape_cast %37 : vector<1x1024x256xbf16> to vector<1024x256xbf16>
    %cst_34 = arith.constant dense<0.000000e+00> : vector<3x256xf32>
    %39 = tpu.matmul %32, %38, %cst_34 {dimension_numbers = #tpu.dot_dimension_numbers<[1], [0], [0], [1], [0, 0, 1, 1], [], []>} : vector<3x1024xbf16>, vector<1024x256xbf16>, vector<3x256xf32> -> vector<3x256xf32>
    %40 = arith.addf %26, %39 : vector<3x256xf32>
    %c8 = arith.constant 8 : index
    %c0_35 = arith.constant 0 : index
    %c0_36 = arith.constant 0 : index
    %41 = vector.load %arg3[%c8, %c0_35, %c0_36] : memref<9x1024x256xbf16, #tpu.memory_space<vmem>>, vector<1x1024x256xbf16>
    %42 = vector.shape_cast %41 : vector<1x1024x256xbf16> to vector<1024x256xbf16>
    %cst_37 = arith.constant dense<0.000000e+00> : vector<3x256xf32>
    %43 = tpu.matmul %32, %42, %cst_37 {dimension_numbers = #tpu.dot_dimension_numbers<[1], [0], [0], [1], [0, 0, 1, 1], [], []>} : vector<3x1024xbf16>, vector<1024x256xbf16>, vector<3x256xf32> -> vector<3x256xf32>
    %44 = arith.addf %30, %43 : vector<3x256xf32>
    %cst_38 = arith.constant 0.000000e+00 : f32
    %45 = vector.broadcast %cst_38 : f32 to vector<1x256xf32>
    %cst_39 = arith.constant 0.000000e+00 : f32
    %46 = vector.broadcast %cst_39 : f32 to vector<1x256xf32>
    %47 = vector.extract_strided_slice %36 {offsets = [0, 0], sizes = [1, 256], strides = [1, 1]} : vector<3x256xf32> to vector<1x256xf32>
    %48 = vector.extract_strided_slice %40 {offsets = [1, 0], sizes = [1, 256], strides = [1, 1]} : vector<3x256xf32> to vector<1x256xf32>
    %49 = arith.addf %47, %48 : vector<1x256xf32>
    %50 = vector.extract_strided_slice %44 {offsets = [2, 0], sizes = [1, 256], strides = [1, 1]} : vector<3x256xf32> to vector<1x256xf32>
    %51 = arith.addf %49, %50 : vector<1x256xf32>
    %52 = arith.truncf %51 : vector<1x256xf32> to vector<1x256xbf16>
    %c0_40 = arith.constant 0 : index
    %c0_41 = arith.constant 0 : index
    %c0_42 = arith.constant 0 : index
    %c0_43 = arith.constant 0 : index
    %53 = vector.load %arg4[%c0_40, %c0_41, %c0_42, %c0_43] : memref<1x1x1x256xbf16, #tpu.memory_space<vmem>>, vector<1x1x1x256xbf16>
    %54 = vector.shape_cast %53 : vector<1x1x1x256xbf16> to vector<1x256xbf16>
    %55 = vector.shape_cast %52 : vector<1x256xbf16> to vector<1x1x1x256xbf16>
    tpu.vector_store %arg4[%c0_40, %c0_41, %c0_42, %c0_43], %55 {strides = array<i32>} : memref<1x1x1x256xbf16, #tpu.memory_space<vmem>>, vector<1x1x1x256xbf16>,
    %cst_44 = arith.constant dense<0.000000e+00> : vector<256xf32>
    %56 = vector.multi_reduction <add>, %51, %cst_44 [0] : vector<1x256xf32> to vector<256xf32>
    %57 = vector.shape_cast %56 : vector<256xf32> to vector<1x256xf32>
    %58 = arith.addf %45, %57 : vector<1x256xf32>
    %59 = arith.mulf %51, %51 : vector<1x256xf32>
    %cst_45 = arith.constant dense<0.000000e+00> : vector<256xf32>
    %60 = vector.multi_reduction <add>, %59, %cst_45 [0] : vector<1x256xf32> to vector<256xf32>
    %61 = vector.shape_cast %60 : vector<256xf32> to vector<1x256xf32>
    %62 = arith.addf %46, %61 : vector<1x256xf32>
    %c0_46 = arith.constant 0 : index
    %c0_47 = arith.constant 0 : index
    %c0_48 = arith.constant 0 : index
    %63 = vector.load %arg5[%c0_46, %c0_47, %c0_48] : memref<1x2x256xf32, #tpu.memory_space<vmem>>, vector<1x1x256xf32>
    %64 = vector.shape_cast %63 : vector<1x1x256xf32> to vector<1x256xf32>
    %65 = vector.shape_cast %58 : vector<1x256xf32> to vector<1x1x256xf32>
    tpu.vector_store %arg5[%c0_46, %c0_47, %c0_48], %65 {strides = array<i32>} : memref<1x2x256xf32, #tpu.memory_space<vmem>>, vector<1x1x256xf32>,
    %c0_49 = arith.constant 0 : index
    %c1_50 = arith.constant 1 : index
    %c0_51 = arith.constant 0 : index
    %66 = vector.load %arg5[%c0_49, %c1_50, %c0_51] : memref<1x2x256xf32, #tpu.memory_space<vmem>>, vector<1x1x256xf32>
    %67 = vector.shape_cast %66 : vector<1x1x256xf32> to vector<1x256xf32>
    %68 = vector.shape_cast %62 : vector<1x256xf32> to vector<1x1x256xf32>
    tpu.vector_store %arg5[%c0_49, %c1_50, %c0_51], %68 {strides = array<i32>} : memref<1x2x256xf32, #tpu.memory_space<vmem>>, vector<1x1x256xf32>,
    return
  }
  func.func @transform_0(%arg0: i32, %arg1: i32) -> (i32, i32, i32) {
    %c0_i32 = arith.constant 0 : i32
    %c0_i32_0 = arith.constant 0 : i32
    %c0_i32_1 = arith.constant 0 : i32
    return %arg1, %c0_i32, %c0_i32_0 : i32, i32, i32
  }
  func.func @transform_1(%arg0: i32, %arg1: i32) -> (i32, i32, i32) {
    %c0_i32 = arith.constant 0 : i32
    %c0_i32_0 = arith.constant 0 : i32
    %c0_i32_1 = arith.constant 0 : i32
    return %c0_i32, %c0_i32_0, %arg0 : i32, i32, i32
  }
  func.func @transform_2(%arg0: i32, %arg1: i32) -> (i32, i32, i32, i32) {
    %c0_i32 = arith.constant 0 : i32
    %c0_i32_0 = arith.constant 0 : i32
    %c0_i32_1 = arith.constant 0 : i32
    return %arg1, %c0_i32, %c0_i32_0, %arg0 : i32, i32, i32, i32
  }
  func.func @transform_3(%arg0: i32, %arg1: i32) -> (i32, i32, i32) {
    %c0_i32 = arith.constant 0 : i32
    %c0_i32_0 = arith.constant 0 : i32
    return %arg1, %c0_i32, %arg0 : i32, i32, i32
  }
}

module attributes {stable_mosaic.version = 11 : i64} {
  func.func @kernel(%arg0: i32, %arg1: memref<2x1024xbf16, #tpu.memory_space<vmem>>, %arg2: memref<2x1024x1024xbf16, #tpu.memory_space<vmem>>, %arg3: memref<1x1024xf32, #tpu.memory_space<vmem>>, %arg4: memref<2x2x1x1024xbf16, #tpu.memory_space<vmem>>) attributes {dimension_semantics = [#tpu.dimension_semantics<parallel>], iteration_bounds = array<i64: 1>, scalar_prefetch = 0 : i64, scratch_operands = 0 : i64, tpu.core_type = #tpu.core_type<tc>, window_params = [{transform_indices = @transform_0, window_bounds = array<i64: 2, 1024>}, {pipeline_mode = #tpu.pipeline_mode<synchronous>, transform_indices = @transform_1, window_bounds = array<i64: 2, 1024, 1024>}, {pipeline_mode = #tpu.pipeline_mode<synchronous>, transform_indices = @transform_2, window_bounds = array<i64: 1, 1024>}, {transform_indices = @transform_3, window_bounds = array<i64: 2, 2, 1, 1024>}]} {
    %c0 = arith.constant 0 : index
    %c0_0 = arith.constant 0 : index
    %0 = vector.load %arg1[%c0, %c0_0] : memref<2x1024xbf16, #tpu.memory_space<vmem>>, vector<2x1024xbf16>
    %c0_1 = arith.constant 0 : index
    %c0_2 = arith.constant 0 : index
    %1 = vector.load %arg3[%c0_1, %c0_2] : memref<1x1024xf32, #tpu.memory_space<vmem>>, vector<1x1024xf32>
    %c0_3 = arith.constant 0 : index
    %c0_4 = arith.constant 0 : index
    %c0_5 = arith.constant 0 : index
    %2 = vector.load %arg2[%c0_3, %c0_4, %c0_5] : memref<2x1024x1024xbf16, #tpu.memory_space<vmem>>, vector<1x1024x1024xbf16>
    %3 = vector.shape_cast %2 : vector<1x1024x1024xbf16> to vector<1024x1024xbf16>
    %cst = arith.constant dense<0.000000e+00> : vector<2x1024xf32>
    %4 = tpu.matmul %0, %3, %cst {dimension_numbers = #tpu.dot_dimension_numbers<[1], [0], [0], [1], [0, 0, 1, 1], [], []>} : vector<2x1024xbf16>, vector<1024x1024xbf16>, vector<2x1024xf32> -> vector<2x1024xf32>
    %5 = vector.broadcast %1 : vector<1x1024xf32> to vector<2x1024xf32>
    %6 = arith.addf %4, %5 : vector<2x1024xf32>
    %7 = arith.truncf %6 : vector<2x1024xf32> to vector<2x1024xbf16>
    %8 = vector.extract_strided_slice %7 {offsets = [0, 0], sizes = [1, 1024], strides = [1, 1]} : vector<2x1024xbf16> to vector<1x1024xbf16>
    %c0_6 = arith.constant 0 : index
    %c0_7 = arith.constant 0 : index
    %c0_8 = arith.constant 0 : index
    %c0_9 = arith.constant 0 : index
    %9 = vector.load %arg4[%c0_6, %c0_7, %c0_8, %c0_9] : memref<2x2x1x1024xbf16, #tpu.memory_space<vmem>>, vector<1x1x1x1024xbf16>
    %10 = vector.shape_cast %9 : vector<1x1x1x1024xbf16> to vector<1x1024xbf16>
    %11 = vector.shape_cast %8 : vector<1x1024xbf16> to vector<1x1x1x1024xbf16>
    tpu.vector_store %arg4[%c0_6, %c0_7, %c0_8, %c0_9], %11 {strides = array<i32>} : memref<2x2x1x1024xbf16, #tpu.memory_space<vmem>>, vector<1x1x1x1024xbf16>,
    %12 = vector.extract_strided_slice %7 {offsets = [1, 0], sizes = [1, 1024], strides = [1, 1]} : vector<2x1024xbf16> to vector<1x1024xbf16>
    %c1 = arith.constant 1 : index
    %c0_10 = arith.constant 0 : index
    %c0_11 = arith.constant 0 : index
    %c0_12 = arith.constant 0 : index
    %13 = vector.load %arg4[%c1, %c0_10, %c0_11, %c0_12] : memref<2x2x1x1024xbf16, #tpu.memory_space<vmem>>, vector<1x1x1x1024xbf16>
    %14 = vector.shape_cast %13 : vector<1x1x1x1024xbf16> to vector<1x1024xbf16>
    %15 = vector.shape_cast %12 : vector<1x1024xbf16> to vector<1x1x1x1024xbf16>
    tpu.vector_store %arg4[%c1, %c0_10, %c0_11, %c0_12], %15 {strides = array<i32>} : memref<2x2x1x1024xbf16, #tpu.memory_space<vmem>>, vector<1x1x1x1024xbf16>,
    %c1_13 = arith.constant 1 : index
    %c0_14 = arith.constant 0 : index
    %c0_15 = arith.constant 0 : index
    %16 = vector.load %arg2[%c1_13, %c0_14, %c0_15] : memref<2x1024x1024xbf16, #tpu.memory_space<vmem>>, vector<1x1024x1024xbf16>
    %17 = vector.shape_cast %16 : vector<1x1024x1024xbf16> to vector<1024x1024xbf16>
    %cst_16 = arith.constant dense<0.000000e+00> : vector<2x1024xf32>
    %18 = tpu.matmul %0, %17, %cst_16 {dimension_numbers = #tpu.dot_dimension_numbers<[1], [0], [0], [1], [0, 0, 1, 1], [], []>} : vector<2x1024xbf16>, vector<1024x1024xbf16>, vector<2x1024xf32> -> vector<2x1024xf32>
    %19 = vector.broadcast %1 : vector<1x1024xf32> to vector<2x1024xf32>
    %20 = arith.addf %18, %19 : vector<2x1024xf32>
    %21 = arith.truncf %20 : vector<2x1024xf32> to vector<2x1024xbf16>
    %22 = vector.extract_strided_slice %21 {offsets = [0, 0], sizes = [1, 1024], strides = [1, 1]} : vector<2x1024xbf16> to vector<1x1024xbf16>
    %c0_17 = arith.constant 0 : index
    %c1_18 = arith.constant 1 : index
    %c0_19 = arith.constant 0 : index
    %c0_20 = arith.constant 0 : index
    %23 = vector.load %arg4[%c0_17, %c1_18, %c0_19, %c0_20] : memref<2x2x1x1024xbf16, #tpu.memory_space<vmem>>, vector<1x1x1x1024xbf16>
    %24 = vector.shape_cast %23 : vector<1x1x1x1024xbf16> to vector<1x1024xbf16>
    %25 = vector.shape_cast %22 : vector<1x1024xbf16> to vector<1x1x1x1024xbf16>
    tpu.vector_store %arg4[%c0_17, %c1_18, %c0_19, %c0_20], %25 {strides = array<i32>} : memref<2x2x1x1024xbf16, #tpu.memory_space<vmem>>, vector<1x1x1x1024xbf16>,
    %26 = vector.extract_strided_slice %21 {offsets = [1, 0], sizes = [1, 1024], strides = [1, 1]} : vector<2x1024xbf16> to vector<1x1024xbf16>
    %c1_21 = arith.constant 1 : index
    %c1_22 = arith.constant 1 : index
    %c0_23 = arith.constant 0 : index
    %c0_24 = arith.constant 0 : index
    %27 = vector.load %arg4[%c1_21, %c1_22, %c0_23, %c0_24] : memref<2x2x1x1024xbf16, #tpu.memory_space<vmem>>, vector<1x1x1x1024xbf16>
    %28 = vector.shape_cast %27 : vector<1x1x1x1024xbf16> to vector<1x1024xbf16>
    %29 = vector.shape_cast %26 : vector<1x1024xbf16> to vector<1x1x1x1024xbf16>
    tpu.vector_store %arg4[%c1_21, %c1_22, %c0_23, %c0_24], %29 {strides = array<i32>} : memref<2x2x1x1024xbf16, #tpu.memory_space<vmem>>, vector<1x1x1x1024xbf16>,
    return
  }
  func.func @transform_0(%arg0: i32) -> (i32, i32) {
    %c0_i32 = arith.constant 0 : i32
    %c0_i32_0 = arith.constant 0 : i32
    return %arg0, %c0_i32 : i32, i32
  }
  func.func @transform_1(%arg0: i32) -> (i32, i32, i32) {
    %c0_i32 = arith.constant 0 : i32
    %c0_i32_0 = arith.constant 0 : i32
    %c0_i32_1 = arith.constant 0 : i32
    %c0_i32_2 = arith.constant 0 : i32
    return %c0_i32, %c0_i32_0, %c0_i32_1 : i32, i32, i32
  }
  func.func @transform_2(%arg0: i32) -> (i32, i32) {
    %c0_i32 = arith.constant 0 : i32
    %c0_i32_0 = arith.constant 0 : i32
    %c0_i32_1 = arith.constant 0 : i32
    return %c0_i32, %c0_i32_0 : i32, i32
  }
  func.func @transform_3(%arg0: i32) -> (i32, i32, i32, i32) {
    %c0_i32 = arith.constant 0 : i32
    %c0_i32_0 = arith.constant 0 : i32
    %c0_i32_1 = arith.constant 0 : i32
    %c0_i32_2 = arith.constant 0 : i32
    return %arg0, %c0_i32, %c0_i32_0, %c0_i32_1 : i32, i32, i32, i32
  }
}

module attributes {stable_mosaic.version = 11 : i64} {
  func.func @kernel(%arg0: i32, %arg1: i32, %arg2: memref<1x16x512xbf16, #tpu.memory_space<vmem>>, %arg3: memref<1x16x512xbf16, #tpu.memory_space<vmem>>, %arg4: memref<9x512x256xbf16, #tpu.memory_space<vmem>>, %arg5: memref<9x512x256xbf16, #tpu.memory_space<vmem>>, %arg6: memref<1x2x2x256xbf16, #tpu.memory_space<vmem>>, %arg7: memref<1x2x256xf32, #tpu.memory_space<vmem>>) attributes {dimension_semantics = [#tpu.dimension_semantics<parallel>, #tpu.dimension_semantics<parallel>], iteration_bounds = array<i64: 2, 2>, scalar_prefetch = 0 : i64, scratch_operands = 0 : i64, tpu.core_type = #tpu.core_type<tc>, window_params = [{transform_indices = @transform_0, window_bounds = array<i64: 1, 16, 512>}, {transform_indices = @transform_1, window_bounds = array<i64: 1, 16, 512>}, {transform_indices = @transform_2, window_bounds = array<i64: 9, 512, 256>}, {transform_indices = @transform_3, window_bounds = array<i64: 9, 512, 256>}, {transform_indices = @transform_4, window_bounds = array<i64: 1, 2, 2, 256>}, {transform_indices = @transform_5, window_bounds = array<i64: 1, 2, 256>}]} {
    %cst = arith.constant 0.000000e+00 : f32
    %0 = vector.broadcast %cst : f32 to vector<8x256xf32>
    %cst_0 = arith.constant 0.000000e+00 : f32
    %1 = vector.broadcast %cst_0 : f32 to vector<8x256xf32>
    %cst_1 = arith.constant 0.000000e+00 : f32
    %2 = vector.broadcast %cst_1 : f32 to vector<8x256xf32>
    %c0 = arith.constant 0 : index
    %c0_2 = arith.constant 0 : index
    %c0_3 = arith.constant 0 : index
    %3 = vector.load %arg2[%c0, %c0_2, %c0_3] : memref<1x16x512xbf16, #tpu.memory_space<vmem>>, vector<1x8x512xbf16>
    %4 = vector.shape_cast %3 : vector<1x8x512xbf16> to vector<8x512xbf16>
    %c0_4 = arith.constant 0 : index
    %c0_5 = arith.constant 0 : index
    %c0_6 = arith.constant 0 : index
    %5 = vector.load %arg4[%c0_4, %c0_5, %c0_6] : memref<9x512x256xbf16, #tpu.memory_space<vmem>>, vector<1x512x256xbf16>
    %6 = vector.shape_cast %5 : vector<1x512x256xbf16> to vector<512x256xbf16>
    %cst_7 = arith.constant dense<0.000000e+00> : vector<8x256xf32>
    %7 = tpu.matmul %4, %6, %cst_7 {dimension_numbers = #tpu.dot_dimension_numbers<[1], [0], [0], [1], [0, 0, 1, 1], [], []>} : vector<8x512xbf16>, vector<512x256xbf16>, vector<8x256xf32> -> vector<8x256xf32>
    %8 = arith.addf %0, %7 : vector<8x256xf32>
    %c1 = arith.constant 1 : index
    %c0_8 = arith.constant 0 : index
    %c0_9 = arith.constant 0 : index
    %9 = vector.load %arg4[%c1, %c0_8, %c0_9] : memref<9x512x256xbf16, #tpu.memory_space<vmem>>, vector<1x512x256xbf16>
    %10 = vector.shape_cast %9 : vector<1x512x256xbf16> to vector<512x256xbf16>
    %cst_10 = arith.constant dense<0.000000e+00> : vector<8x256xf32>
    %11 = tpu.matmul %4, %10, %cst_10 {dimension_numbers = #tpu.dot_dimension_numbers<[1], [0], [0], [1], [0, 0, 1, 1], [], []>} : vector<8x512xbf16>, vector<512x256xbf16>, vector<8x256xf32> -> vector<8x256xf32>
    %12 = arith.addf %1, %11 : vector<8x256xf32>
    %c2 = arith.constant 2 : index
    %c0_11 = arith.constant 0 : index
    %c0_12 = arith.constant 0 : index
    %13 = vector.load %arg4[%c2, %c0_11, %c0_12] : memref<9x512x256xbf16, #tpu.memory_space<vmem>>, vector<1x512x256xbf16>
    %14 = vector.shape_cast %13 : vector<1x512x256xbf16> to vector<512x256xbf16>
    %cst_13 = arith.constant dense<0.000000e+00> : vector<8x256xf32>
    %15 = tpu.matmul %4, %14, %cst_13 {dimension_numbers = #tpu.dot_dimension_numbers<[1], [0], [0], [1], [0, 0, 1, 1], [], []>} : vector<8x512xbf16>, vector<512x256xbf16>, vector<8x256xf32> -> vector<8x256xf32>
    %16 = arith.addf %2, %15 : vector<8x256xf32>
    %c0_14 = arith.constant 0 : index
    %c4 = arith.constant 4 : index
    %c0_15 = arith.constant 0 : index
    %17 = vector.load %arg2[%c0_14, %c4, %c0_15] : memref<1x16x512xbf16, #tpu.memory_space<vmem>>, vector<1x8x512xbf16>
    %18 = vector.shape_cast %17 : vector<1x8x512xbf16> to vector<8x512xbf16>
    %c3 = arith.constant 3 : index
    %c0_16 = arith.constant 0 : index
    %c0_17 = arith.constant 0 : index
    %19 = vector.load %arg4[%c3, %c0_16, %c0_17] : memref<9x512x256xbf16, #tpu.memory_space<vmem>>, vector<1x512x256xbf16>
    %20 = vector.shape_cast %19 : vector<1x512x256xbf16> to vector<512x256xbf16>
    %cst_18 = arith.constant dense<0.000000e+00> : vector<8x256xf32>
    %21 = tpu.matmul %18, %20, %cst_18 {dimension_numbers = #tpu.dot_dimension_numbers<[1], [0], [0], [1], [0, 0, 1, 1], [], []>} : vector<8x512xbf16>, vector<512x256xbf16>, vector<8x256xf32> -> vector<8x256xf32>
    %22 = arith.addf %8, %21 : vector<8x256xf32>
    %c4_19 = arith.constant 4 : index
    %c0_20 = arith.constant 0 : index
    %c0_21 = arith.constant 0 : index
    %23 = vector.load %arg4[%c4_19, %c0_20, %c0_21] : memref<9x512x256xbf16, #tpu.memory_space<vmem>>, vector<1x512x256xbf16>
    %24 = vector.shape_cast %23 : vector<1x512x256xbf16> to vector<512x256xbf16>
    %cst_22 = arith.constant dense<0.000000e+00> : vector<8x256xf32>
    %25 = tpu.matmul %18, %24, %cst_22 {dimension_numbers = #tpu.dot_dimension_numbers<[1], [0], [0], [1], [0, 0, 1, 1], [], []>} : vector<8x512xbf16>, vector<512x256xbf16>, vector<8x256xf32> -> vector<8x256xf32>
    %26 = arith.addf %12, %25 : vector<8x256xf32>
    %c5 = arith.constant 5 : index
    %c0_23 = arith.constant 0 : index
    %c0_24 = arith.constant 0 : index
    %27 = vector.load %arg4[%c5, %c0_23, %c0_24] : memref<9x512x256xbf16, #tpu.memory_space<vmem>>, vector<1x512x256xbf16>
    %28 = vector.shape_cast %27 : vector<1x512x256xbf16> to vector<512x256xbf16>
    %cst_25 = arith.constant dense<0.000000e+00> : vector<8x256xf32>
    %29 = tpu.matmul %18, %28, %cst_25 {dimension_numbers = #tpu.dot_dimension_numbers<[1], [0], [0], [1], [0, 0, 1, 1], [], []>} : vector<8x512xbf16>, vector<512x256xbf16>, vector<8x256xf32> -> vector<8x256xf32>
    %30 = arith.addf %16, %29 : vector<8x256xf32>
    %c0_26 = arith.constant 0 : index
    %c8 = arith.constant 8 : index
    %c0_27 = arith.constant 0 : index
    %31 = vector.load %arg2[%c0_26, %c8, %c0_27] : memref<1x16x512xbf16, #tpu.memory_space<vmem>>, vector<1x8x512xbf16>
    %32 = vector.shape_cast %31 : vector<1x8x512xbf16> to vector<8x512xbf16>
    %c6 = arith.constant 6 : index
    %c0_28 = arith.constant 0 : index
    %c0_29 = arith.constant 0 : index
    %33 = vector.load %arg4[%c6, %c0_28, %c0_29] : memref<9x512x256xbf16, #tpu.memory_space<vmem>>, vector<1x512x256xbf16>
    %34 = vector.shape_cast %33 : vector<1x512x256xbf16> to vector<512x256xbf16>
    %cst_30 = arith.constant dense<0.000000e+00> : vector<8x256xf32>
    %35 = tpu.matmul %32, %34, %cst_30 {dimension_numbers = #tpu.dot_dimension_numbers<[1], [0], [0], [1], [0, 0, 1, 1], [], []>} : vector<8x512xbf16>, vector<512x256xbf16>, vector<8x256xf32> -> vector<8x256xf32>
    %36 = arith.addf %22, %35 : vector<8x256xf32>
    %c7 = arith.constant 7 : index
    %c0_31 = arith.constant 0 : index
    %c0_32 = arith.constant 0 : index
    %37 = vector.load %arg4[%c7, %c0_31, %c0_32] : memref<9x512x256xbf16, #tpu.memory_space<vmem>>, vector<1x512x256xbf16>
    %38 = vector.shape_cast %37 : vector<1x512x256xbf16> to vector<512x256xbf16>
    %cst_33 = arith.constant dense<0.000000e+00> : vector<8x256xf32>
    %39 = tpu.matmul %32, %38, %cst_33 {dimension_numbers = #tpu.dot_dimension_numbers<[1], [0], [0], [1], [0, 0, 1, 1], [], []>} : vector<8x512xbf16>, vector<512x256xbf16>, vector<8x256xf32> -> vector<8x256xf32>
    %40 = arith.addf %26, %39 : vector<8x256xf32>
    %c8_34 = arith.constant 8 : index
    %c0_35 = arith.constant 0 : index
    %c0_36 = arith.constant 0 : index
    %41 = vector.load %arg4[%c8_34, %c0_35, %c0_36] : memref<9x512x256xbf16, #tpu.memory_space<vmem>>, vector<1x512x256xbf16>
    %42 = vector.shape_cast %41 : vector<1x512x256xbf16> to vector<512x256xbf16>
    %cst_37 = arith.constant dense<0.000000e+00> : vector<8x256xf32>
    %43 = tpu.matmul %32, %42, %cst_37 {dimension_numbers = #tpu.dot_dimension_numbers<[1], [0], [0], [1], [0, 0, 1, 1], [], []>} : vector<8x512xbf16>, vector<512x256xbf16>, vector<8x256xf32> -> vector<8x256xf32>
    %44 = arith.addf %30, %43 : vector<8x256xf32>
    %c0_38 = arith.constant 0 : index
    %c0_39 = arith.constant 0 : index
    %c0_40 = arith.constant 0 : index
    %45 = vector.load %arg3[%c0_38, %c0_39, %c0_40] : memref<1x16x512xbf16, #tpu.memory_space<vmem>>, vector<1x8x512xbf16>
    %46 = vector.shape_cast %45 : vector<1x8x512xbf16> to vector<8x512xbf16>
    %c0_41 = arith.constant 0 : index
    %c0_42 = arith.constant 0 : index
    %c0_43 = arith.constant 0 : index
    %47 = vector.load %arg5[%c0_41, %c0_42, %c0_43] : memref<9x512x256xbf16, #tpu.memory_space<vmem>>, vector<1x512x256xbf16>
    %48 = vector.shape_cast %47 : vector<1x512x256xbf16> to vector<512x256xbf16>
    %cst_44 = arith.constant dense<0.000000e+00> : vector<8x256xf32>
    %49 = tpu.matmul %46, %48, %cst_44 {dimension_numbers = #tpu.dot_dimension_numbers<[1], [0], [0], [1], [0, 0, 1, 1], [], []>} : vector<8x512xbf16>, vector<512x256xbf16>, vector<8x256xf32> -> vector<8x256xf32>
    %50 = arith.addf %36, %49 : vector<8x256xf32>
    %c1_45 = arith.constant 1 : index
    %c0_46 = arith.constant 0 : index
    %c0_47 = arith.constant 0 : index
    %51 = vector.load %arg5[%c1_45, %c0_46, %c0_47] : memref<9x512x256xbf16, #tpu.memory_space<vmem>>, vector<1x512x256xbf16>
    %52 = vector.shape_cast %51 : vector<1x512x256xbf16> to vector<512x256xbf16>
    %cst_48 = arith.constant dense<0.000000e+00> : vector<8x256xf32>
    %53 = tpu.matmul %46, %52, %cst_48 {dimension_numbers = #tpu.dot_dimension_numbers<[1], [0], [0], [1], [0, 0, 1, 1], [], []>} : vector<8x512xbf16>, vector<512x256xbf16>, vector<8x256xf32> -> vector<8x256xf32>
    %54 = arith.addf %40, %53 : vector<8x256xf32>
    %c2_49 = arith.constant 2 : index
    %c0_50 = arith.constant 0 : index
    %c0_51 = arith.constant 0 : index
    %55 = vector.load %arg5[%c2_49, %c0_50, %c0_51] : memref<9x512x256xbf16, #tpu.memory_space<vmem>>, vector<1x512x256xbf16>
    %56 = vector.shape_cast %55 : vector<1x512x256xbf16> to vector<512x256xbf16>
    %cst_52 = arith.constant dense<0.000000e+00> : vector<8x256xf32>
    %57 = tpu.matmul %46, %56, %cst_52 {dimension_numbers = #tpu.dot_dimension_numbers<[1], [0], [0], [1], [0, 0, 1, 1], [], []>} : vector<8x512xbf16>, vector<512x256xbf16>, vector<8x256xf32> -> vector<8x256xf32>
    %58 = arith.addf %44, %57 : vector<8x256xf32>
    %c0_53 = arith.constant 0 : index
    %c4_54 = arith.constant 4 : index
    %c0_55 = arith.constant 0 : index
    %59 = vector.load %arg3[%c0_53, %c4_54, %c0_55] : memref<1x16x512xbf16, #tpu.memory_space<vmem>>, vector<1x8x512xbf16>
    %60 = vector.shape_cast %59 : vector<1x8x512xbf16> to vector<8x512xbf16>
    %c3_56 = arith.constant 3 : index
    %c0_57 = arith.constant 0 : index
    %c0_58 = arith.constant 0 : index
    %61 = vector.load %arg5[%c3_56, %c0_57, %c0_58] : memref<9x512x256xbf16, #tpu.memory_space<vmem>>, vector<1x512x256xbf16>
    %62 = vector.shape_cast %61 : vector<1x512x256xbf16> to vector<512x256xbf16>
    %cst_59 = arith.constant dense<0.000000e+00> : vector<8x256xf32>
    %63 = tpu.matmul %60, %62, %cst_59 {dimension_numbers = #tpu.dot_dimension_numbers<[1], [0], [0], [1], [0, 0, 1, 1], [], []>} : vector<8x512xbf16>, vector<512x256xbf16>, vector<8x256xf32> -> vector<8x256xf32>
    %64 = arith.addf %50, %63 : vector<8x256xf32>
    %c4_60 = arith.constant 4 : index
    %c0_61 = arith.constant 0 : index
    %c0_62 = arith.constant 0 : index
    %65 = vector.load %arg5[%c4_60, %c0_61, %c0_62] : memref<9x512x256xbf16, #tpu.memory_space<vmem>>, vector<1x512x256xbf16>
    %66 = vector.shape_cast %65 : vector<1x512x256xbf16> to vector<512x256xbf16>
    %cst_63 = arith.constant dense<0.000000e+00> : vector<8x256xf32>
    %67 = tpu.matmul %60, %66, %cst_63 {dimension_numbers = #tpu.dot_dimension_numbers<[1], [0], [0], [1], [0, 0, 1, 1], [], []>} : vector<8x512xbf16>, vector<512x256xbf16>, vector<8x256xf32> -> vector<8x256xf32>
    %68 = arith.addf %54, %67 : vector<8x256xf32>
    %c5_64 = arith.constant 5 : index
    %c0_65 = arith.constant 0 : index
    %c0_66 = arith.constant 0 : index
    %69 = vector.load %arg5[%c5_64, %c0_65, %c0_66] : memref<9x512x256xbf16, #tpu.memory_space<vmem>>, vector<1x512x256xbf16>
    %70 = vector.shape_cast %69 : vector<1x512x256xbf16> to vector<512x256xbf16>
    %cst_67 = arith.constant dense<0.000000e+00> : vector<8x256xf32>
    %71 = tpu.matmul %60, %70, %cst_67 {dimension_numbers = #tpu.dot_dimension_numbers<[1], [0], [0], [1], [0, 0, 1, 1], [], []>} : vector<8x512xbf16>, vector<512x256xbf16>, vector<8x256xf32> -> vector<8x256xf32>
    %72 = arith.addf %58, %71 : vector<8x256xf32>
    %c0_68 = arith.constant 0 : index
    %c8_69 = arith.constant 8 : index
    %c0_70 = arith.constant 0 : index
    %73 = vector.load %arg3[%c0_68, %c8_69, %c0_70] : memref<1x16x512xbf16, #tpu.memory_space<vmem>>, vector<1x8x512xbf16>
    %74 = vector.shape_cast %73 : vector<1x8x512xbf16> to vector<8x512xbf16>
    %c6_71 = arith.constant 6 : index
    %c0_72 = arith.constant 0 : index
    %c0_73 = arith.constant 0 : index
    %75 = vector.load %arg5[%c6_71, %c0_72, %c0_73] : memref<9x512x256xbf16, #tpu.memory_space<vmem>>, vector<1x512x256xbf16>
    %76 = vector.shape_cast %75 : vector<1x512x256xbf16> to vector<512x256xbf16>
    %cst_74 = arith.constant dense<0.000000e+00> : vector<8x256xf32>
    %77 = tpu.matmul %74, %76, %cst_74 {dimension_numbers = #tpu.dot_dimension_numbers<[1], [0], [0], [1], [0, 0, 1, 1], [], []>} : vector<8x512xbf16>, vector<512x256xbf16>, vector<8x256xf32> -> vector<8x256xf32>
    %78 = arith.addf %64, %77 : vector<8x256xf32>
    %c7_75 = arith.constant 7 : index
    %c0_76 = arith.constant 0 : index
    %c0_77 = arith.constant 0 : index
    %79 = vector.load %arg5[%c7_75, %c0_76, %c0_77] : memref<9x512x256xbf16, #tpu.memory_space<vmem>>, vector<1x512x256xbf16>
    %80 = vector.shape_cast %79 : vector<1x512x256xbf16> to vector<512x256xbf16>
    %cst_78 = arith.constant dense<0.000000e+00> : vector<8x256xf32>
    %81 = tpu.matmul %74, %80, %cst_78 {dimension_numbers = #tpu.dot_dimension_numbers<[1], [0], [0], [1], [0, 0, 1, 1], [], []>} : vector<8x512xbf16>, vector<512x256xbf16>, vector<8x256xf32> -> vector<8x256xf32>
    %82 = arith.addf %68, %81 : vector<8x256xf32>
    %c8_79 = arith.constant 8 : index
    %c0_80 = arith.constant 0 : index
    %c0_81 = arith.constant 0 : index
    %83 = vector.load %arg5[%c8_79, %c0_80, %c0_81] : memref<9x512x256xbf16, #tpu.memory_space<vmem>>, vector<1x512x256xbf16>
    %84 = vector.shape_cast %83 : vector<1x512x256xbf16> to vector<512x256xbf16>
    %cst_82 = arith.constant dense<0.000000e+00> : vector<8x256xf32>
    %85 = tpu.matmul %74, %84, %cst_82 {dimension_numbers = #tpu.dot_dimension_numbers<[1], [0], [0], [1], [0, 0, 1, 1], [], []>} : vector<8x512xbf16>, vector<512x256xbf16>, vector<8x256xf32> -> vector<8x256xf32>
    %86 = arith.addf %72, %85 : vector<8x256xf32>
    %cst_83 = arith.constant 0.000000e+00 : f32
    %87 = vector.broadcast %cst_83 : f32 to vector<1x256xf32>
    %cst_84 = arith.constant 0.000000e+00 : f32
    %88 = vector.broadcast %cst_84 : f32 to vector<1x256xf32>
    %89 = vector.extract_strided_slice %78 {offsets = [0, 0], sizes = [2, 256], strides = [1, 1]} : vector<8x256xf32> to vector<2x256xf32>
    %90 = vector.extract_strided_slice %82 {offsets = [1, 0], sizes = [2, 256], strides = [1, 1]} : vector<8x256xf32> to vector<2x256xf32>
    %91 = arith.addf %89, %90 : vector<2x256xf32>
    %92 = vector.extract_strided_slice %86 {offsets = [2, 0], sizes = [2, 256], strides = [1, 1]} : vector<8x256xf32> to vector<2x256xf32>
    %93 = arith.addf %91, %92 : vector<2x256xf32>
    %94 = arith.truncf %93 : vector<2x256xf32> to vector<2x256xbf16>
    %c0_85 = arith.constant 0 : index
    %c0_86 = arith.constant 0 : index
    %c0_87 = arith.constant 0 : index
    %c0_88 = arith.constant 0 : index
    %95 = vector.load %arg6[%c0_85, %c0_86, %c0_87, %c0_88] : memref<1x2x2x256xbf16, #tpu.memory_space<vmem>>, vector<1x1x2x256xbf16>
    %96 = vector.shape_cast %95 : vector<1x1x2x256xbf16> to vector<2x256xbf16>
    %97 = vector.shape_cast %94 : vector<2x256xbf16> to vector<1x1x2x256xbf16>
    tpu.vector_store %arg6[%c0_85, %c0_86, %c0_87, %c0_88], %97 {strides = array<i32>} : memref<1x2x2x256xbf16, #tpu.memory_space<vmem>>, vector<1x1x2x256xbf16>,
    %cst_89 = arith.constant dense<0.000000e+00> : vector<256xf32>
    %98 = vector.multi_reduction <add>, %93, %cst_89 [0] : vector<2x256xf32> to vector<256xf32>
    %99 = vector.shape_cast %98 : vector<256xf32> to vector<1x256xf32>
    %100 = arith.addf %87, %99 : vector<1x256xf32>
    %101 = arith.mulf %93, %93 : vector<2x256xf32>
    %cst_90 = arith.constant dense<0.000000e+00> : vector<256xf32>
    %102 = vector.multi_reduction <add>, %101, %cst_90 [0] : vector<2x256xf32> to vector<256xf32>
    %103 = vector.shape_cast %102 : vector<256xf32> to vector<1x256xf32>
    %104 = arith.addf %88, %103 : vector<1x256xf32>
    %105 = vector.extract_strided_slice %78 {offsets = [4, 0], sizes = [2, 256], strides = [1, 1]} : vector<8x256xf32> to vector<2x256xf32>
    %106 = vector.extract_strided_slice %82 {offsets = [5, 0], sizes = [2, 256], strides = [1, 1]} : vector<8x256xf32> to vector<2x256xf32>
    %107 = arith.addf %105, %106 : vector<2x256xf32>
    %108 = vector.extract_strided_slice %86 {offsets = [6, 0], sizes = [2, 256], strides = [1, 1]} : vector<8x256xf32> to vector<2x256xf32>
    %109 = arith.addf %107, %108 : vector<2x256xf32>
    %110 = arith.truncf %109 : vector<2x256xf32> to vector<2x256xbf16>
    %c0_91 = arith.constant 0 : index
    %c1_92 = arith.constant 1 : index
    %c0_93 = arith.constant 0 : index
    %c0_94 = arith.constant 0 : index
    %111 = vector.load %arg6[%c0_91, %c1_92, %c0_93, %c0_94] : memref<1x2x2x256xbf16, #tpu.memory_space<vmem>>, vector<1x1x2x256xbf16>
    %112 = vector.shape_cast %111 : vector<1x1x2x256xbf16> to vector<2x256xbf16>
    %113 = vector.shape_cast %110 : vector<2x256xbf16> to vector<1x1x2x256xbf16>
    tpu.vector_store %arg6[%c0_91, %c1_92, %c0_93, %c0_94], %113 {strides = array<i32>} : memref<1x2x2x256xbf16, #tpu.memory_space<vmem>>, vector<1x1x2x256xbf16>,
    %cst_95 = arith.constant dense<0.000000e+00> : vector<256xf32>
    %114 = vector.multi_reduction <add>, %109, %cst_95 [0] : vector<2x256xf32> to vector<256xf32>
    %115 = vector.shape_cast %114 : vector<256xf32> to vector<1x256xf32>
    %116 = arith.addf %100, %115 : vector<1x256xf32>
    %117 = arith.mulf %109, %109 : vector<2x256xf32>
    %cst_96 = arith.constant dense<0.000000e+00> : vector<256xf32>
    %118 = vector.multi_reduction <add>, %117, %cst_96 [0] : vector<2x256xf32> to vector<256xf32>
    %119 = vector.shape_cast %118 : vector<256xf32> to vector<1x256xf32>
    %120 = arith.addf %104, %119 : vector<1x256xf32>
    %c0_97 = arith.constant 0 : index
    %c0_98 = arith.constant 0 : index
    %c0_99 = arith.constant 0 : index
    %121 = vector.load %arg7[%c0_97, %c0_98, %c0_99] : memref<1x2x256xf32, #tpu.memory_space<vmem>>, vector<1x1x256xf32>
    %122 = vector.shape_cast %121 : vector<1x1x256xf32> to vector<1x256xf32>
    %123 = vector.shape_cast %116 : vector<1x256xf32> to vector<1x1x256xf32>
    tpu.vector_store %arg7[%c0_97, %c0_98, %c0_99], %123 {strides = array<i32>} : memref<1x2x256xf32, #tpu.memory_space<vmem>>, vector<1x1x256xf32>,
    %c0_100 = arith.constant 0 : index
    %c1_101 = arith.constant 1 : index
    %c0_102 = arith.constant 0 : index
    %124 = vector.load %arg7[%c0_100, %c1_101, %c0_102] : memref<1x2x256xf32, #tpu.memory_space<vmem>>, vector<1x1x256xf32>
    %125 = vector.shape_cast %124 : vector<1x1x256xf32> to vector<1x256xf32>
    %126 = vector.shape_cast %120 : vector<1x256xf32> to vector<1x1x256xf32>
    tpu.vector_store %arg7[%c0_100, %c1_101, %c0_102], %126 {strides = array<i32>} : memref<1x2x256xf32, #tpu.memory_space<vmem>>, vector<1x1x256xf32>,
    return
  }
  func.func @transform_0(%arg0: i32, %arg1: i32) -> (i32, i32, i32) {
    %c0_i32 = arith.constant 0 : i32
    %c0_i32_0 = arith.constant 0 : i32
    %c0_i32_1 = arith.constant 0 : i32
    return %arg1, %c0_i32, %c0_i32_0 : i32, i32, i32
  }
  func.func @transform_1(%arg0: i32, %arg1: i32) -> (i32, i32, i32) {
    %c0_i32 = arith.constant 0 : i32
    %c0_i32_0 = arith.constant 0 : i32
    %c0_i32_1 = arith.constant 0 : i32
    return %arg1, %c0_i32, %c0_i32_0 : i32, i32, i32
  }
  func.func @transform_2(%arg0: i32, %arg1: i32) -> (i32, i32, i32) {
    %c0_i32 = arith.constant 0 : i32
    %c0_i32_0 = arith.constant 0 : i32
    %c0_i32_1 = arith.constant 0 : i32
    return %c0_i32, %c0_i32_0, %arg0 : i32, i32, i32
  }
  func.func @transform_3(%arg0: i32, %arg1: i32) -> (i32, i32, i32) {
    %c0_i32 = arith.constant 0 : i32
    %c0_i32_0 = arith.constant 0 : i32
    %c0_i32_1 = arith.constant 0 : i32
    return %c0_i32, %c0_i32_0, %arg0 : i32, i32, i32
  }
  func.func @transform_4(%arg0: i32, %arg1: i32) -> (i32, i32, i32, i32) {
    %c0_i32 = arith.constant 0 : i32
    %c0_i32_0 = arith.constant 0 : i32
    %c0_i32_1 = arith.constant 0 : i32
    return %arg1, %c0_i32, %c0_i32_0, %arg0 : i32, i32, i32, i32
  }
  func.func @transform_5(%arg0: i32, %arg1: i32) -> (i32, i32, i32) {
    %c0_i32 = arith.constant 0 : i32
    %c0_i32_0 = arith.constant 0 : i32
    return %arg1, %c0_i32, %arg0 : i32, i32, i32
  }
}

module attributes {stable_mosaic.version = 11 : i64} {
  func.func @kernel(%arg0: i32, %arg1: memref<8x512xbf16, #tpu.memory_space<vmem>>, %arg2: memref<2x512x512xbf16, #tpu.memory_space<vmem>>, %arg3: memref<1x512xf32, #tpu.memory_space<vmem>>, %arg4: memref<4x2x2x512xbf16, #tpu.memory_space<vmem>>) attributes {dimension_semantics = [#tpu.dimension_semantics<parallel>], iteration_bounds = array<i64: 1>, scalar_prefetch = 0 : i64, scratch_operands = 0 : i64, tpu.core_type = #tpu.core_type<tc>, window_params = [{transform_indices = @transform_0, window_bounds = array<i64: 8, 512>}, {pipeline_mode = #tpu.pipeline_mode<synchronous>, transform_indices = @transform_1, window_bounds = array<i64: 2, 512, 512>}, {pipeline_mode = #tpu.pipeline_mode<synchronous>, transform_indices = @transform_2, window_bounds = array<i64: 1, 512>}, {transform_indices = @transform_3, window_bounds = array<i64: 4, 2, 2, 512>}]} {
    %c0 = arith.constant 0 : index
    %c0_0 = arith.constant 0 : index
    %0 = vector.load %arg1[%c0, %c0_0] : memref<8x512xbf16, #tpu.memory_space<vmem>>, vector<8x512xbf16>
    %c0_1 = arith.constant 0 : index
    %c0_2 = arith.constant 0 : index
    %1 = vector.load %arg3[%c0_1, %c0_2] : memref<1x512xf32, #tpu.memory_space<vmem>>, vector<1x512xf32>
    %c0_3 = arith.constant 0 : index
    %c0_4 = arith.constant 0 : index
    %c0_5 = arith.constant 0 : index
    %2 = vector.load %arg2[%c0_3, %c0_4, %c0_5] : memref<2x512x512xbf16, #tpu.memory_space<vmem>>, vector<1x512x512xbf16>
    %3 = vector.shape_cast %2 : vector<1x512x512xbf16> to vector<512x512xbf16>
    %cst = arith.constant dense<0.000000e+00> : vector<8x512xf32>
    %4 = tpu.matmul %0, %3, %cst {dimension_numbers = #tpu.dot_dimension_numbers<[1], [0], [0], [1], [0, 0, 1, 1], [], []>} : vector<8x512xbf16>, vector<512x512xbf16>, vector<8x512xf32> -> vector<8x512xf32>
    %5 = vector.broadcast %1 : vector<1x512xf32> to vector<8x512xf32>
    %6 = arith.addf %4, %5 : vector<8x512xf32>
    %7 = arith.truncf %6 : vector<8x512xf32> to vector<8x512xbf16>
    %8 = vector.extract_strided_slice %7 {offsets = [0, 0], sizes = [2, 512], strides = [1, 1]} : vector<8x512xbf16> to vector<2x512xbf16>
    %c0_6 = arith.constant 0 : index
    %c0_7 = arith.constant 0 : index
    %c0_8 = arith.constant 0 : index
    %c0_9 = arith.constant 0 : index
    %9 = vector.load %arg4[%c0_6, %c0_7, %c0_8, %c0_9] : memref<4x2x2x512xbf16, #tpu.memory_space<vmem>>, vector<1x1x2x512xbf16>
    %10 = vector.shape_cast %9 : vector<1x1x2x512xbf16> to vector<2x512xbf16>
    %11 = vector.shape_cast %8 : vector<2x512xbf16> to vector<1x1x2x512xbf16>
    tpu.vector_store %arg4[%c0_6, %c0_7, %c0_8, %c0_9], %11 {strides = array<i32>} : memref<4x2x2x512xbf16, #tpu.memory_space<vmem>>, vector<1x1x2x512xbf16>,
    %12 = vector.extract_strided_slice %7 {offsets = [2, 0], sizes = [2, 512], strides = [1, 1]} : vector<8x512xbf16> to vector<2x512xbf16>
    %c1 = arith.constant 1 : index
    %c0_10 = arith.constant 0 : index
    %c0_11 = arith.constant 0 : index
    %c0_12 = arith.constant 0 : index
    %13 = vector.load %arg4[%c1, %c0_10, %c0_11, %c0_12] : memref<4x2x2x512xbf16, #tpu.memory_space<vmem>>, vector<1x1x2x512xbf16>
    %14 = vector.shape_cast %13 : vector<1x1x2x512xbf16> to vector<2x512xbf16>
    %15 = vector.shape_cast %12 : vector<2x512xbf16> to vector<1x1x2x512xbf16>
    tpu.vector_store %arg4[%c1, %c0_10, %c0_11, %c0_12], %15 {strides = array<i32>} : memref<4x2x2x512xbf16, #tpu.memory_space<vmem>>, vector<1x1x2x512xbf16>,
    %16 = vector.extract_strided_slice %7 {offsets = [4, 0], sizes = [2, 512], strides = [1, 1]} : vector<8x512xbf16> to vector<2x512xbf16>
    %c2 = arith.constant 2 : index
    %c0_13 = arith.constant 0 : index
    %c0_14 = arith.constant 0 : index
    %c0_15 = arith.constant 0 : index
    %17 = vector.load %arg4[%c2, %c0_13, %c0_14, %c0_15] : memref<4x2x2x512xbf16, #tpu.memory_space<vmem>>, vector<1x1x2x512xbf16>
    %18 = vector.shape_cast %17 : vector<1x1x2x512xbf16> to vector<2x512xbf16>
    %19 = vector.shape_cast %16 : vector<2x512xbf16> to vector<1x1x2x512xbf16>
    tpu.vector_store %arg4[%c2, %c0_13, %c0_14, %c0_15], %19 {strides = array<i32>} : memref<4x2x2x512xbf16, #tpu.memory_space<vmem>>, vector<1x1x2x512xbf16>,
    %20 = vector.extract_strided_slice %7 {offsets = [6, 0], sizes = [2, 512], strides = [1, 1]} : vector<8x512xbf16> to vector<2x512xbf16>
    %c3 = arith.constant 3 : index
    %c0_16 = arith.constant 0 : index
    %c0_17 = arith.constant 0 : index
    %c0_18 = arith.constant 0 : index
    %21 = vector.load %arg4[%c3, %c0_16, %c0_17, %c0_18] : memref<4x2x2x512xbf16, #tpu.memory_space<vmem>>, vector<1x1x2x512xbf16>
    %22 = vector.shape_cast %21 : vector<1x1x2x512xbf16> to vector<2x512xbf16>
    %23 = vector.shape_cast %20 : vector<2x512xbf16> to vector<1x1x2x512xbf16>
    tpu.vector_store %arg4[%c3, %c0_16, %c0_17, %c0_18], %23 {strides = array<i32>} : memref<4x2x2x512xbf16, #tpu.memory_space<vmem>>, vector<1x1x2x512xbf16>,
    %c1_19 = arith.constant 1 : index
    %c0_20 = arith.constant 0 : index
    %c0_21 = arith.constant 0 : index
    %24 = vector.load %arg2[%c1_19, %c0_20, %c0_21] : memref<2x512x512xbf16, #tpu.memory_space<vmem>>, vector<1x512x512xbf16>
    %25 = vector.shape_cast %24 : vector<1x512x512xbf16> to vector<512x512xbf16>
    %cst_22 = arith.constant dense<0.000000e+00> : vector<8x512xf32>
    %26 = tpu.matmul %0, %25, %cst_22 {dimension_numbers = #tpu.dot_dimension_numbers<[1], [0], [0], [1], [0, 0, 1, 1], [], []>} : vector<8x512xbf16>, vector<512x512xbf16>, vector<8x512xf32> -> vector<8x512xf32>
    %27 = vector.broadcast %1 : vector<1x512xf32> to vector<8x512xf32>
    %28 = arith.addf %26, %27 : vector<8x512xf32>
    %29 = arith.truncf %28 : vector<8x512xf32> to vector<8x512xbf16>
    %30 = vector.extract_strided_slice %29 {offsets = [0, 0], sizes = [2, 512], strides = [1, 1]} : vector<8x512xbf16> to vector<2x512xbf16>
    %c0_23 = arith.constant 0 : index
    %c1_24 = arith.constant 1 : index
    %c0_25 = arith.constant 0 : index
    %c0_26 = arith.constant 0 : index
    %31 = vector.load %arg4[%c0_23, %c1_24, %c0_25, %c0_26] : memref<4x2x2x512xbf16, #tpu.memory_space<vmem>>, vector<1x1x2x512xbf16>
    %32 = vector.shape_cast %31 : vector<1x1x2x512xbf16> to vector<2x512xbf16>
    %33 = vector.shape_cast %30 : vector<2x512xbf16> to vector<1x1x2x512xbf16>
    tpu.vector_store %arg4[%c0_23, %c1_24, %c0_25, %c0_26], %33 {strides = array<i32>} : memref<4x2x2x512xbf16, #tpu.memory_space<vmem>>, vector<1x1x2x512xbf16>,
    %34 = vector.extract_strided_slice %29 {offsets = [2, 0], sizes = [2, 512], strides = [1, 1]} : vector<8x512xbf16> to vector<2x512xbf16>
    %c1_27 = arith.constant 1 : index
    %c1_28 = arith.constant 1 : index
    %c0_29 = arith.constant 0 : index
    %c0_30 = arith.constant 0 : index
    %35 = vector.load %arg4[%c1_27, %c1_28, %c0_29, %c0_30] : memref<4x2x2x512xbf16, #tpu.memory_space<vmem>>, vector<1x1x2x512xbf16>
    %36 = vector.shape_cast %35 : vector<1x1x2x512xbf16> to vector<2x512xbf16>
    %37 = vector.shape_cast %34 : vector<2x512xbf16> to vector<1x1x2x512xbf16>
    tpu.vector_store %arg4[%c1_27, %c1_28, %c0_29, %c0_30], %37 {strides = array<i32>} : memref<4x2x2x512xbf16, #tpu.memory_space<vmem>>, vector<1x1x2x512xbf16>,
    %38 = vector.extract_strided_slice %29 {offsets = [4, 0], sizes = [2, 512], strides = [1, 1]} : vector<8x512xbf16> to vector<2x512xbf16>
    %c2_31 = arith.constant 2 : index
    %c1_32 = arith.constant 1 : index
    %c0_33 = arith.constant 0 : index
    %c0_34 = arith.constant 0 : index
    %39 = vector.load %arg4[%c2_31, %c1_32, %c0_33, %c0_34] : memref<4x2x2x512xbf16, #tpu.memory_space<vmem>>, vector<1x1x2x512xbf16>
    %40 = vector.shape_cast %39 : vector<1x1x2x512xbf16> to vector<2x512xbf16>
    %41 = vector.shape_cast %38 : vector<2x512xbf16> to vector<1x1x2x512xbf16>
    tpu.vector_store %arg4[%c2_31, %c1_32, %c0_33, %c0_34], %41 {strides = array<i32>} : memref<4x2x2x512xbf16, #tpu.memory_space<vmem>>, vector<1x1x2x512xbf16>,
    %42 = vector.extract_strided_slice %29 {offsets = [6, 0], sizes = [2, 512], strides = [1, 1]} : vector<8x512xbf16> to vector<2x512xbf16>
    %c3_35 = arith.constant 3 : index
    %c1_36 = arith.constant 1 : index
    %c0_37 = arith.constant 0 : index
    %c0_38 = arith.constant 0 : index
    %43 = vector.load %arg4[%c3_35, %c1_36, %c0_37, %c0_38] : memref<4x2x2x512xbf16, #tpu.memory_space<vmem>>, vector<1x1x2x512xbf16>
    %44 = vector.shape_cast %43 : vector<1x1x2x512xbf16> to vector<2x512xbf16>
    %45 = vector.shape_cast %42 : vector<2x512xbf16> to vector<1x1x2x512xbf16>
    tpu.vector_store %arg4[%c3_35, %c1_36, %c0_37, %c0_38], %45 {strides = array<i32>} : memref<4x2x2x512xbf16, #tpu.memory_space<vmem>>, vector<1x1x2x512xbf16>,
    return
  }
  func.func @transform_0(%arg0: i32) -> (i32, i32) {
    %c0_i32 = arith.constant 0 : i32
    %c0_i32_0 = arith.constant 0 : i32
    return %arg0, %c0_i32 : i32, i32
  }
  func.func @transform_1(%arg0: i32) -> (i32, i32, i32) {
    %c0_i32 = arith.constant 0 : i32
    %c0_i32_0 = arith.constant 0 : i32
    %c0_i32_1 = arith.constant 0 : i32
    %c0_i32_2 = arith.constant 0 : i32
    return %c0_i32, %c0_i32_0, %c0_i32_1 : i32, i32, i32
  }
  func.func @transform_2(%arg0: i32) -> (i32, i32) {
    %c0_i32 = arith.constant 0 : i32
    %c0_i32_0 = arith.constant 0 : i32
    %c0_i32_1 = arith.constant 0 : i32
    return %c0_i32, %c0_i32_0 : i32, i32
  }
  func.func @transform_3(%arg0: i32) -> (i32, i32, i32, i32) {
    %c0_i32 = arith.constant 0 : i32
    %c0_i32_0 = arith.constant 0 : i32
    %c0_i32_1 = arith.constant 0 : i32
    %c0_i32_2 = arith.constant 0 : i32
    return %arg0, %c0_i32, %c0_i32_0, %c0_i32_1 : i32, i32, i32, i32
  }
}

module attributes {stable_mosaic.version = 11 : i64} {
  func.func @kernel(%arg0: i32, %arg1: i32, %arg2: memref<1x36x256xbf16, #tpu.memory_space<vmem>>, %arg3: memref<1x36x256xbf16, #tpu.memory_space<vmem>>, %arg4: memref<9x256x256xbf16, #tpu.memory_space<vmem>>, %arg5: memref<9x256x256xbf16, #tpu.memory_space<vmem>>, %arg6: memref<1x4x4x256xbf16, #tpu.memory_space<vmem>>, %arg7: memref<1x2x256xf32, #tpu.memory_space<vmem>>) attributes {dimension_semantics = [#tpu.dimension_semantics<parallel>, #tpu.dimension_semantics<parallel>], iteration_bounds = array<i64: 1, 2>, scalar_prefetch = 0 : i64, scratch_operands = 0 : i64, tpu.core_type = #tpu.core_type<tc>, window_params = [{transform_indices = @transform_0, window_bounds = array<i64: 1, 36, 256>}, {transform_indices = @transform_1, window_bounds = array<i64: 1, 36, 256>}, {transform_indices = @transform_2, window_bounds = array<i64: 9, 256, 256>}, {transform_indices = @transform_3, window_bounds = array<i64: 9, 256, 256>}, {transform_indices = @transform_4, window_bounds = array<i64: 1, 4, 4, 256>}, {transform_indices = @transform_5, window_bounds = array<i64: 1, 2, 256>}]} {
    %cst = arith.constant 0.000000e+00 : f32
    %0 = vector.broadcast %cst : f32 to vector<24x256xf32>
    %cst_0 = arith.constant 0.000000e+00 : f32
    %1 = vector.broadcast %cst_0 : f32 to vector<24x256xf32>
    %cst_1 = arith.constant 0.000000e+00 : f32
    %2 = vector.broadcast %cst_1 : f32 to vector<24x256xf32>
    %c0 = arith.constant 0 : index
    %c0_2 = arith.constant 0 : index
    %c0_3 = arith.constant 0 : index
    %3 = vector.load %arg2[%c0, %c0_2, %c0_3] : memref<1x36x256xbf16, #tpu.memory_space<vmem>>, vector<1x24x256xbf16>
    %4 = vector.shape_cast %3 : vector<1x24x256xbf16> to vector<24x256xbf16>
    %c0_4 = arith.constant 0 : index
    %c0_5 = arith.constant 0 : index
    %c0_6 = arith.constant 0 : index
    %5 = vector.load %arg4[%c0_4, %c0_5, %c0_6] : memref<9x256x256xbf16, #tpu.memory_space<vmem>>, vector<1x256x256xbf16>
    %6 = vector.shape_cast %5 : vector<1x256x256xbf16> to vector<256x256xbf16>
    %cst_7 = arith.constant dense<0.000000e+00> : vector<24x256xf32>
    %7 = tpu.matmul %4, %6, %cst_7 {dimension_numbers = #tpu.dot_dimension_numbers<[1], [0], [0], [1], [0, 0, 1, 1], [], []>} : vector<24x256xbf16>, vector<256x256xbf16>, vector<24x256xf32> -> vector<24x256xf32>
    %8 = arith.addf %0, %7 : vector<24x256xf32>
    %c1 = arith.constant 1 : index
    %c0_8 = arith.constant 0 : index
    %c0_9 = arith.constant 0 : index
    %9 = vector.load %arg4[%c1, %c0_8, %c0_9] : memref<9x256x256xbf16, #tpu.memory_space<vmem>>, vector<1x256x256xbf16>
    %10 = vector.shape_cast %9 : vector<1x256x256xbf16> to vector<256x256xbf16>
    %cst_10 = arith.constant dense<0.000000e+00> : vector<24x256xf32>
    %11 = tpu.matmul %4, %10, %cst_10 {dimension_numbers = #tpu.dot_dimension_numbers<[1], [0], [0], [1], [0, 0, 1, 1], [], []>} : vector<24x256xbf16>, vector<256x256xbf16>, vector<24x256xf32> -> vector<24x256xf32>
    %12 = arith.addf %1, %11 : vector<24x256xf32>
    %c2 = arith.constant 2 : index
    %c0_11 = arith.constant 0 : index
    %c0_12 = arith.constant 0 : index
    %13 = vector.load %arg4[%c2, %c0_11, %c0_12] : memref<9x256x256xbf16, #tpu.memory_space<vmem>>, vector<1x256x256xbf16>
    %14 = vector.shape_cast %13 : vector<1x256x256xbf16> to vector<256x256xbf16>
    %cst_13 = arith.constant dense<0.000000e+00> : vector<24x256xf32>
    %15 = tpu.matmul %4, %14, %cst_13 {dimension_numbers = #tpu.dot_dimension_numbers<[1], [0], [0], [1], [0, 0, 1, 1], [], []>} : vector<24x256xbf16>, vector<256x256xbf16>, vector<24x256xf32> -> vector<24x256xf32>
    %16 = arith.addf %2, %15 : vector<24x256xf32>
    %c0_14 = arith.constant 0 : index
    %c6 = arith.constant 6 : index
    %c0_15 = arith.constant 0 : index
    %17 = vector.load %arg2[%c0_14, %c6, %c0_15] : memref<1x36x256xbf16, #tpu.memory_space<vmem>>, vector<1x24x256xbf16>
    %18 = vector.shape_cast %17 : vector<1x24x256xbf16> to vector<24x256xbf16>
    %c3 = arith.constant 3 : index
    %c0_16 = arith.constant 0 : index
    %c0_17 = arith.constant 0 : index
    %19 = vector.load %arg4[%c3, %c0_16, %c0_17] : memref<9x256x256xbf16, #tpu.memory_space<vmem>>, vector<1x256x256xbf16>
    %20 = vector.shape_cast %19 : vector<1x256x256xbf16> to vector<256x256xbf16>
    %cst_18 = arith.constant dense<0.000000e+00> : vector<24x256xf32>
    %21 = tpu.matmul %18, %20, %cst_18 {dimension_numbers = #tpu.dot_dimension_numbers<[1], [0], [0], [1], [0, 0, 1, 1], [], []>} : vector<24x256xbf16>, vector<256x256xbf16>, vector<24x256xf32> -> vector<24x256xf32>
    %22 = arith.addf %8, %21 : vector<24x256xf32>
    %c4 = arith.constant 4 : index
    %c0_19 = arith.constant 0 : index
    %c0_20 = arith.constant 0 : index
    %23 = vector.load %arg4[%c4, %c0_19, %c0_20] : memref<9x256x256xbf16, #tpu.memory_space<vmem>>, vector<1x256x256xbf16>
    %24 = vector.shape_cast %23 : vector<1x256x256xbf16> to vector<256x256xbf16>
    %cst_21 = arith.constant dense<0.000000e+00> : vector<24x256xf32>
    %25 = tpu.matmul %18, %24, %cst_21 {dimension_numbers = #tpu.dot_dimension_numbers<[1], [0], [0], [1], [0, 0, 1, 1], [], []>} : vector<24x256xbf16>, vector<256x256xbf16>, vector<24x256xf32> -> vector<24x256xf32>
    %26 = arith.addf %12, %25 : vector<24x256xf32>
    %c5 = arith.constant 5 : index
    %c0_22 = arith.constant 0 : index
    %c0_23 = arith.constant 0 : index
    %27 = vector.load %arg4[%c5, %c0_22, %c0_23] : memref<9x256x256xbf16, #tpu.memory_space<vmem>>, vector<1x256x256xbf16>
    %28 = vector.shape_cast %27 : vector<1x256x256xbf16> to vector<256x256xbf16>
    %cst_24 = arith.constant dense<0.000000e+00> : vector<24x256xf32>
    %29 = tpu.matmul %18, %28, %cst_24 {dimension_numbers = #tpu.dot_dimension_numbers<[1], [0], [0], [1], [0, 0, 1, 1], [], []>} : vector<24x256xbf16>, vector<256x256xbf16>, vector<24x256xf32> -> vector<24x256xf32>
    %30 = arith.addf %16, %29 : vector<24x256xf32>
    %c0_25 = arith.constant 0 : index
    %c12 = arith.constant 12 : index
    %c0_26 = arith.constant 0 : index
    %31 = vector.load %arg2[%c0_25, %c12, %c0_26] : memref<1x36x256xbf16, #tpu.memory_space<vmem>>, vector<1x24x256xbf16>
    %32 = vector.shape_cast %31 : vector<1x24x256xbf16> to vector<24x256xbf16>
    %c6_27 = arith.constant 6 : index
    %c0_28 = arith.constant 0 : index
    %c0_29 = arith.constant 0 : index
    %33 = vector.load %arg4[%c6_27, %c0_28, %c0_29] : memref<9x256x256xbf16, #tpu.memory_space<vmem>>, vector<1x256x256xbf16>
    %34 = vector.shape_cast %33 : vector<1x256x256xbf16> to vector<256x256xbf16>
    %cst_30 = arith.constant dense<0.000000e+00> : vector<24x256xf32>
    %35 = tpu.matmul %32, %34, %cst_30 {dimension_numbers = #tpu.dot_dimension_numbers<[1], [0], [0], [1], [0, 0, 1, 1], [], []>} : vector<24x256xbf16>, vector<256x256xbf16>, vector<24x256xf32> -> vector<24x256xf32>
    %36 = arith.addf %22, %35 : vector<24x256xf32>
    %c7 = arith.constant 7 : index
    %c0_31 = arith.constant 0 : index
    %c0_32 = arith.constant 0 : index
    %37 = vector.load %arg4[%c7, %c0_31, %c0_32] : memref<9x256x256xbf16, #tpu.memory_space<vmem>>, vector<1x256x256xbf16>
    %38 = vector.shape_cast %37 : vector<1x256x256xbf16> to vector<256x256xbf16>
    %cst_33 = arith.constant dense<0.000000e+00> : vector<24x256xf32>
    %39 = tpu.matmul %32, %38, %cst_33 {dimension_numbers = #tpu.dot_dimension_numbers<[1], [0], [0], [1], [0, 0, 1, 1], [], []>} : vector<24x256xbf16>, vector<256x256xbf16>, vector<24x256xf32> -> vector<24x256xf32>
    %40 = arith.addf %26, %39 : vector<24x256xf32>
    %c8 = arith.constant 8 : index
    %c0_34 = arith.constant 0 : index
    %c0_35 = arith.constant 0 : index
    %41 = vector.load %arg4[%c8, %c0_34, %c0_35] : memref<9x256x256xbf16, #tpu.memory_space<vmem>>, vector<1x256x256xbf16>
    %42 = vector.shape_cast %41 : vector<1x256x256xbf16> to vector<256x256xbf16>
    %cst_36 = arith.constant dense<0.000000e+00> : vector<24x256xf32>
    %43 = tpu.matmul %32, %42, %cst_36 {dimension_numbers = #tpu.dot_dimension_numbers<[1], [0], [0], [1], [0, 0, 1, 1], [], []>} : vector<24x256xbf16>, vector<256x256xbf16>, vector<24x256xf32> -> vector<24x256xf32>
    %44 = arith.addf %30, %43 : vector<24x256xf32>
    %c0_37 = arith.constant 0 : index
    %c0_38 = arith.constant 0 : index
    %c0_39 = arith.constant 0 : index
    %45 = vector.load %arg3[%c0_37, %c0_38, %c0_39] : memref<1x36x256xbf16, #tpu.memory_space<vmem>>, vector<1x24x256xbf16>
    %46 = vector.shape_cast %45 : vector<1x24x256xbf16> to vector<24x256xbf16>
    %c0_40 = arith.constant 0 : index
    %c0_41 = arith.constant 0 : index
    %c0_42 = arith.constant 0 : index
    %47 = vector.load %arg5[%c0_40, %c0_41, %c0_42] : memref<9x256x256xbf16, #tpu.memory_space<vmem>>, vector<1x256x256xbf16>
    %48 = vector.shape_cast %47 : vector<1x256x256xbf16> to vector<256x256xbf16>
    %cst_43 = arith.constant dense<0.000000e+00> : vector<24x256xf32>
    %49 = tpu.matmul %46, %48, %cst_43 {dimension_numbers = #tpu.dot_dimension_numbers<[1], [0], [0], [1], [0, 0, 1, 1], [], []>} : vector<24x256xbf16>, vector<256x256xbf16>, vector<24x256xf32> -> vector<24x256xf32>
    %50 = arith.addf %36, %49 : vector<24x256xf32>
    %c1_44 = arith.constant 1 : index
    %c0_45 = arith.constant 0 : index
    %c0_46 = arith.constant 0 : index
    %51 = vector.load %arg5[%c1_44, %c0_45, %c0_46] : memref<9x256x256xbf16, #tpu.memory_space<vmem>>, vector<1x256x256xbf16>
    %52 = vector.shape_cast %51 : vector<1x256x256xbf16> to vector<256x256xbf16>
    %cst_47 = arith.constant dense<0.000000e+00> : vector<24x256xf32>
    %53 = tpu.matmul %46, %52, %cst_47 {dimension_numbers = #tpu.dot_dimension_numbers<[1], [0], [0], [1], [0, 0, 1, 1], [], []>} : vector<24x256xbf16>, vector<256x256xbf16>, vector<24x256xf32> -> vector<24x256xf32>
    %54 = arith.addf %40, %53 : vector<24x256xf32>
    %c2_48 = arith.constant 2 : index
    %c0_49 = arith.constant 0 : index
    %c0_50 = arith.constant 0 : index
    %55 = vector.load %arg5[%c2_48, %c0_49, %c0_50] : memref<9x256x256xbf16, #tpu.memory_space<vmem>>, vector<1x256x256xbf16>
    %56 = vector.shape_cast %55 : vector<1x256x256xbf16> to vector<256x256xbf16>
    %cst_51 = arith.constant dense<0.000000e+00> : vector<24x256xf32>
    %57 = tpu.matmul %46, %56, %cst_51 {dimension_numbers = #tpu.dot_dimension_numbers<[1], [0], [0], [1], [0, 0, 1, 1], [], []>} : vector<24x256xbf16>, vector<256x256xbf16>, vector<24x256xf32> -> vector<24x256xf32>
    %58 = arith.addf %44, %57 : vector<24x256xf32>
    %c0_52 = arith.constant 0 : index
    %c6_53 = arith.constant 6 : index
    %c0_54 = arith.constant 0 : index
    %59 = vector.load %arg3[%c0_52, %c6_53, %c0_54] : memref<1x36x256xbf16, #tpu.memory_space<vmem>>, vector<1x24x256xbf16>
    %60 = vector.shape_cast %59 : vector<1x24x256xbf16> to vector<24x256xbf16>
    %c3_55 = arith.constant 3 : index
    %c0_56 = arith.constant 0 : index
    %c0_57 = arith.constant 0 : index
    %61 = vector.load %arg5[%c3_55, %c0_56, %c0_57] : memref<9x256x256xbf16, #tpu.memory_space<vmem>>, vector<1x256x256xbf16>
    %62 = vector.shape_cast %61 : vector<1x256x256xbf16> to vector<256x256xbf16>
    %cst_58 = arith.constant dense<0.000000e+00> : vector<24x256xf32>
    %63 = tpu.matmul %60, %62, %cst_58 {dimension_numbers = #tpu.dot_dimension_numbers<[1], [0], [0], [1], [0, 0, 1, 1], [], []>} : vector<24x256xbf16>, vector<256x256xbf16>, vector<24x256xf32> -> vector<24x256xf32>
    %64 = arith.addf %50, %63 : vector<24x256xf32>
    %c4_59 = arith.constant 4 : index
    %c0_60 = arith.constant 0 : index
    %c0_61 = arith.constant 0 : index
    %65 = vector.load %arg5[%c4_59, %c0_60, %c0_61] : memref<9x256x256xbf16, #tpu.memory_space<vmem>>, vector<1x256x256xbf16>
    %66 = vector.shape_cast %65 : vector<1x256x256xbf16> to vector<256x256xbf16>
    %cst_62 = arith.constant dense<0.000000e+00> : vector<24x256xf32>
    %67 = tpu.matmul %60, %66, %cst_62 {dimension_numbers = #tpu.dot_dimension_numbers<[1], [0], [0], [1], [0, 0, 1, 1], [], []>} : vector<24x256xbf16>, vector<256x256xbf16>, vector<24x256xf32> -> vector<24x256xf32>
    %68 = arith.addf %54, %67 : vector<24x256xf32>
    %c5_63 = arith.constant 5 : index
    %c0_64 = arith.constant 0 : index
    %c0_65 = arith.constant 0 : index
    %69 = vector.load %arg5[%c5_63, %c0_64, %c0_65] : memref<9x256x256xbf16, #tpu.memory_space<vmem>>, vector<1x256x256xbf16>
    %70 = vector.shape_cast %69 : vector<1x256x256xbf16> to vector<256x256xbf16>
    %cst_66 = arith.constant dense<0.000000e+00> : vector<24x256xf32>
    %71 = tpu.matmul %60, %70, %cst_66 {dimension_numbers = #tpu.dot_dimension_numbers<[1], [0], [0], [1], [0, 0, 1, 1], [], []>} : vector<24x256xbf16>, vector<256x256xbf16>, vector<24x256xf32> -> vector<24x256xf32>
    %72 = arith.addf %58, %71 : vector<24x256xf32>
    %c0_67 = arith.constant 0 : index
    %c12_68 = arith.constant 12 : index
    %c0_69 = arith.constant 0 : index
    %73 = vector.load %arg3[%c0_67, %c12_68, %c0_69] : memref<1x36x256xbf16, #tpu.memory_space<vmem>>, vector<1x24x256xbf16>
    %74 = vector.shape_cast %73 : vector<1x24x256xbf16> to vector<24x256xbf16>
    %c6_70 = arith.constant 6 : index
    %c0_71 = arith.constant 0 : index
    %c0_72 = arith.constant 0 : index
    %75 = vector.load %arg5[%c6_70, %c0_71, %c0_72] : memref<9x256x256xbf16, #tpu.memory_space<vmem>>, vector<1x256x256xbf16>
    %76 = vector.shape_cast %75 : vector<1x256x256xbf16> to vector<256x256xbf16>
    %cst_73 = arith.constant dense<0.000000e+00> : vector<24x256xf32>
    %77 = tpu.matmul %74, %76, %cst_73 {dimension_numbers = #tpu.dot_dimension_numbers<[1], [0], [0], [1], [0, 0, 1, 1], [], []>} : vector<24x256xbf16>, vector<256x256xbf16>, vector<24x256xf32> -> vector<24x256xf32>
    %78 = arith.addf %64, %77 : vector<24x256xf32>
    %c7_74 = arith.constant 7 : index
    %c0_75 = arith.constant 0 : index
    %c0_76 = arith.constant 0 : index
    %79 = vector.load %arg5[%c7_74, %c0_75, %c0_76] : memref<9x256x256xbf16, #tpu.memory_space<vmem>>, vector<1x256x256xbf16>
    %80 = vector.shape_cast %79 : vector<1x256x256xbf16> to vector<256x256xbf16>
    %cst_77 = arith.constant dense<0.000000e+00> : vector<24x256xf32>
    %81 = tpu.matmul %74, %80, %cst_77 {dimension_numbers = #tpu.dot_dimension_numbers<[1], [0], [0], [1], [0, 0, 1, 1], [], []>} : vector<24x256xbf16>, vector<256x256xbf16>, vector<24x256xf32> -> vector<24x256xf32>
    %82 = arith.addf %68, %81 : vector<24x256xf32>
    %c8_78 = arith.constant 8 : index
    %c0_79 = arith.constant 0 : index
    %c0_80 = arith.constant 0 : index
    %83 = vector.load %arg5[%c8_78, %c0_79, %c0_80] : memref<9x256x256xbf16, #tpu.memory_space<vmem>>, vector<1x256x256xbf16>
    %84 = vector.shape_cast %83 : vector<1x256x256xbf16> to vector<256x256xbf16>
    %cst_81 = arith.constant dense<0.000000e+00> : vector<24x256xf32>
    %85 = tpu.matmul %74, %84, %cst_81 {dimension_numbers = #tpu.dot_dimension_numbers<[1], [0], [0], [1], [0, 0, 1, 1], [], []>} : vector<24x256xbf16>, vector<256x256xbf16>, vector<24x256xf32> -> vector<24x256xf32>
    %86 = arith.addf %72, %85 : vector<24x256xf32>
    %cst_82 = arith.constant 0.000000e+00 : f32
    %87 = vector.broadcast %cst_82 : f32 to vector<1x256xf32>
    %cst_83 = arith.constant 0.000000e+00 : f32
    %88 = vector.broadcast %cst_83 : f32 to vector<1x256xf32>
    %89 = vector.extract_strided_slice %78 {offsets = [0, 0], sizes = [4, 256], strides = [1, 1]} : vector<24x256xf32> to vector<4x256xf32>
    %90 = vector.extract_strided_slice %82 {offsets = [1, 0], sizes = [4, 256], strides = [1, 1]} : vector<24x256xf32> to vector<4x256xf32>
    %91 = arith.addf %89, %90 : vector<4x256xf32>
    %92 = vector.extract_strided_slice %86 {offsets = [2, 0], sizes = [4, 256], strides = [1, 1]} : vector<24x256xf32> to vector<4x256xf32>
    %93 = arith.addf %91, %92 : vector<4x256xf32>
    %94 = arith.truncf %93 : vector<4x256xf32> to vector<4x256xbf16>
    %c0_84 = arith.constant 0 : index
    %c0_85 = arith.constant 0 : index
    %c0_86 = arith.constant 0 : index
    %c0_87 = arith.constant 0 : index
    %95 = vector.load %arg6[%c0_84, %c0_85, %c0_86, %c0_87] : memref<1x4x4x256xbf16, #tpu.memory_space<vmem>>, vector<1x1x4x256xbf16>
    %96 = vector.shape_cast %95 : vector<1x1x4x256xbf16> to vector<4x256xbf16>
    %97 = vector.shape_cast %94 : vector<4x256xbf16> to vector<1x1x4x256xbf16>
    tpu.vector_store %arg6[%c0_84, %c0_85, %c0_86, %c0_87], %97 {strides = array<i32>} : memref<1x4x4x256xbf16, #tpu.memory_space<vmem>>, vector<1x1x4x256xbf16>,
    %cst_88 = arith.constant dense<0.000000e+00> : vector<256xf32>
    %98 = vector.multi_reduction <add>, %93, %cst_88 [0] : vector<4x256xf32> to vector<256xf32>
    %99 = vector.shape_cast %98 : vector<256xf32> to vector<1x256xf32>
    %100 = arith.addf %87, %99 : vector<1x256xf32>
    %101 = arith.mulf %93, %93 : vector<4x256xf32>
    %cst_89 = arith.constant dense<0.000000e+00> : vector<256xf32>
    %102 = vector.multi_reduction <add>, %101, %cst_89 [0] : vector<4x256xf32> to vector<256xf32>
    %103 = vector.shape_cast %102 : vector<256xf32> to vector<1x256xf32>
    %104 = arith.addf %88, %103 : vector<1x256xf32>
    %105 = vector.extract_strided_slice %78 {offsets = [6, 0], sizes = [4, 256], strides = [1, 1]} : vector<24x256xf32> to vector<4x256xf32>
    %106 = vector.extract_strided_slice %82 {offsets = [7, 0], sizes = [4, 256], strides = [1, 1]} : vector<24x256xf32> to vector<4x256xf32>
    %107 = arith.addf %105, %106 : vector<4x256xf32>
    %108 = vector.extract_strided_slice %86 {offsets = [8, 0], sizes = [4, 256], strides = [1, 1]} : vector<24x256xf32> to vector<4x256xf32>
    %109 = arith.addf %107, %108 : vector<4x256xf32>
    %110 = arith.truncf %109 : vector<4x256xf32> to vector<4x256xbf16>
    %c0_90 = arith.constant 0 : index
    %c1_91 = arith.constant 1 : index
    %c0_92 = arith.constant 0 : index
    %c0_93 = arith.constant 0 : index
    %111 = vector.load %arg6[%c0_90, %c1_91, %c0_92, %c0_93] : memref<1x4x4x256xbf16, #tpu.memory_space<vmem>>, vector<1x1x4x256xbf16>
    %112 = vector.shape_cast %111 : vector<1x1x4x256xbf16> to vector<4x256xbf16>
    %113 = vector.shape_cast %110 : vector<4x256xbf16> to vector<1x1x4x256xbf16>
    tpu.vector_store %arg6[%c0_90, %c1_91, %c0_92, %c0_93], %113 {strides = array<i32>} : memref<1x4x4x256xbf16, #tpu.memory_space<vmem>>, vector<1x1x4x256xbf16>,
    %cst_94 = arith.constant dense<0.000000e+00> : vector<256xf32>
    %114 = vector.multi_reduction <add>, %109, %cst_94 [0] : vector<4x256xf32> to vector<256xf32>
    %115 = vector.shape_cast %114 : vector<256xf32> to vector<1x256xf32>
    %116 = arith.addf %100, %115 : vector<1x256xf32>
    %117 = arith.mulf %109, %109 : vector<4x256xf32>
    %cst_95 = arith.constant dense<0.000000e+00> : vector<256xf32>
    %118 = vector.multi_reduction <add>, %117, %cst_95 [0] : vector<4x256xf32> to vector<256xf32>
    %119 = vector.shape_cast %118 : vector<256xf32> to vector<1x256xf32>
    %120 = arith.addf %104, %119 : vector<1x256xf32>
    %121 = vector.extract_strided_slice %78 {offsets = [12, 0], sizes = [4, 256], strides = [1, 1]} : vector<24x256xf32> to vector<4x256xf32>
    %122 = vector.extract_strided_slice %82 {offsets = [13, 0], sizes = [4, 256], strides = [1, 1]} : vector<24x256xf32> to vector<4x256xf32>
    %123 = arith.addf %121, %122 : vector<4x256xf32>
    %124 = vector.extract_strided_slice %86 {offsets = [14, 0], sizes = [4, 256], strides = [1, 1]} : vector<24x256xf32> to vector<4x256xf32>
    %125 = arith.addf %123, %124 : vector<4x256xf32>
    %126 = arith.truncf %125 : vector<4x256xf32> to vector<4x256xbf16>
    %c0_96 = arith.constant 0 : index
    %c2_97 = arith.constant 2 : index
    %c0_98 = arith.constant 0 : index
    %c0_99 = arith.constant 0 : index
    %127 = vector.load %arg6[%c0_96, %c2_97, %c0_98, %c0_99] : memref<1x4x4x256xbf16, #tpu.memory_space<vmem>>, vector<1x1x4x256xbf16>
    %128 = vector.shape_cast %127 : vector<1x1x4x256xbf16> to vector<4x256xbf16>
    %129 = vector.shape_cast %126 : vector<4x256xbf16> to vector<1x1x4x256xbf16>
    tpu.vector_store %arg6[%c0_96, %c2_97, %c0_98, %c0_99], %129 {strides = array<i32>} : memref<1x4x4x256xbf16, #tpu.memory_space<vmem>>, vector<1x1x4x256xbf16>,
    %cst_100 = arith.constant dense<0.000000e+00> : vector<256xf32>
    %130 = vector.multi_reduction <add>, %125, %cst_100 [0] : vector<4x256xf32> to vector<256xf32>
    %131 = vector.shape_cast %130 : vector<256xf32> to vector<1x256xf32>
    %132 = arith.addf %116, %131 : vector<1x256xf32>
    %133 = arith.mulf %125, %125 : vector<4x256xf32>
    %cst_101 = arith.constant dense<0.000000e+00> : vector<256xf32>
    %134 = vector.multi_reduction <add>, %133, %cst_101 [0] : vector<4x256xf32> to vector<256xf32>
    %135 = vector.shape_cast %134 : vector<256xf32> to vector<1x256xf32>
    %136 = arith.addf %120, %135 : vector<1x256xf32>
    %137 = vector.extract_strided_slice %78 {offsets = [18, 0], sizes = [4, 256], strides = [1, 1]} : vector<24x256xf32> to vector<4x256xf32>
    %138 = vector.extract_strided_slice %82 {offsets = [19, 0], sizes = [4, 256], strides = [1, 1]} : vector<24x256xf32> to vector<4x256xf32>
    %139 = arith.addf %137, %138 : vector<4x256xf32>
    %140 = vector.extract_strided_slice %86 {offsets = [20, 0], sizes = [4, 256], strides = [1, 1]} : vector<24x256xf32> to vector<4x256xf32>
    %141 = arith.addf %139, %140 : vector<4x256xf32>
    %142 = arith.truncf %141 : vector<4x256xf32> to vector<4x256xbf16>
    %c0_102 = arith.constant 0 : index
    %c3_103 = arith.constant 3 : index
    %c0_104 = arith.constant 0 : index
    %c0_105 = arith.constant 0 : index
    %143 = vector.load %arg6[%c0_102, %c3_103, %c0_104, %c0_105] : memref<1x4x4x256xbf16, #tpu.memory_space<vmem>>, vector<1x1x4x256xbf16>
    %144 = vector.shape_cast %143 : vector<1x1x4x256xbf16> to vector<4x256xbf16>
    %145 = vector.shape_cast %142 : vector<4x256xbf16> to vector<1x1x4x256xbf16>
    tpu.vector_store %arg6[%c0_102, %c3_103, %c0_104, %c0_105], %145 {strides = array<i32>} : memref<1x4x4x256xbf16, #tpu.memory_space<vmem>>, vector<1x1x4x256xbf16>,
    %cst_106 = arith.constant dense<0.000000e+00> : vector<256xf32>
    %146 = vector.multi_reduction <add>, %141, %cst_106 [0] : vector<4x256xf32> to vector<256xf32>
    %147 = vector.shape_cast %146 : vector<256xf32> to vector<1x256xf32>
    %148 = arith.addf %132, %147 : vector<1x256xf32>
    %149 = arith.mulf %141, %141 : vector<4x256xf32>
    %cst_107 = arith.constant dense<0.000000e+00> : vector<256xf32>
    %150 = vector.multi_reduction <add>, %149, %cst_107 [0] : vector<4x256xf32> to vector<256xf32>
    %151 = vector.shape_cast %150 : vector<256xf32> to vector<1x256xf32>
    %152 = arith.addf %136, %151 : vector<1x256xf32>
    %c0_108 = arith.constant 0 : index
    %c0_109 = arith.constant 0 : index
    %c0_110 = arith.constant 0 : index
    %153 = vector.load %arg7[%c0_108, %c0_109, %c0_110] : memref<1x2x256xf32, #tpu.memory_space<vmem>>, vector<1x1x256xf32>
    %154 = vector.shape_cast %153 : vector<1x1x256xf32> to vector<1x256xf32>
    %155 = vector.shape_cast %148 : vector<1x256xf32> to vector<1x1x256xf32>
    tpu.vector_store %arg7[%c0_108, %c0_109, %c0_110], %155 {strides = array<i32>} : memref<1x2x256xf32, #tpu.memory_space<vmem>>, vector<1x1x256xf32>,
    %c0_111 = arith.constant 0 : index
    %c1_112 = arith.constant 1 : index
    %c0_113 = arith.constant 0 : index
    %156 = vector.load %arg7[%c0_111, %c1_112, %c0_113] : memref<1x2x256xf32, #tpu.memory_space<vmem>>, vector<1x1x256xf32>
    %157 = vector.shape_cast %156 : vector<1x1x256xf32> to vector<1x256xf32>
    %158 = vector.shape_cast %152 : vector<1x256xf32> to vector<1x1x256xf32>
    tpu.vector_store %arg7[%c0_111, %c1_112, %c0_113], %158 {strides = array<i32>} : memref<1x2x256xf32, #tpu.memory_space<vmem>>, vector<1x1x256xf32>,
    return
  }
  func.func @transform_0(%arg0: i32, %arg1: i32) -> (i32, i32, i32) {
    %c0_i32 = arith.constant 0 : i32
    %c0_i32_0 = arith.constant 0 : i32
    %c0_i32_1 = arith.constant 0 : i32
    return %arg1, %c0_i32, %c0_i32_0 : i32, i32, i32
  }
  func.func @transform_1(%arg0: i32, %arg1: i32) -> (i32, i32, i32) {
    %c0_i32 = arith.constant 0 : i32
    %c0_i32_0 = arith.constant 0 : i32
    %c0_i32_1 = arith.constant 0 : i32
    return %arg1, %c0_i32, %c0_i32_0 : i32, i32, i32
  }
  func.func @transform_2(%arg0: i32, %arg1: i32) -> (i32, i32, i32) {
    %c0_i32 = arith.constant 0 : i32
    %c0_i32_0 = arith.constant 0 : i32
    %c0_i32_1 = arith.constant 0 : i32
    return %c0_i32, %c0_i32_0, %arg0 : i32, i32, i32
  }
  func.func @transform_3(%arg0: i32, %arg1: i32) -> (i32, i32, i32) {
    %c0_i32 = arith.constant 0 : i32
    %c0_i32_0 = arith.constant 0 : i32
    %c0_i32_1 = arith.constant 0 : i32
    return %c0_i32, %c0_i32_0, %arg0 : i32, i32, i32
  }
  func.func @transform_4(%arg0: i32, %arg1: i32) -> (i32, i32, i32, i32) {
    %c0_i32 = arith.constant 0 : i32
    %c0_i32_0 = arith.constant 0 : i32
    %c0_i32_1 = arith.constant 0 : i32
    return %arg1, %c0_i32, %c0_i32_0, %arg0 : i32, i32, i32, i32
  }
  func.func @transform_5(%arg0: i32, %arg1: i32) -> (i32, i32, i32) {
    %c0_i32 = arith.constant 0 : i32
    %c0_i32_0 = arith.constant 0 : i32
    return %arg1, %c0_i32, %arg0 : i32, i32, i32
  }
}

module attributes {stable_mosaic.version = 11 : i64} {
  func.func @kernel(%arg0: i32, %arg1: memref<32x256xbf16, #tpu.memory_space<vmem>>, %arg2: memref<2x256x256xbf16, #tpu.memory_space<vmem>>, %arg3: memref<1x256xf32, #tpu.memory_space<vmem>>, %arg4: memref<8x2x4x256xbf16, #tpu.memory_space<vmem>>) attributes {dimension_semantics = [#tpu.dimension_semantics<parallel>], iteration_bounds = array<i64: 1>, scalar_prefetch = 0 : i64, scratch_operands = 0 : i64, tpu.core_type = #tpu.core_type<tc>, window_params = [{transform_indices = @transform_0, window_bounds = array<i64: 32, 256>}, {pipeline_mode = #tpu.pipeline_mode<synchronous>, transform_indices = @transform_1, window_bounds = array<i64: 2, 256, 256>}, {pipeline_mode = #tpu.pipeline_mode<synchronous>, transform_indices = @transform_2, window_bounds = array<i64: 1, 256>}, {transform_indices = @transform_3, window_bounds = array<i64: 8, 2, 4, 256>}]} {
    %c0 = arith.constant 0 : index
    %c0_0 = arith.constant 0 : index
    %0 = vector.load %arg1[%c0, %c0_0] : memref<32x256xbf16, #tpu.memory_space<vmem>>, vector<32x256xbf16>
    %c0_1 = arith.constant 0 : index
    %c0_2 = arith.constant 0 : index
    %1 = vector.load %arg3[%c0_1, %c0_2] : memref<1x256xf32, #tpu.memory_space<vmem>>, vector<1x256xf32>
    %c0_3 = arith.constant 0 : index
    %c0_4 = arith.constant 0 : index
    %c0_5 = arith.constant 0 : index
    %2 = vector.load %arg2[%c0_3, %c0_4, %c0_5] : memref<2x256x256xbf16, #tpu.memory_space<vmem>>, vector<1x256x256xbf16>
    %3 = vector.shape_cast %2 : vector<1x256x256xbf16> to vector<256x256xbf16>
    %cst = arith.constant dense<0.000000e+00> : vector<32x256xf32>
    %4 = tpu.matmul %0, %3, %cst {dimension_numbers = #tpu.dot_dimension_numbers<[1], [0], [0], [1], [0, 0, 1, 1], [], []>} : vector<32x256xbf16>, vector<256x256xbf16>, vector<32x256xf32> -> vector<32x256xf32>
    %5 = vector.broadcast %1 : vector<1x256xf32> to vector<32x256xf32>
    %6 = arith.addf %4, %5 : vector<32x256xf32>
    %7 = arith.truncf %6 : vector<32x256xf32> to vector<32x256xbf16>
    %8 = vector.extract_strided_slice %7 {offsets = [0, 0], sizes = [4, 256], strides = [1, 1]} : vector<32x256xbf16> to vector<4x256xbf16>
    %c0_6 = arith.constant 0 : index
    %c0_7 = arith.constant 0 : index
    %c0_8 = arith.constant 0 : index
    %c0_9 = arith.constant 0 : index
    %9 = vector.load %arg4[%c0_6, %c0_7, %c0_8, %c0_9] : memref<8x2x4x256xbf16, #tpu.memory_space<vmem>>, vector<1x1x4x256xbf16>
    %10 = vector.shape_cast %9 : vector<1x1x4x256xbf16> to vector<4x256xbf16>
    %11 = vector.shape_cast %8 : vector<4x256xbf16> to vector<1x1x4x256xbf16>
    tpu.vector_store %arg4[%c0_6, %c0_7, %c0_8, %c0_9], %11 {strides = array<i32>} : memref<8x2x4x256xbf16, #tpu.memory_space<vmem>>, vector<1x1x4x256xbf16>,
    %12 = vector.extract_strided_slice %7 {offsets = [4, 0], sizes = [4, 256], strides = [1, 1]} : vector<32x256xbf16> to vector<4x256xbf16>
    %c1 = arith.constant 1 : index
    %c0_10 = arith.constant 0 : index
    %c0_11 = arith.constant 0 : index
    %c0_12 = arith.constant 0 : index
    %13 = vector.load %arg4[%c1, %c0_10, %c0_11, %c0_12] : memref<8x2x4x256xbf16, #tpu.memory_space<vmem>>, vector<1x1x4x256xbf16>
    %14 = vector.shape_cast %13 : vector<1x1x4x256xbf16> to vector<4x256xbf16>
    %15 = vector.shape_cast %12 : vector<4x256xbf16> to vector<1x1x4x256xbf16>
    tpu.vector_store %arg4[%c1, %c0_10, %c0_11, %c0_12], %15 {strides = array<i32>} : memref<8x2x4x256xbf16, #tpu.memory_space<vmem>>, vector<1x1x4x256xbf16>,
    %16 = vector.extract_strided_slice %7 {offsets = [8, 0], sizes = [4, 256], strides = [1, 1]} : vector<32x256xbf16> to vector<4x256xbf16>
    %c2 = arith.constant 2 : index
    %c0_13 = arith.constant 0 : index
    %c0_14 = arith.constant 0 : index
    %c0_15 = arith.constant 0 : index
    %17 = vector.load %arg4[%c2, %c0_13, %c0_14, %c0_15] : memref<8x2x4x256xbf16, #tpu.memory_space<vmem>>, vector<1x1x4x256xbf16>
    %18 = vector.shape_cast %17 : vector<1x1x4x256xbf16> to vector<4x256xbf16>
    %19 = vector.shape_cast %16 : vector<4x256xbf16> to vector<1x1x4x256xbf16>
    tpu.vector_store %arg4[%c2, %c0_13, %c0_14, %c0_15], %19 {strides = array<i32>} : memref<8x2x4x256xbf16, #tpu.memory_space<vmem>>, vector<1x1x4x256xbf16>,
    %20 = vector.extract_strided_slice %7 {offsets = [12, 0], sizes = [4, 256], strides = [1, 1]} : vector<32x256xbf16> to vector<4x256xbf16>
    %c3 = arith.constant 3 : index
    %c0_16 = arith.constant 0 : index
    %c0_17 = arith.constant 0 : index
    %c0_18 = arith.constant 0 : index
    %21 = vector.load %arg4[%c3, %c0_16, %c0_17, %c0_18] : memref<8x2x4x256xbf16, #tpu.memory_space<vmem>>, vector<1x1x4x256xbf16>
    %22 = vector.shape_cast %21 : vector<1x1x4x256xbf16> to vector<4x256xbf16>
    %23 = vector.shape_cast %20 : vector<4x256xbf16> to vector<1x1x4x256xbf16>
    tpu.vector_store %arg4[%c3, %c0_16, %c0_17, %c0_18], %23 {strides = array<i32>} : memref<8x2x4x256xbf16, #tpu.memory_space<vmem>>, vector<1x1x4x256xbf16>,
    %24 = vector.extract_strided_slice %7 {offsets = [16, 0], sizes = [4, 256], strides = [1, 1]} : vector<32x256xbf16> to vector<4x256xbf16>
    %c4 = arith.constant 4 : index
    %c0_19 = arith.constant 0 : index
    %c0_20 = arith.constant 0 : index
    %c0_21 = arith.constant 0 : index
    %25 = vector.load %arg4[%c4, %c0_19, %c0_20, %c0_21] : memref<8x2x4x256xbf16, #tpu.memory_space<vmem>>, vector<1x1x4x256xbf16>
    %26 = vector.shape_cast %25 : vector<1x1x4x256xbf16> to vector<4x256xbf16>
    %27 = vector.shape_cast %24 : vector<4x256xbf16> to vector<1x1x4x256xbf16>
    tpu.vector_store %arg4[%c4, %c0_19, %c0_20, %c0_21], %27 {strides = array<i32>} : memref<8x2x4x256xbf16, #tpu.memory_space<vmem>>, vector<1x1x4x256xbf16>,
    %28 = vector.extract_strided_slice %7 {offsets = [20, 0], sizes = [4, 256], strides = [1, 1]} : vector<32x256xbf16> to vector<4x256xbf16>
    %c5 = arith.constant 5 : index
    %c0_22 = arith.constant 0 : index
    %c0_23 = arith.constant 0 : index
    %c0_24 = arith.constant 0 : index
    %29 = vector.load %arg4[%c5, %c0_22, %c0_23, %c0_24] : memref<8x2x4x256xbf16, #tpu.memory_space<vmem>>, vector<1x1x4x256xbf16>
    %30 = vector.shape_cast %29 : vector<1x1x4x256xbf16> to vector<4x256xbf16>
    %31 = vector.shape_cast %28 : vector<4x256xbf16> to vector<1x1x4x256xbf16>
    tpu.vector_store %arg4[%c5, %c0_22, %c0_23, %c0_24], %31 {strides = array<i32>} : memref<8x2x4x256xbf16, #tpu.memory_space<vmem>>, vector<1x1x4x256xbf16>,
    %32 = vector.extract_strided_slice %7 {offsets = [24, 0], sizes = [4, 256], strides = [1, 1]} : vector<32x256xbf16> to vector<4x256xbf16>
    %c6 = arith.constant 6 : index
    %c0_25 = arith.constant 0 : index
    %c0_26 = arith.constant 0 : index
    %c0_27 = arith.constant 0 : index
    %33 = vector.load %arg4[%c6, %c0_25, %c0_26, %c0_27] : memref<8x2x4x256xbf16, #tpu.memory_space<vmem>>, vector<1x1x4x256xbf16>
    %34 = vector.shape_cast %33 : vector<1x1x4x256xbf16> to vector<4x256xbf16>
    %35 = vector.shape_cast %32 : vector<4x256xbf16> to vector<1x1x4x256xbf16>
    tpu.vector_store %arg4[%c6, %c0_25, %c0_26, %c0_27], %35 {strides = array<i32>} : memref<8x2x4x256xbf16, #tpu.memory_space<vmem>>, vector<1x1x4x256xbf16>,
    %36 = vector.extract_strided_slice %7 {offsets = [28, 0], sizes = [4, 256], strides = [1, 1]} : vector<32x256xbf16> to vector<4x256xbf16>
    %c7 = arith.constant 7 : index
    %c0_28 = arith.constant 0 : index
    %c0_29 = arith.constant 0 : index
    %c0_30 = arith.constant 0 : index
    %37 = vector.load %arg4[%c7, %c0_28, %c0_29, %c0_30] : memref<8x2x4x256xbf16, #tpu.memory_space<vmem>>, vector<1x1x4x256xbf16>
    %38 = vector.shape_cast %37 : vector<1x1x4x256xbf16> to vector<4x256xbf16>
    %39 = vector.shape_cast %36 : vector<4x256xbf16> to vector<1x1x4x256xbf16>
    tpu.vector_store %arg4[%c7, %c0_28, %c0_29, %c0_30], %39 {strides = array<i32>} : memref<8x2x4x256xbf16, #tpu.memory_space<vmem>>, vector<1x1x4x256xbf16>,
    %c1_31 = arith.constant 1 : index
    %c0_32 = arith.constant 0 : index
    %c0_33 = arith.constant 0 : index
    %40 = vector.load %arg2[%c1_31, %c0_32, %c0_33] : memref<2x256x256xbf16, #tpu.memory_space<vmem>>, vector<1x256x256xbf16>
    %41 = vector.shape_cast %40 : vector<1x256x256xbf16> to vector<256x256xbf16>
    %cst_34 = arith.constant dense<0.000000e+00> : vector<32x256xf32>
    %42 = tpu.matmul %0, %41, %cst_34 {dimension_numbers = #tpu.dot_dimension_numbers<[1], [0], [0], [1], [0, 0, 1, 1], [], []>} : vector<32x256xbf16>, vector<256x256xbf16>, vector<32x256xf32> -> vector<32x256xf32>
    %43 = vector.broadcast %1 : vector<1x256xf32> to vector<32x256xf32>
    %44 = arith.addf %42, %43 : vector<32x256xf32>
    %45 = arith.truncf %44 : vector<32x256xf32> to vector<32x256xbf16>
    %46 = vector.extract_strided_slice %45 {offsets = [0, 0], sizes = [4, 256], strides = [1, 1]} : vector<32x256xbf16> to vector<4x256xbf16>
    %c0_35 = arith.constant 0 : index
    %c1_36 = arith.constant 1 : index
    %c0_37 = arith.constant 0 : index
    %c0_38 = arith.constant 0 : index
    %47 = vector.load %arg4[%c0_35, %c1_36, %c0_37, %c0_38] : memref<8x2x4x256xbf16, #tpu.memory_space<vmem>>, vector<1x1x4x256xbf16>
    %48 = vector.shape_cast %47 : vector<1x1x4x256xbf16> to vector<4x256xbf16>
    %49 = vector.shape_cast %46 : vector<4x256xbf16> to vector<1x1x4x256xbf16>
    tpu.vector_store %arg4[%c0_35, %c1_36, %c0_37, %c0_38], %49 {strides = array<i32>} : memref<8x2x4x256xbf16, #tpu.memory_space<vmem>>, vector<1x1x4x256xbf16>,
    %50 = vector.extract_strided_slice %45 {offsets = [4, 0], sizes = [4, 256], strides = [1, 1]} : vector<32x256xbf16> to vector<4x256xbf16>
    %c1_39 = arith.constant 1 : index
    %c1_40 = arith.constant 1 : index
    %c0_41 = arith.constant 0 : index
    %c0_42 = arith.constant 0 : index
    %51 = vector.load %arg4[%c1_39, %c1_40, %c0_41, %c0_42] : memref<8x2x4x256xbf16, #tpu.memory_space<vmem>>, vector<1x1x4x256xbf16>
    %52 = vector.shape_cast %51 : vector<1x1x4x256xbf16> to vector<4x256xbf16>
    %53 = vector.shape_cast %50 : vector<4x256xbf16> to vector<1x1x4x256xbf16>
    tpu.vector_store %arg4[%c1_39, %c1_40, %c0_41, %c0_42], %53 {strides = array<i32>} : memref<8x2x4x256xbf16, #tpu.memory_space<vmem>>, vector<1x1x4x256xbf16>,
    %54 = vector.extract_strided_slice %45 {offsets = [8, 0], sizes = [4, 256], strides = [1, 1]} : vector<32x256xbf16> to vector<4x256xbf16>
    %c2_43 = arith.constant 2 : index
    %c1_44 = arith.constant 1 : index
    %c0_45 = arith.constant 0 : index
    %c0_46 = arith.constant 0 : index
    %55 = vector.load %arg4[%c2_43, %c1_44, %c0_45, %c0_46] : memref<8x2x4x256xbf16, #tpu.memory_space<vmem>>, vector<1x1x4x256xbf16>
    %56 = vector.shape_cast %55 : vector<1x1x4x256xbf16> to vector<4x256xbf16>
    %57 = vector.shape_cast %54 : vector<4x256xbf16> to vector<1x1x4x256xbf16>
    tpu.vector_store %arg4[%c2_43, %c1_44, %c0_45, %c0_46], %57 {strides = array<i32>} : memref<8x2x4x256xbf16, #tpu.memory_space<vmem>>, vector<1x1x4x256xbf16>,
    %58 = vector.extract_strided_slice %45 {offsets = [12, 0], sizes = [4, 256], strides = [1, 1]} : vector<32x256xbf16> to vector<4x256xbf16>
    %c3_47 = arith.constant 3 : index
    %c1_48 = arith.constant 1 : index
    %c0_49 = arith.constant 0 : index
    %c0_50 = arith.constant 0 : index
    %59 = vector.load %arg4[%c3_47, %c1_48, %c0_49, %c0_50] : memref<8x2x4x256xbf16, #tpu.memory_space<vmem>>, vector<1x1x4x256xbf16>
    %60 = vector.shape_cast %59 : vector<1x1x4x256xbf16> to vector<4x256xbf16>
    %61 = vector.shape_cast %58 : vector<4x256xbf16> to vector<1x1x4x256xbf16>
    tpu.vector_store %arg4[%c3_47, %c1_48, %c0_49, %c0_50], %61 {strides = array<i32>} : memref<8x2x4x256xbf16, #tpu.memory_space<vmem>>, vector<1x1x4x256xbf16>,
    %62 = vector.extract_strided_slice %45 {offsets = [16, 0], sizes = [4, 256], strides = [1, 1]} : vector<32x256xbf16> to vector<4x256xbf16>
    %c4_51 = arith.constant 4 : index
    %c1_52 = arith.constant 1 : index
    %c0_53 = arith.constant 0 : index
    %c0_54 = arith.constant 0 : index
    %63 = vector.load %arg4[%c4_51, %c1_52, %c0_53, %c0_54] : memref<8x2x4x256xbf16, #tpu.memory_space<vmem>>, vector<1x1x4x256xbf16>
    %64 = vector.shape_cast %63 : vector<1x1x4x256xbf16> to vector<4x256xbf16>
    %65 = vector.shape_cast %62 : vector<4x256xbf16> to vector<1x1x4x256xbf16>
    tpu.vector_store %arg4[%c4_51, %c1_52, %c0_53, %c0_54], %65 {strides = array<i32>} : memref<8x2x4x256xbf16, #tpu.memory_space<vmem>>, vector<1x1x4x256xbf16>,
    %66 = vector.extract_strided_slice %45 {offsets = [20, 0], sizes = [4, 256], strides = [1, 1]} : vector<32x256xbf16> to vector<4x256xbf16>
    %c5_55 = arith.constant 5 : index
    %c1_56 = arith.constant 1 : index
    %c0_57 = arith.constant 0 : index
    %c0_58 = arith.constant 0 : index
    %67 = vector.load %arg4[%c5_55, %c1_56, %c0_57, %c0_58] : memref<8x2x4x256xbf16, #tpu.memory_space<vmem>>, vector<1x1x4x256xbf16>
    %68 = vector.shape_cast %67 : vector<1x1x4x256xbf16> to vector<4x256xbf16>
    %69 = vector.shape_cast %66 : vector<4x256xbf16> to vector<1x1x4x256xbf16>
    tpu.vector_store %arg4[%c5_55, %c1_56, %c0_57, %c0_58], %69 {strides = array<i32>} : memref<8x2x4x256xbf16, #tpu.memory_space<vmem>>, vector<1x1x4x256xbf16>,
    %70 = vector.extract_strided_slice %45 {offsets = [24, 0], sizes = [4, 256], strides = [1, 1]} : vector<32x256xbf16> to vector<4x256xbf16>
    %c6_59 = arith.constant 6 : index
    %c1_60 = arith.constant 1 : index
    %c0_61 = arith.constant 0 : index
    %c0_62 = arith.constant 0 : index
    %71 = vector.load %arg4[%c6_59, %c1_60, %c0_61, %c0_62] : memref<8x2x4x256xbf16, #tpu.memory_space<vmem>>, vector<1x1x4x256xbf16>
    %72 = vector.shape_cast %71 : vector<1x1x4x256xbf16> to vector<4x256xbf16>
    %73 = vector.shape_cast %70 : vector<4x256xbf16> to vector<1x1x4x256xbf16>
    tpu.vector_store %arg4[%c6_59, %c1_60, %c0_61, %c0_62], %73 {strides = array<i32>} : memref<8x2x4x256xbf16, #tpu.memory_space<vmem>>, vector<1x1x4x256xbf16>,
    %74 = vector.extract_strided_slice %45 {offsets = [28, 0], sizes = [4, 256], strides = [1, 1]} : vector<32x256xbf16> to vector<4x256xbf16>
    %c7_63 = arith.constant 7 : index
    %c1_64 = arith.constant 1 : index
    %c0_65 = arith.constant 0 : index
    %c0_66 = arith.constant 0 : index
    %75 = vector.load %arg4[%c7_63, %c1_64, %c0_65, %c0_66] : memref<8x2x4x256xbf16, #tpu.memory_space<vmem>>, vector<1x1x4x256xbf16>
    %76 = vector.shape_cast %75 : vector<1x1x4x256xbf16> to vector<4x256xbf16>
    %77 = vector.shape_cast %74 : vector<4x256xbf16> to vector<1x1x4x256xbf16>
    tpu.vector_store %arg4[%c7_63, %c1_64, %c0_65, %c0_66], %77 {strides = array<i32>} : memref<8x2x4x256xbf16, #tpu.memory_space<vmem>>, vector<1x1x4x256xbf16>,
    return
  }
  func.func @transform_0(%arg0: i32) -> (i32, i32) {
    %c0_i32 = arith.constant 0 : i32
    %c0_i32_0 = arith.constant 0 : i32
    return %arg0, %c0_i32 : i32, i32
  }
  func.func @transform_1(%arg0: i32) -> (i32, i32, i32) {
    %c0_i32 = arith.constant 0 : i32
    %c0_i32_0 = arith.constant 0 : i32
    %c0_i32_1 = arith.constant 0 : i32
    %c0_i32_2 = arith.constant 0 : i32
    return %c0_i32, %c0_i32_0, %c0_i32_1 : i32, i32, i32
  }
  func.func @transform_2(%arg0: i32) -> (i32, i32) {
    %c0_i32 = arith.constant 0 : i32
    %c0_i32_0 = arith.constant 0 : i32
    %c0_i32_1 = arith.constant 0 : i32
    return %c0_i32, %c0_i32_0 : i32, i32
  }
  func.func @transform_3(%arg0: i32) -> (i32, i32, i32, i32) {
    %c0_i32 = arith.constant 0 : i32
    %c0_i32_0 = arith.constant 0 : i32
    %c0_i32_1 = arith.constant 0 : i32
    %c0_i32_2 = arith.constant 0 : i32
    return %arg0, %c0_i32, %c0_i32_0, %c0_i32_1 : i32, i32, i32, i32
  }
}

module attributes {stable_mosaic.version = 11 : i64} {
  func.func @kernel(%arg0: i32, %arg1: i32, %arg2: memref<1x100x128xbf16, #tpu.memory_space<vmem>>, %arg3: memref<1x100x128xbf16, #tpu.memory_space<vmem>>, %arg4: memref<9x128x128xbf16, #tpu.memory_space<vmem>>, %arg5: memref<9x128x128xbf16, #tpu.memory_space<vmem>>, %arg6: memref<1x8x8x128xbf16, #tpu.memory_space<vmem>>, %arg7: memref<1x2x128xf32, #tpu.memory_space<vmem>>) attributes {dimension_semantics = [#tpu.dimension_semantics<parallel>, #tpu.dimension_semantics<parallel>], iteration_bounds = array<i64: 1, 2>, scalar_prefetch = 0 : i64, scratch_operands = 0 : i64, tpu.core_type = #tpu.core_type<tc>, window_params = [{transform_indices = @transform_0, window_bounds = array<i64: 1, 100, 128>}, {transform_indices = @transform_1, window_bounds = array<i64: 1, 100, 128>}, {transform_indices = @transform_2, window_bounds = array<i64: 9, 128, 128>}, {transform_indices = @transform_3, window_bounds = array<i64: 9, 128, 128>}, {transform_indices = @transform_4, window_bounds = array<i64: 1, 8, 8, 128>}, {transform_indices = @transform_5, window_bounds = array<i64: 1, 2, 128>}]} {
    %cst = arith.constant 0.000000e+00 : f32
    %0 = vector.broadcast %cst : f32 to vector<80x128xf32>
    %cst_0 = arith.constant 0.000000e+00 : f32
    %1 = vector.broadcast %cst_0 : f32 to vector<80x128xf32>
    %cst_1 = arith.constant 0.000000e+00 : f32
    %2 = vector.broadcast %cst_1 : f32 to vector<80x128xf32>
    %c0 = arith.constant 0 : index
    %c0_2 = arith.constant 0 : index
    %c0_3 = arith.constant 0 : index
    %3 = vector.load %arg2[%c0, %c0_2, %c0_3] : memref<1x100x128xbf16, #tpu.memory_space<vmem>>, vector<1x80x128xbf16>
    %4 = vector.shape_cast %3 : vector<1x80x128xbf16> to vector<80x128xbf16>
    %c0_4 = arith.constant 0 : index
    %c0_5 = arith.constant 0 : index
    %c0_6 = arith.constant 0 : index
    %5 = vector.load %arg4[%c0_4, %c0_5, %c0_6] : memref<9x128x128xbf16, #tpu.memory_space<vmem>>, vector<1x128x128xbf16>
    %6 = vector.shape_cast %5 : vector<1x128x128xbf16> to vector<128x128xbf16>
    %cst_7 = arith.constant dense<0.000000e+00> : vector<80x128xf32>
    %7 = tpu.matmul %4, %6, %cst_7 {dimension_numbers = #tpu.dot_dimension_numbers<[1], [0], [0], [1], [0, 0, 1, 1], [], []>} : vector<80x128xbf16>, vector<128x128xbf16>, vector<80x128xf32> -> vector<80x128xf32>
    %8 = arith.addf %0, %7 : vector<80x128xf32>
    %c1 = arith.constant 1 : index
    %c0_8 = arith.constant 0 : index
    %c0_9 = arith.constant 0 : index
    %9 = vector.load %arg4[%c1, %c0_8, %c0_9] : memref<9x128x128xbf16, #tpu.memory_space<vmem>>, vector<1x128x128xbf16>
    %10 = vector.shape_cast %9 : vector<1x128x128xbf16> to vector<128x128xbf16>
    %cst_10 = arith.constant dense<0.000000e+00> : vector<80x128xf32>
    %11 = tpu.matmul %4, %10, %cst_10 {dimension_numbers = #tpu.dot_dimension_numbers<[1], [0], [0], [1], [0, 0, 1, 1], [], []>} : vector<80x128xbf16>, vector<128x128xbf16>, vector<80x128xf32> -> vector<80x128xf32>
    %12 = arith.addf %1, %11 : vector<80x128xf32>
    %c2 = arith.constant 2 : index
    %c0_11 = arith.constant 0 : index
    %c0_12 = arith.constant 0 : index
    %13 = vector.load %arg4[%c2, %c0_11, %c0_12] : memref<9x128x128xbf16, #tpu.memory_space<vmem>>, vector<1x128x128xbf16>
    %14 = vector.shape_cast %13 : vector<1x128x128xbf16> to vector<128x128xbf16>
    %cst_13 = arith.constant dense<0.000000e+00> : vector<80x128xf32>
    %15 = tpu.matmul %4, %14, %cst_13 {dimension_numbers = #tpu.dot_dimension_numbers<[1], [0], [0], [1], [0, 0, 1, 1], [], []>} : vector<80x128xbf16>, vector<128x128xbf16>, vector<80x128xf32> -> vector<80x128xf32>
    %16 = arith.addf %2, %15 : vector<80x128xf32>
    %c0_14 = arith.constant 0 : index
    %c10 = arith.constant 10 : index
    %c0_15 = arith.constant 0 : index
    %17 = vector.load %arg2[%c0_14, %c10, %c0_15] : memref<1x100x128xbf16, #tpu.memory_space<vmem>>, vector<1x80x128xbf16>
    %18 = vector.shape_cast %17 : vector<1x80x128xbf16> to vector<80x128xbf16>
    %c3 = arith.constant 3 : index
    %c0_16 = arith.constant 0 : index
    %c0_17 = arith.constant 0 : index
    %19 = vector.load %arg4[%c3, %c0_16, %c0_17] : memref<9x128x128xbf16, #tpu.memory_space<vmem>>, vector<1x128x128xbf16>
    %20 = vector.shape_cast %19 : vector<1x128x128xbf16> to vector<128x128xbf16>
    %cst_18 = arith.constant dense<0.000000e+00> : vector<80x128xf32>
    %21 = tpu.matmul %18, %20, %cst_18 {dimension_numbers = #tpu.dot_dimension_numbers<[1], [0], [0], [1], [0, 0, 1, 1], [], []>} : vector<80x128xbf16>, vector<128x128xbf16>, vector<80x128xf32> -> vector<80x128xf32>
    %22 = arith.addf %8, %21 : vector<80x128xf32>
    %c4 = arith.constant 4 : index
    %c0_19 = arith.constant 0 : index
    %c0_20 = arith.constant 0 : index
    %23 = vector.load %arg4[%c4, %c0_19, %c0_20] : memref<9x128x128xbf16, #tpu.memory_space<vmem>>, vector<1x128x128xbf16>
    %24 = vector.shape_cast %23 : vector<1x128x128xbf16> to vector<128x128xbf16>
    %cst_21 = arith.constant dense<0.000000e+00> : vector<80x128xf32>
    %25 = tpu.matmul %18, %24, %cst_21 {dimension_numbers = #tpu.dot_dimension_numbers<[1], [0], [0], [1], [0, 0, 1, 1], [], []>} : vector<80x128xbf16>, vector<128x128xbf16>, vector<80x128xf32> -> vector<80x128xf32>
    %26 = arith.addf %12, %25 : vector<80x128xf32>
    %c5 = arith.constant 5 : index
    %c0_22 = arith.constant 0 : index
    %c0_23 = arith.constant 0 : index
    %27 = vector.load %arg4[%c5, %c0_22, %c0_23] : memref<9x128x128xbf16, #tpu.memory_space<vmem>>, vector<1x128x128xbf16>
    %28 = vector.shape_cast %27 : vector<1x128x128xbf16> to vector<128x128xbf16>
    %cst_24 = arith.constant dense<0.000000e+00> : vector<80x128xf32>
    %29 = tpu.matmul %18, %28, %cst_24 {dimension_numbers = #tpu.dot_dimension_numbers<[1], [0], [0], [1], [0, 0, 1, 1], [], []>} : vector<80x128xbf16>, vector<128x128xbf16>, vector<80x128xf32> -> vector<80x128xf32>
    %30 = arith.addf %16, %29 : vector<80x128xf32>
    %c0_25 = arith.constant 0 : index
    %c20 = arith.constant 20 : index
    %c0_26 = arith.constant 0 : index
    %31 = vector.load %arg2[%c0_25, %c20, %c0_26] : memref<1x100x128xbf16, #tpu.memory_space<vmem>>, vector<1x80x128xbf16>
    %32 = vector.shape_cast %31 : vector<1x80x128xbf16> to vector<80x128xbf16>
    %c6 = arith.constant 6 : index
    %c0_27 = arith.constant 0 : index
    %c0_28 = arith.constant 0 : index
    %33 = vector.load %arg4[%c6, %c0_27, %c0_28] : memref<9x128x128xbf16, #tpu.memory_space<vmem>>, vector<1x128x128xbf16>
    %34 = vector.shape_cast %33 : vector<1x128x128xbf16> to vector<128x128xbf16>
    %cst_29 = arith.constant dense<0.000000e+00> : vector<80x128xf32>
    %35 = tpu.matmul %32, %34, %cst_29 {dimension_numbers = #tpu.dot_dimension_numbers<[1], [0], [0], [1], [0, 0, 1, 1], [], []>} : vector<80x128xbf16>, vector<128x128xbf16>, vector<80x128xf32> -> vector<80x128xf32>
    %36 = arith.addf %22, %35 : vector<80x128xf32>
    %c7 = arith.constant 7 : index
    %c0_30 = arith.constant 0 : index
    %c0_31 = arith.constant 0 : index
    %37 = vector.load %arg4[%c7, %c0_30, %c0_31] : memref<9x128x128xbf16, #tpu.memory_space<vmem>>, vector<1x128x128xbf16>
    %38 = vector.shape_cast %37 : vector<1x128x128xbf16> to vector<128x128xbf16>
    %cst_32 = arith.constant dense<0.000000e+00> : vector<80x128xf32>
    %39 = tpu.matmul %32, %38, %cst_32 {dimension_numbers = #tpu.dot_dimension_numbers<[1], [0], [0], [1], [0, 0, 1, 1], [], []>} : vector<80x128xbf16>, vector<128x128xbf16>, vector<80x128xf32> -> vector<80x128xf32>
    %40 = arith.addf %26, %39 : vector<80x128xf32>
    %c8 = arith.constant 8 : index
    %c0_33 = arith.constant 0 : index
    %c0_34 = arith.constant 0 : index
    %41 = vector.load %arg4[%c8, %c0_33, %c0_34] : memref<9x128x128xbf16, #tpu.memory_space<vmem>>, vector<1x128x128xbf16>
    %42 = vector.shape_cast %41 : vector<1x128x128xbf16> to vector<128x128xbf16>
    %cst_35 = arith.constant dense<0.000000e+00> : vector<80x128xf32>
    %43 = tpu.matmul %32, %42, %cst_35 {dimension_numbers = #tpu.dot_dimension_numbers<[1], [0], [0], [1], [0, 0, 1, 1], [], []>} : vector<80x128xbf16>, vector<128x128xbf16>, vector<80x128xf32> -> vector<80x128xf32>
    %44 = arith.addf %30, %43 : vector<80x128xf32>
    %c0_36 = arith.constant 0 : index
    %c0_37 = arith.constant 0 : index
    %c0_38 = arith.constant 0 : index
    %45 = vector.load %arg3[%c0_36, %c0_37, %c0_38] : memref<1x100x128xbf16, #tpu.memory_space<vmem>>, vector<1x80x128xbf16>
    %46 = vector.shape_cast %45 : vector<1x80x128xbf16> to vector<80x128xbf16>
    %c0_39 = arith.constant 0 : index
    %c0_40 = arith.constant 0 : index
    %c0_41 = arith.constant 0 : index
    %47 = vector.load %arg5[%c0_39, %c0_40, %c0_41] : memref<9x128x128xbf16, #tpu.memory_space<vmem>>, vector<1x128x128xbf16>
    %48 = vector.shape_cast %47 : vector<1x128x128xbf16> to vector<128x128xbf16>
    %cst_42 = arith.constant dense<0.000000e+00> : vector<80x128xf32>
    %49 = tpu.matmul %46, %48, %cst_42 {dimension_numbers = #tpu.dot_dimension_numbers<[1], [0], [0], [1], [0, 0, 1, 1], [], []>} : vector<80x128xbf16>, vector<128x128xbf16>, vector<80x128xf32> -> vector<80x128xf32>
    %50 = arith.addf %36, %49 : vector<80x128xf32>
    %c1_43 = arith.constant 1 : index
    %c0_44 = arith.constant 0 : index
    %c0_45 = arith.constant 0 : index
    %51 = vector.load %arg5[%c1_43, %c0_44, %c0_45] : memref<9x128x128xbf16, #tpu.memory_space<vmem>>, vector<1x128x128xbf16>
    %52 = vector.shape_cast %51 : vector<1x128x128xbf16> to vector<128x128xbf16>
    %cst_46 = arith.constant dense<0.000000e+00> : vector<80x128xf32>
    %53 = tpu.matmul %46, %52, %cst_46 {dimension_numbers = #tpu.dot_dimension_numbers<[1], [0], [0], [1], [0, 0, 1, 1], [], []>} : vector<80x128xbf16>, vector<128x128xbf16>, vector<80x128xf32> -> vector<80x128xf32>
    %54 = arith.addf %40, %53 : vector<80x128xf32>
    %c2_47 = arith.constant 2 : index
    %c0_48 = arith.constant 0 : index
    %c0_49 = arith.constant 0 : index
    %55 = vector.load %arg5[%c2_47, %c0_48, %c0_49] : memref<9x128x128xbf16, #tpu.memory_space<vmem>>, vector<1x128x128xbf16>
    %56 = vector.shape_cast %55 : vector<1x128x128xbf16> to vector<128x128xbf16>
    %cst_50 = arith.constant dense<0.000000e+00> : vector<80x128xf32>
    %57 = tpu.matmul %46, %56, %cst_50 {dimension_numbers = #tpu.dot_dimension_numbers<[1], [0], [0], [1], [0, 0, 1, 1], [], []>} : vector<80x128xbf16>, vector<128x128xbf16>, vector<80x128xf32> -> vector<80x128xf32>
    %58 = arith.addf %44, %57 : vector<80x128xf32>
    %c0_51 = arith.constant 0 : index
    %c10_52 = arith.constant 10 : index
    %c0_53 = arith.constant 0 : index
    %59 = vector.load %arg3[%c0_51, %c10_52, %c0_53] : memref<1x100x128xbf16, #tpu.memory_space<vmem>>, vector<1x80x128xbf16>
    %60 = vector.shape_cast %59 : vector<1x80x128xbf16> to vector<80x128xbf16>
    %c3_54 = arith.constant 3 : index
    %c0_55 = arith.constant 0 : index
    %c0_56 = arith.constant 0 : index
    %61 = vector.load %arg5[%c3_54, %c0_55, %c0_56] : memref<9x128x128xbf16, #tpu.memory_space<vmem>>, vector<1x128x128xbf16>
    %62 = vector.shape_cast %61 : vector<1x128x128xbf16> to vector<128x128xbf16>
    %cst_57 = arith.constant dense<0.000000e+00> : vector<80x128xf32>
    %63 = tpu.matmul %60, %62, %cst_57 {dimension_numbers = #tpu.dot_dimension_numbers<[1], [0], [0], [1], [0, 0, 1, 1], [], []>} : vector<80x128xbf16>, vector<128x128xbf16>, vector<80x128xf32> -> vector<80x128xf32>
    %64 = arith.addf %50, %63 : vector<80x128xf32>
    %c4_58 = arith.constant 4 : index
    %c0_59 = arith.constant 0 : index
    %c0_60 = arith.constant 0 : index
    %65 = vector.load %arg5[%c4_58, %c0_59, %c0_60] : memref<9x128x128xbf16, #tpu.memory_space<vmem>>, vector<1x128x128xbf16>
    %66 = vector.shape_cast %65 : vector<1x128x128xbf16> to vector<128x128xbf16>
    %cst_61 = arith.constant dense<0.000000e+00> : vector<80x128xf32>
    %67 = tpu.matmul %60, %66, %cst_61 {dimension_numbers = #tpu.dot_dimension_numbers<[1], [0], [0], [1], [0, 0, 1, 1], [], []>} : vector<80x128xbf16>, vector<128x128xbf16>, vector<80x128xf32> -> vector<80x128xf32>
    %68 = arith.addf %54, %67 : vector<80x128xf32>
    %c5_62 = arith.constant 5 : index
    %c0_63 = arith.constant 0 : index
    %c0_64 = arith.constant 0 : index
    %69 = vector.load %arg5[%c5_62, %c0_63, %c0_64] : memref<9x128x128xbf16, #tpu.memory_space<vmem>>, vector<1x128x128xbf16>
    %70 = vector.shape_cast %69 : vector<1x128x128xbf16> to vector<128x128xbf16>
    %cst_65 = arith.constant dense<0.000000e+00> : vector<80x128xf32>
    %71 = tpu.matmul %60, %70, %cst_65 {dimension_numbers = #tpu.dot_dimension_numbers<[1], [0], [0], [1], [0, 0, 1, 1], [], []>} : vector<80x128xbf16>, vector<128x128xbf16>, vector<80x128xf32> -> vector<80x128xf32>
    %72 = arith.addf %58, %71 : vector<80x128xf32>
    %c0_66 = arith.constant 0 : index
    %c20_67 = arith.constant 20 : index
    %c0_68 = arith.constant 0 : index
    %73 = vector.load %arg3[%c0_66, %c20_67, %c0_68] : memref<1x100x128xbf16, #tpu.memory_space<vmem>>, vector<1x80x128xbf16>
    %74 = vector.shape_cast %73 : vector<1x80x128xbf16> to vector<80x128xbf16>
    %c6_69 = arith.constant 6 : index
    %c0_70 = arith.constant 0 : index
    %c0_71 = arith.constant 0 : index
    %75 = vector.load %arg5[%c6_69, %c0_70, %c0_71] : memref<9x128x128xbf16, #tpu.memory_space<vmem>>, vector<1x128x128xbf16>
    %76 = vector.shape_cast %75 : vector<1x128x128xbf16> to vector<128x128xbf16>
    %cst_72 = arith.constant dense<0.000000e+00> : vector<80x128xf32>
    %77 = tpu.matmul %74, %76, %cst_72 {dimension_numbers = #tpu.dot_dimension_numbers<[1], [0], [0], [1], [0, 0, 1, 1], [], []>} : vector<80x128xbf16>, vector<128x128xbf16>, vector<80x128xf32> -> vector<80x128xf32>
    %78 = arith.addf %64, %77 : vector<80x128xf32>
    %c7_73 = arith.constant 7 : index
    %c0_74 = arith.constant 0 : index
    %c0_75 = arith.constant 0 : index
    %79 = vector.load %arg5[%c7_73, %c0_74, %c0_75] : memref<9x128x128xbf16, #tpu.memory_space<vmem>>, vector<1x128x128xbf16>
    %80 = vector.shape_cast %79 : vector<1x128x128xbf16> to vector<128x128xbf16>
    %cst_76 = arith.constant dense<0.000000e+00> : vector<80x128xf32>
    %81 = tpu.matmul %74, %80, %cst_76 {dimension_numbers = #tpu.dot_dimension_numbers<[1], [0], [0], [1], [0, 0, 1, 1], [], []>} : vector<80x128xbf16>, vector<128x128xbf16>, vector<80x128xf32> -> vector<80x128xf32>
    %82 = arith.addf %68, %81 : vector<80x128xf32>
    %c8_77 = arith.constant 8 : index
    %c0_78 = arith.constant 0 : index
    %c0_79 = arith.constant 0 : index
    %83 = vector.load %arg5[%c8_77, %c0_78, %c0_79] : memref<9x128x128xbf16, #tpu.memory_space<vmem>>, vector<1x128x128xbf16>
    %84 = vector.shape_cast %83 : vector<1x128x128xbf16> to vector<128x128xbf16>
    %cst_80 = arith.constant dense<0.000000e+00> : vector<80x128xf32>
    %85 = tpu.matmul %74, %84, %cst_80 {dimension_numbers = #tpu.dot_dimension_numbers<[1], [0], [0], [1], [0, 0, 1, 1], [], []>} : vector<80x128xbf16>, vector<128x128xbf16>, vector<80x128xf32> -> vector<80x128xf32>
    %86 = arith.addf %72, %85 : vector<80x128xf32>
    %cst_81 = arith.constant 0.000000e+00 : f32
    %87 = vector.broadcast %cst_81 : f32 to vector<1x128xf32>
    %cst_82 = arith.constant 0.000000e+00 : f32
    %88 = vector.broadcast %cst_82 : f32 to vector<1x128xf32>
    %89 = vector.extract_strided_slice %78 {offsets = [0, 0], sizes = [8, 128], strides = [1, 1]} : vector<80x128xf32> to vector<8x128xf32>
    %90 = vector.extract_strided_slice %82 {offsets = [1, 0], sizes = [8, 128], strides = [1, 1]} : vector<80x128xf32> to vector<8x128xf32>
    %91 = arith.addf %89, %90 : vector<8x128xf32>
    %92 = vector.extract_strided_slice %86 {offsets = [2, 0], sizes = [8, 128], strides = [1, 1]} : vector<80x128xf32> to vector<8x128xf32>
    %93 = arith.addf %91, %92 : vector<8x128xf32>
    %94 = arith.truncf %93 : vector<8x128xf32> to vector<8x128xbf16>
    %c0_83 = arith.constant 0 : index
    %c0_84 = arith.constant 0 : index
    %c0_85 = arith.constant 0 : index
    %c0_86 = arith.constant 0 : index
    %95 = vector.load %arg6[%c0_83, %c0_84, %c0_85, %c0_86] : memref<1x8x8x128xbf16, #tpu.memory_space<vmem>>, vector<1x1x8x128xbf16>
    %96 = vector.shape_cast %95 : vector<1x1x8x128xbf16> to vector<8x128xbf16>
    %97 = vector.shape_cast %94 : vector<8x128xbf16> to vector<1x1x8x128xbf16>
    tpu.vector_store %arg6[%c0_83, %c0_84, %c0_85, %c0_86], %97 {strides = array<i32>} : memref<1x8x8x128xbf16, #tpu.memory_space<vmem>>, vector<1x1x8x128xbf16>,
    %cst_87 = arith.constant dense<0.000000e+00> : vector<128xf32>
    %98 = vector.multi_reduction <add>, %93, %cst_87 [0] : vector<8x128xf32> to vector<128xf32>
    %99 = vector.shape_cast %98 : vector<128xf32> to vector<1x128xf32>
    %100 = arith.addf %87, %99 : vector<1x128xf32>
    %101 = arith.mulf %93, %93 : vector<8x128xf32>
    %cst_88 = arith.constant dense<0.000000e+00> : vector<128xf32>
    %102 = vector.multi_reduction <add>, %101, %cst_88 [0] : vector<8x128xf32> to vector<128xf32>
    %103 = vector.shape_cast %102 : vector<128xf32> to vector<1x128xf32>
    %104 = arith.addf %88, %103 : vector<1x128xf32>
    %105 = vector.extract_strided_slice %78 {offsets = [10, 0], sizes = [8, 128], strides = [1, 1]} : vector<80x128xf32> to vector<8x128xf32>
    %106 = vector.extract_strided_slice %82 {offsets = [11, 0], sizes = [8, 128], strides = [1, 1]} : vector<80x128xf32> to vector<8x128xf32>
    %107 = arith.addf %105, %106 : vector<8x128xf32>
    %108 = vector.extract_strided_slice %86 {offsets = [12, 0], sizes = [8, 128], strides = [1, 1]} : vector<80x128xf32> to vector<8x128xf32>
    %109 = arith.addf %107, %108 : vector<8x128xf32>
    %110 = arith.truncf %109 : vector<8x128xf32> to vector<8x128xbf16>
    %c0_89 = arith.constant 0 : index
    %c1_90 = arith.constant 1 : index
    %c0_91 = arith.constant 0 : index
    %c0_92 = arith.constant 0 : index
    %111 = vector.load %arg6[%c0_89, %c1_90, %c0_91, %c0_92] : memref<1x8x8x128xbf16, #tpu.memory_space<vmem>>, vector<1x1x8x128xbf16>
    %112 = vector.shape_cast %111 : vector<1x1x8x128xbf16> to vector<8x128xbf16>
    %113 = vector.shape_cast %110 : vector<8x128xbf16> to vector<1x1x8x128xbf16>
    tpu.vector_store %arg6[%c0_89, %c1_90, %c0_91, %c0_92], %113 {strides = array<i32>} : memref<1x8x8x128xbf16, #tpu.memory_space<vmem>>, vector<1x1x8x128xbf16>,
    %cst_93 = arith.constant dense<0.000000e+00> : vector<128xf32>
    %114 = vector.multi_reduction <add>, %109, %cst_93 [0] : vector<8x128xf32> to vector<128xf32>
    %115 = vector.shape_cast %114 : vector<128xf32> to vector<1x128xf32>
    %116 = arith.addf %100, %115 : vector<1x128xf32>
    %117 = arith.mulf %109, %109 : vector<8x128xf32>
    %cst_94 = arith.constant dense<0.000000e+00> : vector<128xf32>
    %118 = vector.multi_reduction <add>, %117, %cst_94 [0] : vector<8x128xf32> to vector<128xf32>
    %119 = vector.shape_cast %118 : vector<128xf32> to vector<1x128xf32>
    %120 = arith.addf %104, %119 : vector<1x128xf32>
    %121 = vector.extract_strided_slice %78 {offsets = [20, 0], sizes = [8, 128], strides = [1, 1]} : vector<80x128xf32> to vector<8x128xf32>
    %122 = vector.extract_strided_slice %82 {offsets = [21, 0], sizes = [8, 128], strides = [1, 1]} : vector<80x128xf32> to vector<8x128xf32>
    %123 = arith.addf %121, %122 : vector<8x128xf32>
    %124 = vector.extract_strided_slice %86 {offsets = [22, 0], sizes = [8, 128], strides = [1, 1]} : vector<80x128xf32> to vector<8x128xf32>
    %125 = arith.addf %123, %124 : vector<8x128xf32>
    %126 = arith.truncf %125 : vector<8x128xf32> to vector<8x128xbf16>
    %c0_95 = arith.constant 0 : index
    %c2_96 = arith.constant 2 : index
    %c0_97 = arith.constant 0 : index
    %c0_98 = arith.constant 0 : index
    %127 = vector.load %arg6[%c0_95, %c2_96, %c0_97, %c0_98] : memref<1x8x8x128xbf16, #tpu.memory_space<vmem>>, vector<1x1x8x128xbf16>
    %128 = vector.shape_cast %127 : vector<1x1x8x128xbf16> to vector<8x128xbf16>
    %129 = vector.shape_cast %126 : vector<8x128xbf16> to vector<1x1x8x128xbf16>
    tpu.vector_store %arg6[%c0_95, %c2_96, %c0_97, %c0_98], %129 {strides = array<i32>} : memref<1x8x8x128xbf16, #tpu.memory_space<vmem>>, vector<1x1x8x128xbf16>,
    %cst_99 = arith.constant dense<0.000000e+00> : vector<128xf32>
    %130 = vector.multi_reduction <add>, %125, %cst_99 [0] : vector<8x128xf32> to vector<128xf32>
    %131 = vector.shape_cast %130 : vector<128xf32> to vector<1x128xf32>
    %132 = arith.addf %116, %131 : vector<1x128xf32>
    %133 = arith.mulf %125, %125 : vector<8x128xf32>
    %cst_100 = arith.constant dense<0.000000e+00> : vector<128xf32>
    %134 = vector.multi_reduction <add>, %133, %cst_100 [0] : vector<8x128xf32> to vector<128xf32>
    %135 = vector.shape_cast %134 : vector<128xf32> to vector<1x128xf32>
    %136 = arith.addf %120, %135 : vector<1x128xf32>
    %137 = vector.extract_strided_slice %78 {offsets = [30, 0], sizes = [8, 128], strides = [1, 1]} : vector<80x128xf32> to vector<8x128xf32>
    %138 = vector.extract_strided_slice %82 {offsets = [31, 0], sizes = [8, 128], strides = [1, 1]} : vector<80x128xf32> to vector<8x128xf32>
    %139 = arith.addf %137, %138 : vector<8x128xf32>
    %140 = vector.extract_strided_slice %86 {offsets = [32, 0], sizes = [8, 128], strides = [1, 1]} : vector<80x128xf32> to vector<8x128xf32>
    %141 = arith.addf %139, %140 : vector<8x128xf32>
    %142 = arith.truncf %141 : vector<8x128xf32> to vector<8x128xbf16>
    %c0_101 = arith.constant 0 : index
    %c3_102 = arith.constant 3 : index
    %c0_103 = arith.constant 0 : index
    %c0_104 = arith.constant 0 : index
    %143 = vector.load %arg6[%c0_101, %c3_102, %c0_103, %c0_104] : memref<1x8x8x128xbf16, #tpu.memory_space<vmem>>, vector<1x1x8x128xbf16>
    %144 = vector.shape_cast %143 : vector<1x1x8x128xbf16> to vector<8x128xbf16>
    %145 = vector.shape_cast %142 : vector<8x128xbf16> to vector<1x1x8x128xbf16>
    tpu.vector_store %arg6[%c0_101, %c3_102, %c0_103, %c0_104], %145 {strides = array<i32>} : memref<1x8x8x128xbf16, #tpu.memory_space<vmem>>, vector<1x1x8x128xbf16>,
    %cst_105 = arith.constant dense<0.000000e+00> : vector<128xf32>
    %146 = vector.multi_reduction <add>, %141, %cst_105 [0] : vector<8x128xf32> to vector<128xf32>
    %147 = vector.shape_cast %146 : vector<128xf32> to vector<1x128xf32>
    %148 = arith.addf %132, %147 : vector<1x128xf32>
    %149 = arith.mulf %141, %141 : vector<8x128xf32>
    %cst_106 = arith.constant dense<0.000000e+00> : vector<128xf32>
    %150 = vector.multi_reduction <add>, %149, %cst_106 [0] : vector<8x128xf32> to vector<128xf32>
    %151 = vector.shape_cast %150 : vector<128xf32> to vector<1x128xf32>
    %152 = arith.addf %136, %151 : vector<1x128xf32>
    %153 = vector.extract_strided_slice %78 {offsets = [40, 0], sizes = [8, 128], strides = [1, 1]} : vector<80x128xf32> to vector<8x128xf32>
    %154 = vector.extract_strided_slice %82 {offsets = [41, 0], sizes = [8, 128], strides = [1, 1]} : vector<80x128xf32> to vector<8x128xf32>
    %155 = arith.addf %153, %154 : vector<8x128xf32>
    %156 = vector.extract_strided_slice %86 {offsets = [42, 0], sizes = [8, 128], strides = [1, 1]} : vector<80x128xf32> to vector<8x128xf32>
    %157 = arith.addf %155, %156 : vector<8x128xf32>
    %158 = arith.truncf %157 : vector<8x128xf32> to vector<8x128xbf16>
    %c0_107 = arith.constant 0 : index
    %c4_108 = arith.constant 4 : index
    %c0_109 = arith.constant 0 : index
    %c0_110 = arith.constant 0 : index
    %159 = vector.load %arg6[%c0_107, %c4_108, %c0_109, %c0_110] : memref<1x8x8x128xbf16, #tpu.memory_space<vmem>>, vector<1x1x8x128xbf16>
    %160 = vector.shape_cast %159 : vector<1x1x8x128xbf16> to vector<8x128xbf16>
    %161 = vector.shape_cast %158 : vector<8x128xbf16> to vector<1x1x8x128xbf16>
    tpu.vector_store %arg6[%c0_107, %c4_108, %c0_109, %c0_110], %161 {strides = array<i32>} : memref<1x8x8x128xbf16, #tpu.memory_space<vmem>>, vector<1x1x8x128xbf16>,
    %cst_111 = arith.constant dense<0.000000e+00> : vector<128xf32>
    %162 = vector.multi_reduction <add>, %157, %cst_111 [0] : vector<8x128xf32> to vector<128xf32>
    %163 = vector.shape_cast %162 : vector<128xf32> to vector<1x128xf32>
    %164 = arith.addf %148, %163 : vector<1x128xf32>
    %165 = arith.mulf %157, %157 : vector<8x128xf32>
    %cst_112 = arith.constant dense<0.000000e+00> : vector<128xf32>
    %166 = vector.multi_reduction <add>, %165, %cst_112 [0] : vector<8x128xf32> to vector<128xf32>
    %167 = vector.shape_cast %166 : vector<128xf32> to vector<1x128xf32>
    %168 = arith.addf %152, %167 : vector<1x128xf32>
    %169 = vector.extract_strided_slice %78 {offsets = [50, 0], sizes = [8, 128], strides = [1, 1]} : vector<80x128xf32> to vector<8x128xf32>
    %170 = vector.extract_strided_slice %82 {offsets = [51, 0], sizes = [8, 128], strides = [1, 1]} : vector<80x128xf32> to vector<8x128xf32>
    %171 = arith.addf %169, %170 : vector<8x128xf32>
    %172 = vector.extract_strided_slice %86 {offsets = [52, 0], sizes = [8, 128], strides = [1, 1]} : vector<80x128xf32> to vector<8x128xf32>
    %173 = arith.addf %171, %172 : vector<8x128xf32>
    %174 = arith.truncf %173 : vector<8x128xf32> to vector<8x128xbf16>
    %c0_113 = arith.constant 0 : index
    %c5_114 = arith.constant 5 : index
    %c0_115 = arith.constant 0 : index
    %c0_116 = arith.constant 0 : index
    %175 = vector.load %arg6[%c0_113, %c5_114, %c0_115, %c0_116] : memref<1x8x8x128xbf16, #tpu.memory_space<vmem>>, vector<1x1x8x128xbf16>
    %176 = vector.shape_cast %175 : vector<1x1x8x128xbf16> to vector<8x128xbf16>
    %177 = vector.shape_cast %174 : vector<8x128xbf16> to vector<1x1x8x128xbf16>
    tpu.vector_store %arg6[%c0_113, %c5_114, %c0_115, %c0_116], %177 {strides = array<i32>} : memref<1x8x8x128xbf16, #tpu.memory_space<vmem>>, vector<1x1x8x128xbf16>,
    %cst_117 = arith.constant dense<0.000000e+00> : vector<128xf32>
    %178 = vector.multi_reduction <add>, %173, %cst_117 [0] : vector<8x128xf32> to vector<128xf32>
    %179 = vector.shape_cast %178 : vector<128xf32> to vector<1x128xf32>
    %180 = arith.addf %164, %179 : vector<1x128xf32>
    %181 = arith.mulf %173, %173 : vector<8x128xf32>
    %cst_118 = arith.constant dense<0.000000e+00> : vector<128xf32>
    %182 = vector.multi_reduction <add>, %181, %cst_118 [0] : vector<8x128xf32> to vector<128xf32>
    %183 = vector.shape_cast %182 : vector<128xf32> to vector<1x128xf32>
    %184 = arith.addf %168, %183 : vector<1x128xf32>
    %185 = vector.extract_strided_slice %78 {offsets = [60, 0], sizes = [8, 128], strides = [1, 1]} : vector<80x128xf32> to vector<8x128xf32>
    %186 = vector.extract_strided_slice %82 {offsets = [61, 0], sizes = [8, 128], strides = [1, 1]} : vector<80x128xf32> to vector<8x128xf32>
    %187 = arith.addf %185, %186 : vector<8x128xf32>
    %188 = vector.extract_strided_slice %86 {offsets = [62, 0], sizes = [8, 128], strides = [1, 1]} : vector<80x128xf32> to vector<8x128xf32>
    %189 = arith.addf %187, %188 : vector<8x128xf32>
    %190 = arith.truncf %189 : vector<8x128xf32> to vector<8x128xbf16>
    %c0_119 = arith.constant 0 : index
    %c6_120 = arith.constant 6 : index
    %c0_121 = arith.constant 0 : index
    %c0_122 = arith.constant 0 : index
    %191 = vector.load %arg6[%c0_119, %c6_120, %c0_121, %c0_122] : memref<1x8x8x128xbf16, #tpu.memory_space<vmem>>, vector<1x1x8x128xbf16>
    %192 = vector.shape_cast %191 : vector<1x1x8x128xbf16> to vector<8x128xbf16>
    %193 = vector.shape_cast %190 : vector<8x128xbf16> to vector<1x1x8x128xbf16>
    tpu.vector_store %arg6[%c0_119, %c6_120, %c0_121, %c0_122], %193 {strides = array<i32>} : memref<1x8x8x128xbf16, #tpu.memory_space<vmem>>, vector<1x1x8x128xbf16>,
    %cst_123 = arith.constant dense<0.000000e+00> : vector<128xf32>
    %194 = vector.multi_reduction <add>, %189, %cst_123 [0] : vector<8x128xf32> to vector<128xf32>
    %195 = vector.shape_cast %194 : vector<128xf32> to vector<1x128xf32>
    %196 = arith.addf %180, %195 : vector<1x128xf32>
    %197 = arith.mulf %189, %189 : vector<8x128xf32>
    %cst_124 = arith.constant dense<0.000000e+00> : vector<128xf32>
    %198 = vector.multi_reduction <add>, %197, %cst_124 [0] : vector<8x128xf32> to vector<128xf32>
    %199 = vector.shape_cast %198 : vector<128xf32> to vector<1x128xf32>
    %200 = arith.addf %184, %199 : vector<1x128xf32>
    %201 = vector.extract_strided_slice %78 {offsets = [70, 0], sizes = [8, 128], strides = [1, 1]} : vector<80x128xf32> to vector<8x128xf32>
    %202 = vector.extract_strided_slice %82 {offsets = [71, 0], sizes = [8, 128], strides = [1, 1]} : vector<80x128xf32> to vector<8x128xf32>
    %203 = arith.addf %201, %202 : vector<8x128xf32>
    %204 = vector.extract_strided_slice %86 {offsets = [72, 0], sizes = [8, 128], strides = [1, 1]} : vector<80x128xf32> to vector<8x128xf32>
    %205 = arith.addf %203, %204 : vector<8x128xf32>
    %206 = arith.truncf %205 : vector<8x128xf32> to vector<8x128xbf16>
    %c0_125 = arith.constant 0 : index
    %c7_126 = arith.constant 7 : index
    %c0_127 = arith.constant 0 : index
    %c0_128 = arith.constant 0 : index
    %207 = vector.load %arg6[%c0_125, %c7_126, %c0_127, %c0_128] : memref<1x8x8x128xbf16, #tpu.memory_space<vmem>>, vector<1x1x8x128xbf16>
    %208 = vector.shape_cast %207 : vector<1x1x8x128xbf16> to vector<8x128xbf16>
    %209 = vector.shape_cast %206 : vector<8x128xbf16> to vector<1x1x8x128xbf16>
    tpu.vector_store %arg6[%c0_125, %c7_126, %c0_127, %c0_128], %209 {strides = array<i32>} : memref<1x8x8x128xbf16, #tpu.memory_space<vmem>>, vector<1x1x8x128xbf16>,
    %cst_129 = arith.constant dense<0.000000e+00> : vector<128xf32>
    %210 = vector.multi_reduction <add>, %205, %cst_129 [0] : vector<8x128xf32> to vector<128xf32>
    %211 = vector.shape_cast %210 : vector<128xf32> to vector<1x128xf32>
    %212 = arith.addf %196, %211 : vector<1x128xf32>
    %213 = arith.mulf %205, %205 : vector<8x128xf32>
    %cst_130 = arith.constant dense<0.000000e+00> : vector<128xf32>
    %214 = vector.multi_reduction <add>, %213, %cst_130 [0] : vector<8x128xf32> to vector<128xf32>
    %215 = vector.shape_cast %214 : vector<128xf32> to vector<1x128xf32>
    %216 = arith.addf %200, %215 : vector<1x128xf32>
    %c0_131 = arith.constant 0 : index
    %c0_132 = arith.constant 0 : index
    %c0_133 = arith.constant 0 : index
    %217 = vector.load %arg7[%c0_131, %c0_132, %c0_133] : memref<1x2x128xf32, #tpu.memory_space<vmem>>, vector<1x1x128xf32>
    %218 = vector.shape_cast %217 : vector<1x1x128xf32> to vector<1x128xf32>
    %219 = vector.shape_cast %212 : vector<1x128xf32> to vector<1x1x128xf32>
    tpu.vector_store %arg7[%c0_131, %c0_132, %c0_133], %219 {strides = array<i32>} : memref<1x2x128xf32, #tpu.memory_space<vmem>>, vector<1x1x128xf32>,
    %c0_134 = arith.constant 0 : index
    %c1_135 = arith.constant 1 : index
    %c0_136 = arith.constant 0 : index
    %220 = vector.load %arg7[%c0_134, %c1_135, %c0_136] : memref<1x2x128xf32, #tpu.memory_space<vmem>>, vector<1x1x128xf32>
    %221 = vector.shape_cast %220 : vector<1x1x128xf32> to vector<1x128xf32>
    %222 = vector.shape_cast %216 : vector<1x128xf32> to vector<1x1x128xf32>
    tpu.vector_store %arg7[%c0_134, %c1_135, %c0_136], %222 {strides = array<i32>} : memref<1x2x128xf32, #tpu.memory_space<vmem>>, vector<1x1x128xf32>,
    return
  }
  func.func @transform_0(%arg0: i32, %arg1: i32) -> (i32, i32, i32) {
    %c0_i32 = arith.constant 0 : i32
    %c0_i32_0 = arith.constant 0 : i32
    %c0_i32_1 = arith.constant 0 : i32
    return %arg1, %c0_i32, %c0_i32_0 : i32, i32, i32
  }
  func.func @transform_1(%arg0: i32, %arg1: i32) -> (i32, i32, i32) {
    %c0_i32 = arith.constant 0 : i32
    %c0_i32_0 = arith.constant 0 : i32
    %c0_i32_1 = arith.constant 0 : i32
    return %arg1, %c0_i32, %c0_i32_0 : i32, i32, i32
  }
  func.func @transform_2(%arg0: i32, %arg1: i32) -> (i32, i32, i32) {
    %c0_i32 = arith.constant 0 : i32
    %c0_i32_0 = arith.constant 0 : i32
    %c0_i32_1 = arith.constant 0 : i32
    return %c0_i32, %c0_i32_0, %arg0 : i32, i32, i32
  }
  func.func @transform_3(%arg0: i32, %arg1: i32) -> (i32, i32, i32) {
    %c0_i32 = arith.constant 0 : i32
    %c0_i32_0 = arith.constant 0 : i32
    %c0_i32_1 = arith.constant 0 : i32
    return %c0_i32, %c0_i32_0, %arg0 : i32, i32, i32
  }
  func.func @transform_4(%arg0: i32, %arg1: i32) -> (i32, i32, i32, i32) {
    %c0_i32 = arith.constant 0 : i32
    %c0_i32_0 = arith.constant 0 : i32
    %c0_i32_1 = arith.constant 0 : i32
    return %arg1, %c0_i32, %c0_i32_0, %arg0 : i32, i32, i32, i32
  }
  func.func @transform_5(%arg0: i32, %arg1: i32) -> (i32, i32, i32) {
    %c0_i32 = arith.constant 0 : i32
    %c0_i32_0 = arith.constant 0 : i32
    return %arg1, %c0_i32, %arg0 : i32, i32, i32
  }
}

module attributes {stable_mosaic.version = 11 : i64} {
  func.func @kernel(%arg0: i32, %arg1: memref<128x128xbf16, #tpu.memory_space<vmem>>, %arg2: memref<2x128x128xbf16, #tpu.memory_space<vmem>>, %arg3: memref<1x128xf32, #tpu.memory_space<vmem>>, %arg4: memref<16x2x8x128xbf16, #tpu.memory_space<vmem>>) attributes {dimension_semantics = [#tpu.dimension_semantics<parallel>], iteration_bounds = array<i64: 1>, scalar_prefetch = 0 : i64, scratch_operands = 0 : i64, tpu.core_type = #tpu.core_type<tc>, window_params = [{transform_indices = @transform_0, window_bounds = array<i64: 128, 128>}, {pipeline_mode = #tpu.pipeline_mode<synchronous>, transform_indices = @transform_1, window_bounds = array<i64: 2, 128, 128>}, {pipeline_mode = #tpu.pipeline_mode<synchronous>, transform_indices = @transform_2, window_bounds = array<i64: 1, 128>}, {transform_indices = @transform_3, window_bounds = array<i64: 16, 2, 8, 128>}]} {
    %c0 = arith.constant 0 : index
    %c0_0 = arith.constant 0 : index
    %0 = vector.load %arg1[%c0, %c0_0] : memref<128x128xbf16, #tpu.memory_space<vmem>>, vector<128x128xbf16>
    %c0_1 = arith.constant 0 : index
    %c0_2 = arith.constant 0 : index
    %1 = vector.load %arg3[%c0_1, %c0_2] : memref<1x128xf32, #tpu.memory_space<vmem>>, vector<1x128xf32>
    %c0_3 = arith.constant 0 : index
    %c0_4 = arith.constant 0 : index
    %c0_5 = arith.constant 0 : index
    %2 = vector.load %arg2[%c0_3, %c0_4, %c0_5] : memref<2x128x128xbf16, #tpu.memory_space<vmem>>, vector<1x128x128xbf16>
    %3 = vector.shape_cast %2 : vector<1x128x128xbf16> to vector<128x128xbf16>
    %cst = arith.constant dense<0.000000e+00> : vector<128x128xf32>
    %4 = tpu.matmul %0, %3, %cst {dimension_numbers = #tpu.dot_dimension_numbers<[1], [0], [0], [1], [0, 0, 1, 1], [], []>} : vector<128x128xbf16>, vector<128x128xbf16>, vector<128x128xf32> -> vector<128x128xf32>
    %5 = vector.broadcast %1 : vector<1x128xf32> to vector<128x128xf32>
    %6 = arith.addf %4, %5 : vector<128x128xf32>
    %7 = arith.truncf %6 : vector<128x128xf32> to vector<128x128xbf16>
    %8 = vector.extract_strided_slice %7 {offsets = [0, 0], sizes = [8, 128], strides = [1, 1]} : vector<128x128xbf16> to vector<8x128xbf16>
    %c0_6 = arith.constant 0 : index
    %c0_7 = arith.constant 0 : index
    %c0_8 = arith.constant 0 : index
    %c0_9 = arith.constant 0 : index
    %9 = vector.load %arg4[%c0_6, %c0_7, %c0_8, %c0_9] : memref<16x2x8x128xbf16, #tpu.memory_space<vmem>>, vector<1x1x8x128xbf16>
    %10 = vector.shape_cast %9 : vector<1x1x8x128xbf16> to vector<8x128xbf16>
    %11 = vector.shape_cast %8 : vector<8x128xbf16> to vector<1x1x8x128xbf16>
    tpu.vector_store %arg4[%c0_6, %c0_7, %c0_8, %c0_9], %11 {strides = array<i32>} : memref<16x2x8x128xbf16, #tpu.memory_space<vmem>>, vector<1x1x8x128xbf16>,
    %12 = vector.extract_strided_slice %7 {offsets = [8, 0], sizes = [8, 128], strides = [1, 1]} : vector<128x128xbf16> to vector<8x128xbf16>
    %c1 = arith.constant 1 : index
    %c0_10 = arith.constant 0 : index
    %c0_11 = arith.constant 0 : index
    %c0_12 = arith.constant 0 : index
    %13 = vector.load %arg4[%c1, %c0_10, %c0_11, %c0_12] : memref<16x2x8x128xbf16, #tpu.memory_space<vmem>>, vector<1x1x8x128xbf16>
    %14 = vector.shape_cast %13 : vector<1x1x8x128xbf16> to vector<8x128xbf16>
    %15 = vector.shape_cast %12 : vector<8x128xbf16> to vector<1x1x8x128xbf16>
    tpu.vector_store %arg4[%c1, %c0_10, %c0_11, %c0_12], %15 {strides = array<i32>} : memref<16x2x8x128xbf16, #tpu.memory_space<vmem>>, vector<1x1x8x128xbf16>,
    %16 = vector.extract_strided_slice %7 {offsets = [16, 0], sizes = [8, 128], strides = [1, 1]} : vector<128x128xbf16> to vector<8x128xbf16>
    %c2 = arith.constant 2 : index
    %c0_13 = arith.constant 0 : index
    %c0_14 = arith.constant 0 : index
    %c0_15 = arith.constant 0 : index
    %17 = vector.load %arg4[%c2, %c0_13, %c0_14, %c0_15] : memref<16x2x8x128xbf16, #tpu.memory_space<vmem>>, vector<1x1x8x128xbf16>
    %18 = vector.shape_cast %17 : vector<1x1x8x128xbf16> to vector<8x128xbf16>
    %19 = vector.shape_cast %16 : vector<8x128xbf16> to vector<1x1x8x128xbf16>
    tpu.vector_store %arg4[%c2, %c0_13, %c0_14, %c0_15], %19 {strides = array<i32>} : memref<16x2x8x128xbf16, #tpu.memory_space<vmem>>, vector<1x1x8x128xbf16>,
    %20 = vector.extract_strided_slice %7 {offsets = [24, 0], sizes = [8, 128], strides = [1, 1]} : vector<128x128xbf16> to vector<8x128xbf16>
    %c3 = arith.constant 3 : index
    %c0_16 = arith.constant 0 : index
    %c0_17 = arith.constant 0 : index
    %c0_18 = arith.constant 0 : index
    %21 = vector.load %arg4[%c3, %c0_16, %c0_17, %c0_18] : memref<16x2x8x128xbf16, #tpu.memory_space<vmem>>, vector<1x1x8x128xbf16>
    %22 = vector.shape_cast %21 : vector<1x1x8x128xbf16> to vector<8x128xbf16>
    %23 = vector.shape_cast %20 : vector<8x128xbf16> to vector<1x1x8x128xbf16>
    tpu.vector_store %arg4[%c3, %c0_16, %c0_17, %c0_18], %23 {strides = array<i32>} : memref<16x2x8x128xbf16, #tpu.memory_space<vmem>>, vector<1x1x8x128xbf16>,
    %24 = vector.extract_strided_slice %7 {offsets = [32, 0], sizes = [8, 128], strides = [1, 1]} : vector<128x128xbf16> to vector<8x128xbf16>
    %c4 = arith.constant 4 : index
    %c0_19 = arith.constant 0 : index
    %c0_20 = arith.constant 0 : index
    %c0_21 = arith.constant 0 : index
    %25 = vector.load %arg4[%c4, %c0_19, %c0_20, %c0_21] : memref<16x2x8x128xbf16, #tpu.memory_space<vmem>>, vector<1x1x8x128xbf16>
    %26 = vector.shape_cast %25 : vector<1x1x8x128xbf16> to vector<8x128xbf16>
    %27 = vector.shape_cast %24 : vector<8x128xbf16> to vector<1x1x8x128xbf16>
    tpu.vector_store %arg4[%c4, %c0_19, %c0_20, %c0_21], %27 {strides = array<i32>} : memref<16x2x8x128xbf16, #tpu.memory_space<vmem>>, vector<1x1x8x128xbf16>,
    %28 = vector.extract_strided_slice %7 {offsets = [40, 0], sizes = [8, 128], strides = [1, 1]} : vector<128x128xbf16> to vector<8x128xbf16>
    %c5 = arith.constant 5 : index
    %c0_22 = arith.constant 0 : index
    %c0_23 = arith.constant 0 : index
    %c0_24 = arith.constant 0 : index
    %29 = vector.load %arg4[%c5, %c0_22, %c0_23, %c0_24] : memref<16x2x8x128xbf16, #tpu.memory_space<vmem>>, vector<1x1x8x128xbf16>
    %30 = vector.shape_cast %29 : vector<1x1x8x128xbf16> to vector<8x128xbf16>
    %31 = vector.shape_cast %28 : vector<8x128xbf16> to vector<1x1x8x128xbf16>
    tpu.vector_store %arg4[%c5, %c0_22, %c0_23, %c0_24], %31 {strides = array<i32>} : memref<16x2x8x128xbf16, #tpu.memory_space<vmem>>, vector<1x1x8x128xbf16>,
    %32 = vector.extract_strided_slice %7 {offsets = [48, 0], sizes = [8, 128], strides = [1, 1]} : vector<128x128xbf16> to vector<8x128xbf16>
    %c6 = arith.constant 6 : index
    %c0_25 = arith.constant 0 : index
    %c0_26 = arith.constant 0 : index
    %c0_27 = arith.constant 0 : index
    %33 = vector.load %arg4[%c6, %c0_25, %c0_26, %c0_27] : memref<16x2x8x128xbf16, #tpu.memory_space<vmem>>, vector<1x1x8x128xbf16>
    %34 = vector.shape_cast %33 : vector<1x1x8x128xbf16> to vector<8x128xbf16>
    %35 = vector.shape_cast %32 : vector<8x128xbf16> to vector<1x1x8x128xbf16>
    tpu.vector_store %arg4[%c6, %c0_25, %c0_26, %c0_27], %35 {strides = array<i32>} : memref<16x2x8x128xbf16, #tpu.memory_space<vmem>>, vector<1x1x8x128xbf16>,
    %36 = vector.extract_strided_slice %7 {offsets = [56, 0], sizes = [8, 128], strides = [1, 1]} : vector<128x128xbf16> to vector<8x128xbf16>
    %c7 = arith.constant 7 : index
    %c0_28 = arith.constant 0 : index
    %c0_29 = arith.constant 0 : index
    %c0_30 = arith.constant 0 : index
    %37 = vector.load %arg4[%c7, %c0_28, %c0_29, %c0_30] : memref<16x2x8x128xbf16, #tpu.memory_space<vmem>>, vector<1x1x8x128xbf16>
    %38 = vector.shape_cast %37 : vector<1x1x8x128xbf16> to vector<8x128xbf16>
    %39 = vector.shape_cast %36 : vector<8x128xbf16> to vector<1x1x8x128xbf16>
    tpu.vector_store %arg4[%c7, %c0_28, %c0_29, %c0_30], %39 {strides = array<i32>} : memref<16x2x8x128xbf16, #tpu.memory_space<vmem>>, vector<1x1x8x128xbf16>,
    %40 = vector.extract_strided_slice %7 {offsets = [64, 0], sizes = [8, 128], strides = [1, 1]} : vector<128x128xbf16> to vector<8x128xbf16>
    %c8 = arith.constant 8 : index
    %c0_31 = arith.constant 0 : index
    %c0_32 = arith.constant 0 : index
    %c0_33 = arith.constant 0 : index
    %41 = vector.load %arg4[%c8, %c0_31, %c0_32, %c0_33] : memref<16x2x8x128xbf16, #tpu.memory_space<vmem>>, vector<1x1x8x128xbf16>
    %42 = vector.shape_cast %41 : vector<1x1x8x128xbf16> to vector<8x128xbf16>
    %43 = vector.shape_cast %40 : vector<8x128xbf16> to vector<1x1x8x128xbf16>
    tpu.vector_store %arg4[%c8, %c0_31, %c0_32, %c0_33], %43 {strides = array<i32>} : memref<16x2x8x128xbf16, #tpu.memory_space<vmem>>, vector<1x1x8x128xbf16>,
    %44 = vector.extract_strided_slice %7 {offsets = [72, 0], sizes = [8, 128], strides = [1, 1]} : vector<128x128xbf16> to vector<8x128xbf16>
    %c9 = arith.constant 9 : index
    %c0_34 = arith.constant 0 : index
    %c0_35 = arith.constant 0 : index
    %c0_36 = arith.constant 0 : index
    %45 = vector.load %arg4[%c9, %c0_34, %c0_35, %c0_36] : memref<16x2x8x128xbf16, #tpu.memory_space<vmem>>, vector<1x1x8x128xbf16>
    %46 = vector.shape_cast %45 : vector<1x1x8x128xbf16> to vector<8x128xbf16>
    %47 = vector.shape_cast %44 : vector<8x128xbf16> to vector<1x1x8x128xbf16>
    tpu.vector_store %arg4[%c9, %c0_34, %c0_35, %c0_36], %47 {strides = array<i32>} : memref<16x2x8x128xbf16, #tpu.memory_space<vmem>>, vector<1x1x8x128xbf16>,
    %48 = vector.extract_strided_slice %7 {offsets = [80, 0], sizes = [8, 128], strides = [1, 1]} : vector<128x128xbf16> to vector<8x128xbf16>
    %c10 = arith.constant 10 : index
    %c0_37 = arith.constant 0 : index
    %c0_38 = arith.constant 0 : index
    %c0_39 = arith.constant 0 : index
    %49 = vector.load %arg4[%c10, %c0_37, %c0_38, %c0_39] : memref<16x2x8x128xbf16, #tpu.memory_space<vmem>>, vector<1x1x8x128xbf16>
    %50 = vector.shape_cast %49 : vector<1x1x8x128xbf16> to vector<8x128xbf16>
    %51 = vector.shape_cast %48 : vector<8x128xbf16> to vector<1x1x8x128xbf16>
    tpu.vector_store %arg4[%c10, %c0_37, %c0_38, %c0_39], %51 {strides = array<i32>} : memref<16x2x8x128xbf16, #tpu.memory_space<vmem>>, vector<1x1x8x128xbf16>,
    %52 = vector.extract_strided_slice %7 {offsets = [88, 0], sizes = [8, 128], strides = [1, 1]} : vector<128x128xbf16> to vector<8x128xbf16>
    %c11 = arith.constant 11 : index
    %c0_40 = arith.constant 0 : index
    %c0_41 = arith.constant 0 : index
    %c0_42 = arith.constant 0 : index
    %53 = vector.load %arg4[%c11, %c0_40, %c0_41, %c0_42] : memref<16x2x8x128xbf16, #tpu.memory_space<vmem>>, vector<1x1x8x128xbf16>
    %54 = vector.shape_cast %53 : vector<1x1x8x128xbf16> to vector<8x128xbf16>
    %55 = vector.shape_cast %52 : vector<8x128xbf16> to vector<1x1x8x128xbf16>
    tpu.vector_store %arg4[%c11, %c0_40, %c0_41, %c0_42], %55 {strides = array<i32>} : memref<16x2x8x128xbf16, #tpu.memory_space<vmem>>, vector<1x1x8x128xbf16>,
    %56 = vector.extract_strided_slice %7 {offsets = [96, 0], sizes = [8, 128], strides = [1, 1]} : vector<128x128xbf16> to vector<8x128xbf16>
    %c12 = arith.constant 12 : index
    %c0_43 = arith.constant 0 : index
    %c0_44 = arith.constant 0 : index
    %c0_45 = arith.constant 0 : index
    %57 = vector.load %arg4[%c12, %c0_43, %c0_44, %c0_45] : memref<16x2x8x128xbf16, #tpu.memory_space<vmem>>, vector<1x1x8x128xbf16>
    %58 = vector.shape_cast %57 : vector<1x1x8x128xbf16> to vector<8x128xbf16>
    %59 = vector.shape_cast %56 : vector<8x128xbf16> to vector<1x1x8x128xbf16>
    tpu.vector_store %arg4[%c12, %c0_43, %c0_44, %c0_45], %59 {strides = array<i32>} : memref<16x2x8x128xbf16, #tpu.memory_space<vmem>>, vector<1x1x8x128xbf16>,
    %60 = vector.extract_strided_slice %7 {offsets = [104, 0], sizes = [8, 128], strides = [1, 1]} : vector<128x128xbf16> to vector<8x128xbf16>
    %c13 = arith.constant 13 : index
    %c0_46 = arith.constant 0 : index
    %c0_47 = arith.constant 0 : index
    %c0_48 = arith.constant 0 : index
    %61 = vector.load %arg4[%c13, %c0_46, %c0_47, %c0_48] : memref<16x2x8x128xbf16, #tpu.memory_space<vmem>>, vector<1x1x8x128xbf16>
    %62 = vector.shape_cast %61 : vector<1x1x8x128xbf16> to vector<8x128xbf16>
    %63 = vector.shape_cast %60 : vector<8x128xbf16> to vector<1x1x8x128xbf16>
    tpu.vector_store %arg4[%c13, %c0_46, %c0_47, %c0_48], %63 {strides = array<i32>} : memref<16x2x8x128xbf16, #tpu.memory_space<vmem>>, vector<1x1x8x128xbf16>,
    %64 = vector.extract_strided_slice %7 {offsets = [112, 0], sizes = [8, 128], strides = [1, 1]} : vector<128x128xbf16> to vector<8x128xbf16>
    %c14 = arith.constant 14 : index
    %c0_49 = arith.constant 0 : index
    %c0_50 = arith.constant 0 : index
    %c0_51 = arith.constant 0 : index
    %65 = vector.load %arg4[%c14, %c0_49, %c0_50, %c0_51] : memref<16x2x8x128xbf16, #tpu.memory_space<vmem>>, vector<1x1x8x128xbf16>
    %66 = vector.shape_cast %65 : vector<1x1x8x128xbf16> to vector<8x128xbf16>
    %67 = vector.shape_cast %64 : vector<8x128xbf16> to vector<1x1x8x128xbf16>
    tpu.vector_store %arg4[%c14, %c0_49, %c0_50, %c0_51], %67 {strides = array<i32>} : memref<16x2x8x128xbf16, #tpu.memory_space<vmem>>, vector<1x1x8x128xbf16>,
    %68 = vector.extract_strided_slice %7 {offsets = [120, 0], sizes = [8, 128], strides = [1, 1]} : vector<128x128xbf16> to vector<8x128xbf16>
    %c15 = arith.constant 15 : index
    %c0_52 = arith.constant 0 : index
    %c0_53 = arith.constant 0 : index
    %c0_54 = arith.constant 0 : index
    %69 = vector.load %arg4[%c15, %c0_52, %c0_53, %c0_54] : memref<16x2x8x128xbf16, #tpu.memory_space<vmem>>, vector<1x1x8x128xbf16>
    %70 = vector.shape_cast %69 : vector<1x1x8x128xbf16> to vector<8x128xbf16>
    %71 = vector.shape_cast %68 : vector<8x128xbf16> to vector<1x1x8x128xbf16>
    tpu.vector_store %arg4[%c15, %c0_52, %c0_53, %c0_54], %71 {strides = array<i32>} : memref<16x2x8x128xbf16, #tpu.memory_space<vmem>>, vector<1x1x8x128xbf16>,
    %c1_55 = arith.constant 1 : index
    %c0_56 = arith.constant 0 : index
    %c0_57 = arith.constant 0 : index
    %72 = vector.load %arg2[%c1_55, %c0_56, %c0_57] : memref<2x128x128xbf16, #tpu.memory_space<vmem>>, vector<1x128x128xbf16>
    %73 = vector.shape_cast %72 : vector<1x128x128xbf16> to vector<128x128xbf16>
    %cst_58 = arith.constant dense<0.000000e+00> : vector<128x128xf32>
    %74 = tpu.matmul %0, %73, %cst_58 {dimension_numbers = #tpu.dot_dimension_numbers<[1], [0], [0], [1], [0, 0, 1, 1], [], []>} : vector<128x128xbf16>, vector<128x128xbf16>, vector<128x128xf32> -> vector<128x128xf32>
    %75 = vector.broadcast %1 : vector<1x128xf32> to vector<128x128xf32>
    %76 = arith.addf %74, %75 : vector<128x128xf32>
    %77 = arith.truncf %76 : vector<128x128xf32> to vector<128x128xbf16>
    %78 = vector.extract_strided_slice %77 {offsets = [0, 0], sizes = [8, 128], strides = [1, 1]} : vector<128x128xbf16> to vector<8x128xbf16>
    %c0_59 = arith.constant 0 : index
    %c1_60 = arith.constant 1 : index
    %c0_61 = arith.constant 0 : index
    %c0_62 = arith.constant 0 : index
    %79 = vector.load %arg4[%c0_59, %c1_60, %c0_61, %c0_62] : memref<16x2x8x128xbf16, #tpu.memory_space<vmem>>, vector<1x1x8x128xbf16>
    %80 = vector.shape_cast %79 : vector<1x1x8x128xbf16> to vector<8x128xbf16>
    %81 = vector.shape_cast %78 : vector<8x128xbf16> to vector<1x1x8x128xbf16>
    tpu.vector_store %arg4[%c0_59, %c1_60, %c0_61, %c0_62], %81 {strides = array<i32>} : memref<16x2x8x128xbf16, #tpu.memory_space<vmem>>, vector<1x1x8x128xbf16>,
    %82 = vector.extract_strided_slice %77 {offsets = [8, 0], sizes = [8, 128], strides = [1, 1]} : vector<128x128xbf16> to vector<8x128xbf16>
    %c1_63 = arith.constant 1 : index
    %c1_64 = arith.constant 1 : index
    %c0_65 = arith.constant 0 : index
    %c0_66 = arith.constant 0 : index
    %83 = vector.load %arg4[%c1_63, %c1_64, %c0_65, %c0_66] : memref<16x2x8x128xbf16, #tpu.memory_space<vmem>>, vector<1x1x8x128xbf16>
    %84 = vector.shape_cast %83 : vector<1x1x8x128xbf16> to vector<8x128xbf16>
    %85 = vector.shape_cast %82 : vector<8x128xbf16> to vector<1x1x8x128xbf16>
    tpu.vector_store %arg4[%c1_63, %c1_64, %c0_65, %c0_66], %85 {strides = array<i32>} : memref<16x2x8x128xbf16, #tpu.memory_space<vmem>>, vector<1x1x8x128xbf16>,
    %86 = vector.extract_strided_slice %77 {offsets = [16, 0], sizes = [8, 128], strides = [1, 1]} : vector<128x128xbf16> to vector<8x128xbf16>
    %c2_67 = arith.constant 2 : index
    %c1_68 = arith.constant 1 : index
    %c0_69 = arith.constant 0 : index
    %c0_70 = arith.constant 0 : index
    %87 = vector.load %arg4[%c2_67, %c1_68, %c0_69, %c0_70] : memref<16x2x8x128xbf16, #tpu.memory_space<vmem>>, vector<1x1x8x128xbf16>
    %88 = vector.shape_cast %87 : vector<1x1x8x128xbf16> to vector<8x128xbf16>
    %89 = vector.shape_cast %86 : vector<8x128xbf16> to vector<1x1x8x128xbf16>
    tpu.vector_store %arg4[%c2_67, %c1_68, %c0_69, %c0_70], %89 {strides = array<i32>} : memref<16x2x8x128xbf16, #tpu.memory_space<vmem>>, vector<1x1x8x128xbf16>,
    %90 = vector.extract_strided_slice %77 {offsets = [24, 0], sizes = [8, 128], strides = [1, 1]} : vector<128x128xbf16> to vector<8x128xbf16>
    %c3_71 = arith.constant 3 : index
    %c1_72 = arith.constant 1 : index
    %c0_73 = arith.constant 0 : index
    %c0_74 = arith.constant 0 : index
    %91 = vector.load %arg4[%c3_71, %c1_72, %c0_73, %c0_74] : memref<16x2x8x128xbf16, #tpu.memory_space<vmem>>, vector<1x1x8x128xbf16>
    %92 = vector.shape_cast %91 : vector<1x1x8x128xbf16> to vector<8x128xbf16>
    %93 = vector.shape_cast %90 : vector<8x128xbf16> to vector<1x1x8x128xbf16>
    tpu.vector_store %arg4[%c3_71, %c1_72, %c0_73, %c0_74], %93 {strides = array<i32>} : memref<16x2x8x128xbf16, #tpu.memory_space<vmem>>, vector<1x1x8x128xbf16>,
    %94 = vector.extract_strided_slice %77 {offsets = [32, 0], sizes = [8, 128], strides = [1, 1]} : vector<128x128xbf16> to vector<8x128xbf16>
    %c4_75 = arith.constant 4 : index
    %c1_76 = arith.constant 1 : index
    %c0_77 = arith.constant 0 : index
    %c0_78 = arith.constant 0 : index
    %95 = vector.load %arg4[%c4_75, %c1_76, %c0_77, %c0_78] : memref<16x2x8x128xbf16, #tpu.memory_space<vmem>>, vector<1x1x8x128xbf16>
    %96 = vector.shape_cast %95 : vector<1x1x8x128xbf16> to vector<8x128xbf16>
    %97 = vector.shape_cast %94 : vector<8x128xbf16> to vector<1x1x8x128xbf16>
    tpu.vector_store %arg4[%c4_75, %c1_76, %c0_77, %c0_78], %97 {strides = array<i32>} : memref<16x2x8x128xbf16, #tpu.memory_space<vmem>>, vector<1x1x8x128xbf16>,
    %98 = vector.extract_strided_slice %77 {offsets = [40, 0], sizes = [8, 128], strides = [1, 1]} : vector<128x128xbf16> to vector<8x128xbf16>
    %c5_79 = arith.constant 5 : index
    %c1_80 = arith.constant 1 : index
    %c0_81 = arith.constant 0 : index
    %c0_82 = arith.constant 0 : index
    %99 = vector.load %arg4[%c5_79, %c1_80, %c0_81, %c0_82] : memref<16x2x8x128xbf16, #tpu.memory_space<vmem>>, vector<1x1x8x128xbf16>
    %100 = vector.shape_cast %99 : vector<1x1x8x128xbf16> to vector<8x128xbf16>
    %101 = vector.shape_cast %98 : vector<8x128xbf16> to vector<1x1x8x128xbf16>
    tpu.vector_store %arg4[%c5_79, %c1_80, %c0_81, %c0_82], %101 {strides = array<i32>} : memref<16x2x8x128xbf16, #tpu.memory_space<vmem>>, vector<1x1x8x128xbf16>,
    %102 = vector.extract_strided_slice %77 {offsets = [48, 0], sizes = [8, 128], strides = [1, 1]} : vector<128x128xbf16> to vector<8x128xbf16>
    %c6_83 = arith.constant 6 : index
    %c1_84 = arith.constant 1 : index
    %c0_85 = arith.constant 0 : index
    %c0_86 = arith.constant 0 : index
    %103 = vector.load %arg4[%c6_83, %c1_84, %c0_85, %c0_86] : memref<16x2x8x128xbf16, #tpu.memory_space<vmem>>, vector<1x1x8x128xbf16>
    %104 = vector.shape_cast %103 : vector<1x1x8x128xbf16> to vector<8x128xbf16>
    %105 = vector.shape_cast %102 : vector<8x128xbf16> to vector<1x1x8x128xbf16>
    tpu.vector_store %arg4[%c6_83, %c1_84, %c0_85, %c0_86], %105 {strides = array<i32>} : memref<16x2x8x128xbf16, #tpu.memory_space<vmem>>, vector<1x1x8x128xbf16>,
    %106 = vector.extract_strided_slice %77 {offsets = [56, 0], sizes = [8, 128], strides = [1, 1]} : vector<128x128xbf16> to vector<8x128xbf16>
    %c7_87 = arith.constant 7 : index
    %c1_88 = arith.constant 1 : index
    %c0_89 = arith.constant 0 : index
    %c0_90 = arith.constant 0 : index
    %107 = vector.load %arg4[%c7_87, %c1_88, %c0_89, %c0_90] : memref<16x2x8x128xbf16, #tpu.memory_space<vmem>>, vector<1x1x8x128xbf16>
    %108 = vector.shape_cast %107 : vector<1x1x8x128xbf16> to vector<8x128xbf16>
    %109 = vector.shape_cast %106 : vector<8x128xbf16> to vector<1x1x8x128xbf16>
    tpu.vector_store %arg4[%c7_87, %c1_88, %c0_89, %c0_90], %109 {strides = array<i32>} : memref<16x2x8x128xbf16, #tpu.memory_space<vmem>>, vector<1x1x8x128xbf16>,
    %110 = vector.extract_strided_slice %77 {offsets = [64, 0], sizes = [8, 128], strides = [1, 1]} : vector<128x128xbf16> to vector<8x128xbf16>
    %c8_91 = arith.constant 8 : index
    %c1_92 = arith.constant 1 : index
    %c0_93 = arith.constant 0 : index
    %c0_94 = arith.constant 0 : index
    %111 = vector.load %arg4[%c8_91, %c1_92, %c0_93, %c0_94] : memref<16x2x8x128xbf16, #tpu.memory_space<vmem>>, vector<1x1x8x128xbf16>
    %112 = vector.shape_cast %111 : vector<1x1x8x128xbf16> to vector<8x128xbf16>
    %113 = vector.shape_cast %110 : vector<8x128xbf16> to vector<1x1x8x128xbf16>
    tpu.vector_store %arg4[%c8_91, %c1_92, %c0_93, %c0_94], %113 {strides = array<i32>} : memref<16x2x8x128xbf16, #tpu.memory_space<vmem>>, vector<1x1x8x128xbf16>,
    %114 = vector.extract_strided_slice %77 {offsets = [72, 0], sizes = [8, 128], strides = [1, 1]} : vector<128x128xbf16> to vector<8x128xbf16>
    %c9_95 = arith.constant 9 : index
    %c1_96 = arith.constant 1 : index
    %c0_97 = arith.constant 0 : index
    %c0_98 = arith.constant 0 : index
    %115 = vector.load %arg4[%c9_95, %c1_96, %c0_97, %c0_98] : memref<16x2x8x128xbf16, #tpu.memory_space<vmem>>, vector<1x1x8x128xbf16>
    %116 = vector.shape_cast %115 : vector<1x1x8x128xbf16> to vector<8x128xbf16>
    %117 = vector.shape_cast %114 : vector<8x128xbf16> to vector<1x1x8x128xbf16>
    tpu.vector_store %arg4[%c9_95, %c1_96, %c0_97, %c0_98], %117 {strides = array<i32>} : memref<16x2x8x128xbf16, #tpu.memory_space<vmem>>, vector<1x1x8x128xbf16>,
    %118 = vector.extract_strided_slice %77 {offsets = [80, 0], sizes = [8, 128], strides = [1, 1]} : vector<128x128xbf16> to vector<8x128xbf16>
    %c10_99 = arith.constant 10 : index
    %c1_100 = arith.constant 1 : index
    %c0_101 = arith.constant 0 : index
    %c0_102 = arith.constant 0 : index
    %119 = vector.load %arg4[%c10_99, %c1_100, %c0_101, %c0_102] : memref<16x2x8x128xbf16, #tpu.memory_space<vmem>>, vector<1x1x8x128xbf16>
    %120 = vector.shape_cast %119 : vector<1x1x8x128xbf16> to vector<8x128xbf16>
    %121 = vector.shape_cast %118 : vector<8x128xbf16> to vector<1x1x8x128xbf16>
    tpu.vector_store %arg4[%c10_99, %c1_100, %c0_101, %c0_102], %121 {strides = array<i32>} : memref<16x2x8x128xbf16, #tpu.memory_space<vmem>>, vector<1x1x8x128xbf16>,
    %122 = vector.extract_strided_slice %77 {offsets = [88, 0], sizes = [8, 128], strides = [1, 1]} : vector<128x128xbf16> to vector<8x128xbf16>
    %c11_103 = arith.constant 11 : index
    %c1_104 = arith.constant 1 : index
    %c0_105 = arith.constant 0 : index
    %c0_106 = arith.constant 0 : index
    %123 = vector.load %arg4[%c11_103, %c1_104, %c0_105, %c0_106] : memref<16x2x8x128xbf16, #tpu.memory_space<vmem>>, vector<1x1x8x128xbf16>
    %124 = vector.shape_cast %123 : vector<1x1x8x128xbf16> to vector<8x128xbf16>
    %125 = vector.shape_cast %122 : vector<8x128xbf16> to vector<1x1x8x128xbf16>
    tpu.vector_store %arg4[%c11_103, %c1_104, %c0_105, %c0_106], %125 {strides = array<i32>} : memref<16x2x8x128xbf16, #tpu.memory_space<vmem>>, vector<1x1x8x128xbf16>,
    %126 = vector.extract_strided_slice %77 {offsets = [96, 0], sizes = [8, 128], strides = [1, 1]} : vector<128x128xbf16> to vector<8x128xbf16>
    %c12_107 = arith.constant 12 : index
    %c1_108 = arith.constant 1 : index
    %c0_109 = arith.constant 0 : index
    %c0_110 = arith.constant 0 : index
    %127 = vector.load %arg4[%c12_107, %c1_108, %c0_109, %c0_110] : memref<16x2x8x128xbf16, #tpu.memory_space<vmem>>, vector<1x1x8x128xbf16>
    %128 = vector.shape_cast %127 : vector<1x1x8x128xbf16> to vector<8x128xbf16>
    %129 = vector.shape_cast %126 : vector<8x128xbf16> to vector<1x1x8x128xbf16>
    tpu.vector_store %arg4[%c12_107, %c1_108, %c0_109, %c0_110], %129 {strides = array<i32>} : memref<16x2x8x128xbf16, #tpu.memory_space<vmem>>, vector<1x1x8x128xbf16>,
    %130 = vector.extract_strided_slice %77 {offsets = [104, 0], sizes = [8, 128], strides = [1, 1]} : vector<128x128xbf16> to vector<8x128xbf16>
    %c13_111 = arith.constant 13 : index
    %c1_112 = arith.constant 1 : index
    %c0_113 = arith.constant 0 : index
    %c0_114 = arith.constant 0 : index
    %131 = vector.load %arg4[%c13_111, %c1_112, %c0_113, %c0_114] : memref<16x2x8x128xbf16, #tpu.memory_space<vmem>>, vector<1x1x8x128xbf16>
    %132 = vector.shape_cast %131 : vector<1x1x8x128xbf16> to vector<8x128xbf16>
    %133 = vector.shape_cast %130 : vector<8x128xbf16> to vector<1x1x8x128xbf16>
    tpu.vector_store %arg4[%c13_111, %c1_112, %c0_113, %c0_114], %133 {strides = array<i32>} : memref<16x2x8x128xbf16, #tpu.memory_space<vmem>>, vector<1x1x8x128xbf16>,
    %134 = vector.extract_strided_slice %77 {offsets = [112, 0], sizes = [8, 128], strides = [1, 1]} : vector<128x128xbf16> to vector<8x128xbf16>
    %c14_115 = arith.constant 14 : index
    %c1_116 = arith.constant 1 : index
    %c0_117 = arith.constant 0 : index
    %c0_118 = arith.constant 0 : index
    %135 = vector.load %arg4[%c14_115, %c1_116, %c0_117, %c0_118] : memref<16x2x8x128xbf16, #tpu.memory_space<vmem>>, vector<1x1x8x128xbf16>
    %136 = vector.shape_cast %135 : vector<1x1x8x128xbf16> to vector<8x128xbf16>
    %137 = vector.shape_cast %134 : vector<8x128xbf16> to vector<1x1x8x128xbf16>
    tpu.vector_store %arg4[%c14_115, %c1_116, %c0_117, %c0_118], %137 {strides = array<i32>} : memref<16x2x8x128xbf16, #tpu.memory_space<vmem>>, vector<1x1x8x128xbf16>,
    %138 = vector.extract_strided_slice %77 {offsets = [120, 0], sizes = [8, 128], strides = [1, 1]} : vector<128x128xbf16> to vector<8x128xbf16>
    %c15_119 = arith.constant 15 : index
    %c1_120 = arith.constant 1 : index
    %c0_121 = arith.constant 0 : index
    %c0_122 = arith.constant 0 : index
    %139 = vector.load %arg4[%c15_119, %c1_120, %c0_121, %c0_122] : memref<16x2x8x128xbf16, #tpu.memory_space<vmem>>, vector<1x1x8x128xbf16>
    %140 = vector.shape_cast %139 : vector<1x1x8x128xbf16> to vector<8x128xbf16>
    %141 = vector.shape_cast %138 : vector<8x128xbf16> to vector<1x1x8x128xbf16>
    tpu.vector_store %arg4[%c15_119, %c1_120, %c0_121, %c0_122], %141 {strides = array<i32>} : memref<16x2x8x128xbf16, #tpu.memory_space<vmem>>, vector<1x1x8x128xbf16>,
    return
  }
  func.func @transform_0(%arg0: i32) -> (i32, i32) {
    %c0_i32 = arith.constant 0 : i32
    %c0_i32_0 = arith.constant 0 : i32
    return %arg0, %c0_i32 : i32, i32
  }
  func.func @transform_1(%arg0: i32) -> (i32, i32, i32) {
    %c0_i32 = arith.constant 0 : i32
    %c0_i32_0 = arith.constant 0 : i32
    %c0_i32_1 = arith.constant 0 : i32
    %c0_i32_2 = arith.constant 0 : i32
    return %c0_i32, %c0_i32_0, %c0_i32_1 : i32, i32, i32
  }
  func.func @transform_2(%arg0: i32) -> (i32, i32) {
    %c0_i32 = arith.constant 0 : i32
    %c0_i32_0 = arith.constant 0 : i32
    %c0_i32_1 = arith.constant 0 : i32
    return %c0_i32, %c0_i32_0 : i32, i32
  }
  func.func @transform_3(%arg0: i32) -> (i32, i32, i32, i32) {
    %c0_i32 = arith.constant 0 : i32
    %c0_i32_0 = arith.constant 0 : i32
    %c0_i32_1 = arith.constant 0 : i32
    %c0_i32_2 = arith.constant 0 : i32
    return %arg0, %c0_i32, %c0_i32_0, %c0_i32_1 : i32, i32, i32, i32
  }
}

module attributes {stable_mosaic.version = 11 : i64} {
  func.func @kernel(%arg0: i32, %arg1: i32, %arg2: memref<1x324x64xbf16, #tpu.memory_space<vmem>>, %arg3: memref<1x324x64xbf16, #tpu.memory_space<vmem>>, %arg4: memref<9x64x64xbf16, #tpu.memory_space<vmem>>, %arg5: memref<9x64x64xbf16, #tpu.memory_space<vmem>>, %arg6: memref<1x16x16x64xbf16, #tpu.memory_space<vmem>>, %arg7: memref<1x2x64xf32, #tpu.memory_space<vmem>>) attributes {dimension_semantics = [#tpu.dimension_semantics<parallel>, #tpu.dimension_semantics<parallel>], iteration_bounds = array<i64: 1, 2>, scalar_prefetch = 0 : i64, scratch_operands = 0 : i64, tpu.core_type = #tpu.core_type<tc>, window_params = [{transform_indices = @transform_0, window_bounds = array<i64: 1, 324, 64>}, {transform_indices = @transform_1, window_bounds = array<i64: 1, 324, 64>}, {transform_indices = @transform_2, window_bounds = array<i64: 9, 64, 64>}, {transform_indices = @transform_3, window_bounds = array<i64: 9, 64, 64>}, {transform_indices = @transform_4, window_bounds = array<i64: 1, 16, 16, 64>}, {transform_indices = @transform_5, window_bounds = array<i64: 1, 2, 64>}]} {
    %cst = arith.constant 0.000000e+00 : f32
    %0 = vector.broadcast %cst : f32 to vector<288x64xf32>
    %cst_0 = arith.constant 0.000000e+00 : f32
    %1 = vector.broadcast %cst_0 : f32 to vector<288x64xf32>
    %cst_1 = arith.constant 0.000000e+00 : f32
    %2 = vector.broadcast %cst_1 : f32 to vector<288x64xf32>
    %c0 = arith.constant 0 : index
    %c0_2 = arith.constant 0 : index
    %c0_3 = arith.constant 0 : index
    %3 = vector.load %arg2[%c0, %c0_2, %c0_3] : memref<1x324x64xbf16, #tpu.memory_space<vmem>>, vector<1x288x64xbf16>
    %4 = vector.shape_cast %3 : vector<1x288x64xbf16> to vector<288x64xbf16>
    %c0_4 = arith.constant 0 : index
    %c0_5 = arith.constant 0 : index
    %c0_6 = arith.constant 0 : index
    %5 = vector.load %arg4[%c0_4, %c0_5, %c0_6] : memref<9x64x64xbf16, #tpu.memory_space<vmem>>, vector<1x64x64xbf16>
    %6 = vector.shape_cast %5 : vector<1x64x64xbf16> to vector<64x64xbf16>
    %cst_7 = arith.constant dense<0.000000e+00> : vector<288x64xf32>
    %7 = tpu.matmul %4, %6, %cst_7 {dimension_numbers = #tpu.dot_dimension_numbers<[1], [0], [0], [1], [0, 0, 1, 1], [], []>} : vector<288x64xbf16>, vector<64x64xbf16>, vector<288x64xf32> -> vector<288x64xf32>
    %8 = arith.addf %0, %7 : vector<288x64xf32>
    %c1 = arith.constant 1 : index
    %c0_8 = arith.constant 0 : index
    %c0_9 = arith.constant 0 : index
    %9 = vector.load %arg4[%c1, %c0_8, %c0_9] : memref<9x64x64xbf16, #tpu.memory_space<vmem>>, vector<1x64x64xbf16>
    %10 = vector.shape_cast %9 : vector<1x64x64xbf16> to vector<64x64xbf16>
    %cst_10 = arith.constant dense<0.000000e+00> : vector<288x64xf32>
    %11 = tpu.matmul %4, %10, %cst_10 {dimension_numbers = #tpu.dot_dimension_numbers<[1], [0], [0], [1], [0, 0, 1, 1], [], []>} : vector<288x64xbf16>, vector<64x64xbf16>, vector<288x64xf32> -> vector<288x64xf32>
    %12 = arith.addf %1, %11 : vector<288x64xf32>
    %c2 = arith.constant 2 : index
    %c0_11 = arith.constant 0 : index
    %c0_12 = arith.constant 0 : index
    %13 = vector.load %arg4[%c2, %c0_11, %c0_12] : memref<9x64x64xbf16, #tpu.memory_space<vmem>>, vector<1x64x64xbf16>
    %14 = vector.shape_cast %13 : vector<1x64x64xbf16> to vector<64x64xbf16>
    %cst_13 = arith.constant dense<0.000000e+00> : vector<288x64xf32>
    %15 = tpu.matmul %4, %14, %cst_13 {dimension_numbers = #tpu.dot_dimension_numbers<[1], [0], [0], [1], [0, 0, 1, 1], [], []>} : vector<288x64xbf16>, vector<64x64xbf16>, vector<288x64xf32> -> vector<288x64xf32>
    %16 = arith.addf %2, %15 : vector<288x64xf32>
    %c0_14 = arith.constant 0 : index
    %c18 = arith.constant 18 : index
    %c0_15 = arith.constant 0 : index
    %17 = vector.load %arg2[%c0_14, %c18, %c0_15] : memref<1x324x64xbf16, #tpu.memory_space<vmem>>, vector<1x288x64xbf16>
    %18 = vector.shape_cast %17 : vector<1x288x64xbf16> to vector<288x64xbf16>
    %c3 = arith.constant 3 : index
    %c0_16 = arith.constant 0 : index
    %c0_17 = arith.constant 0 : index
    %19 = vector.load %arg4[%c3, %c0_16, %c0_17] : memref<9x64x64xbf16, #tpu.memory_space<vmem>>, vector<1x64x64xbf16>
    %20 = vector.shape_cast %19 : vector<1x64x64xbf16> to vector<64x64xbf16>
    %cst_18 = arith.constant dense<0.000000e+00> : vector<288x64xf32>
    %21 = tpu.matmul %18, %20, %cst_18 {dimension_numbers = #tpu.dot_dimension_numbers<[1], [0], [0], [1], [0, 0, 1, 1], [], []>} : vector<288x64xbf16>, vector<64x64xbf16>, vector<288x64xf32> -> vector<288x64xf32>
    %22 = arith.addf %8, %21 : vector<288x64xf32>
    %c4 = arith.constant 4 : index
    %c0_19 = arith.constant 0 : index
    %c0_20 = arith.constant 0 : index
    %23 = vector.load %arg4[%c4, %c0_19, %c0_20] : memref<9x64x64xbf16, #tpu.memory_space<vmem>>, vector<1x64x64xbf16>
    %24 = vector.shape_cast %23 : vector<1x64x64xbf16> to vector<64x64xbf16>
    %cst_21 = arith.constant dense<0.000000e+00> : vector<288x64xf32>
    %25 = tpu.matmul %18, %24, %cst_21 {dimension_numbers = #tpu.dot_dimension_numbers<[1], [0], [0], [1], [0, 0, 1, 1], [], []>} : vector<288x64xbf16>, vector<64x64xbf16>, vector<288x64xf32> -> vector<288x64xf32>
    %26 = arith.addf %12, %25 : vector<288x64xf32>
    %c5 = arith.constant 5 : index
    %c0_22 = arith.constant 0 : index
    %c0_23 = arith.constant 0 : index
    %27 = vector.load %arg4[%c5, %c0_22, %c0_23] : memref<9x64x64xbf16, #tpu.memory_space<vmem>>, vector<1x64x64xbf16>
    %28 = vector.shape_cast %27 : vector<1x64x64xbf16> to vector<64x64xbf16>
    %cst_24 = arith.constant dense<0.000000e+00> : vector<288x64xf32>
    %29 = tpu.matmul %18, %28, %cst_24 {dimension_numbers = #tpu.dot_dimension_numbers<[1], [0], [0], [1], [0, 0, 1, 1], [], []>} : vector<288x64xbf16>, vector<64x64xbf16>, vector<288x64xf32> -> vector<288x64xf32>
    %30 = arith.addf %16, %29 : vector<288x64xf32>
    %c0_25 = arith.constant 0 : index
    %c36 = arith.constant 36 : index
    %c0_26 = arith.constant 0 : index
    %31 = vector.load %arg2[%c0_25, %c36, %c0_26] : memref<1x324x64xbf16, #tpu.memory_space<vmem>>, vector<1x288x64xbf16>
    %32 = vector.shape_cast %31 : vector<1x288x64xbf16> to vector<288x64xbf16>
    %c6 = arith.constant 6 : index
    %c0_27 = arith.constant 0 : index
    %c0_28 = arith.constant 0 : index
    %33 = vector.load %arg4[%c6, %c0_27, %c0_28] : memref<9x64x64xbf16, #tpu.memory_space<vmem>>, vector<1x64x64xbf16>
    %34 = vector.shape_cast %33 : vector<1x64x64xbf16> to vector<64x64xbf16>
    %cst_29 = arith.constant dense<0.000000e+00> : vector<288x64xf32>
    %35 = tpu.matmul %32, %34, %cst_29 {dimension_numbers = #tpu.dot_dimension_numbers<[1], [0], [0], [1], [0, 0, 1, 1], [], []>} : vector<288x64xbf16>, vector<64x64xbf16>, vector<288x64xf32> -> vector<288x64xf32>
    %36 = arith.addf %22, %35 : vector<288x64xf32>
    %c7 = arith.constant 7 : index
    %c0_30 = arith.constant 0 : index
    %c0_31 = arith.constant 0 : index
    %37 = vector.load %arg4[%c7, %c0_30, %c0_31] : memref<9x64x64xbf16, #tpu.memory_space<vmem>>, vector<1x64x64xbf16>
    %38 = vector.shape_cast %37 : vector<1x64x64xbf16> to vector<64x64xbf16>
    %cst_32 = arith.constant dense<0.000000e+00> : vector<288x64xf32>
    %39 = tpu.matmul %32, %38, %cst_32 {dimension_numbers = #tpu.dot_dimension_numbers<[1], [0], [0], [1], [0, 0, 1, 1], [], []>} : vector<288x64xbf16>, vector<64x64xbf16>, vector<288x64xf32> -> vector<288x64xf32>
    %40 = arith.addf %26, %39 : vector<288x64xf32>
    %c8 = arith.constant 8 : index
    %c0_33 = arith.constant 0 : index
    %c0_34 = arith.constant 0 : index
    %41 = vector.load %arg4[%c8, %c0_33, %c0_34] : memref<9x64x64xbf16, #tpu.memory_space<vmem>>, vector<1x64x64xbf16>
    %42 = vector.shape_cast %41 : vector<1x64x64xbf16> to vector<64x64xbf16>
    %cst_35 = arith.constant dense<0.000000e+00> : vector<288x64xf32>
    %43 = tpu.matmul %32, %42, %cst_35 {dimension_numbers = #tpu.dot_dimension_numbers<[1], [0], [0], [1], [0, 0, 1, 1], [], []>} : vector<288x64xbf16>, vector<64x64xbf16>, vector<288x64xf32> -> vector<288x64xf32>
    %44 = arith.addf %30, %43 : vector<288x64xf32>
    %c0_36 = arith.constant 0 : index
    %c0_37 = arith.constant 0 : index
    %c0_38 = arith.constant 0 : index
    %45 = vector.load %arg3[%c0_36, %c0_37, %c0_38] : memref<1x324x64xbf16, #tpu.memory_space<vmem>>, vector<1x288x64xbf16>
    %46 = vector.shape_cast %45 : vector<1x288x64xbf16> to vector<288x64xbf16>
    %c0_39 = arith.constant 0 : index
    %c0_40 = arith.constant 0 : index
    %c0_41 = arith.constant 0 : index
    %47 = vector.load %arg5[%c0_39, %c0_40, %c0_41] : memref<9x64x64xbf16, #tpu.memory_space<vmem>>, vector<1x64x64xbf16>
    %48 = vector.shape_cast %47 : vector<1x64x64xbf16> to vector<64x64xbf16>
    %cst_42 = arith.constant dense<0.000000e+00> : vector<288x64xf32>
    %49 = tpu.matmul %46, %48, %cst_42 {dimension_numbers = #tpu.dot_dimension_numbers<[1], [0], [0], [1], [0, 0, 1, 1], [], []>} : vector<288x64xbf16>, vector<64x64xbf16>, vector<288x64xf32> -> vector<288x64xf32>
    %50 = arith.addf %36, %49 : vector<288x64xf32>
    %c1_43 = arith.constant 1 : index
    %c0_44 = arith.constant 0 : index
    %c0_45 = arith.constant 0 : index
    %51 = vector.load %arg5[%c1_43, %c0_44, %c0_45] : memref<9x64x64xbf16, #tpu.memory_space<vmem>>, vector<1x64x64xbf16>
    %52 = vector.shape_cast %51 : vector<1x64x64xbf16> to vector<64x64xbf16>
    %cst_46 = arith.constant dense<0.000000e+00> : vector<288x64xf32>
    %53 = tpu.matmul %46, %52, %cst_46 {dimension_numbers = #tpu.dot_dimension_numbers<[1], [0], [0], [1], [0, 0, 1, 1], [], []>} : vector<288x64xbf16>, vector<64x64xbf16>, vector<288x64xf32> -> vector<288x64xf32>
    %54 = arith.addf %40, %53 : vector<288x64xf32>
    %c2_47 = arith.constant 2 : index
    %c0_48 = arith.constant 0 : index
    %c0_49 = arith.constant 0 : index
    %55 = vector.load %arg5[%c2_47, %c0_48, %c0_49] : memref<9x64x64xbf16, #tpu.memory_space<vmem>>, vector<1x64x64xbf16>
    %56 = vector.shape_cast %55 : vector<1x64x64xbf16> to vector<64x64xbf16>
    %cst_50 = arith.constant dense<0.000000e+00> : vector<288x64xf32>
    %57 = tpu.matmul %46, %56, %cst_50 {dimension_numbers = #tpu.dot_dimension_numbers<[1], [0], [0], [1], [0, 0, 1, 1], [], []>} : vector<288x64xbf16>, vector<64x64xbf16>, vector<288x64xf32> -> vector<288x64xf32>
    %58 = arith.addf %44, %57 : vector<288x64xf32>
    %c0_51 = arith.constant 0 : index
    %c18_52 = arith.constant 18 : index
    %c0_53 = arith.constant 0 : index
    %59 = vector.load %arg3[%c0_51, %c18_52, %c0_53] : memref<1x324x64xbf16, #tpu.memory_space<vmem>>, vector<1x288x64xbf16>
    %60 = vector.shape_cast %59 : vector<1x288x64xbf16> to vector<288x64xbf16>
    %c3_54 = arith.constant 3 : index
    %c0_55 = arith.constant 0 : index
    %c0_56 = arith.constant 0 : index
    %61 = vector.load %arg5[%c3_54, %c0_55, %c0_56] : memref<9x64x64xbf16, #tpu.memory_space<vmem>>, vector<1x64x64xbf16>
    %62 = vector.shape_cast %61 : vector<1x64x64xbf16> to vector<64x64xbf16>
    %cst_57 = arith.constant dense<0.000000e+00> : vector<288x64xf32>
    %63 = tpu.matmul %60, %62, %cst_57 {dimension_numbers = #tpu.dot_dimension_numbers<[1], [0], [0], [1], [0, 0, 1, 1], [], []>} : vector<288x64xbf16>, vector<64x64xbf16>, vector<288x64xf32> -> vector<288x64xf32>
    %64 = arith.addf %50, %63 : vector<288x64xf32>
    %c4_58 = arith.constant 4 : index
    %c0_59 = arith.constant 0 : index
    %c0_60 = arith.constant 0 : index
    %65 = vector.load %arg5[%c4_58, %c0_59, %c0_60] : memref<9x64x64xbf16, #tpu.memory_space<vmem>>, vector<1x64x64xbf16>
    %66 = vector.shape_cast %65 : vector<1x64x64xbf16> to vector<64x64xbf16>
    %cst_61 = arith.constant dense<0.000000e+00> : vector<288x64xf32>
    %67 = tpu.matmul %60, %66, %cst_61 {dimension_numbers = #tpu.dot_dimension_numbers<[1], [0], [0], [1], [0, 0, 1, 1], [], []>} : vector<288x64xbf16>, vector<64x64xbf16>, vector<288x64xf32> -> vector<288x64xf32>
    %68 = arith.addf %54, %67 : vector<288x64xf32>
    %c5_62 = arith.constant 5 : index
    %c0_63 = arith.constant 0 : index
    %c0_64 = arith.constant 0 : index
    %69 = vector.load %arg5[%c5_62, %c0_63, %c0_64] : memref<9x64x64xbf16, #tpu.memory_space<vmem>>, vector<1x64x64xbf16>
    %70 = vector.shape_cast %69 : vector<1x64x64xbf16> to vector<64x64xbf16>
    %cst_65 = arith.constant dense<0.000000e+00> : vector<288x64xf32>
    %71 = tpu.matmul %60, %70, %cst_65 {dimension_numbers = #tpu.dot_dimension_numbers<[1], [0], [0], [1], [0, 0, 1, 1], [], []>} : vector<288x64xbf16>, vector<64x64xbf16>, vector<288x64xf32> -> vector<288x64xf32>
    %72 = arith.addf %58, %71 : vector<288x64xf32>
    %c0_66 = arith.constant 0 : index
    %c36_67 = arith.constant 36 : index
    %c0_68 = arith.constant 0 : index
    %73 = vector.load %arg3[%c0_66, %c36_67, %c0_68] : memref<1x324x64xbf16, #tpu.memory_space<vmem>>, vector<1x288x64xbf16>
    %74 = vector.shape_cast %73 : vector<1x288x64xbf16> to vector<288x64xbf16>
    %c6_69 = arith.constant 6 : index
    %c0_70 = arith.constant 0 : index
    %c0_71 = arith.constant 0 : index
    %75 = vector.load %arg5[%c6_69, %c0_70, %c0_71] : memref<9x64x64xbf16, #tpu.memory_space<vmem>>, vector<1x64x64xbf16>
    %76 = vector.shape_cast %75 : vector<1x64x64xbf16> to vector<64x64xbf16>
    %cst_72 = arith.constant dense<0.000000e+00> : vector<288x64xf32>
    %77 = tpu.matmul %74, %76, %cst_72 {dimension_numbers = #tpu.dot_dimension_numbers<[1], [0], [0], [1], [0, 0, 1, 1], [], []>} : vector<288x64xbf16>, vector<64x64xbf16>, vector<288x64xf32> -> vector<288x64xf32>
    %78 = arith.addf %64, %77 : vector<288x64xf32>
    %c7_73 = arith.constant 7 : index
    %c0_74 = arith.constant 0 : index
    %c0_75 = arith.constant 0 : index
    %79 = vector.load %arg5[%c7_73, %c0_74, %c0_75] : memref<9x64x64xbf16, #tpu.memory_space<vmem>>, vector<1x64x64xbf16>
    %80 = vector.shape_cast %79 : vector<1x64x64xbf16> to vector<64x64xbf16>
    %cst_76 = arith.constant dense<0.000000e+00> : vector<288x64xf32>
    %81 = tpu.matmul %74, %80, %cst_76 {dimension_numbers = #tpu.dot_dimension_numbers<[1], [0], [0], [1], [0, 0, 1, 1], [], []>} : vector<288x64xbf16>, vector<64x64xbf16>, vector<288x64xf32> -> vector<288x64xf32>
    %82 = arith.addf %68, %81 : vector<288x64xf32>
    %c8_77 = arith.constant 8 : index
    %c0_78 = arith.constant 0 : index
    %c0_79 = arith.constant 0 : index
    %83 = vector.load %arg5[%c8_77, %c0_78, %c0_79] : memref<9x64x64xbf16, #tpu.memory_space<vmem>>, vector<1x64x64xbf16>
    %84 = vector.shape_cast %83 : vector<1x64x64xbf16> to vector<64x64xbf16>
    %cst_80 = arith.constant dense<0.000000e+00> : vector<288x64xf32>
    %85 = tpu.matmul %74, %84, %cst_80 {dimension_numbers = #tpu.dot_dimension_numbers<[1], [0], [0], [1], [0, 0, 1, 1], [], []>} : vector<288x64xbf16>, vector<64x64xbf16>, vector<288x64xf32> -> vector<288x64xf32>
    %86 = arith.addf %72, %85 : vector<288x64xf32>
    %cst_81 = arith.constant 0.000000e+00 : f32
    %87 = vector.broadcast %cst_81 : f32 to vector<1x64xf32>
    %cst_82 = arith.constant 0.000000e+00 : f32
    %88 = vector.broadcast %cst_82 : f32 to vector<1x64xf32>
    %89 = vector.extract_strided_slice %78 {offsets = [0, 0], sizes = [16, 64], strides = [1, 1]} : vector<288x64xf32> to vector<16x64xf32>
    %90 = vector.extract_strided_slice %82 {offsets = [1, 0], sizes = [16, 64], strides = [1, 1]} : vector<288x64xf32> to vector<16x64xf32>
    %91 = arith.addf %89, %90 : vector<16x64xf32>
    %92 = vector.extract_strided_slice %86 {offsets = [2, 0], sizes = [16, 64], strides = [1, 1]} : vector<288x64xf32> to vector<16x64xf32>
    %93 = arith.addf %91, %92 : vector<16x64xf32>
    %94 = arith.truncf %93 : vector<16x64xf32> to vector<16x64xbf16>
    %c0_83 = arith.constant 0 : index
    %c0_84 = arith.constant 0 : index
    %c0_85 = arith.constant 0 : index
    %c0_86 = arith.constant 0 : index
    %95 = vector.load %arg6[%c0_83, %c0_84, %c0_85, %c0_86] : memref<1x16x16x64xbf16, #tpu.memory_space<vmem>>, vector<1x1x16x64xbf16>
    %96 = vector.shape_cast %95 : vector<1x1x16x64xbf16> to vector<16x64xbf16>
    %97 = vector.shape_cast %94 : vector<16x64xbf16> to vector<1x1x16x64xbf16>
    tpu.vector_store %arg6[%c0_83, %c0_84, %c0_85, %c0_86], %97 {strides = array<i32>} : memref<1x16x16x64xbf16, #tpu.memory_space<vmem>>, vector<1x1x16x64xbf16>,
    %cst_87 = arith.constant dense<0.000000e+00> : vector<64xf32>
    %98 = vector.multi_reduction <add>, %93, %cst_87 [0] : vector<16x64xf32> to vector<64xf32>
    %99 = vector.shape_cast %98 : vector<64xf32> to vector<1x64xf32>
    %100 = arith.addf %87, %99 : vector<1x64xf32>
    %101 = arith.mulf %93, %93 : vector<16x64xf32>
    %cst_88 = arith.constant dense<0.000000e+00> : vector<64xf32>
    %102 = vector.multi_reduction <add>, %101, %cst_88 [0] : vector<16x64xf32> to vector<64xf32>
    %103 = vector.shape_cast %102 : vector<64xf32> to vector<1x64xf32>
    %104 = arith.addf %88, %103 : vector<1x64xf32>
    %105 = vector.extract_strided_slice %78 {offsets = [18, 0], sizes = [16, 64], strides = [1, 1]} : vector<288x64xf32> to vector<16x64xf32>
    %106 = vector.extract_strided_slice %82 {offsets = [19, 0], sizes = [16, 64], strides = [1, 1]} : vector<288x64xf32> to vector<16x64xf32>
    %107 = arith.addf %105, %106 : vector<16x64xf32>
    %108 = vector.extract_strided_slice %86 {offsets = [20, 0], sizes = [16, 64], strides = [1, 1]} : vector<288x64xf32> to vector<16x64xf32>
    %109 = arith.addf %107, %108 : vector<16x64xf32>
    %110 = arith.truncf %109 : vector<16x64xf32> to vector<16x64xbf16>
    %c0_89 = arith.constant 0 : index
    %c1_90 = arith.constant 1 : index
    %c0_91 = arith.constant 0 : index
    %c0_92 = arith.constant 0 : index
    %111 = vector.load %arg6[%c0_89, %c1_90, %c0_91, %c0_92] : memref<1x16x16x64xbf16, #tpu.memory_space<vmem>>, vector<1x1x16x64xbf16>
    %112 = vector.shape_cast %111 : vector<1x1x16x64xbf16> to vector<16x64xbf16>
    %113 = vector.shape_cast %110 : vector<16x64xbf16> to vector<1x1x16x64xbf16>
    tpu.vector_store %arg6[%c0_89, %c1_90, %c0_91, %c0_92], %113 {strides = array<i32>} : memref<1x16x16x64xbf16, #tpu.memory_space<vmem>>, vector<1x1x16x64xbf16>,
    %cst_93 = arith.constant dense<0.000000e+00> : vector<64xf32>
    %114 = vector.multi_reduction <add>, %109, %cst_93 [0] : vector<16x64xf32> to vector<64xf32>
    %115 = vector.shape_cast %114 : vector<64xf32> to vector<1x64xf32>
    %116 = arith.addf %100, %115 : vector<1x64xf32>
    %117 = arith.mulf %109, %109 : vector<16x64xf32>
    %cst_94 = arith.constant dense<0.000000e+00> : vector<64xf32>
    %118 = vector.multi_reduction <add>, %117, %cst_94 [0] : vector<16x64xf32> to vector<64xf32>
    %119 = vector.shape_cast %118 : vector<64xf32> to vector<1x64xf32>
    %120 = arith.addf %104, %119 : vector<1x64xf32>
    %121 = vector.extract_strided_slice %78 {offsets = [36, 0], sizes = [16, 64], strides = [1, 1]} : vector<288x64xf32> to vector<16x64xf32>
    %122 = vector.extract_strided_slice %82 {offsets = [37, 0], sizes = [16, 64], strides = [1, 1]} : vector<288x64xf32> to vector<16x64xf32>
    %123 = arith.addf %121, %122 : vector<16x64xf32>
    %124 = vector.extract_strided_slice %86 {offsets = [38, 0], sizes = [16, 64], strides = [1, 1]} : vector<288x64xf32> to vector<16x64xf32>
    %125 = arith.addf %123, %124 : vector<16x64xf32>
    %126 = arith.truncf %125 : vector<16x64xf32> to vector<16x64xbf16>
    %c0_95 = arith.constant 0 : index
    %c2_96 = arith.constant 2 : index
    %c0_97 = arith.constant 0 : index
    %c0_98 = arith.constant 0 : index
    %127 = vector.load %arg6[%c0_95, %c2_96, %c0_97, %c0_98] : memref<1x16x16x64xbf16, #tpu.memory_space<vmem>>, vector<1x1x16x64xbf16>
    %128 = vector.shape_cast %127 : vector<1x1x16x64xbf16> to vector<16x64xbf16>
    %129 = vector.shape_cast %126 : vector<16x64xbf16> to vector<1x1x16x64xbf16>
    tpu.vector_store %arg6[%c0_95, %c2_96, %c0_97, %c0_98], %129 {strides = array<i32>} : memref<1x16x16x64xbf16, #tpu.memory_space<vmem>>, vector<1x1x16x64xbf16>,
    %cst_99 = arith.constant dense<0.000000e+00> : vector<64xf32>
    %130 = vector.multi_reduction <add>, %125, %cst_99 [0] : vector<16x64xf32> to vector<64xf32>
    %131 = vector.shape_cast %130 : vector<64xf32> to vector<1x64xf32>
    %132 = arith.addf %116, %131 : vector<1x64xf32>
    %133 = arith.mulf %125, %125 : vector<16x64xf32>
    %cst_100 = arith.constant dense<0.000000e+00> : vector<64xf32>
    %134 = vector.multi_reduction <add>, %133, %cst_100 [0] : vector<16x64xf32> to vector<64xf32>
    %135 = vector.shape_cast %134 : vector<64xf32> to vector<1x64xf32>
    %136 = arith.addf %120, %135 : vector<1x64xf32>
    %137 = vector.extract_strided_slice %78 {offsets = [54, 0], sizes = [16, 64], strides = [1, 1]} : vector<288x64xf32> to vector<16x64xf32>
    %138 = vector.extract_strided_slice %82 {offsets = [55, 0], sizes = [16, 64], strides = [1, 1]} : vector<288x64xf32> to vector<16x64xf32>
    %139 = arith.addf %137, %138 : vector<16x64xf32>
    %140 = vector.extract_strided_slice %86 {offsets = [56, 0], sizes = [16, 64], strides = [1, 1]} : vector<288x64xf32> to vector<16x64xf32>
    %141 = arith.addf %139, %140 : vector<16x64xf32>
    %142 = arith.truncf %141 : vector<16x64xf32> to vector<16x64xbf16>
    %c0_101 = arith.constant 0 : index
    %c3_102 = arith.constant 3 : index
    %c0_103 = arith.constant 0 : index
    %c0_104 = arith.constant 0 : index
    %143 = vector.load %arg6[%c0_101, %c3_102, %c0_103, %c0_104] : memref<1x16x16x64xbf16, #tpu.memory_space<vmem>>, vector<1x1x16x64xbf16>
    %144 = vector.shape_cast %143 : vector<1x1x16x64xbf16> to vector<16x64xbf16>
    %145 = vector.shape_cast %142 : vector<16x64xbf16> to vector<1x1x16x64xbf16>
    tpu.vector_store %arg6[%c0_101, %c3_102, %c0_103, %c0_104], %145 {strides = array<i32>} : memref<1x16x16x64xbf16, #tpu.memory_space<vmem>>, vector<1x1x16x64xbf16>,
    %cst_105 = arith.constant dense<0.000000e+00> : vector<64xf32>
    %146 = vector.multi_reduction <add>, %141, %cst_105 [0] : vector<16x64xf32> to vector<64xf32>
    %147 = vector.shape_cast %146 : vector<64xf32> to vector<1x64xf32>
    %148 = arith.addf %132, %147 : vector<1x64xf32>
    %149 = arith.mulf %141, %141 : vector<16x64xf32>
    %cst_106 = arith.constant dense<0.000000e+00> : vector<64xf32>
    %150 = vector.multi_reduction <add>, %149, %cst_106 [0] : vector<16x64xf32> to vector<64xf32>
    %151 = vector.shape_cast %150 : vector<64xf32> to vector<1x64xf32>
    %152 = arith.addf %136, %151 : vector<1x64xf32>
    %153 = vector.extract_strided_slice %78 {offsets = [72, 0], sizes = [16, 64], strides = [1, 1]} : vector<288x64xf32> to vector<16x64xf32>
    %154 = vector.extract_strided_slice %82 {offsets = [73, 0], sizes = [16, 64], strides = [1, 1]} : vector<288x64xf32> to vector<16x64xf32>
    %155 = arith.addf %153, %154 : vector<16x64xf32>
    %156 = vector.extract_strided_slice %86 {offsets = [74, 0], sizes = [16, 64], strides = [1, 1]} : vector<288x64xf32> to vector<16x64xf32>
    %157 = arith.addf %155, %156 : vector<16x64xf32>
    %158 = arith.truncf %157 : vector<16x64xf32> to vector<16x64xbf16>
    %c0_107 = arith.constant 0 : index
    %c4_108 = arith.constant 4 : index
    %c0_109 = arith.constant 0 : index
    %c0_110 = arith.constant 0 : index
    %159 = vector.load %arg6[%c0_107, %c4_108, %c0_109, %c0_110] : memref<1x16x16x64xbf16, #tpu.memory_space<vmem>>, vector<1x1x16x64xbf16>
    %160 = vector.shape_cast %159 : vector<1x1x16x64xbf16> to vector<16x64xbf16>
    %161 = vector.shape_cast %158 : vector<16x64xbf16> to vector<1x1x16x64xbf16>
    tpu.vector_store %arg6[%c0_107, %c4_108, %c0_109, %c0_110], %161 {strides = array<i32>} : memref<1x16x16x64xbf16, #tpu.memory_space<vmem>>, vector<1x1x16x64xbf16>,
    %cst_111 = arith.constant dense<0.000000e+00> : vector<64xf32>
    %162 = vector.multi_reduction <add>, %157, %cst_111 [0] : vector<16x64xf32> to vector<64xf32>
    %163 = vector.shape_cast %162 : vector<64xf32> to vector<1x64xf32>
    %164 = arith.addf %148, %163 : vector<1x64xf32>
    %165 = arith.mulf %157, %157 : vector<16x64xf32>
    %cst_112 = arith.constant dense<0.000000e+00> : vector<64xf32>
    %166 = vector.multi_reduction <add>, %165, %cst_112 [0] : vector<16x64xf32> to vector<64xf32>
    %167 = vector.shape_cast %166 : vector<64xf32> to vector<1x64xf32>
    %168 = arith.addf %152, %167 : vector<1x64xf32>
    %169 = vector.extract_strided_slice %78 {offsets = [90, 0], sizes = [16, 64], strides = [1, 1]} : vector<288x64xf32> to vector<16x64xf32>
    %170 = vector.extract_strided_slice %82 {offsets = [91, 0], sizes = [16, 64], strides = [1, 1]} : vector<288x64xf32> to vector<16x64xf32>
    %171 = arith.addf %169, %170 : vector<16x64xf32>
    %172 = vector.extract_strided_slice %86 {offsets = [92, 0], sizes = [16, 64], strides = [1, 1]} : vector<288x64xf32> to vector<16x64xf32>
    %173 = arith.addf %171, %172 : vector<16x64xf32>
    %174 = arith.truncf %173 : vector<16x64xf32> to vector<16x64xbf16>
    %c0_113 = arith.constant 0 : index
    %c5_114 = arith.constant 5 : index
    %c0_115 = arith.constant 0 : index
    %c0_116 = arith.constant 0 : index
    %175 = vector.load %arg6[%c0_113, %c5_114, %c0_115, %c0_116] : memref<1x16x16x64xbf16, #tpu.memory_space<vmem>>, vector<1x1x16x64xbf16>
    %176 = vector.shape_cast %175 : vector<1x1x16x64xbf16> to vector<16x64xbf16>
    %177 = vector.shape_cast %174 : vector<16x64xbf16> to vector<1x1x16x64xbf16>
    tpu.vector_store %arg6[%c0_113, %c5_114, %c0_115, %c0_116], %177 {strides = array<i32>} : memref<1x16x16x64xbf16, #tpu.memory_space<vmem>>, vector<1x1x16x64xbf16>,
    %cst_117 = arith.constant dense<0.000000e+00> : vector<64xf32>
    %178 = vector.multi_reduction <add>, %173, %cst_117 [0] : vector<16x64xf32> to vector<64xf32>
    %179 = vector.shape_cast %178 : vector<64xf32> to vector<1x64xf32>
    %180 = arith.addf %164, %179 : vector<1x64xf32>
    %181 = arith.mulf %173, %173 : vector<16x64xf32>
    %cst_118 = arith.constant dense<0.000000e+00> : vector<64xf32>
    %182 = vector.multi_reduction <add>, %181, %cst_118 [0] : vector<16x64xf32> to vector<64xf32>
    %183 = vector.shape_cast %182 : vector<64xf32> to vector<1x64xf32>
    %184 = arith.addf %168, %183 : vector<1x64xf32>
    %185 = vector.extract_strided_slice %78 {offsets = [108, 0], sizes = [16, 64], strides = [1, 1]} : vector<288x64xf32> to vector<16x64xf32>
    %186 = vector.extract_strided_slice %82 {offsets = [109, 0], sizes = [16, 64], strides = [1, 1]} : vector<288x64xf32> to vector<16x64xf32>
    %187 = arith.addf %185, %186 : vector<16x64xf32>
    %188 = vector.extract_strided_slice %86 {offsets = [110, 0], sizes = [16, 64], strides = [1, 1]} : vector<288x64xf32> to vector<16x64xf32>
    %189 = arith.addf %187, %188 : vector<16x64xf32>
    %190 = arith.truncf %189 : vector<16x64xf32> to vector<16x64xbf16>
    %c0_119 = arith.constant 0 : index
    %c6_120 = arith.constant 6 : index
    %c0_121 = arith.constant 0 : index
    %c0_122 = arith.constant 0 : index
    %191 = vector.load %arg6[%c0_119, %c6_120, %c0_121, %c0_122] : memref<1x16x16x64xbf16, #tpu.memory_space<vmem>>, vector<1x1x16x64xbf16>
    %192 = vector.shape_cast %191 : vector<1x1x16x64xbf16> to vector<16x64xbf16>
    %193 = vector.shape_cast %190 : vector<16x64xbf16> to vector<1x1x16x64xbf16>
    tpu.vector_store %arg6[%c0_119, %c6_120, %c0_121, %c0_122], %193 {strides = array<i32>} : memref<1x16x16x64xbf16, #tpu.memory_space<vmem>>, vector<1x1x16x64xbf16>,
    %cst_123 = arith.constant dense<0.000000e+00> : vector<64xf32>
    %194 = vector.multi_reduction <add>, %189, %cst_123 [0] : vector<16x64xf32> to vector<64xf32>
    %195 = vector.shape_cast %194 : vector<64xf32> to vector<1x64xf32>
    %196 = arith.addf %180, %195 : vector<1x64xf32>
    %197 = arith.mulf %189, %189 : vector<16x64xf32>
    %cst_124 = arith.constant dense<0.000000e+00> : vector<64xf32>
    %198 = vector.multi_reduction <add>, %197, %cst_124 [0] : vector<16x64xf32> to vector<64xf32>
    %199 = vector.shape_cast %198 : vector<64xf32> to vector<1x64xf32>
    %200 = arith.addf %184, %199 : vector<1x64xf32>
    %201 = vector.extract_strided_slice %78 {offsets = [126, 0], sizes = [16, 64], strides = [1, 1]} : vector<288x64xf32> to vector<16x64xf32>
    %202 = vector.extract_strided_slice %82 {offsets = [127, 0], sizes = [16, 64], strides = [1, 1]} : vector<288x64xf32> to vector<16x64xf32>
    %203 = arith.addf %201, %202 : vector<16x64xf32>
    %204 = vector.extract_strided_slice %86 {offsets = [128, 0], sizes = [16, 64], strides = [1, 1]} : vector<288x64xf32> to vector<16x64xf32>
    %205 = arith.addf %203, %204 : vector<16x64xf32>
    %206 = arith.truncf %205 : vector<16x64xf32> to vector<16x64xbf16>
    %c0_125 = arith.constant 0 : index
    %c7_126 = arith.constant 7 : index
    %c0_127 = arith.constant 0 : index
    %c0_128 = arith.constant 0 : index
    %207 = vector.load %arg6[%c0_125, %c7_126, %c0_127, %c0_128] : memref<1x16x16x64xbf16, #tpu.memory_space<vmem>>, vector<1x1x16x64xbf16>
    %208 = vector.shape_cast %207 : vector<1x1x16x64xbf16> to vector<16x64xbf16>
    %209 = vector.shape_cast %206 : vector<16x64xbf16> to vector<1x1x16x64xbf16>
    tpu.vector_store %arg6[%c0_125, %c7_126, %c0_127, %c0_128], %209 {strides = array<i32>} : memref<1x16x16x64xbf16, #tpu.memory_space<vmem>>, vector<1x1x16x64xbf16>,
    %cst_129 = arith.constant dense<0.000000e+00> : vector<64xf32>
    %210 = vector.multi_reduction <add>, %205, %cst_129 [0] : vector<16x64xf32> to vector<64xf32>
    %211 = vector.shape_cast %210 : vector<64xf32> to vector<1x64xf32>
    %212 = arith.addf %196, %211 : vector<1x64xf32>
    %213 = arith.mulf %205, %205 : vector<16x64xf32>
    %cst_130 = arith.constant dense<0.000000e+00> : vector<64xf32>
    %214 = vector.multi_reduction <add>, %213, %cst_130 [0] : vector<16x64xf32> to vector<64xf32>
    %215 = vector.shape_cast %214 : vector<64xf32> to vector<1x64xf32>
    %216 = arith.addf %200, %215 : vector<1x64xf32>
    %217 = vector.extract_strided_slice %78 {offsets = [144, 0], sizes = [16, 64], strides = [1, 1]} : vector<288x64xf32> to vector<16x64xf32>
    %218 = vector.extract_strided_slice %82 {offsets = [145, 0], sizes = [16, 64], strides = [1, 1]} : vector<288x64xf32> to vector<16x64xf32>
    %219 = arith.addf %217, %218 : vector<16x64xf32>
    %220 = vector.extract_strided_slice %86 {offsets = [146, 0], sizes = [16, 64], strides = [1, 1]} : vector<288x64xf32> to vector<16x64xf32>
    %221 = arith.addf %219, %220 : vector<16x64xf32>
    %222 = arith.truncf %221 : vector<16x64xf32> to vector<16x64xbf16>
    %c0_131 = arith.constant 0 : index
    %c8_132 = arith.constant 8 : index
    %c0_133 = arith.constant 0 : index
    %c0_134 = arith.constant 0 : index
    %223 = vector.load %arg6[%c0_131, %c8_132, %c0_133, %c0_134] : memref<1x16x16x64xbf16, #tpu.memory_space<vmem>>, vector<1x1x16x64xbf16>
    %224 = vector.shape_cast %223 : vector<1x1x16x64xbf16> to vector<16x64xbf16>
    %225 = vector.shape_cast %222 : vector<16x64xbf16> to vector<1x1x16x64xbf16>
    tpu.vector_store %arg6[%c0_131, %c8_132, %c0_133, %c0_134], %225 {strides = array<i32>} : memref<1x16x16x64xbf16, #tpu.memory_space<vmem>>, vector<1x1x16x64xbf16>,
    %cst_135 = arith.constant dense<0.000000e+00> : vector<64xf32>
    %226 = vector.multi_reduction <add>, %221, %cst_135 [0] : vector<16x64xf32> to vector<64xf32>
    %227 = vector.shape_cast %226 : vector<64xf32> to vector<1x64xf32>
    %228 = arith.addf %212, %227 : vector<1x64xf32>
    %229 = arith.mulf %221, %221 : vector<16x64xf32>
    %cst_136 = arith.constant dense<0.000000e+00> : vector<64xf32>
    %230 = vector.multi_reduction <add>, %229, %cst_136 [0] : vector<16x64xf32> to vector<64xf32>
    %231 = vector.shape_cast %230 : vector<64xf32> to vector<1x64xf32>
    %232 = arith.addf %216, %231 : vector<1x64xf32>
    %233 = vector.extract_strided_slice %78 {offsets = [162, 0], sizes = [16, 64], strides = [1, 1]} : vector<288x64xf32> to vector<16x64xf32>
    %234 = vector.extract_strided_slice %82 {offsets = [163, 0], sizes = [16, 64], strides = [1, 1]} : vector<288x64xf32> to vector<16x64xf32>
    %235 = arith.addf %233, %234 : vector<16x64xf32>
    %236 = vector.extract_strided_slice %86 {offsets = [164, 0], sizes = [16, 64], strides = [1, 1]} : vector<288x64xf32> to vector<16x64xf32>
    %237 = arith.addf %235, %236 : vector<16x64xf32>
    %238 = arith.truncf %237 : vector<16x64xf32> to vector<16x64xbf16>
    %c0_137 = arith.constant 0 : index
    %c9 = arith.constant 9 : index
    %c0_138 = arith.constant 0 : index
    %c0_139 = arith.constant 0 : index
    %239 = vector.load %arg6[%c0_137, %c9, %c0_138, %c0_139] : memref<1x16x16x64xbf16, #tpu.memory_space<vmem>>, vector<1x1x16x64xbf16>
    %240 = vector.shape_cast %239 : vector<1x1x16x64xbf16> to vector<16x64xbf16>
    %241 = vector.shape_cast %238 : vector<16x64xbf16> to vector<1x1x16x64xbf16>
    tpu.vector_store %arg6[%c0_137, %c9, %c0_138, %c0_139], %241 {strides = array<i32>} : memref<1x16x16x64xbf16, #tpu.memory_space<vmem>>, vector<1x1x16x64xbf16>,
    %cst_140 = arith.constant dense<0.000000e+00> : vector<64xf32>
    %242 = vector.multi_reduction <add>, %237, %cst_140 [0] : vector<16x64xf32> to vector<64xf32>
    %243 = vector.shape_cast %242 : vector<64xf32> to vector<1x64xf32>
    %244 = arith.addf %228, %243 : vector<1x64xf32>
    %245 = arith.mulf %237, %237 : vector<16x64xf32>
    %cst_141 = arith.constant dense<0.000000e+00> : vector<64xf32>
    %246 = vector.multi_reduction <add>, %245, %cst_141 [0] : vector<16x64xf32> to vector<64xf32>
    %247 = vector.shape_cast %246 : vector<64xf32> to vector<1x64xf32>
    %248 = arith.addf %232, %247 : vector<1x64xf32>
    %249 = vector.extract_strided_slice %78 {offsets = [180, 0], sizes = [16, 64], strides = [1, 1]} : vector<288x64xf32> to vector<16x64xf32>
    %250 = vector.extract_strided_slice %82 {offsets = [181, 0], sizes = [16, 64], strides = [1, 1]} : vector<288x64xf32> to vector<16x64xf32>
    %251 = arith.addf %249, %250 : vector<16x64xf32>
    %252 = vector.extract_strided_slice %86 {offsets = [182, 0], sizes = [16, 64], strides = [1, 1]} : vector<288x64xf32> to vector<16x64xf32>
    %253 = arith.addf %251, %252 : vector<16x64xf32>
    %254 = arith.truncf %253 : vector<16x64xf32> to vector<16x64xbf16>
    %c0_142 = arith.constant 0 : index
    %c10 = arith.constant 10 : index
    %c0_143 = arith.constant 0 : index
    %c0_144 = arith.constant 0 : index
    %255 = vector.load %arg6[%c0_142, %c10, %c0_143, %c0_144] : memref<1x16x16x64xbf16, #tpu.memory_space<vmem>>, vector<1x1x16x64xbf16>
    %256 = vector.shape_cast %255 : vector<1x1x16x64xbf16> to vector<16x64xbf16>
    %257 = vector.shape_cast %254 : vector<16x64xbf16> to vector<1x1x16x64xbf16>
    tpu.vector_store %arg6[%c0_142, %c10, %c0_143, %c0_144], %257 {strides = array<i32>} : memref<1x16x16x64xbf16, #tpu.memory_space<vmem>>, vector<1x1x16x64xbf16>,
    %cst_145 = arith.constant dense<0.000000e+00> : vector<64xf32>
    %258 = vector.multi_reduction <add>, %253, %cst_145 [0] : vector<16x64xf32> to vector<64xf32>
    %259 = vector.shape_cast %258 : vector<64xf32> to vector<1x64xf32>
    %260 = arith.addf %244, %259 : vector<1x64xf32>
    %261 = arith.mulf %253, %253 : vector<16x64xf32>
    %cst_146 = arith.constant dense<0.000000e+00> : vector<64xf32>
    %262 = vector.multi_reduction <add>, %261, %cst_146 [0] : vector<16x64xf32> to vector<64xf32>
    %263 = vector.shape_cast %262 : vector<64xf32> to vector<1x64xf32>
    %264 = arith.addf %248, %263 : vector<1x64xf32>
    %265 = vector.extract_strided_slice %78 {offsets = [198, 0], sizes = [16, 64], strides = [1, 1]} : vector<288x64xf32> to vector<16x64xf32>
    %266 = vector.extract_strided_slice %82 {offsets = [199, 0], sizes = [16, 64], strides = [1, 1]} : vector<288x64xf32> to vector<16x64xf32>
    %267 = arith.addf %265, %266 : vector<16x64xf32>
    %268 = vector.extract_strided_slice %86 {offsets = [200, 0], sizes = [16, 64], strides = [1, 1]} : vector<288x64xf32> to vector<16x64xf32>
    %269 = arith.addf %267, %268 : vector<16x64xf32>
    %270 = arith.truncf %269 : vector<16x64xf32> to vector<16x64xbf16>
    %c0_147 = arith.constant 0 : index
    %c11 = arith.constant 11 : index
    %c0_148 = arith.constant 0 : index
    %c0_149 = arith.constant 0 : index
    %271 = vector.load %arg6[%c0_147, %c11, %c0_148, %c0_149] : memref<1x16x16x64xbf16, #tpu.memory_space<vmem>>, vector<1x1x16x64xbf16>
    %272 = vector.shape_cast %271 : vector<1x1x16x64xbf16> to vector<16x64xbf16>
    %273 = vector.shape_cast %270 : vector<16x64xbf16> to vector<1x1x16x64xbf16>
    tpu.vector_store %arg6[%c0_147, %c11, %c0_148, %c0_149], %273 {strides = array<i32>} : memref<1x16x16x64xbf16, #tpu.memory_space<vmem>>, vector<1x1x16x64xbf16>,
    %cst_150 = arith.constant dense<0.000000e+00> : vector<64xf32>
    %274 = vector.multi_reduction <add>, %269, %cst_150 [0] : vector<16x64xf32> to vector<64xf32>
    %275 = vector.shape_cast %274 : vector<64xf32> to vector<1x64xf32>
    %276 = arith.addf %260, %275 : vector<1x64xf32>
    %277 = arith.mulf %269, %269 : vector<16x64xf32>
    %cst_151 = arith.constant dense<0.000000e+00> : vector<64xf32>
    %278 = vector.multi_reduction <add>, %277, %cst_151 [0] : vector<16x64xf32> to vector<64xf32>
    %279 = vector.shape_cast %278 : vector<64xf32> to vector<1x64xf32>
    %280 = arith.addf %264, %279 : vector<1x64xf32>
    %281 = vector.extract_strided_slice %78 {offsets = [216, 0], sizes = [16, 64], strides = [1, 1]} : vector<288x64xf32> to vector<16x64xf32>
    %282 = vector.extract_strided_slice %82 {offsets = [217, 0], sizes = [16, 64], strides = [1, 1]} : vector<288x64xf32> to vector<16x64xf32>
    %283 = arith.addf %281, %282 : vector<16x64xf32>
    %284 = vector.extract_strided_slice %86 {offsets = [218, 0], sizes = [16, 64], strides = [1, 1]} : vector<288x64xf32> to vector<16x64xf32>
    %285 = arith.addf %283, %284 : vector<16x64xf32>
    %286 = arith.truncf %285 : vector<16x64xf32> to vector<16x64xbf16>
    %c0_152 = arith.constant 0 : index
    %c12 = arith.constant 12 : index
    %c0_153 = arith.constant 0 : index
    %c0_154 = arith.constant 0 : index
    %287 = vector.load %arg6[%c0_152, %c12, %c0_153, %c0_154] : memref<1x16x16x64xbf16, #tpu.memory_space<vmem>>, vector<1x1x16x64xbf16>
    %288 = vector.shape_cast %287 : vector<1x1x16x64xbf16> to vector<16x64xbf16>
    %289 = vector.shape_cast %286 : vector<16x64xbf16> to vector<1x1x16x64xbf16>
    tpu.vector_store %arg6[%c0_152, %c12, %c0_153, %c0_154], %289 {strides = array<i32>} : memref<1x16x16x64xbf16, #tpu.memory_space<vmem>>, vector<1x1x16x64xbf16>,
    %cst_155 = arith.constant dense<0.000000e+00> : vector<64xf32>
    %290 = vector.multi_reduction <add>, %285, %cst_155 [0] : vector<16x64xf32> to vector<64xf32>
    %291 = vector.shape_cast %290 : vector<64xf32> to vector<1x64xf32>
    %292 = arith.addf %276, %291 : vector<1x64xf32>
    %293 = arith.mulf %285, %285 : vector<16x64xf32>
    %cst_156 = arith.constant dense<0.000000e+00> : vector<64xf32>
    %294 = vector.multi_reduction <add>, %293, %cst_156 [0] : vector<16x64xf32> to vector<64xf32>
    %295 = vector.shape_cast %294 : vector<64xf32> to vector<1x64xf32>
    %296 = arith.addf %280, %295 : vector<1x64xf32>
    %297 = vector.extract_strided_slice %78 {offsets = [234, 0], sizes = [16, 64], strides = [1, 1]} : vector<288x64xf32> to vector<16x64xf32>
    %298 = vector.extract_strided_slice %82 {offsets = [235, 0], sizes = [16, 64], strides = [1, 1]} : vector<288x64xf32> to vector<16x64xf32>
    %299 = arith.addf %297, %298 : vector<16x64xf32>
    %300 = vector.extract_strided_slice %86 {offsets = [236, 0], sizes = [16, 64], strides = [1, 1]} : vector<288x64xf32> to vector<16x64xf32>
    %301 = arith.addf %299, %300 : vector<16x64xf32>
    %302 = arith.truncf %301 : vector<16x64xf32> to vector<16x64xbf16>
    %c0_157 = arith.constant 0 : index
    %c13 = arith.constant 13 : index
    %c0_158 = arith.constant 0 : index
    %c0_159 = arith.constant 0 : index
    %303 = vector.load %arg6[%c0_157, %c13, %c0_158, %c0_159] : memref<1x16x16x64xbf16, #tpu.memory_space<vmem>>, vector<1x1x16x64xbf16>
    %304 = vector.shape_cast %303 : vector<1x1x16x64xbf16> to vector<16x64xbf16>
    %305 = vector.shape_cast %302 : vector<16x64xbf16> to vector<1x1x16x64xbf16>
    tpu.vector_store %arg6[%c0_157, %c13, %c0_158, %c0_159], %305 {strides = array<i32>} : memref<1x16x16x64xbf16, #tpu.memory_space<vmem>>, vector<1x1x16x64xbf16>,
    %cst_160 = arith.constant dense<0.000000e+00> : vector<64xf32>
    %306 = vector.multi_reduction <add>, %301, %cst_160 [0] : vector<16x64xf32> to vector<64xf32>
    %307 = vector.shape_cast %306 : vector<64xf32> to vector<1x64xf32>
    %308 = arith.addf %292, %307 : vector<1x64xf32>
    %309 = arith.mulf %301, %301 : vector<16x64xf32>
    %cst_161 = arith.constant dense<0.000000e+00> : vector<64xf32>
    %310 = vector.multi_reduction <add>, %309, %cst_161 [0] : vector<16x64xf32> to vector<64xf32>
    %311 = vector.shape_cast %310 : vector<64xf32> to vector<1x64xf32>
    %312 = arith.addf %296, %311 : vector<1x64xf32>
    %313 = vector.extract_strided_slice %78 {offsets = [252, 0], sizes = [16, 64], strides = [1, 1]} : vector<288x64xf32> to vector<16x64xf32>
    %314 = vector.extract_strided_slice %82 {offsets = [253, 0], sizes = [16, 64], strides = [1, 1]} : vector<288x64xf32> to vector<16x64xf32>
    %315 = arith.addf %313, %314 : vector<16x64xf32>
    %316 = vector.extract_strided_slice %86 {offsets = [254, 0], sizes = [16, 64], strides = [1, 1]} : vector<288x64xf32> to vector<16x64xf32>
    %317 = arith.addf %315, %316 : vector<16x64xf32>
    %318 = arith.truncf %317 : vector<16x64xf32> to vector<16x64xbf16>
    %c0_162 = arith.constant 0 : index
    %c14 = arith.constant 14 : index
    %c0_163 = arith.constant 0 : index
    %c0_164 = arith.constant 0 : index
    %319 = vector.load %arg6[%c0_162, %c14, %c0_163, %c0_164] : memref<1x16x16x64xbf16, #tpu.memory_space<vmem>>, vector<1x1x16x64xbf16>
    %320 = vector.shape_cast %319 : vector<1x1x16x64xbf16> to vector<16x64xbf16>
    %321 = vector.shape_cast %318 : vector<16x64xbf16> to vector<1x1x16x64xbf16>
    tpu.vector_store %arg6[%c0_162, %c14, %c0_163, %c0_164], %321 {strides = array<i32>} : memref<1x16x16x64xbf16, #tpu.memory_space<vmem>>, vector<1x1x16x64xbf16>,
    %cst_165 = arith.constant dense<0.000000e+00> : vector<64xf32>
    %322 = vector.multi_reduction <add>, %317, %cst_165 [0] : vector<16x64xf32> to vector<64xf32>
    %323 = vector.shape_cast %322 : vector<64xf32> to vector<1x64xf32>
    %324 = arith.addf %308, %323 : vector<1x64xf32>
    %325 = arith.mulf %317, %317 : vector<16x64xf32>
    %cst_166 = arith.constant dense<0.000000e+00> : vector<64xf32>
    %326 = vector.multi_reduction <add>, %325, %cst_166 [0] : vector<16x64xf32> to vector<64xf32>
    %327 = vector.shape_cast %326 : vector<64xf32> to vector<1x64xf32>
    %328 = arith.addf %312, %327 : vector<1x64xf32>
    %329 = vector.extract_strided_slice %78 {offsets = [270, 0], sizes = [16, 64], strides = [1, 1]} : vector<288x64xf32> to vector<16x64xf32>
    %330 = vector.extract_strided_slice %82 {offsets = [271, 0], sizes = [16, 64], strides = [1, 1]} : vector<288x64xf32> to vector<16x64xf32>
    %331 = arith.addf %329, %330 : vector<16x64xf32>
    %332 = vector.extract_strided_slice %86 {offsets = [272, 0], sizes = [16, 64], strides = [1, 1]} : vector<288x64xf32> to vector<16x64xf32>
    %333 = arith.addf %331, %332 : vector<16x64xf32>
    %334 = arith.truncf %333 : vector<16x64xf32> to vector<16x64xbf16>
    %c0_167 = arith.constant 0 : index
    %c15 = arith.constant 15 : index
    %c0_168 = arith.constant 0 : index
    %c0_169 = arith.constant 0 : index
    %335 = vector.load %arg6[%c0_167, %c15, %c0_168, %c0_169] : memref<1x16x16x64xbf16, #tpu.memory_space<vmem>>, vector<1x1x16x64xbf16>
    %336 = vector.shape_cast %335 : vector<1x1x16x64xbf16> to vector<16x64xbf16>
    %337 = vector.shape_cast %334 : vector<16x64xbf16> to vector<1x1x16x64xbf16>
    tpu.vector_store %arg6[%c0_167, %c15, %c0_168, %c0_169], %337 {strides = array<i32>} : memref<1x16x16x64xbf16, #tpu.memory_space<vmem>>, vector<1x1x16x64xbf16>,
    %cst_170 = arith.constant dense<0.000000e+00> : vector<64xf32>
    %338 = vector.multi_reduction <add>, %333, %cst_170 [0] : vector<16x64xf32> to vector<64xf32>
    %339 = vector.shape_cast %338 : vector<64xf32> to vector<1x64xf32>
    %340 = arith.addf %324, %339 : vector<1x64xf32>
    %341 = arith.mulf %333, %333 : vector<16x64xf32>
    %cst_171 = arith.constant dense<0.000000e+00> : vector<64xf32>
    %342 = vector.multi_reduction <add>, %341, %cst_171 [0] : vector<16x64xf32> to vector<64xf32>
    %343 = vector.shape_cast %342 : vector<64xf32> to vector<1x64xf32>
    %344 = arith.addf %328, %343 : vector<1x64xf32>
    %c0_172 = arith.constant 0 : index
    %c0_173 = arith.constant 0 : index
    %c0_174 = arith.constant 0 : index
    %345 = vector.load %arg7[%c0_172, %c0_173, %c0_174] : memref<1x2x64xf32, #tpu.memory_space<vmem>>, vector<1x1x64xf32>
    %346 = vector.shape_cast %345 : vector<1x1x64xf32> to vector<1x64xf32>
    %347 = vector.shape_cast %340 : vector<1x64xf32> to vector<1x1x64xf32>
    tpu.vector_store %arg7[%c0_172, %c0_173, %c0_174], %347 {strides = array<i32>} : memref<1x2x64xf32, #tpu.memory_space<vmem>>, vector<1x1x64xf32>,
    %c0_175 = arith.constant 0 : index
    %c1_176 = arith.constant 1 : index
    %c0_177 = arith.constant 0 : index
    %348 = vector.load %arg7[%c0_175, %c1_176, %c0_177] : memref<1x2x64xf32, #tpu.memory_space<vmem>>, vector<1x1x64xf32>
    %349 = vector.shape_cast %348 : vector<1x1x64xf32> to vector<1x64xf32>
    %350 = vector.shape_cast %344 : vector<1x64xf32> to vector<1x1x64xf32>
    tpu.vector_store %arg7[%c0_175, %c1_176, %c0_177], %350 {strides = array<i32>} : memref<1x2x64xf32, #tpu.memory_space<vmem>>, vector<1x1x64xf32>,
    return
  }
  func.func @transform_0(%arg0: i32, %arg1: i32) -> (i32, i32, i32) {
    %c0_i32 = arith.constant 0 : i32
    %c0_i32_0 = arith.constant 0 : i32
    %c0_i32_1 = arith.constant 0 : i32
    return %arg1, %c0_i32, %c0_i32_0 : i32, i32, i32
  }
  func.func @transform_1(%arg0: i32, %arg1: i32) -> (i32, i32, i32) {
    %c0_i32 = arith.constant 0 : i32
    %c0_i32_0 = arith.constant 0 : i32
    %c0_i32_1 = arith.constant 0 : i32
    return %arg1, %c0_i32, %c0_i32_0 : i32, i32, i32
  }
  func.func @transform_2(%arg0: i32, %arg1: i32) -> (i32, i32, i32) {
    %c0_i32 = arith.constant 0 : i32
    %c0_i32_0 = arith.constant 0 : i32
    %c0_i32_1 = arith.constant 0 : i32
    return %c0_i32, %c0_i32_0, %arg0 : i32, i32, i32
  }
  func.func @transform_3(%arg0: i32, %arg1: i32) -> (i32, i32, i32) {
    %c0_i32 = arith.constant 0 : i32
    %c0_i32_0 = arith.constant 0 : i32
    %c0_i32_1 = arith.constant 0 : i32
    return %c0_i32, %c0_i32_0, %arg0 : i32, i32, i32
  }
  func.func @transform_4(%arg0: i32, %arg1: i32) -> (i32, i32, i32, i32) {
    %c0_i32 = arith.constant 0 : i32
    %c0_i32_0 = arith.constant 0 : i32
    %c0_i32_1 = arith.constant 0 : i32
    return %arg1, %c0_i32, %c0_i32_0, %arg0 : i32, i32, i32, i32
  }
  func.func @transform_5(%arg0: i32, %arg1: i32) -> (i32, i32, i32) {
    %c0_i32 = arith.constant 0 : i32
    %c0_i32_0 = arith.constant 0 : i32
    return %arg1, %c0_i32, %arg0 : i32, i32, i32
  }
}

module attributes {stable_mosaic.version = 11 : i64} {
  func.func @_avg_matmul_bias_kernel(%arg0: i32, %arg1: memref<512x64xbf16, #tpu.memory_space<vmem>>, %arg2: memref<512x64xbf16, #tpu.memory_space<vmem>>, %arg3: memref<64x128xbf16, #tpu.memory_space<vmem>>, %arg4: memref<1x128xf32, #tpu.memory_space<vmem>>, %arg5: memref<512x128xf32, #tpu.memory_space<vmem>>) attributes {dimension_semantics = [#tpu.dimension_semantics<parallel>], iteration_bounds = array<i64: 1>, scalar_prefetch = 0 : i64, scratch_operands = 0 : i64, tpu.core_type = #tpu.core_type<tc>, window_params = [{transform_indices = @transform_0, window_bounds = array<i64: 512, 64>}, {transform_indices = @transform_1, window_bounds = array<i64: 512, 64>}, {pipeline_mode = #tpu.pipeline_mode<synchronous>, transform_indices = @transform_2, window_bounds = array<i64: 64, 128>}, {pipeline_mode = #tpu.pipeline_mode<synchronous>, transform_indices = @transform_3, window_bounds = array<i64: 1, 128>}, {transform_indices = @transform_4, window_bounds = array<i64: 512, 128>}]} {
    %c0 = arith.constant 0 : index
    %c0_0 = arith.constant 0 : index
    %0 = vector.load %arg1[%c0, %c0_0] : memref<512x64xbf16, #tpu.memory_space<vmem>>, vector<512x64xbf16>
    %1 = arith.extf %0 : vector<512x64xbf16> to vector<512x64xf32>
    %c0_1 = arith.constant 0 : index
    %c0_2 = arith.constant 0 : index
    %2 = vector.load %arg2[%c0_1, %c0_2] : memref<512x64xbf16, #tpu.memory_space<vmem>>, vector<512x64xbf16>
    %3 = arith.extf %2 : vector<512x64xbf16> to vector<512x64xf32>
    %4 = arith.addf %1, %3 : vector<512x64xf32>
    %cst = arith.constant 5.000000e-01 : f32
    %5 = vector.broadcast %cst : f32 to vector<512x64xf32>
    %6 = arith.mulf %4, %5 : vector<512x64xf32>
    %7 = arith.truncf %6 : vector<512x64xf32> to vector<512x64xbf16>
    %c0_3 = arith.constant 0 : index
    %c0_4 = arith.constant 0 : index
    %8 = vector.load %arg3[%c0_3, %c0_4] : memref<64x128xbf16, #tpu.memory_space<vmem>>, vector<64x128xbf16>
    %cst_5 = arith.constant dense<0.000000e+00> : vector<512x128xf32>
    %9 = tpu.matmul %7, %8, %cst_5 {dimension_numbers = #tpu.dot_dimension_numbers<[1], [0], [0], [1], [0, 0, 1, 1], [], []>} : vector<512x64xbf16>, vector<64x128xbf16>, vector<512x128xf32> -> vector<512x128xf32>
    %c0_6 = arith.constant 0 : index
    %c0_7 = arith.constant 0 : index
    %10 = vector.load %arg4[%c0_6, %c0_7] : memref<1x128xf32, #tpu.memory_space<vmem>>, vector<1x128xf32>
    %11 = vector.broadcast %10 : vector<1x128xf32> to vector<512x128xf32>
    %12 = arith.addf %9, %11 : vector<512x128xf32>
    %c0_8 = arith.constant 0 : index
    %c0_9 = arith.constant 0 : index
    %13 = vector.load %arg5[%c0_8, %c0_9] : memref<512x128xf32, #tpu.memory_space<vmem>>, vector<512x128xf32>
    tpu.vector_store %arg5[%c0_8, %c0_9], %12 {strides = array<i32>} : memref<512x128xf32, #tpu.memory_space<vmem>>, vector<512x128xf32>,
    return
  }
  func.func @transform_0(%arg0: i32) -> (i32, i32) {
    %c0_i32 = arith.constant 0 : i32
    %c0_i32_0 = arith.constant 0 : i32
    return %arg0, %c0_i32 : i32, i32
  }
  func.func @transform_1(%arg0: i32) -> (i32, i32) {
    %c0_i32 = arith.constant 0 : i32
    %c0_i32_0 = arith.constant 0 : i32
    return %arg0, %c0_i32 : i32, i32
  }
  func.func @transform_2(%arg0: i32) -> (i32, i32) {
    %c0_i32 = arith.constant 0 : i32
    %c0_i32_0 = arith.constant 0 : i32
    %c0_i32_1 = arith.constant 0 : i32
    return %c0_i32, %c0_i32_0 : i32, i32
  }
  func.func @transform_3(%arg0: i32) -> (i32, i32) {
    %c0_i32 = arith.constant 0 : i32
    %c0_i32_0 = arith.constant 0 : i32
    %c0_i32_1 = arith.constant 0 : i32
    return %c0_i32, %c0_i32_0 : i32, i32
  }
  func.func @transform_4(%arg0: i32) -> (i32, i32) {
    %c0_i32 = arith.constant 0 : i32
    %c0_i32_0 = arith.constant 0 : i32
    return %arg0, %c0_i32 : i32, i32
  }
}

</mosaic_0001>

<llo_original>
// kernel: tile.133
$region0: #{tile.133}
  #allocation0 [shape = 's32[1]{0}', space=sflag, size = 0x4, scoped, tag = 'scoped memory for tile.133']
  %s0 = inlined_call_operand.vmem [shape: f32[128], index: 0, kind: input, shape index: {}]
  %s1 = inlined_call_operand.vmem [shape: f32[2,128], index: 1, kind: output, shape index: {}]
  // Predicated region
  $region2: #{tile.133} parent=0 // pred_check
    _
  $region3: #{tile.133} parent=0 // pred_check_branch
    %3 = sbr.rel (0) target = $region5
  $region4: #{tile.133} parent=0 // pred_region
    _
  $region5: #{tile.133} parent=0 // pred_fallthru
    _
  %v4 = vld [vmem:[%s0] ss:$0 sm:$0xff]
  %5 = vst [vmem:[%s1] sm:$0x3] %v4

</llo_original>
